<compile_context>
chip_gen: v5e
topology: v5e:2x2
jax: 0.10.0
libtpu: 0.0.40
codegen_flags: <defaults>
</compile_context>

<pallas_src>
import jax
import jax.numpy as jnp
from jax.experimental import pallas as pl
from jax.experimental.pallas import tpu as pltpu

HIDDEN = 1024
LANE = 128
SUBLANE = 8     # f32 sublane height
TM = 256        # activation row tile for the large-batch (grid) path


def _round_up(x, m):
    return ((x + m - 1) // m) * m


def _fused_mlp_kernel(x_ref, w1_ref, b1_ref, w2_ref, b2_ref, w3_ref, b3_ref,
                      wo_ref, bo_ref, o_ref):
    """out = relu(relu(relu(x@W1+b1)@W2+b2)@W3+b3) @ Wo + bo, all in VMEM.

    Weights are (in, out) bf16; biases are (1, out) f32; accumulation is f32.
    """
    h = x_ref[...].astype(w1_ref.dtype)                          # (M, din) bf16
    h = jnp.dot(h, w1_ref[...], preferred_element_type=jnp.float32)
    h = jnp.maximum(h + b1_ref[...], 0.0).astype(w2_ref.dtype)
    h = jnp.dot(h, w2_ref[...], preferred_element_type=jnp.float32)
    h = jnp.maximum(h + b2_ref[...], 0.0).astype(w3_ref.dtype)
    h = jnp.dot(h, w3_ref[...], preferred_element_type=jnp.float32)
    h = jnp.maximum(h + b3_ref[...], 0.0).astype(wo_ref.dtype)
    out = jnp.dot(h, wo_ref[...], preferred_element_type=jnp.float32)
    o_ref[...] = (out + bo_ref[...]).astype(o_ref.dtype)


def _weight_bytes(n_pad):
    return (3 * HIDDEN * HIDDEN + HIDDEN * n_pad) * 2 + (3 * HIDDEN + n_pad) * 4


def _mlp_forward(params, x, dout):
    din = params["w1"].shape[0]
    n_pad = params["wo"].shape[1]          # dout padded to a multiple of 128
    h = x.reshape(-1, din)                 # NCHW -> (B, din), like torch .view
    m = h.shape[0]

    if m <= TM:
        # Small-batch fast path: sublane-align rows for unmasked stores.
        m_pad = _round_up(m, SUBLANE)
    else:
        # Large-batch grid path: rows padded to a multiple of the row tile.
        m_pad = _round_up(m, TM)
    if m_pad != m:
        h = jnp.pad(h, ((0, m_pad - m), (0, 0)))

    args = (h, params["w1"], params["b1"], params["w2"], params["b2"],
            params["w3"], params["b3"], params["wo"], params["bo"])
    w_bytes = _weight_bytes(n_pad)

    if m_pad <= TM:
        # Single gridless step: everything single-buffered in VMEM.
        vmem = pl.BlockSpec(memory_space=pltpu.MemorySpace.VMEM)
        vmem_limit = max(
            12 << 20,
            _round_up(w_bytes
                      + m_pad * HIDDEN * 4              # x
                      + m_pad * n_pad * 4               # padded output
                      + 4 * m_pad * HIDDEN * 4          # live activation temps
                      + (2 << 20),                      # headroom
                      1 << 20))
        out_pad = pl.pallas_call(
            _fused_mlp_kernel,
            out_shape=jax.ShapeDtypeStruct((m_pad, n_pad), jnp.float32),
            in_specs=[vmem] * 9,
            out_specs=vmem,
            compiler_params=pltpu.CompilerParams(vmem_limit_bytes=vmem_limit),
        )(*args)
    else:
        # 1-D grid over row tiles; constant index_map keeps weights resident
        # in VMEM across all grid steps (DMA'd once per core).
        def w_spec(shape):
            return pl.BlockSpec(shape, lambda i: (0, 0))

        grid = (m_pad // TM,)
        vmem_limit = _round_up(
            2 * w_bytes                                  # weights (worst case 2x)
            + 2 * TM * HIDDEN * 4 + 2 * TM * n_pad * 4   # double-buffered x / out
            + 4 * TM * HIDDEN * 4                        # live activation temps
            + (4 << 20),                                 # headroom
            1 << 20)
        out_pad = pl.pallas_call(
            _fused_mlp_kernel,
            out_shape=jax.ShapeDtypeStruct((m_pad, n_pad), jnp.float32),
            grid_spec=pltpu.PrefetchScalarGridSpec(
                num_scalar_prefetch=0,
                grid=grid,
                in_specs=[
                    pl.BlockSpec((TM, HIDDEN), lambda i: (i, 0)),
                    w_spec((HIDDEN, HIDDEN)), w_spec((1, HIDDEN)),
                    w_spec((HIDDEN, HIDDEN)), w_spec((1, HIDDEN)),
                    w_spec((HIDDEN, HIDDEN)), w_spec((1, HIDDEN)),
                    w_spec((HIDDEN, n_pad)), w_spec((1, n_pad)),
                ],
                out_specs=pl.BlockSpec((TM, n_pad), lambda i: (i, 0)),
            ),
            compiler_params=pltpu.CompilerParams(
                dimension_semantics=("parallel",),
                vmem_limit_bytes=vmem_limit,
            ),
        )(*args)

    return out_pad[:m, :dout]


mlp_forward = jax.jit(_mlp_forward, static_argnums=2)


def _torch_linear_init(key, fan_in, fan_out):
    """PyTorch-style uniform(-1/sqrt(fan_in), 1/sqrt(fan_in)) init (f32)."""
    kw, kb = jax.random.split(key)
    bound = 1.0 / jnp.sqrt(jnp.float32(fan_in))
    w = jax.random.uniform(kw, (fan_out, fan_in), jnp.float32, -bound, bound)
    b = jax.random.uniform(kb, (fan_out,), jnp.float32, -bound, bound)
    return w, b


def mlp_init(key, din_tuple, dout):
    din = 1
    for d in din_tuple:
        din *= d
    keys = jax.random.split(key, 4)
    w1, b1 = _torch_linear_init(keys[0], din, HIDDEN)
    w2, b2 = _torch_linear_init(keys[1], HIDDEN, HIDDEN)
    w3, b3 = _torch_linear_init(keys[2], HIDDEN, HIDDEN)
    wo, bo = _torch_linear_init(keys[3], HIDDEN, dout)

    # Pad the last layer to a lane-dense (multiple-of-128) output width.
    n_pad = _round_up(dout, LANE)
    wo_pad = jnp.zeros((HIDDEN, n_pad), jnp.float32).at[:, :dout].set(wo.T)
    bo_pad = jnp.zeros((1, n_pad), jnp.float32).at[0, :dout].set(bo)

    # Weights pre-transposed to (in, out) and cast to bf16 once at init;
    # biases stay f32 (bias add / accumulation happen in f32 in the kernel).
    return {
        "w1": w1.T.astype(jnp.bfloat16),
        "b1": b1.reshape(1, HIDDEN),
        "w2": w2.T.astype(jnp.bfloat16),
        "b2": b2.reshape(1, HIDDEN),
        "w3": w3.T.astype(jnp.bfloat16),
        "b3": b3.reshape(1, HIDDEN),
        "wo": wo_pad.astype(jnp.bfloat16),
        "bo": bo_pad,
    }


def mlp_reference(params, x, dout):
    """Same math in plain JAX (bf16 weights, f32 accumulation) for validation."""
    din = params["w1"].shape[0]
    h = x.reshape(-1, din).astype(jnp.bfloat16)
    for wn, bn in (("w1", "b1"), ("w2", "b2"), ("w3", "b3")):
        h = jnp.dot(h, params[wn], preferred_element_type=jnp.float32)
        h = jnp.maximum(h + params[bn], 0.0).astype(jnp.bfloat16)
    out = jnp.dot(h, params["wo"], preferred_element_type=jnp.float32)
    out = out + params["bo"]
    return out[:, :dout]


if __name__ == "__main__":
    key = jax.random.PRNGKey(0)
    k_param, k_x, k_x2 = jax.random.split(key, 3)

    din_tuple = (4, 16, 16)   # C, H, W -> din = 1024
    dout = 10
    batch = 2

    params = mlp_init(k_param, din_tuple, dout)

    # Small-batch (gridless fast path), as in the original test.
    x = jax.random.normal(k_x, (batch,) + din_tuple, jnp.float32)  # NCHW
    out = jax.block_until_ready(mlp_forward(params, x, dout))
    ref = mlp_reference(params, x, dout)
    assert out.shape == (batch, dout)
    assert jnp.allclose(out, ref, atol=1e-2, rtol=1e-2), float(
        jnp.max(jnp.abs(out - ref)))

    # Larger batch exercises the weight-resident grid path (ragged M -> padded).
    batch2 = 384
    x2 = jax.random.normal(k_x2, (batch2,) + din_tuple, jnp.float32)
    out2 = jax.block_until_ready(mlp_forward(params, x2, dout))
    ref2 = mlp_reference(params, x2, dout)
    assert out2.shape == (batch2, dout)
    assert jnp.allclose(out2, ref2, atol=1e-2, rtol=1e-2), float(
        jnp.max(jnp.abs(out2 - ref2)))

    print("KERNEL_OK")
</pallas_src>

<mosaic_0001>
module attributes {stable_mosaic.version = 11 : i64} {
  func.func @_fused_mlp_kernel(%arg0: memref<8x1024xf32, #tpu.memory_space<vmem>>, %arg1: memref<1024x1024xbf16, #tpu.memory_space<vmem>>, %arg2: memref<1x1024xf32, #tpu.memory_space<vmem>>, %arg3: memref<1024x1024xbf16, #tpu.memory_space<vmem>>, %arg4: memref<1x1024xf32, #tpu.memory_space<vmem>>, %arg5: memref<1024x1024xbf16, #tpu.memory_space<vmem>>, %arg6: memref<1x1024xf32, #tpu.memory_space<vmem>>, %arg7: memref<1024x128xbf16, #tpu.memory_space<vmem>>, %arg8: memref<1x128xf32, #tpu.memory_space<vmem>>, %arg9: memref<8x128xf32, #tpu.memory_space<vmem>>) attributes {dimension_semantics = [], scalar_prefetch = 0 : i64, scratch_operands = 0 : i64, tpu.core_type = #tpu.core_type<tc>} {
    %c0 = arith.constant 0 : index
    %c0_0 = arith.constant 0 : index
    %0 = vector.load %arg0[%c0, %c0_0] : memref<8x1024xf32, #tpu.memory_space<vmem>>, vector<8x1024xf32>
    %1 = arith.truncf %0 : vector<8x1024xf32> to vector<8x1024xbf16>
    %c0_1 = arith.constant 0 : index
    %c0_2 = arith.constant 0 : index
    %2 = vector.load %arg1[%c0_1, %c0_2] : memref<1024x1024xbf16, #tpu.memory_space<vmem>>, vector<1024x1024xbf16>
    %cst = arith.constant dense<0.000000e+00> : vector<8x1024xf32>
    %3 = tpu.matmul %1, %2, %cst {dimension_numbers = #tpu.dot_dimension_numbers<[1], [0], [0], [1], [0, 0, 1, 1], [], []>} : vector<8x1024xbf16>, vector<1024x1024xbf16>, vector<8x1024xf32> -> vector<8x1024xf32>
    %c0_3 = arith.constant 0 : index
    %c0_4 = arith.constant 0 : index
    %4 = vector.load %arg2[%c0_3, %c0_4] : memref<1x1024xf32, #tpu.memory_space<vmem>>, vector<1x1024xf32>
    %5 = vector.broadcast %4 : vector<1x1024xf32> to vector<8x1024xf32>
    %6 = arith.addf %3, %5 : vector<8x1024xf32>
    %cst_5 = arith.constant 0.000000e+00 : f32
    %7 = vector.broadcast %cst_5 : f32 to vector<8x1024xf32>
    %8 = arith.maximumf %6, %7 : vector<8x1024xf32>
    %9 = arith.truncf %8 : vector<8x1024xf32> to vector<8x1024xbf16>
    %c0_6 = arith.constant 0 : index
    %c0_7 = arith.constant 0 : index
    %10 = vector.load %arg3[%c0_6, %c0_7] : memref<1024x1024xbf16, #tpu.memory_space<vmem>>, vector<1024x1024xbf16>
    %cst_8 = arith.constant dense<0.000000e+00> : vector<8x1024xf32>
    %11 = tpu.matmul %9, %10, %cst_8 {dimension_numbers = #tpu.dot_dimension_numbers<[1], [0], [0], [1], [0, 0, 1, 1], [], []>} : vector<8x1024xbf16>, vector<1024x1024xbf16>, vector<8x1024xf32> -> vector<8x1024xf32>
    %c0_9 = arith.constant 0 : index
    %c0_10 = arith.constant 0 : index
    %12 = vector.load %arg4[%c0_9, %c0_10] : memref<1x1024xf32, #tpu.memory_space<vmem>>, vector<1x1024xf32>
    %13 = vector.broadcast %12 : vector<1x1024xf32> to vector<8x1024xf32>
    %14 = arith.addf %11, %13 : vector<8x1024xf32>
    %cst_11 = arith.constant 0.000000e+00 : f32
    %15 = vector.broadcast %cst_11 : f32 to vector<8x1024xf32>
    %16 = arith.maximumf %14, %15 : vector<8x1024xf32>
    %17 = arith.truncf %16 : vector<8x1024xf32> to vector<8x1024xbf16>
    %c0_12 = arith.constant 0 : index
    %c0_13 = arith.constant 0 : index
    %18 = vector.load %arg5[%c0_12, %c0_13] : memref<1024x1024xbf16, #tpu.memory_space<vmem>>, vector<1024x1024xbf16>
    %cst_14 = arith.constant dense<0.000000e+00> : vector<8x1024xf32>
    %19 = tpu.matmul %17, %18, %cst_14 {dimension_numbers = #tpu.dot_dimension_numbers<[1], [0], [0], [1], [0, 0, 1, 1], [], []>} : vector<8x1024xbf16>, vector<1024x1024xbf16>, vector<8x1024xf32> -> vector<8x1024xf32>
    %c0_15 = arith.constant 0 : index
    %c0_16 = arith.constant 0 : index
    %20 = vector.load %arg6[%c0_15, %c0_16] : memref<1x1024xf32, #tpu.memory_space<vmem>>, vector<1x1024xf32>
    %21 = vector.broadcast %20 : vector<1x1024xf32> to vector<8x1024xf32>
    %22 = arith.addf %19, %21 : vector<8x1024xf32>
    %cst_17 = arith.constant 0.000000e+00 : f32
    %23 = vector.broadcast %cst_17 : f32 to vector<8x1024xf32>
    %24 = arith.maximumf %22, %23 : vector<8x1024xf32>
    %25 = arith.truncf %24 : vector<8x1024xf32> to vector<8x1024xbf16>
    %c0_18 = arith.constant 0 : index
    %c0_19 = arith.constant 0 : index
    %26 = vector.load %arg7[%c0_18, %c0_19] : memref<1024x128xbf16, #tpu.memory_space<vmem>>, vector<1024x128xbf16>
    %cst_20 = arith.constant dense<0.000000e+00> : vector<8x128xf32>
    %27 = tpu.matmul %25, %26, %cst_20 {dimension_numbers = #tpu.dot_dimension_numbers<[1], [0], [0], [1], [0, 0, 1, 1], [], []>} : vector<8x1024xbf16>, vector<1024x128xbf16>, vector<8x128xf32> -> vector<8x128xf32>
    %c0_21 = arith.constant 0 : index
    %c0_22 = arith.constant 0 : index
    %28 = vector.load %arg8[%c0_21, %c0_22] : memref<1x128xf32, #tpu.memory_space<vmem>>, vector<1x128xf32>
    %29 = vector.broadcast %28 : vector<1x128xf32> to vector<8x128xf32>
    %30 = arith.addf %27, %29 : vector<8x128xf32>
    %c0_23 = arith.constant 0 : index
    %c0_24 = arith.constant 0 : index
    %31 = vector.load %arg9[%c0_23, %c0_24] : memref<8x128xf32, #tpu.memory_space<vmem>>, vector<8x128xf32>
    tpu.vector_store %arg9[%c0_23, %c0_24], %30 {strides = array<i32>} : memref<8x128xf32, #tpu.memory_space<vmem>>, vector<8x128xf32>,
    return
  }
}

</mosaic_0001>

<llo_original>
// kernel: _mlp_forward.1
$region0: #{_mlp_forward.1}
  #allocation0 [shape = 'u32[]', space=smem, size = 0x4, offset = 0x4, fixed_abs, tag = 'smem constant byte address 0x4 - core index']
  #allocation1 [shape = 'u32[72,128]{1,0:T(1,128)}', space=vmem, size = 0x9000, scoped, tag = 'internal scratch']
  %s0 = inlined_call_operand.vmem [shape: f32[8,1024], index: 0, kind: input, shape index: {}]
  %s1 = inlined_call_operand.hbm [shape: bf16[1024,1024], index: 1, kind: input, shape index: {}]
  %s2 = inlined_call_operand.hbm [shape: f32[1,1024], index: 2, kind: input, shape index: {}]
  %s3 = inlined_call_operand.hbm [shape: bf16[1024,1024], index: 3, kind: input, shape index: {}]
  %s4 = inlined_call_operand.hbm [shape: f32[1,1024], index: 4, kind: input, shape index: {}]
  %s5 = inlined_call_operand.hbm [shape: bf16[1024,1024], index: 5, kind: input, shape index: {}]
  %s6 = inlined_call_operand.hbm [shape: f32[1,1024], index: 6, kind: input, shape index: {}]
  %s7 = inlined_call_operand.hbm [shape: bf16[1024,128], index: 7, kind: input, shape index: {}]
  %s8 = inlined_call_operand.hbm [shape: f32[1,128], index: 8, kind: input, shape index: {}]
  %s9 = inlined_call_operand.vmem [shape: f32[8,128], index: 9, kind: output, shape index: {}]
  %s10 = sld [smem:[#allocation0]]
  $region78: #{_mlp_forward.1} parent=0
    _
  %s12 = ssub.s32 1, %s10
  %s13 = scalar_select 0, %s12, %s10
  $region1: #{_mlp_forward.1} parent=0
    #allocation2 [shape = 'u8[2097152]{0}', space=vmem, size = 0x200000, scoped, tag = 'input window, operand 1, single buffered']
    #allocation3 [shape = 's32[1]{0}', space=sflag, size = 0x4, scoped, tag = 'scoped memory for _mlp_forward.1']
    #allocation4 [shape = 'u8[4096]{0}', space=vmem, size = 0x1000, scoped, tag = 'input window, operand 2, single buffered']
    #allocation5 [shape = 's32[1]{0}', space=sflag, size = 0x4, scoped, tag = 'scoped memory for _mlp_forward.1']
    #allocation6 [shape = 'u8[2097152]{0}', space=vmem, size = 0x200000, scoped, tag = 'input window, operand 3, single buffered']
    #allocation7 [shape = 'u8[4096]{0}', space=vmem, size = 0x1000, scoped, tag = 'input window, operand 4, single buffered']
    #allocation8 [shape = 's32[1]{0}', space=sflag, size = 0x4, scoped, tag = 'scoped memory for _mlp_forward.1']
    #allocation9 [shape = 'u8[2097152]{0}', space=vmem, size = 0x200000, scoped, tag = 'input window, operand 5, single buffered']
    #allocation10 [shape = 'u8[4096]{0}', space=vmem, size = 0x1000, scoped, tag = 'input window, operand 6, single buffered']
    #allocation11 [shape = 's32[1]{0}', space=sflag, size = 0x4, scoped, tag = 'scoped memory for _mlp_forward.1']
    #allocation12 [shape = 'u8[262144]{0}', space=vmem, size = 0x40000, scoped, tag = 'input window, operand 7, single buffered']
    #allocation13 [shape = 'u8[512]{0}', space=vmem, size = 0x400, scoped, tag = 'input window, operand 8, single buffered']
    #allocation14 [shape = 's32[1]{0}', space=sflag, size = 0x4, scoped, tag = 'scoped memory for _mlp_forward.1']
    %14 = vsyncpa [#allocation3], 0
    %15 = vsyncpa [#allocation5], 0
    %16 = vsyncpa [#allocation8], 0
    %17 = vsyncpa [#allocation11], 0
    %18 = vsyncpa [#allocation14], 0
    // Predicated region
    $region2: #{_mlp_forward.1} parent=1 // pred_check
      _
    $region3: #{_mlp_forward.1} parent=1 // pred_check_branch
      %20 = sbr.rel (0) target = $region5
    $region4: #{_mlp_forward.1} parent=1 // pred_region
      _
    $region5: #{_mlp_forward.1} parent=1 // pred_fallthru
      _
    // Predicated region
    $region6: #{_mlp_forward.1} parent=1 // pred_check
      _
    $region7: #{_mlp_forward.1} parent=1 // pred_check_branch
      %22 = sbr.rel (0) target = $region9
    $region8: #{_mlp_forward.1} parent=1 // pred_region
      %24 = vsyncadd [#allocation3], 0
      %s25 = sshll.u32 %s1, 4
      %s26 = int_to_ptr.hbm [resolvable:$true] %s25
      %s27 = sshll.u32 [#allocation2], 4
      %s28 = int_to_ptr.vmem [resolvable:$true] %s27
      %33 = dma.hbm_to_vmem [thread:$0]  %s26, 65536, %s28, [#allocation3], 512, 512, 32
    $region9: #{_mlp_forward.1} parent=1 // pred_fallthru
      _
    // Predicated region
    $region10: #{_mlp_forward.1} parent=1 // pred_check
      _
    $region11: #{_mlp_forward.1} parent=1 // pred_check_branch
      %35 = sbr.rel (0) target = $region13
    $region12: #{_mlp_forward.1} parent=1 // pred_region
      %37 = vsyncadd [#allocation5], 0
      %s39 = sshll.u32 %s2, 4
      %s40 = int_to_ptr.hbm [resolvable:$true] %s39
      %s41 = sshll.u32 [#allocation4], 4
      %s42 = int_to_ptr.vmem [resolvable:$true] %s41
      %44 = dma.hbm_to_vmem [thread:$0]  %s40, 128, %s42, [#allocation5]
    $region13: #{_mlp_forward.1} parent=1 // pred_fallthru
      _
    // Predicated region
    $region14: #{_mlp_forward.1} parent=1 // pred_check
      _
    $region15: #{_mlp_forward.1} parent=1 // pred_check_branch
      %46 = sbr.rel (0) target = $region17
    $region16: #{_mlp_forward.1} parent=1 // pred_region
      %48 = vsyncadd [#allocation5], 0
      %s49 = sshll.u32 %s3, 4
      %s50 = int_to_ptr.hbm [resolvable:$true] %s49
      %s51 = sshll.u32 [#allocation6], 4
      %s52 = int_to_ptr.vmem [resolvable:$true] %s51
      %57 = dma.hbm_to_vmem [thread:$0]  %s50, 65536, %s52, [#allocation5], 512, 512, 32
    $region17: #{_mlp_forward.1} parent=1 // pred_fallthru
      _
    // Predicated region
    $region18: #{_mlp_forward.1} parent=1 // pred_check
      _
    $region19: #{_mlp_forward.1} parent=1 // pred_check_branch
      %59 = sbr.rel (0) target = $region21
    $region20: #{_mlp_forward.1} parent=1 // pred_region
      %61 = vsyncadd [#allocation8], 0
      %s63 = sshll.u32 %s4, 4
      %s64 = int_to_ptr.hbm [resolvable:$true] %s63
      %s65 = sshll.u32 [#allocation7], 4
      %s66 = int_to_ptr.vmem [resolvable:$true] %s65
      %68 = dma.hbm_to_vmem [thread:$0]  %s64, 128, %s66, [#allocation8]
    $region21: #{_mlp_forward.1} parent=1 // pred_fallthru
      _
    // Predicated region
    $region22: #{_mlp_forward.1} parent=1 // pred_check
      _
    $region23: #{_mlp_forward.1} parent=1 // pred_check_branch
      %70 = sbr.rel (0) target = $region25
    $region24: #{_mlp_forward.1} parent=1 // pred_region
      %72 = vsyncadd [#allocation8], 0
      %s73 = sshll.u32 %s5, 4
      %s74 = int_to_ptr.hbm [resolvable:$true] %s73
      %s75 = sshll.u32 [#allocation9], 4
      %s76 = int_to_ptr.vmem [resolvable:$true] %s75
      %81 = dma.hbm_to_vmem [thread:$0]  %s74, 65536, %s76, [#allocation8], 512, 512, 32
    $region25: #{_mlp_forward.1} parent=1 // pred_fallthru
      _
    // Predicated region
    $region26: #{_mlp_forward.1} parent=1 // pred_check
      _
    $region27: #{_mlp_forward.1} parent=1 // pred_check_branch
      %83 = sbr.rel (0) target = $region29
    $region28: #{_mlp_forward.1} parent=1 // pred_region
      %85 = vsyncadd [#allocation11], 0
      %s87 = sshll.u32 %s6, 4
      %s88 = int_to_ptr.hbm [resolvable:$true] %s87
      %s89 = sshll.u32 [#allocation10], 4
      %s90 = int_to_ptr.vmem [resolvable:$true] %s89
      %92 = dma.hbm_to_vmem [thread:$0]  %s88, 128, %s90, [#allocation11]
    $region29: #{_mlp_forward.1} parent=1 // pred_fallthru
      _
    // Predicated region
    $region30: #{_mlp_forward.1} parent=1 // pred_check
      _
    $region31: #{_mlp_forward.1} parent=1 // pred_check_branch
      %94 = sbr.rel (0) target = $region33
    $region32: #{_mlp_forward.1} parent=1 // pred_region
      %96 = vsyncadd [#allocation11], 0
      %s97 = sshll.u32 %s7, 4
      %s98 = int_to_ptr.hbm [resolvable:$true] %s97
      %s99 = sshll.u32 [#allocation12], 4
      %s100 = int_to_ptr.vmem [resolvable:$true] %s99
      %105 = dma.hbm_to_vmem [thread:$0]  %s98, 8192, %s100, [#allocation11], 64, 64, 4
    $region33: #{_mlp_forward.1} parent=1 // pred_fallthru
      _
    // Predicated region
    $region34: #{_mlp_forward.1} parent=1 // pred_check
      _
    $region35: #{_mlp_forward.1} parent=1 // pred_check_branch
      %107 = sbr.rel (0) target = $region37
    $region36: #{_mlp_forward.1} parent=1 // pred_region
      %109 = vsyncadd [#allocation14], 0
      %s111 = sshll.u32 %s8, 4
      %s112 = int_to_ptr.hbm [resolvable:$true] %s111
      %s113 = sshll.u32 [#allocation13], 4
      %s114 = int_to_ptr.vmem [resolvable:$true] %s113
      %116 = dma.hbm_to_vmem [thread:$0]  %s112, 16, %s114, [#allocation14]
    $region37: #{_mlp_forward.1} parent=1 // pred_fallthru
      _
    // Predicated region
    $region38: #{_mlp_forward.1} parent=1 // pred_check
      _
    $region39: #{_mlp_forward.1} parent=1 // pred_check_branch
      %118 = sbr.rel (0) target = $region41
    $region40: #{_mlp_forward.1} parent=1 // pred_region
      %120 = dma.done [#allocation3], 65536
    $region41: #{_mlp_forward.1} parent=1 // pred_fallthru
      _
    // Predicated region
    $region42: #{_mlp_forward.1} parent=1 // pred_check
      _
    $region43: #{_mlp_forward.1} parent=1 // pred_check_branch
      %122 = sbr.rel (0) target = $region45
    $region44: #{_mlp_forward.1} parent=1 // pred_region
      %124 = dma.done [#allocation5], 128
    $region45: #{_mlp_forward.1} parent=1 // pred_fallthru
      _
    // Predicated region
    $region46: #{_mlp_forward.1} parent=1 // pred_check
      _
    $region47: #{_mlp_forward.1} parent=1 // pred_check_branch
      %126 = sbr.rel (0) target = $region49
    $region48: #{_mlp_forward.1} parent=1 // pred_region
      %128 = dma.done [#allocation5], 65536
    $region49: #{_mlp_forward.1} parent=1 // pred_fallthru
      _
    // Predicated region
    $region50: #{_mlp_forward.1} parent=1 // pred_check
      _
    $region51: #{_mlp_forward.1} parent=1 // pred_check_branch
      %130 = sbr.rel (0) target = $region53
    $region52: #{_mlp_forward.1} parent=1 // pred_region
      %132 = dma.done [#allocation8], 128
    $region53: #{_mlp_forward.1} parent=1 // pred_fallthru
      _
    // Predicated region
    $region54: #{_mlp_forward.1} parent=1 // pred_check
      _
    $region55: #{_mlp_forward.1} parent=1 // pred_check_branch
      %134 = sbr.rel (0) target = $region57
    $region56: #{_mlp_forward.1} parent=1 // pred_region
      %136 = dma.done [#allocation8], 65536
    $region57: #{_mlp_forward.1} parent=1 // pred_fallthru
      _
    // Predicated region
    $region58: #{_mlp_forward.1} parent=1 // pred_check
      _
    $region59: #{_mlp_forward.1} parent=1 // pred_check_branch
      %138 = sbr.rel (0) target = $region61
    $region60: #{_mlp_forward.1} parent=1 // pred_region
      %140 = dma.done [#allocation11], 128
    $region61: #{_mlp_forward.1} parent=1 // pred_fallthru
      _
    // Predicated region
    $region62: #{_mlp_forward.1} parent=1 // pred_check
      _
    $region63: #{_mlp_forward.1} parent=1 // pred_check_branch
      %142 = sbr.rel (0) target = $region65
    $region64: #{_mlp_forward.1} parent=1 // pred_region
      %144 = dma.done [#allocation11], 8192
    $region65: #{_mlp_forward.1} parent=1 // pred_fallthru
      _
    // Predicated region
    $region66: #{_mlp_forward.1} parent=1 // pred_check
      _
    $region67: #{_mlp_forward.1} parent=1 // pred_check_branch
      %146 = sbr.rel (0) target = $region69
    $region68: #{_mlp_forward.1} parent=1 // pred_region
      %148 = dma.done [#allocation14], 16
    $region69: #{_mlp_forward.1} parent=1 // pred_fallthru
      _
    %v149 = vld [vmem:[%s0] sm:$0xff]
    %v150 = vld [vmem:[%s0 + $0x8] sm:$0xff]
    %v151 = vld [vmem:[%s0 + $0x10] sm:$0xff]
    %v152 = vld [vmem:[%s0 + $0x18] sm:$0xff]
    %v153 = vld [vmem:[%s0 + $0x20] sm:$0xff]
    %v154 = vld [vmem:[%s0 + $0x28] sm:$0xff]
    %v155 = vld [vmem:[%s0 + $0x30] sm:$0xff]
    %v156 = vld [vmem:[%s0 + $0x38] sm:$0xff]
    %v157 = vpack.c.bf16 %v149, %v149
    %v158 = vpack.c.bf16 %v150, %v150
    %v159 = vpack.c.bf16 %v151, %v151
    %v160 = vpack.c.bf16 %v152, %v152
    %v161 = vpack.c.bf16 %v153, %v153
    %v162 = vpack.c.bf16 %v154, %v154
    %v163 = vpack.c.bf16 %v155, %v155
    %v164 = vpack.c.bf16 %v156, %v156
    %v165 = vld [vmem:[#allocation2] sm:$0xff]
    %v166 = vld [vmem:[#allocation2 + $0x8] sm:$0xff]
    %v167 = vld [vmem:[#allocation2 + $0x10] sm:$0xff]
    %v168 = vld [vmem:[#allocation2 + $0x18] sm:$0xff]
    %v169 = vld [vmem:[#allocation2 + $0x20] sm:$0xff]
    %v170 = vld [vmem:[#allocation2 + $0x28] sm:$0xff]
    %v171 = vld [vmem:[#allocation2 + $0x30] sm:$0xff]
    %v172 = vld [vmem:[#allocation2 + $0x38] sm:$0xff]
    %v173 = vld [vmem:[#allocation2 + $0x40] sm:$0xff]
    %v174 = vld [vmem:[#allocation2 + $0x48] sm:$0xff]
    %v175 = vld [vmem:[#allocation2 + $0x50] sm:$0xff]
    %v176 = vld [vmem:[#allocation2 + $0x58] sm:$0xff]
    %v177 = vld [vmem:[#allocation2 + $0x60] sm:$0xff]
    %v178 = vld [vmem:[#allocation2 + $0x68] sm:$0xff]
    %v179 = vld [vmem:[#allocation2 + $0x70] sm:$0xff]
    %v180 = vld [vmem:[#allocation2 + $0x78] sm:$0xff]
    %v181 = vld [vmem:[#allocation2 + $0x80] sm:$0xff]
    %v182 = vld [vmem:[#allocation2 + $0x88] sm:$0xff]
    %v183 = vld [vmem:[#allocation2 + $0x90] sm:$0xff]
    %v184 = vld [vmem:[#allocation2 + $0x98] sm:$0xff]
    %v185 = vld [vmem:[#allocation2 + $0xa0] sm:$0xff]
    %v186 = vld [vmem:[#allocation2 + $0xa8] sm:$0xff]
    %v187 = vld [vmem:[#allocation2 + $0xb0] sm:$0xff]
    %v188 = vld [vmem:[#allocation2 + $0xb8] sm:$0xff]
    %v189 = vld [vmem:[#allocation2 + $0xc0] sm:$0xff]
    %v190 = vld [vmem:[#allocation2 + $0xc8] sm:$0xff]
    %v191 = vld [vmem:[#allocation2 + $0xd0] sm:$0xff]
    %v192 = vld [vmem:[#allocation2 + $0xd8] sm:$0xff]
    %v193 = vld [vmem:[#allocation2 + $0xe0] sm:$0xff]
    %v194 = vld [vmem:[#allocation2 + $0xe8] sm:$0xff]
    %v195 = vld [vmem:[#allocation2 + $0xf0] sm:$0xff]
    %v196 = vld [vmem:[#allocation2 + $0xf8] sm:$0xff]
    %v197 = vld [vmem:[#allocation2 + $0x100] sm:$0xff]
    %v198 = vld [vmem:[#allocation2 + $0x108] sm:$0xff]
    %v199 = vld [vmem:[#allocation2 + $0x110] sm:$0xff]
    %v200 = vld [vmem:[#allocation2 + $0x118] sm:$0xff]
    %v201 = vld [vmem:[#allocation2 + $0x120] sm:$0xff]
    %v202 = vld [vmem:[#allocation2 + $0x128] sm:$0xff]
    %v203 = vld [vmem:[#allocation2 + $0x130] sm:$0xff]
    %v204 = vld [vmem:[#allocation2 + $0x138] sm:$0xff]
    %v205 = vld [vmem:[#allocation2 + $0x140] sm:$0xff]
    %v206 = vld [vmem:[#allocation2 + $0x148] sm:$0xff]
    %v207 = vld [vmem:[#allocation2 + $0x150] sm:$0xff]
    %v208 = vld [vmem:[#allocation2 + $0x158] sm:$0xff]
    %v209 = vld [vmem:[#allocation2 + $0x160] sm:$0xff]
    %v210 = vld [vmem:[#allocation2 + $0x168] sm:$0xff]
    %v211 = vld [vmem:[#allocation2 + $0x170] sm:$0xff]
    %v212 = vld [vmem:[#allocation2 + $0x178] sm:$0xff]
    %v213 = vld [vmem:[#allocation2 + $0x180] sm:$0xff]
    %v214 = vld [vmem:[#allocation2 + $0x188] sm:$0xff]
    %v215 = vld [vmem:[#allocation2 + $0x190] sm:$0xff]
    %v216 = vld [vmem:[#allocation2 + $0x198] sm:$0xff]
    %v217 = vld [vmem:[#allocation2 + $0x1a0] sm:$0xff]
    %v218 = vld [vmem:[#allocation2 + $0x1a8] sm:$0xff]
    %v219 = vld [vmem:[#allocation2 + $0x1b0] sm:$0xff]
    %v220 = vld [vmem:[#allocation2 + $0x1b8] sm:$0xff]
    %v221 = vld [vmem:[#allocation2 + $0x1c0] sm:$0xff]
    %v222 = vld [vmem:[#allocation2 + $0x1c8] sm:$0xff]
    %v223 = vld [vmem:[#allocation2 + $0x1d0] sm:$0xff]
    %v224 = vld [vmem:[#allocation2 + $0x1d8] sm:$0xff]
    %v225 = vld [vmem:[#allocation2 + $0x1e0] sm:$0xff]
    %v226 = vld [vmem:[#allocation2 + $0x1e8] sm:$0xff]
    %v227 = vld [vmem:[#allocation2 + $0x1f0] sm:$0xff]
    %v228 = vld [vmem:[#allocation2 + $0x1f8] sm:$0xff]
    %v229 = vld [vmem:[#allocation2 + $0x200] sm:$0xff]
    %v230 = vld [vmem:[#allocation2 + $0x208] sm:$0xff]
    %v231 = vld [vmem:[#allocation2 + $0x210] sm:$0xff]
    %v232 = vld [vmem:[#allocation2 + $0x218] sm:$0xff]
    %v233 = vld [vmem:[#allocation2 + $0x220] sm:$0xff]
    %v234 = vld [vmem:[#allocation2 + $0x228] sm:$0xff]
    %v235 = vld [vmem:[#allocation2 + $0x230] sm:$0xff]
    %v236 = vld [vmem:[#allocation2 + $0x238] sm:$0xff]
    %v237 = vld [vmem:[#allocation2 + $0x240] sm:$0xff]
    %v238 = vld [vmem:[#allocation2 + $0x248] sm:$0xff]
    %v239 = vld [vmem:[#allocation2 + $0x250] sm:$0xff]
    %v240 = vld [vmem:[#allocation2 + $0x258] sm:$0xff]
    %v241 = vld [vmem:[#allocation2 + $0x260] sm:$0xff]
    %v242 = vld [vmem:[#allocation2 + $0x268] sm:$0xff]
    %v243 = vld [vmem:[#allocation2 + $0x270] sm:$0xff]
    %v244 = vld [vmem:[#allocation2 + $0x278] sm:$0xff]
    %v245 = vld [vmem:[#allocation2 + $0x280] sm:$0xff]
    %v246 = vld [vmem:[#allocation2 + $0x288] sm:$0xff]
    %v247 = vld [vmem:[#allocation2 + $0x290] sm:$0xff]
    %v248 = vld [vmem:[#allocation2 + $0x298] sm:$0xff]
    %v249 = vld [vmem:[#allocation2 + $0x2a0] sm:$0xff]
    %v250 = vld [vmem:[#allocation2 + $0x2a8] sm:$0xff]
    %v251 = vld [vmem:[#allocation2 + $0x2b0] sm:$0xff]
    %v252 = vld [vmem:[#allocation2 + $0x2b8] sm:$0xff]
    %v253 = vld [vmem:[#allocation2 + $0x2c0] sm:$0xff]
    %v254 = vld [vmem:[#allocation2 + $0x2c8] sm:$0xff]
    %v255 = vld [vmem:[#allocation2 + $0x2d0] sm:$0xff]
    %v256 = vld [vmem:[#allocation2 + $0x2d8] sm:$0xff]
    %v257 = vld [vmem:[#allocation2 + $0x2e0] sm:$0xff]
    %v258 = vld [vmem:[#allocation2 + $0x2e8] sm:$0xff]
    %v259 = vld [vmem:[#allocation2 + $0x2f0] sm:$0xff]
    %v260 = vld [vmem:[#allocation2 + $0x2f8] sm:$0xff]
    %v261 = vld [vmem:[#allocation2 + $0x300] sm:$0xff]
    %v262 = vld [vmem:[#allocation2 + $0x308] sm:$0xff]
    %v263 = vld [vmem:[#allocation2 + $0x310] sm:$0xff]
    %v264 = vld [vmem:[#allocation2 + $0x318] sm:$0xff]
    %v265 = vld [vmem:[#allocation2 + $0x320] sm:$0xff]
    %v266 = vld [vmem:[#allocation2 + $0x328] sm:$0xff]
    %v267 = vld [vmem:[#allocation2 + $0x330] sm:$0xff]
    %v268 = vld [vmem:[#allocation2 + $0x338] sm:$0xff]
    %v269 = vld [vmem:[#allocation2 + $0x340] sm:$0xff]
    %v270 = vld [vmem:[#allocation2 + $0x348] sm:$0xff]
    %v271 = vld [vmem:[#allocation2 + $0x350] sm:$0xff]
    %v272 = vld [vmem:[#allocation2 + $0x358] sm:$0xff]
    %v273 = vld [vmem:[#allocation2 + $0x360] sm:$0xff]
    %v274 = vld [vmem:[#allocation2 + $0x368] sm:$0xff]
    %v275 = vld [vmem:[#allocation2 + $0x370] sm:$0xff]
    %v276 = vld [vmem:[#allocation2 + $0x378] sm:$0xff]
    %v277 = vld [vmem:[#allocation2 + $0x380] sm:$0xff]
    %v278 = vld [vmem:[#allocation2 + $0x388] sm:$0xff]
    %v279 = vld [vmem:[#allocation2 + $0x390] sm:$0xff]
    %v280 = vld [vmem:[#allocation2 + $0x398] sm:$0xff]
    %v281 = vld [vmem:[#allocation2 + $0x3a0] sm:$0xff]
    %v282 = vld [vmem:[#allocation2 + $0x3a8] sm:$0xff]
    %v283 = vld [vmem:[#allocation2 + $0x3b0] sm:$0xff]
    %v284 = vld [vmem:[#allocation2 + $0x3b8] sm:$0xff]
    %v285 = vld [vmem:[#allocation2 + $0x3c0] sm:$0xff]
    %v286 = vld [vmem:[#allocation2 + $0x3c8] sm:$0xff]
    %v287 = vld [vmem:[#allocation2 + $0x3d0] sm:$0xff]
    %v288 = vld [vmem:[#allocation2 + $0x3d8] sm:$0xff]
    %v289 = vld [vmem:[#allocation2 + $0x3e0] sm:$0xff]
    %v290 = vld [vmem:[#allocation2 + $0x3e8] sm:$0xff]
    %v291 = vld [vmem:[#allocation2 + $0x3f0] sm:$0xff]
    %v292 = vld [vmem:[#allocation2 + $0x3f8] sm:$0xff]
    %v293 = vld [vmem:[#allocation2 + $0x400] sm:$0xff]
    %v294 = vld [vmem:[#allocation2 + $0x408] sm:$0xff]
    %v295 = vld [vmem:[#allocation2 + $0x410] sm:$0xff]
    %v296 = vld [vmem:[#allocation2 + $0x418] sm:$0xff]
    %v297 = vld [vmem:[#allocation2 + $0x420] sm:$0xff]
    %v298 = vld [vmem:[#allocation2 + $0x428] sm:$0xff]
    %v299 = vld [vmem:[#allocation2 + $0x430] sm:$0xff]
    %v300 = vld [vmem:[#allocation2 + $0x438] sm:$0xff]
    %v301 = vld [vmem:[#allocation2 + $0x440] sm:$0xff]
    %v302 = vld [vmem:[#allocation2 + $0x448] sm:$0xff]
    %v303 = vld [vmem:[#allocation2 + $0x450] sm:$0xff]
    %v304 = vld [vmem:[#allocation2 + $0x458] sm:$0xff]
    %v305 = vld [vmem:[#allocation2 + $0x460] sm:$0xff]
    %v306 = vld [vmem:[#allocation2 + $0x468] sm:$0xff]
    %v307 = vld [vmem:[#allocation2 + $0x470] sm:$0xff]
    %v308 = vld [vmem:[#allocation2 + $0x478] sm:$0xff]
    %v309 = vld [vmem:[#allocation2 + $0x480] sm:$0xff]
    %v310 = vld [vmem:[#allocation2 + $0x488] sm:$0xff]
    %v311 = vld [vmem:[#allocation2 + $0x490] sm:$0xff]
    %v312 = vld [vmem:[#allocation2 + $0x498] sm:$0xff]
    %v313 = vld [vmem:[#allocation2 + $0x4a0] sm:$0xff]
    %v314 = vld [vmem:[#allocation2 + $0x4a8] sm:$0xff]
    %v315 = vld [vmem:[#allocation2 + $0x4b0] sm:$0xff]
    %v316 = vld [vmem:[#allocation2 + $0x4b8] sm:$0xff]
    %v317 = vld [vmem:[#allocation2 + $0x4c0] sm:$0xff]
    %v318 = vld [vmem:[#allocation2 + $0x4c8] sm:$0xff]
    %v319 = vld [vmem:[#allocation2 + $0x4d0] sm:$0xff]
    %v320 = vld [vmem:[#allocation2 + $0x4d8] sm:$0xff]
    %v321 = vld [vmem:[#allocation2 + $0x4e0] sm:$0xff]
    %v322 = vld [vmem:[#allocation2 + $0x4e8] sm:$0xff]
    %v323 = vld [vmem:[#allocation2 + $0x4f0] sm:$0xff]
    %v324 = vld [vmem:[#allocation2 + $0x4f8] sm:$0xff]
    %v325 = vld [vmem:[#allocation2 + $0x500] sm:$0xff]
    %v326 = vld [vmem:[#allocation2 + $0x508] sm:$0xff]
    %v327 = vld [vmem:[#allocation2 + $0x510] sm:$0xff]
    %v328 = vld [vmem:[#allocation2 + $0x518] sm:$0xff]
    %v329 = vld [vmem:[#allocation2 + $0x520] sm:$0xff]
    %v330 = vld [vmem:[#allocation2 + $0x528] sm:$0xff]
    %v331 = vld [vmem:[#allocation2 + $0x530] sm:$0xff]
    %v332 = vld [vmem:[#allocation2 + $0x538] sm:$0xff]
    %v333 = vld [vmem:[#allocation2 + $0x540] sm:$0xff]
    %v334 = vld [vmem:[#allocation2 + $0x548] sm:$0xff]
    %v335 = vld [vmem:[#allocation2 + $0x550] sm:$0xff]
    %v336 = vld [vmem:[#allocation2 + $0x558] sm:$0xff]
    %v337 = vld [vmem:[#allocation2 + $0x560] sm:$0xff]
    %v338 = vld [vmem:[#allocation2 + $0x568] sm:$0xff]
    %v339 = vld [vmem:[#allocation2 + $0x570] sm:$0xff]
    %v340 = vld [vmem:[#allocation2 + $0x578] sm:$0xff]
    %v341 = vld [vmem:[#allocation2 + $0x580] sm:$0xff]
    %v342 = vld [vmem:[#allocation2 + $0x588] sm:$0xff]
    %v343 = vld [vmem:[#allocation2 + $0x590] sm:$0xff]
    %v344 = vld [vmem:[#allocation2 + $0x598] sm:$0xff]
    %v345 = vld [vmem:[#allocation2 + $0x5a0] sm:$0xff]
    %v346 = vld [vmem:[#allocation2 + $0x5a8] sm:$0xff]
    %v347 = vld [vmem:[#allocation2 + $0x5b0] sm:$0xff]
    %v348 = vld [vmem:[#allocation2 + $0x5b8] sm:$0xff]
    %v349 = vld [vmem:[#allocation2 + $0x5c0] sm:$0xff]
    %v350 = vld [vmem:[#allocation2 + $0x5c8] sm:$0xff]
    %v351 = vld [vmem:[#allocation2 + $0x5d0] sm:$0xff]
    %v352 = vld [vmem:[#allocation2 + $0x5d8] sm:$0xff]
    %v353 = vld [vmem:[#allocation2 + $0x5e0] sm:$0xff]
    %v354 = vld [vmem:[#allocation2 + $0x5e8] sm:$0xff]
    %v355 = vld [vmem:[#allocation2 + $0x5f0] sm:$0xff]
    %v356 = vld [vmem:[#allocation2 + $0x5f8] sm:$0xff]
    %v357 = vld [vmem:[#allocation2 + $0x600] sm:$0xff]
    %v358 = vld [vmem:[#allocation2 + $0x608] sm:$0xff]
    %v359 = vld [vmem:[#allocation2 + $0x610] sm:$0xff]
    %v360 = vld [vmem:[#allocation2 + $0x618] sm:$0xff]
    %v361 = vld [vmem:[#allocation2 + $0x620] sm:$0xff]
    %v362 = vld [vmem:[#allocation2 + $0x628] sm:$0xff]
    %v363 = vld [vmem:[#allocation2 + $0x630] sm:$0xff]
    %v364 = vld [vmem:[#allocation2 + $0x638] sm:$0xff]
    %v365 = vld [vmem:[#allocation2 + $0x640] sm:$0xff]
    %v366 = vld [vmem:[#allocation2 + $0x648] sm:$0xff]
    %v367 = vld [vmem:[#allocation2 + $0x650] sm:$0xff]
    %v368 = vld [vmem:[#allocation2 + $0x658] sm:$0xff]
    %v369 = vld [vmem:[#allocation2 + $0x660] sm:$0xff]
    %v370 = vld [vmem:[#allocation2 + $0x668] sm:$0xff]
    %v371 = vld [vmem:[#allocation2 + $0x670] sm:$0xff]
    %v372 = vld [vmem:[#allocation2 + $0x678] sm:$0xff]
    %v373 = vld [vmem:[#allocation2 + $0x680] sm:$0xff]
    %v374 = vld [vmem:[#allocation2 + $0x688] sm:$0xff]
    %v375 = vld [vmem:[#allocation2 + $0x690] sm:$0xff]
    %v376 = vld [vmem:[#allocation2 + $0x698] sm:$0xff]
    %v377 = vld [vmem:[#allocation2 + $0x6a0] sm:$0xff]
    %v378 = vld [vmem:[#allocation2 + $0x6a8] sm:$0xff]
    %v379 = vld [vmem:[#allocation2 + $0x6b0] sm:$0xff]
    %v380 = vld [vmem:[#allocation2 + $0x6b8] sm:$0xff]
    %v381 = vld [vmem:[#allocation2 + $0x6c0] sm:$0xff]
    %v382 = vld [vmem:[#allocation2 + $0x6c8] sm:$0xff]
    %v383 = vld [vmem:[#allocation2 + $0x6d0] sm:$0xff]
    %v384 = vld [vmem:[#allocation2 + $0x6d8] sm:$0xff]
    %v385 = vld [vmem:[#allocation2 + $0x6e0] sm:$0xff]
    %v386 = vld [vmem:[#allocation2 + $0x6e8] sm:$0xff]
    %v387 = vld [vmem:[#allocation2 + $0x6f0] sm:$0xff]
    %v388 = vld [vmem:[#allocation2 + $0x6f8] sm:$0xff]
    %v389 = vld [vmem:[#allocation2 + $0x700] sm:$0xff]
    %v390 = vld [vmem:[#allocation2 + $0x708] sm:$0xff]
    %v391 = vld [vmem:[#allocation2 + $0x710] sm:$0xff]
    %v392 = vld [vmem:[#allocation2 + $0x718] sm:$0xff]
    %v393 = vld [vmem:[#allocation2 + $0x720] sm:$0xff]
    %v394 = vld [vmem:[#allocation2 + $0x728] sm:$0xff]
    %v395 = vld [vmem:[#allocation2 + $0x730] sm:$0xff]
    %v396 = vld [vmem:[#allocation2 + $0x738] sm:$0xff]
    %v397 = vld [vmem:[#allocation2 + $0x740] sm:$0xff]
    %v398 = vld [vmem:[#allocation2 + $0x748] sm:$0xff]
    %v399 = vld [vmem:[#allocation2 + $0x750] sm:$0xff]
    %v400 = vld [vmem:[#allocation2 + $0x758] sm:$0xff]
    %v401 = vld [vmem:[#allocation2 + $0x760] sm:$0xff]
    %v402 = vld [vmem:[#allocation2 + $0x768] sm:$0xff]
    %v403 = vld [vmem:[#allocation2 + $0x770] sm:$0xff]
    %v404 = vld [vmem:[#allocation2 + $0x778] sm:$0xff]
    %v405 = vld [vmem:[#allocation2 + $0x780] sm:$0xff]
    %v406 = vld [vmem:[#allocation2 + $0x788] sm:$0xff]
    %v407 = vld [vmem:[#allocation2 + $0x790] sm:$0xff]
    %v408 = vld [vmem:[#allocation2 + $0x798] sm:$0xff]
    %v409 = vld [vmem:[#allocation2 + $0x7a0] sm:$0xff]
    %v410 = vld [vmem:[#allocation2 + $0x7a8] sm:$0xff]
    %v411 = vld [vmem:[#allocation2 + $0x7b0] sm:$0xff]
    %v412 = vld [vmem:[#allocation2 + $0x7b8] sm:$0xff]
    %v413 = vld [vmem:[#allocation2 + $0x7c0] sm:$0xff]
    %v414 = vld [vmem:[#allocation2 + $0x7c8] sm:$0xff]
    %v415 = vld [vmem:[#allocation2 + $0x7d0] sm:$0xff]
    %v416 = vld [vmem:[#allocation2 + $0x7d8] sm:$0xff]
    %v417 = vld [vmem:[#allocation2 + $0x7e0] sm:$0xff]
    %v418 = vld [vmem:[#allocation2 + $0x7e8] sm:$0xff]
    %v419 = vld [vmem:[#allocation2 + $0x7f0] sm:$0xff]
    %v420 = vld [vmem:[#allocation2 + $0x7f8] sm:$0xff]
    %v421 = vld [vmem:[#allocation2 + $0x800] sm:$0xff]
    %v422 = vld [vmem:[#allocation2 + $0x808] sm:$0xff]
    %v423 = vld [vmem:[#allocation2 + $0x810] sm:$0xff]
    %v424 = vld [vmem:[#allocation2 + $0x818] sm:$0xff]
    %v425 = vld [vmem:[#allocation2 + $0x820] sm:$0xff]
    %v426 = vld [vmem:[#allocation2 + $0x828] sm:$0xff]
    %v427 = vld [vmem:[#allocation2 + $0x830] sm:$0xff]
    %v428 = vld [vmem:[#allocation2 + $0x838] sm:$0xff]
    %v429 = vld [vmem:[#allocation2 + $0x840] sm:$0xff]
    %v430 = vld [vmem:[#allocation2 + $0x848] sm:$0xff]
    %v431 = vld [vmem:[#allocation2 + $0x850] sm:$0xff]
    %v432 = vld [vmem:[#allocation2 + $0x858] sm:$0xff]
    %v433 = vld [vmem:[#allocation2 + $0x860] sm:$0xff]
    %v434 = vld [vmem:[#allocation2 + $0x868] sm:$0xff]
    %v435 = vld [vmem:[#allocation2 + $0x870] sm:$0xff]
    %v436 = vld [vmem:[#allocation2 + $0x878] sm:$0xff]
    %v437 = vld [vmem:[#allocation2 + $0x880] sm:$0xff]
    %v438 = vld [vmem:[#allocation2 + $0x888] sm:$0xff]
    %v439 = vld [vmem:[#allocation2 + $0x890] sm:$0xff]
    %v440 = vld [vmem:[#allocation2 + $0x898] sm:$0xff]
    %v441 = vld [vmem:[#allocation2 + $0x8a0] sm:$0xff]
    %v442 = vld [vmem:[#allocation2 + $0x8a8] sm:$0xff]
    %v443 = vld [vmem:[#allocation2 + $0x8b0] sm:$0xff]
    %v444 = vld [vmem:[#allocation2 + $0x8b8] sm:$0xff]
    %v445 = vld [vmem:[#allocation2 + $0x8c0] sm:$0xff]
    %v446 = vld [vmem:[#allocation2 + $0x8c8] sm:$0xff]
    %v447 = vld [vmem:[#allocation2 + $0x8d0] sm:$0xff]
    %v448 = vld [vmem:[#allocation2 + $0x8d8] sm:$0xff]
    %v449 = vld [vmem:[#allocation2 + $0x8e0] sm:$0xff]
    %v450 = vld [vmem:[#allocation2 + $0x8e8] sm:$0xff]
    %v451 = vld [vmem:[#allocation2 + $0x8f0] sm:$0xff]
    %v452 = vld [vmem:[#allocation2 + $0x8f8] sm:$0xff]
    %v453 = vld [vmem:[#allocation2 + $0x900] sm:$0xff]
    %v454 = vld [vmem:[#allocation2 + $0x908] sm:$0xff]
    %v455 = vld [vmem:[#allocation2 + $0x910] sm:$0xff]
    %v456 = vld [vmem:[#allocation2 + $0x918] sm:$0xff]
    %v457 = vld [vmem:[#allocation2 + $0x920] sm:$0xff]
    %v458 = vld [vmem:[#allocation2 + $0x928] sm:$0xff]
    %v459 = vld [vmem:[#allocation2 + $0x930] sm:$0xff]
    %v460 = vld [vmem:[#allocation2 + $0x938] sm:$0xff]
    %v461 = vld [vmem:[#allocation2 + $0x940] sm:$0xff]
    %v462 = vld [vmem:[#allocation2 + $0x948] sm:$0xff]
    %v463 = vld [vmem:[#allocation2 + $0x950] sm:$0xff]
    %v464 = vld [vmem:[#allocation2 + $0x958] sm:$0xff]
    %v465 = vld [vmem:[#allocation2 + $0x960] sm:$0xff]
    %v466 = vld [vmem:[#allocation2 + $0x968] sm:$0xff]
    %v467 = vld [vmem:[#allocation2 + $0x970] sm:$0xff]
    %v468 = vld [vmem:[#allocation2 + $0x978] sm:$0xff]
    %v469 = vld [vmem:[#allocation2 + $0x980] sm:$0xff]
    %v470 = vld [vmem:[#allocation2 + $0x988] sm:$0xff]
    %v471 = vld [vmem:[#allocation2 + $0x990] sm:$0xff]
    %v472 = vld [vmem:[#allocation2 + $0x998] sm:$0xff]
    %v473 = vld [vmem:[#allocation2 + $0x9a0] sm:$0xff]
    %v474 = vld [vmem:[#allocation2 + $0x9a8] sm:$0xff]
    %v475 = vld [vmem:[#allocation2 + $0x9b0] sm:$0xff]
    %v476 = vld [vmem:[#allocation2 + $0x9b8] sm:$0xff]
    %v477 = vld [vmem:[#allocation2 + $0x9c0] sm:$0xff]
    %v478 = vld [vmem:[#allocation2 + $0x9c8] sm:$0xff]
    %v479 = vld [vmem:[#allocation2 + $0x9d0] sm:$0xff]
    %v480 = vld [vmem:[#allocation2 + $0x9d8] sm:$0xff]
    %v481 = vld [vmem:[#allocation2 + $0x9e0] sm:$0xff]
    %v482 = vld [vmem:[#allocation2 + $0x9e8] sm:$0xff]
    %v483 = vld [vmem:[#allocation2 + $0x9f0] sm:$0xff]
    %v484 = vld [vmem:[#allocation2 + $0x9f8] sm:$0xff]
    %v485 = vld [vmem:[#allocation2 + $0xa00] sm:$0xff]
    %v486 = vld [vmem:[#allocation2 + $0xa08] sm:$0xff]
    %v487 = vld [vmem:[#allocation2 + $0xa10] sm:$0xff]
    %v488 = vld [vmem:[#allocation2 + $0xa18] sm:$0xff]
    %v489 = vld [vmem:[#allocation2 + $0xa20] sm:$0xff]
    %v490 = vld [vmem:[#allocation2 + $0xa28] sm:$0xff]
    %v491 = vld [vmem:[#allocation2 + $0xa30] sm:$0xff]
    %v492 = vld [vmem:[#allocation2 + $0xa38] sm:$0xff]
    %v493 = vld [vmem:[#allocation2 + $0xa40] sm:$0xff]
    %v494 = vld [vmem:[#allocation2 + $0xa48] sm:$0xff]
    %v495 = vld [vmem:[#allocation2 + $0xa50] sm:$0xff]
    %v496 = vld [vmem:[#allocation2 + $0xa58] sm:$0xff]
    %v497 = vld [vmem:[#allocation2 + $0xa60] sm:$0xff]
    %v498 = vld [vmem:[#allocation2 + $0xa68] sm:$0xff]
    %v499 = vld [vmem:[#allocation2 + $0xa70] sm:$0xff]
    %v500 = vld [vmem:[#allocation2 + $0xa78] sm:$0xff]
    %v501 = vld [vmem:[#allocation2 + $0xa80] sm:$0xff]
    %v502 = vld [vmem:[#allocation2 + $0xa88] sm:$0xff]
    %v503 = vld [vmem:[#allocation2 + $0xa90] sm:$0xff]
    %v504 = vld [vmem:[#allocation2 + $0xa98] sm:$0xff]
    %v505 = vld [vmem:[#allocation2 + $0xaa0] sm:$0xff]
    %v506 = vld [vmem:[#allocation2 + $0xaa8] sm:$0xff]
    %v507 = vld [vmem:[#allocation2 + $0xab0] sm:$0xff]
    %v508 = vld [vmem:[#allocation2 + $0xab8] sm:$0xff]
    %v509 = vld [vmem:[#allocation2 + $0xac0] sm:$0xff]
    %v510 = vld [vmem:[#allocation2 + $0xac8] sm:$0xff]
    %v511 = vld [vmem:[#allocation2 + $0xad0] sm:$0xff]
    %v512 = vld [vmem:[#allocation2 + $0xad8] sm:$0xff]
    %v513 = vld [vmem:[#allocation2 + $0xae0] sm:$0xff]
    %v514 = vld [vmem:[#allocation2 + $0xae8] sm:$0xff]
    %v515 = vld [vmem:[#allocation2 + $0xaf0] sm:$0xff]
    %v516 = vld [vmem:[#allocation2 + $0xaf8] sm:$0xff]
    %v517 = vld [vmem:[#allocation2 + $0xb00] sm:$0xff]
    %v518 = vld [vmem:[#allocation2 + $0xb08] sm:$0xff]
    %v519 = vld [vmem:[#allocation2 + $0xb10] sm:$0xff]
    %v520 = vld [vmem:[#allocation2 + $0xb18] sm:$0xff]
    %v521 = vld [vmem:[#allocation2 + $0xb20] sm:$0xff]
    %v522 = vld [vmem:[#allocation2 + $0xb28] sm:$0xff]
    %v523 = vld [vmem:[#allocation2 + $0xb30] sm:$0xff]
    %v524 = vld [vmem:[#allocation2 + $0xb38] sm:$0xff]
    %v525 = vld [vmem:[#allocation2 + $0xb40] sm:$0xff]
    %v526 = vld [vmem:[#allocation2 + $0xb48] sm:$0xff]
    %v527 = vld [vmem:[#allocation2 + $0xb50] sm:$0xff]
    %v528 = vld [vmem:[#allocation2 + $0xb58] sm:$0xff]
    %v529 = vld [vmem:[#allocation2 + $0xb60] sm:$0xff]
    %v530 = vld [vmem:[#allocation2 + $0xb68] sm:$0xff]
    %v531 = vld [vmem:[#allocation2 + $0xb70] sm:$0xff]
    %v532 = vld [vmem:[#allocation2 + $0xb78] sm:$0xff]
    %v533 = vld [vmem:[#allocation2 + $0xb80] sm:$0xff]
    %v534 = vld [vmem:[#allocation2 + $0xb88] sm:$0xff]
    %v535 = vld [vmem:[#allocation2 + $0xb90] sm:$0xff]
    %v536 = vld [vmem:[#allocation2 + $0xb98] sm:$0xff]
    %v537 = vld [vmem:[#allocation2 + $0xba0] sm:$0xff]
    %v538 = vld [vmem:[#allocation2 + $0xba8] sm:$0xff]
    %v539 = vld [vmem:[#allocation2 + $0xbb0] sm:$0xff]
    %v540 = vld [vmem:[#allocation2 + $0xbb8] sm:$0xff]
    %v541 = vld [vmem:[#allocation2 + $0xbc0] sm:$0xff]
    %v542 = vld [vmem:[#allocation2 + $0xbc8] sm:$0xff]
    %v543 = vld [vmem:[#allocation2 + $0xbd0] sm:$0xff]
    %v544 = vld [vmem:[#allocation2 + $0xbd8] sm:$0xff]
    %v545 = vld [vmem:[#allocation2 + $0xbe0] sm:$0xff]
    %v546 = vld [vmem:[#allocation2 + $0xbe8] sm:$0xff]
    %v547 = vld [vmem:[#allocation2 + $0xbf0] sm:$0xff]
    %v548 = vld [vmem:[#allocation2 + $0xbf8] sm:$0xff]
    %v549 = vld [vmem:[#allocation2 + $0xc00] sm:$0xff]
    %v550 = vld [vmem:[#allocation2 + $0xc08] sm:$0xff]
    %v551 = vld [vmem:[#allocation2 + $0xc10] sm:$0xff]
    %v552 = vld [vmem:[#allocation2 + $0xc18] sm:$0xff]
    %v553 = vld [vmem:[#allocation2 + $0xc20] sm:$0xff]
    %v554 = vld [vmem:[#allocation2 + $0xc28] sm:$0xff]
    %v555 = vld [vmem:[#allocation2 + $0xc30] sm:$0xff]
    %v556 = vld [vmem:[#allocation2 + $0xc38] sm:$0xff]
    %v557 = vld [vmem:[#allocation2 + $0xc40] sm:$0xff]
    %v558 = vld [vmem:[#allocation2 + $0xc48] sm:$0xff]
    %v559 = vld [vmem:[#allocation2 + $0xc50] sm:$0xff]
    %v560 = vld [vmem:[#allocation2 + $0xc58] sm:$0xff]
    %v561 = vld [vmem:[#allocation2 + $0xc60] sm:$0xff]
    %v562 = vld [vmem:[#allocation2 + $0xc68] sm:$0xff]
    %v563 = vld [vmem:[#allocation2 + $0xc70] sm:$0xff]
    %v564 = vld [vmem:[#allocation2 + $0xc78] sm:$0xff]
    %v565 = vld [vmem:[#allocation2 + $0xc80] sm:$0xff]
    %v566 = vld [vmem:[#allocation2 + $0xc88] sm:$0xff]
    %v567 = vld [vmem:[#allocation2 + $0xc90] sm:$0xff]
    %v568 = vld [vmem:[#allocation2 + $0xc98] sm:$0xff]
    %v569 = vld [vmem:[#allocation2 + $0xca0] sm:$0xff]
    %v570 = vld [vmem:[#allocation2 + $0xca8] sm:$0xff]
    %v571 = vld [vmem:[#allocation2 + $0xcb0] sm:$0xff]
    %v572 = vld [vmem:[#allocation2 + $0xcb8] sm:$0xff]
    %v573 = vld [vmem:[#allocation2 + $0xcc0] sm:$0xff]
    %v574 = vld [vmem:[#allocation2 + $0xcc8] sm:$0xff]
    %v575 = vld [vmem:[#allocation2 + $0xcd0] sm:$0xff]
    %v576 = vld [vmem:[#allocation2 + $0xcd8] sm:$0xff]
    %v577 = vld [vmem:[#allocation2 + $0xce0] sm:$0xff]
    %v578 = vld [vmem:[#allocation2 + $0xce8] sm:$0xff]
    %v579 = vld [vmem:[#allocation2 + $0xcf0] sm:$0xff]
    %v580 = vld [vmem:[#allocation2 + $0xcf8] sm:$0xff]
    %v581 = vld [vmem:[#allocation2 + $0xd00] sm:$0xff]
    %v582 = vld [vmem:[#allocation2 + $0xd08] sm:$0xff]
    %v583 = vld [vmem:[#allocation2 + $0xd10] sm:$0xff]
    %v584 = vld [vmem:[#allocation2 + $0xd18] sm:$0xff]
    %v585 = vld [vmem:[#allocation2 + $0xd20] sm:$0xff]
    %v586 = vld [vmem:[#allocation2 + $0xd28] sm:$0xff]
    %v587 = vld [vmem:[#allocation2 + $0xd30] sm:$0xff]
    %v588 = vld [vmem:[#allocation2 + $0xd38] sm:$0xff]
    %v589 = vld [vmem:[#allocation2 + $0xd40] sm:$0xff]
    %v590 = vld [vmem:[#allocation2 + $0xd48] sm:$0xff]
    %v591 = vld [vmem:[#allocation2 + $0xd50] sm:$0xff]
    %v592 = vld [vmem:[#allocation2 + $0xd58] sm:$0xff]
    %v593 = vld [vmem:[#allocation2 + $0xd60] sm:$0xff]
    %v594 = vld [vmem:[#allocation2 + $0xd68] sm:$0xff]
    %v595 = vld [vmem:[#allocation2 + $0xd70] sm:$0xff]
    %v596 = vld [vmem:[#allocation2 + $0xd78] sm:$0xff]
    %v597 = vld [vmem:[#allocation2 + $0xd80] sm:$0xff]
    %v598 = vld [vmem:[#allocation2 + $0xd88] sm:$0xff]
    %v599 = vld [vmem:[#allocation2 + $0xd90] sm:$0xff]
    %v600 = vld [vmem:[#allocation2 + $0xd98] sm:$0xff]
    %v601 = vld [vmem:[#allocation2 + $0xda0] sm:$0xff]
    %v602 = vld [vmem:[#allocation2 + $0xda8] sm:$0xff]
    %v603 = vld [vmem:[#allocation2 + $0xdb0] sm:$0xff]
    %v604 = vld [vmem:[#allocation2 + $0xdb8] sm:$0xff]
    %v605 = vld [vmem:[#allocation2 + $0xdc0] sm:$0xff]
    %v606 = vld [vmem:[#allocation2 + $0xdc8] sm:$0xff]
    %v607 = vld [vmem:[#allocation2 + $0xdd0] sm:$0xff]
    %v608 = vld [vmem:[#allocation2 + $0xdd8] sm:$0xff]
    %v609 = vld [vmem:[#allocation2 + $0xde0] sm:$0xff]
    %v610 = vld [vmem:[#allocation2 + $0xde8] sm:$0xff]
    %v611 = vld [vmem:[#allocation2 + $0xdf0] sm:$0xff]
    %v612 = vld [vmem:[#allocation2 + $0xdf8] sm:$0xff]
    %v613 = vld [vmem:[#allocation2 + $0xe00] sm:$0xff]
    %v614 = vld [vmem:[#allocation2 + $0xe08] sm:$0xff]
    %v615 = vld [vmem:[#allocation2 + $0xe10] sm:$0xff]
    %v616 = vld [vmem:[#allocation2 + $0xe18] sm:$0xff]
    %v617 = vld [vmem:[#allocation2 + $0xe20] sm:$0xff]
    %v618 = vld [vmem:[#allocation2 + $0xe28] sm:$0xff]
    %v619 = vld [vmem:[#allocation2 + $0xe30] sm:$0xff]
    %v620 = vld [vmem:[#allocation2 + $0xe38] sm:$0xff]
    %v621 = vld [vmem:[#allocation2 + $0xe40] sm:$0xff]
    %v622 = vld [vmem:[#allocation2 + $0xe48] sm:$0xff]
    %v623 = vld [vmem:[#allocation2 + $0xe50] sm:$0xff]
    %v624 = vld [vmem:[#allocation2 + $0xe58] sm:$0xff]
    %v625 = vld [vmem:[#allocation2 + $0xe60] sm:$0xff]
    %v626 = vld [vmem:[#allocation2 + $0xe68] sm:$0xff]
    %v627 = vld [vmem:[#allocation2 + $0xe70] sm:$0xff]
    %v628 = vld [vmem:[#allocation2 + $0xe78] sm:$0xff]
    %v629 = vld [vmem:[#allocation2 + $0xe80] sm:$0xff]
    %v630 = vld [vmem:[#allocation2 + $0xe88] sm:$0xff]
    %v631 = vld [vmem:[#allocation2 + $0xe90] sm:$0xff]
    %v632 = vld [vmem:[#allocation2 + $0xe98] sm:$0xff]
    %v633 = vld [vmem:[#allocation2 + $0xea0] sm:$0xff]
    %v634 = vld [vmem:[#allocation2 + $0xea8] sm:$0xff]
    %v635 = vld [vmem:[#allocation2 + $0xeb0] sm:$0xff]
    %v636 = vld [vmem:[#allocation2 + $0xeb8] sm:$0xff]
    %v637 = vld [vmem:[#allocation2 + $0xec0] sm:$0xff]
    %v638 = vld [vmem:[#allocation2 + $0xec8] sm:$0xff]
    %v639 = vld [vmem:[#allocation2 + $0xed0] sm:$0xff]
    %v640 = vld [vmem:[#allocation2 + $0xed8] sm:$0xff]
    %v641 = vld [vmem:[#allocation2 + $0xee0] sm:$0xff]
    %v642 = vld [vmem:[#allocation2 + $0xee8] sm:$0xff]
    %v643 = vld [vmem:[#allocation2 + $0xef0] sm:$0xff]
    %v644 = vld [vmem:[#allocation2 + $0xef8] sm:$0xff]
    %v645 = vld [vmem:[#allocation2 + $0xf00] sm:$0xff]
    %v646 = vld [vmem:[#allocation2 + $0xf08] sm:$0xff]
    %v647 = vld [vmem:[#allocation2 + $0xf10] sm:$0xff]
    %v648 = vld [vmem:[#allocation2 + $0xf18] sm:$0xff]
    %v649 = vld [vmem:[#allocation2 + $0xf20] sm:$0xff]
    %v650 = vld [vmem:[#allocation2 + $0xf28] sm:$0xff]
    %v651 = vld [vmem:[#allocation2 + $0xf30] sm:$0xff]
    %v652 = vld [vmem:[#allocation2 + $0xf38] sm:$0xff]
    %v653 = vld [vmem:[#allocation2 + $0xf40] sm:$0xff]
    %v654 = vld [vmem:[#allocation2 + $0xf48] sm:$0xff]
    %v655 = vld [vmem:[#allocation2 + $0xf50] sm:$0xff]
    %v656 = vld [vmem:[#allocation2 + $0xf58] sm:$0xff]
    %v657 = vld [vmem:[#allocation2 + $0xf60] sm:$0xff]
    %v658 = vld [vmem:[#allocation2 + $0xf68] sm:$0xff]
    %v659 = vld [vmem:[#allocation2 + $0xf70] sm:$0xff]
    %v660 = vld [vmem:[#allocation2 + $0xf78] sm:$0xff]
    %v661 = vld [vmem:[#allocation2 + $0xf80] sm:$0xff]
    %v662 = vld [vmem:[#allocation2 + $0xf88] sm:$0xff]
    %v663 = vld [vmem:[#allocation2 + $0xf90] sm:$0xff]
    %v664 = vld [vmem:[#allocation2 + $0xf98] sm:$0xff]
    %v665 = vld [vmem:[#allocation2 + $0xfa0] sm:$0xff]
    %v666 = vld [vmem:[#allocation2 + $0xfa8] sm:$0xff]
    %v667 = vld [vmem:[#allocation2 + $0xfb0] sm:$0xff]
    %v668 = vld [vmem:[#allocation2 + $0xfb8] sm:$0xff]
    %v669 = vld [vmem:[#allocation2 + $0xfc0] sm:$0xff]
    %v670 = vld [vmem:[#allocation2 + $0xfc8] sm:$0xff]
    %v671 = vld [vmem:[#allocation2 + $0xfd0] sm:$0xff]
    %v672 = vld [vmem:[#allocation2 + $0xfd8] sm:$0xff]
    %v673 = vld [vmem:[#allocation2 + $0xfe0] sm:$0xff]
    %v674 = vld [vmem:[#allocation2 + $0xfe8] sm:$0xff]
    %v675 = vld [vmem:[#allocation2 + $0xff0] sm:$0xff]
    %v676 = vld [vmem:[#allocation2 + $0xff8] sm:$0xff]
    %v677 = vld [vmem:[#allocation4] sm:$0xff]
    %v679 = vperm.slane %v677, 0
    %v680 = vperm.slane %v677, 1
    %v681 = vperm.slane %v677, 2
    %v682 = vperm.slane %v677, 3
    %v683 = vperm.slane %v677, 4
    %v684 = vperm.slane %v677, 5
    %v685 = vperm.slane %v677, 6
    %v686 = vperm.slane %v677, 7
    %v1207 = vunpack.c.l.b16 %v165
    %v1208 = vunpack.c.h.b16 %v165
    %v1209 = vunpack.c.l.b16 %v166
    %v1210 = vunpack.c.h.b16 %v166
    %v1211 = vunpack.c.l.b16 %v167
    %v1212 = vunpack.c.h.b16 %v167
    %v1213 = vunpack.c.l.b16 %v168
    %v1214 = vunpack.c.h.b16 %v168
    %v1215 = vunpack.c.l.b16 %v169
    %v1216 = vunpack.c.h.b16 %v169
    %v1217 = vunpack.c.l.b16 %v170
    %v1218 = vunpack.c.h.b16 %v170
    %v1219 = vunpack.c.l.b16 %v171
    %v1220 = vunpack.c.h.b16 %v171
    %v1221 = vunpack.c.l.b16 %v172
    %v1222 = vunpack.c.h.b16 %v172
    %v1223 = vunpack.c.l.b16 %v173
    %v1224 = vunpack.c.h.b16 %v173
    %v1225 = vunpack.c.l.b16 %v174
    %v1226 = vunpack.c.h.b16 %v174
    %v1227 = vunpack.c.l.b16 %v175
    %v1228 = vunpack.c.h.b16 %v175
    %v1229 = vunpack.c.l.b16 %v176
    %v1230 = vunpack.c.h.b16 %v176
    %v1231 = vunpack.c.l.b16 %v177
    %v1232 = vunpack.c.h.b16 %v177
    %v1233 = vunpack.c.l.b16 %v178
    %v1234 = vunpack.c.h.b16 %v178
    %v1235 = vunpack.c.l.b16 %v179
    %v1236 = vunpack.c.h.b16 %v179
    %v1237 = vunpack.c.l.b16 %v180
    %v1238 = vunpack.c.h.b16 %v180
    %v1239 = vunpack.c.l.b16 %v181
    %v1240 = vunpack.c.h.b16 %v181
    %v1241 = vunpack.c.l.b16 %v182
    %v1242 = vunpack.c.h.b16 %v182
    %v1243 = vunpack.c.l.b16 %v183
    %v1244 = vunpack.c.h.b16 %v183
    %v1245 = vunpack.c.l.b16 %v184
    %v1246 = vunpack.c.h.b16 %v184
    %v1247 = vunpack.c.l.b16 %v185
    %v1248 = vunpack.c.h.b16 %v185
    %v1249 = vunpack.c.l.b16 %v186
    %v1250 = vunpack.c.h.b16 %v186
    %v1251 = vunpack.c.l.b16 %v187
    %v1252 = vunpack.c.h.b16 %v187
    %v1253 = vunpack.c.l.b16 %v188
    %v1254 = vunpack.c.h.b16 %v188
    %v1255 = vunpack.c.l.b16 %v189
    %v1256 = vunpack.c.h.b16 %v189
    %v1257 = vunpack.c.l.b16 %v190
    %v1258 = vunpack.c.h.b16 %v190
    %v1259 = vunpack.c.l.b16 %v191
    %v1260 = vunpack.c.h.b16 %v191
    %v1261 = vunpack.c.l.b16 %v192
    %v1262 = vunpack.c.h.b16 %v192
    %v1263 = vunpack.c.l.b16 %v193
    %v1264 = vunpack.c.h.b16 %v193
    %v1265 = vunpack.c.l.b16 %v194
    %v1266 = vunpack.c.h.b16 %v194
    %v1267 = vunpack.c.l.b16 %v195
    %v1268 = vunpack.c.h.b16 %v195
    %v1269 = vunpack.c.l.b16 %v196
    %v1270 = vunpack.c.h.b16 %v196
    %v1271 = vunpack.c.l.b16 %v197
    %v1272 = vunpack.c.h.b16 %v197
    %v1273 = vunpack.c.l.b16 %v198
    %v1274 = vunpack.c.h.b16 %v198
    %v1275 = vunpack.c.l.b16 %v199
    %v1276 = vunpack.c.h.b16 %v199
    %v1277 = vunpack.c.l.b16 %v200
    %v1278 = vunpack.c.h.b16 %v200
    %v1279 = vunpack.c.l.b16 %v201
    %v1280 = vunpack.c.h.b16 %v201
    %v1281 = vunpack.c.l.b16 %v202
    %v1282 = vunpack.c.h.b16 %v202
    %v1283 = vunpack.c.l.b16 %v203
    %v1284 = vunpack.c.h.b16 %v203
    %v1285 = vunpack.c.l.b16 %v204
    %v1286 = vunpack.c.h.b16 %v204
    %v1287 = vunpack.c.l.b16 %v205
    %v1288 = vunpack.c.h.b16 %v205
    %v1289 = vunpack.c.l.b16 %v206
    %v1290 = vunpack.c.h.b16 %v206
    %v1291 = vunpack.c.l.b16 %v207
    %v1292 = vunpack.c.h.b16 %v207
    %v1293 = vunpack.c.l.b16 %v208
    %v1294 = vunpack.c.h.b16 %v208
    %v1295 = vunpack.c.l.b16 %v209
    %v1296 = vunpack.c.h.b16 %v209
    %v1297 = vunpack.c.l.b16 %v210
    %v1298 = vunpack.c.h.b16 %v210
    %v1299 = vunpack.c.l.b16 %v211
    %v1300 = vunpack.c.h.b16 %v211
    %v1301 = vunpack.c.l.b16 %v212
    %v1302 = vunpack.c.h.b16 %v212
    %v1303 = vunpack.c.l.b16 %v213
    %v1304 = vunpack.c.h.b16 %v213
    %v1305 = vunpack.c.l.b16 %v214
    %v1306 = vunpack.c.h.b16 %v214
    %v1307 = vunpack.c.l.b16 %v215
    %v1308 = vunpack.c.h.b16 %v215
    %v1309 = vunpack.c.l.b16 %v216
    %v1310 = vunpack.c.h.b16 %v216
    %v1311 = vunpack.c.l.b16 %v217
    %v1312 = vunpack.c.h.b16 %v217
    %v1313 = vunpack.c.l.b16 %v218
    %v1314 = vunpack.c.h.b16 %v218
    %v1315 = vunpack.c.l.b16 %v219
    %v1316 = vunpack.c.h.b16 %v219
    %v1317 = vunpack.c.l.b16 %v220
    %v1318 = vunpack.c.h.b16 %v220
    %v1319 = vunpack.c.l.b16 %v221
    %v1320 = vunpack.c.h.b16 %v221
    %v1321 = vunpack.c.l.b16 %v222
    %v1322 = vunpack.c.h.b16 %v222
    %v1323 = vunpack.c.l.b16 %v223
    %v1324 = vunpack.c.h.b16 %v223
    %v1325 = vunpack.c.l.b16 %v224
    %v1326 = vunpack.c.h.b16 %v224
    %v1327 = vunpack.c.l.b16 %v225
    %v1328 = vunpack.c.h.b16 %v225
    %v1329 = vunpack.c.l.b16 %v226
    %v1330 = vunpack.c.h.b16 %v226
    %v1331 = vunpack.c.l.b16 %v227
    %v1332 = vunpack.c.h.b16 %v227
    %v1333 = vunpack.c.l.b16 %v228
    %v1334 = vunpack.c.h.b16 %v228
    %v1335 = vunpack.c.l.b16 %v229
    %v1336 = vunpack.c.h.b16 %v229
    %v1337 = vunpack.c.l.b16 %v230
    %v1338 = vunpack.c.h.b16 %v230
    %v1339 = vunpack.c.l.b16 %v231
    %v1340 = vunpack.c.h.b16 %v231
    %v1341 = vunpack.c.l.b16 %v232
    %v1342 = vunpack.c.h.b16 %v232
    %v1343 = vunpack.c.l.b16 %v233
    %v1344 = vunpack.c.h.b16 %v233
    %v1345 = vunpack.c.l.b16 %v234
    %v1346 = vunpack.c.h.b16 %v234
    %v1347 = vunpack.c.l.b16 %v235
    %v1348 = vunpack.c.h.b16 %v235
    %v1349 = vunpack.c.l.b16 %v236
    %v1350 = vunpack.c.h.b16 %v236
    %v1351 = vunpack.c.l.b16 %v237
    %v1352 = vunpack.c.h.b16 %v237
    %v1353 = vunpack.c.l.b16 %v238
    %v1354 = vunpack.c.h.b16 %v238
    %v1355 = vunpack.c.l.b16 %v239
    %v1356 = vunpack.c.h.b16 %v239
    %v1357 = vunpack.c.l.b16 %v240
    %v1358 = vunpack.c.h.b16 %v240
    %v1359 = vunpack.c.l.b16 %v241
    %v1360 = vunpack.c.h.b16 %v241
    %v1361 = vunpack.c.l.b16 %v242
    %v1362 = vunpack.c.h.b16 %v242
    %v1363 = vunpack.c.l.b16 %v243
    %v1364 = vunpack.c.h.b16 %v243
    %v1365 = vunpack.c.l.b16 %v244
    %v1366 = vunpack.c.h.b16 %v244
    %v1367 = vunpack.c.l.b16 %v245
    %v1368 = vunpack.c.h.b16 %v245
    %v1369 = vunpack.c.l.b16 %v246
    %v1370 = vunpack.c.h.b16 %v246
    %v1371 = vunpack.c.l.b16 %v247
    %v1372 = vunpack.c.h.b16 %v247
    %v1373 = vunpack.c.l.b16 %v248
    %v1374 = vunpack.c.h.b16 %v248
    %v1375 = vunpack.c.l.b16 %v249
    %v1376 = vunpack.c.h.b16 %v249
    %v1377 = vunpack.c.l.b16 %v250
    %v1378 = vunpack.c.h.b16 %v250
    %v1379 = vunpack.c.l.b16 %v251
    %v1380 = vunpack.c.h.b16 %v251
    %v1381 = vunpack.c.l.b16 %v252
    %v1382 = vunpack.c.h.b16 %v252
    %v1383 = vunpack.c.l.b16 %v253
    %v1384 = vunpack.c.h.b16 %v253
    %v1385 = vunpack.c.l.b16 %v254
    %v1386 = vunpack.c.h.b16 %v254
    %v1387 = vunpack.c.l.b16 %v255
    %v1388 = vunpack.c.h.b16 %v255
    %v1389 = vunpack.c.l.b16 %v256
    %v1390 = vunpack.c.h.b16 %v256
    %v1391 = vunpack.c.l.b16 %v257
    %v1392 = vunpack.c.h.b16 %v257
    %v1393 = vunpack.c.l.b16 %v258
    %v1394 = vunpack.c.h.b16 %v258
    %v1395 = vunpack.c.l.b16 %v259
    %v1396 = vunpack.c.h.b16 %v259
    %v1397 = vunpack.c.l.b16 %v260
    %v1398 = vunpack.c.h.b16 %v260
    %v1399 = vunpack.c.l.b16 %v261
    %v1400 = vunpack.c.h.b16 %v261
    %v1401 = vunpack.c.l.b16 %v262
    %v1402 = vunpack.c.h.b16 %v262
    %v1403 = vunpack.c.l.b16 %v263
    %v1404 = vunpack.c.h.b16 %v263
    %v1405 = vunpack.c.l.b16 %v264
    %v1406 = vunpack.c.h.b16 %v264
    %v1407 = vunpack.c.l.b16 %v265
    %v1408 = vunpack.c.h.b16 %v265
    %v1409 = vunpack.c.l.b16 %v266
    %v1410 = vunpack.c.h.b16 %v266
    %v1411 = vunpack.c.l.b16 %v267
    %v1412 = vunpack.c.h.b16 %v267
    %v1413 = vunpack.c.l.b16 %v268
    %v1414 = vunpack.c.h.b16 %v268
    %v1415 = vunpack.c.l.b16 %v269
    %v1416 = vunpack.c.h.b16 %v269
    %v1417 = vunpack.c.l.b16 %v270
    %v1418 = vunpack.c.h.b16 %v270
    %v1419 = vunpack.c.l.b16 %v271
    %v1420 = vunpack.c.h.b16 %v271
    %v1421 = vunpack.c.l.b16 %v272
    %v1422 = vunpack.c.h.b16 %v272
    %v1423 = vunpack.c.l.b16 %v273
    %v1424 = vunpack.c.h.b16 %v273
    %v1425 = vunpack.c.l.b16 %v274
    %v1426 = vunpack.c.h.b16 %v274
    %v1427 = vunpack.c.l.b16 %v275
    %v1428 = vunpack.c.h.b16 %v275
    %v1429 = vunpack.c.l.b16 %v276
    %v1430 = vunpack.c.h.b16 %v276
    %v1431 = vunpack.c.l.b16 %v277
    %v1432 = vunpack.c.h.b16 %v277
    %v1433 = vunpack.c.l.b16 %v278
    %v1434 = vunpack.c.h.b16 %v278
    %v1435 = vunpack.c.l.b16 %v279
    %v1436 = vunpack.c.h.b16 %v279
    %v1437 = vunpack.c.l.b16 %v280
    %v1438 = vunpack.c.h.b16 %v280
    %v1439 = vunpack.c.l.b16 %v281
    %v1440 = vunpack.c.h.b16 %v281
    %v1441 = vunpack.c.l.b16 %v282
    %v1442 = vunpack.c.h.b16 %v282
    %v1443 = vunpack.c.l.b16 %v283
    %v1444 = vunpack.c.h.b16 %v283
    %v1445 = vunpack.c.l.b16 %v284
    %v1446 = vunpack.c.h.b16 %v284
    %v1447 = vunpack.c.l.b16 %v285
    %v1448 = vunpack.c.h.b16 %v285
    %v1449 = vunpack.c.l.b16 %v286
    %v1450 = vunpack.c.h.b16 %v286
    %v1451 = vunpack.c.l.b16 %v287
    %v1452 = vunpack.c.h.b16 %v287
    %v1453 = vunpack.c.l.b16 %v288
    %v1454 = vunpack.c.h.b16 %v288
    %v1455 = vunpack.c.l.b16 %v289
    %v1456 = vunpack.c.h.b16 %v289
    %v1457 = vunpack.c.l.b16 %v290
    %v1458 = vunpack.c.h.b16 %v290
    %v1459 = vunpack.c.l.b16 %v291
    %v1460 = vunpack.c.h.b16 %v291
    %v1461 = vunpack.c.l.b16 %v292
    %v1462 = vunpack.c.h.b16 %v292
    %v1463 = vunpack.c.l.b16 %v293
    %v1464 = vunpack.c.h.b16 %v293
    %v1465 = vunpack.c.l.b16 %v294
    %v1466 = vunpack.c.h.b16 %v294
    %v1467 = vunpack.c.l.b16 %v295
    %v1468 = vunpack.c.h.b16 %v295
    %v1469 = vunpack.c.l.b16 %v296
    %v1470 = vunpack.c.h.b16 %v296
    %v1471 = vunpack.c.l.b16 %v297
    %v1472 = vunpack.c.h.b16 %v297
    %v1473 = vunpack.c.l.b16 %v298
    %v1474 = vunpack.c.h.b16 %v298
    %v1475 = vunpack.c.l.b16 %v299
    %v1476 = vunpack.c.h.b16 %v299
    %v1477 = vunpack.c.l.b16 %v300
    %v1478 = vunpack.c.h.b16 %v300
    %v1479 = vunpack.c.l.b16 %v301
    %v1480 = vunpack.c.h.b16 %v301
    %v1481 = vunpack.c.l.b16 %v302
    %v1482 = vunpack.c.h.b16 %v302
    %v1483 = vunpack.c.l.b16 %v303
    %v1484 = vunpack.c.h.b16 %v303
    %v1485 = vunpack.c.l.b16 %v304
    %v1486 = vunpack.c.h.b16 %v304
    %v1487 = vunpack.c.l.b16 %v305
    %v1488 = vunpack.c.h.b16 %v305
    %v1489 = vunpack.c.l.b16 %v306
    %v1490 = vunpack.c.h.b16 %v306
    %v1491 = vunpack.c.l.b16 %v307
    %v1492 = vunpack.c.h.b16 %v307
    %v1493 = vunpack.c.l.b16 %v308
    %v1494 = vunpack.c.h.b16 %v308
    %v1495 = vunpack.c.l.b16 %v309
    %v1496 = vunpack.c.h.b16 %v309
    %v1497 = vunpack.c.l.b16 %v310
    %v1498 = vunpack.c.h.b16 %v310
    %v1499 = vunpack.c.l.b16 %v311
    %v1500 = vunpack.c.h.b16 %v311
    %v1501 = vunpack.c.l.b16 %v312
    %v1502 = vunpack.c.h.b16 %v312
    %v1503 = vunpack.c.l.b16 %v313
    %v1504 = vunpack.c.h.b16 %v313
    %v1505 = vunpack.c.l.b16 %v314
    %v1506 = vunpack.c.h.b16 %v314
    %v1507 = vunpack.c.l.b16 %v315
    %v1508 = vunpack.c.h.b16 %v315
    %v1509 = vunpack.c.l.b16 %v316
    %v1510 = vunpack.c.h.b16 %v316
    %v1511 = vunpack.c.l.b16 %v317
    %v1512 = vunpack.c.h.b16 %v317
    %v1513 = vunpack.c.l.b16 %v318
    %v1514 = vunpack.c.h.b16 %v318
    %v1515 = vunpack.c.l.b16 %v319
    %v1516 = vunpack.c.h.b16 %v319
    %v1517 = vunpack.c.l.b16 %v320
    %v1518 = vunpack.c.h.b16 %v320
    %v1519 = vunpack.c.l.b16 %v321
    %v1520 = vunpack.c.h.b16 %v321
    %v1521 = vunpack.c.l.b16 %v322
    %v1522 = vunpack.c.h.b16 %v322
    %v1523 = vunpack.c.l.b16 %v323
    %v1524 = vunpack.c.h.b16 %v323
    %v1525 = vunpack.c.l.b16 %v324
    %v1526 = vunpack.c.h.b16 %v324
    %v1527 = vunpack.c.l.b16 %v325
    %v1528 = vunpack.c.h.b16 %v325
    %v1529 = vunpack.c.l.b16 %v326
    %v1530 = vunpack.c.h.b16 %v326
    %v1531 = vunpack.c.l.b16 %v327
    %v1532 = vunpack.c.h.b16 %v327
    %v1533 = vunpack.c.l.b16 %v328
    %v1534 = vunpack.c.h.b16 %v328
    %v1535 = vunpack.c.l.b16 %v329
    %v1536 = vunpack.c.h.b16 %v329
    %v1537 = vunpack.c.l.b16 %v330
    %v1538 = vunpack.c.h.b16 %v330
    %v1539 = vunpack.c.l.b16 %v331
    %v1540 = vunpack.c.h.b16 %v331
    %v1541 = vunpack.c.l.b16 %v332
    %v1542 = vunpack.c.h.b16 %v332
    %v1543 = vunpack.c.l.b16 %v333
    %v1544 = vunpack.c.h.b16 %v333
    %v1545 = vunpack.c.l.b16 %v334
    %v1546 = vunpack.c.h.b16 %v334
    %v1547 = vunpack.c.l.b16 %v335
    %v1548 = vunpack.c.h.b16 %v335
    %v1549 = vunpack.c.l.b16 %v336
    %v1550 = vunpack.c.h.b16 %v336
    %v1551 = vunpack.c.l.b16 %v337
    %v1552 = vunpack.c.h.b16 %v337
    %v1553 = vunpack.c.l.b16 %v338
    %v1554 = vunpack.c.h.b16 %v338
    %v1555 = vunpack.c.l.b16 %v339
    %v1556 = vunpack.c.h.b16 %v339
    %v1557 = vunpack.c.l.b16 %v340
    %v1558 = vunpack.c.h.b16 %v340
    %v1559 = vunpack.c.l.b16 %v341
    %v1560 = vunpack.c.h.b16 %v341
    %v1561 = vunpack.c.l.b16 %v342
    %v1562 = vunpack.c.h.b16 %v342
    %v1563 = vunpack.c.l.b16 %v343
    %v1564 = vunpack.c.h.b16 %v343
    %v1565 = vunpack.c.l.b16 %v344
    %v1566 = vunpack.c.h.b16 %v344
    %v1567 = vunpack.c.l.b16 %v345
    %v1568 = vunpack.c.h.b16 %v345
    %v1569 = vunpack.c.l.b16 %v346
    %v1570 = vunpack.c.h.b16 %v346
    %v1571 = vunpack.c.l.b16 %v347
    %v1572 = vunpack.c.h.b16 %v347
    %v1573 = vunpack.c.l.b16 %v348
    %v1574 = vunpack.c.h.b16 %v348
    %v1575 = vunpack.c.l.b16 %v349
    %v1576 = vunpack.c.h.b16 %v349
    %v1577 = vunpack.c.l.b16 %v350
    %v1578 = vunpack.c.h.b16 %v350
    %v1579 = vunpack.c.l.b16 %v351
    %v1580 = vunpack.c.h.b16 %v351
    %v1581 = vunpack.c.l.b16 %v352
    %v1582 = vunpack.c.h.b16 %v352
    %v1583 = vunpack.c.l.b16 %v353
    %v1584 = vunpack.c.h.b16 %v353
    %v1585 = vunpack.c.l.b16 %v354
    %v1586 = vunpack.c.h.b16 %v354
    %v1587 = vunpack.c.l.b16 %v355
    %v1588 = vunpack.c.h.b16 %v355
    %v1589 = vunpack.c.l.b16 %v356
    %v1590 = vunpack.c.h.b16 %v356
    %v1591 = vunpack.c.l.b16 %v357
    %v1592 = vunpack.c.h.b16 %v357
    %v1593 = vunpack.c.l.b16 %v358
    %v1594 = vunpack.c.h.b16 %v358
    %v1595 = vunpack.c.l.b16 %v359
    %v1596 = vunpack.c.h.b16 %v359
    %v1597 = vunpack.c.l.b16 %v360
    %v1598 = vunpack.c.h.b16 %v360
    %v1599 = vunpack.c.l.b16 %v361
    %v1600 = vunpack.c.h.b16 %v361
    %v1601 = vunpack.c.l.b16 %v362
    %v1602 = vunpack.c.h.b16 %v362
    %v1603 = vunpack.c.l.b16 %v363
    %v1604 = vunpack.c.h.b16 %v363
    %v1605 = vunpack.c.l.b16 %v364
    %v1606 = vunpack.c.h.b16 %v364
    %v1607 = vunpack.c.l.b16 %v365
    %v1608 = vunpack.c.h.b16 %v365
    %v1609 = vunpack.c.l.b16 %v366
    %v1610 = vunpack.c.h.b16 %v366
    %v1611 = vunpack.c.l.b16 %v367
    %v1612 = vunpack.c.h.b16 %v367
    %v1613 = vunpack.c.l.b16 %v368
    %v1614 = vunpack.c.h.b16 %v368
    %v1615 = vunpack.c.l.b16 %v369
    %v1616 = vunpack.c.h.b16 %v369
    %v1617 = vunpack.c.l.b16 %v370
    %v1618 = vunpack.c.h.b16 %v370
    %v1619 = vunpack.c.l.b16 %v371
    %v1620 = vunpack.c.h.b16 %v371
    %v1621 = vunpack.c.l.b16 %v372
    %v1622 = vunpack.c.h.b16 %v372
    %v1623 = vunpack.c.l.b16 %v373
    %v1624 = vunpack.c.h.b16 %v373
    %v1625 = vunpack.c.l.b16 %v374
    %v1626 = vunpack.c.h.b16 %v374
    %v1627 = vunpack.c.l.b16 %v375
    %v1628 = vunpack.c.h.b16 %v375
    %v1629 = vunpack.c.l.b16 %v376
    %v1630 = vunpack.c.h.b16 %v376
    %v1631 = vunpack.c.l.b16 %v377
    %v1632 = vunpack.c.h.b16 %v377
    %v1633 = vunpack.c.l.b16 %v378
    %v1634 = vunpack.c.h.b16 %v378
    %v1635 = vunpack.c.l.b16 %v379
    %v1636 = vunpack.c.h.b16 %v379
    %v1637 = vunpack.c.l.b16 %v380
    %v1638 = vunpack.c.h.b16 %v380
    %v1639 = vunpack.c.l.b16 %v381
    %v1640 = vunpack.c.h.b16 %v381
    %v1641 = vunpack.c.l.b16 %v382
    %v1642 = vunpack.c.h.b16 %v382
    %v1643 = vunpack.c.l.b16 %v383
    %v1644 = vunpack.c.h.b16 %v383
    %v1645 = vunpack.c.l.b16 %v384
    %v1646 = vunpack.c.h.b16 %v384
    %v1647 = vunpack.c.l.b16 %v385
    %v1648 = vunpack.c.h.b16 %v385
    %v1649 = vunpack.c.l.b16 %v386
    %v1650 = vunpack.c.h.b16 %v386
    %v1651 = vunpack.c.l.b16 %v387
    %v1652 = vunpack.c.h.b16 %v387
    %v1653 = vunpack.c.l.b16 %v388
    %v1654 = vunpack.c.h.b16 %v388
    %v1655 = vunpack.c.l.b16 %v389
    %v1656 = vunpack.c.h.b16 %v389
    %v1657 = vunpack.c.l.b16 %v390
    %v1658 = vunpack.c.h.b16 %v390
    %v1659 = vunpack.c.l.b16 %v391
    %v1660 = vunpack.c.h.b16 %v391
    %v1661 = vunpack.c.l.b16 %v392
    %v1662 = vunpack.c.h.b16 %v392
    %v1663 = vunpack.c.l.b16 %v393
    %v1664 = vunpack.c.h.b16 %v393
    %v1665 = vunpack.c.l.b16 %v394
    %v1666 = vunpack.c.h.b16 %v394
    %v1667 = vunpack.c.l.b16 %v395
    %v1668 = vunpack.c.h.b16 %v395
    %v1669 = vunpack.c.l.b16 %v396
    %v1670 = vunpack.c.h.b16 %v396
    %v1671 = vunpack.c.l.b16 %v397
    %v1672 = vunpack.c.h.b16 %v397
    %v1673 = vunpack.c.l.b16 %v398
    %v1674 = vunpack.c.h.b16 %v398
    %v1675 = vunpack.c.l.b16 %v399
    %v1676 = vunpack.c.h.b16 %v399
    %v1677 = vunpack.c.l.b16 %v400
    %v1678 = vunpack.c.h.b16 %v400
    %v1679 = vunpack.c.l.b16 %v401
    %v1680 = vunpack.c.h.b16 %v401
    %v1681 = vunpack.c.l.b16 %v402
    %v1682 = vunpack.c.h.b16 %v402
    %v1683 = vunpack.c.l.b16 %v403
    %v1684 = vunpack.c.h.b16 %v403
    %v1685 = vunpack.c.l.b16 %v404
    %v1686 = vunpack.c.h.b16 %v404
    %v1687 = vunpack.c.l.b16 %v405
    %v1688 = vunpack.c.h.b16 %v405
    %v1689 = vunpack.c.l.b16 %v406
    %v1690 = vunpack.c.h.b16 %v406
    %v1691 = vunpack.c.l.b16 %v407
    %v1692 = vunpack.c.h.b16 %v407
    %v1693 = vunpack.c.l.b16 %v408
    %v1694 = vunpack.c.h.b16 %v408
    %v1695 = vunpack.c.l.b16 %v409
    %v1696 = vunpack.c.h.b16 %v409
    %v1697 = vunpack.c.l.b16 %v410
    %v1698 = vunpack.c.h.b16 %v410
    %v1699 = vunpack.c.l.b16 %v411
    %v1700 = vunpack.c.h.b16 %v411
    %v1701 = vunpack.c.l.b16 %v412
    %v1702 = vunpack.c.h.b16 %v412
    %v1703 = vunpack.c.l.b16 %v413
    %v1704 = vunpack.c.h.b16 %v413
    %v1705 = vunpack.c.l.b16 %v414
    %v1706 = vunpack.c.h.b16 %v414
    %v1707 = vunpack.c.l.b16 %v415
    %v1708 = vunpack.c.h.b16 %v415
    %v1709 = vunpack.c.l.b16 %v416
    %v1710 = vunpack.c.h.b16 %v416
    %v1711 = vunpack.c.l.b16 %v417
    %v1712 = vunpack.c.h.b16 %v417
    %v1713 = vunpack.c.l.b16 %v418
    %v1714 = vunpack.c.h.b16 %v418
    %v1715 = vunpack.c.l.b16 %v419
    %v1716 = vunpack.c.h.b16 %v419
    %v1717 = vunpack.c.l.b16 %v420
    %v1718 = vunpack.c.h.b16 %v420
    %v1719 = vunpack.c.l.b16 %v421
    %v1720 = vunpack.c.h.b16 %v421
    %v1721 = vunpack.c.l.b16 %v422
    %v1722 = vunpack.c.h.b16 %v422
    %v1723 = vunpack.c.l.b16 %v423
    %v1724 = vunpack.c.h.b16 %v423
    %v1725 = vunpack.c.l.b16 %v424
    %v1726 = vunpack.c.h.b16 %v424
    %v1727 = vunpack.c.l.b16 %v425
    %v1728 = vunpack.c.h.b16 %v425
    %v1729 = vunpack.c.l.b16 %v426
    %v1730 = vunpack.c.h.b16 %v426
    %v1731 = vunpack.c.l.b16 %v427
    %v1732 = vunpack.c.h.b16 %v427
    %v1733 = vunpack.c.l.b16 %v428
    %v1734 = vunpack.c.h.b16 %v428
    %v1735 = vunpack.c.l.b16 %v429
    %v1736 = vunpack.c.h.b16 %v429
    %v1737 = vunpack.c.l.b16 %v430
    %v1738 = vunpack.c.h.b16 %v430
    %v1739 = vunpack.c.l.b16 %v431
    %v1740 = vunpack.c.h.b16 %v431
    %v1741 = vunpack.c.l.b16 %v432
    %v1742 = vunpack.c.h.b16 %v432
    %v1743 = vunpack.c.l.b16 %v433
    %v1744 = vunpack.c.h.b16 %v433
    %v1745 = vunpack.c.l.b16 %v434
    %v1746 = vunpack.c.h.b16 %v434
    %v1747 = vunpack.c.l.b16 %v435
    %v1748 = vunpack.c.h.b16 %v435
    %v1749 = vunpack.c.l.b16 %v436
    %v1750 = vunpack.c.h.b16 %v436
    %v1751 = vunpack.c.l.b16 %v437
    %v1752 = vunpack.c.h.b16 %v437
    %v1753 = vunpack.c.l.b16 %v438
    %v1754 = vunpack.c.h.b16 %v438
    %v1755 = vunpack.c.l.b16 %v439
    %v1756 = vunpack.c.h.b16 %v439
    %v1757 = vunpack.c.l.b16 %v440
    %v1758 = vunpack.c.h.b16 %v440
    %v1759 = vunpack.c.l.b16 %v441
    %v1760 = vunpack.c.h.b16 %v441
    %v1761 = vunpack.c.l.b16 %v442
    %v1762 = vunpack.c.h.b16 %v442
    %v1763 = vunpack.c.l.b16 %v443
    %v1764 = vunpack.c.h.b16 %v443
    %v1765 = vunpack.c.l.b16 %v444
    %v1766 = vunpack.c.h.b16 %v444
    %v1767 = vunpack.c.l.b16 %v445
    %v1768 = vunpack.c.h.b16 %v445
    %v1769 = vunpack.c.l.b16 %v446
    %v1770 = vunpack.c.h.b16 %v446
    %v1771 = vunpack.c.l.b16 %v447
    %v1772 = vunpack.c.h.b16 %v447
    %v1773 = vunpack.c.l.b16 %v448
    %v1774 = vunpack.c.h.b16 %v448
    %v1775 = vunpack.c.l.b16 %v449
    %v1776 = vunpack.c.h.b16 %v449
    %v1777 = vunpack.c.l.b16 %v450
    %v1778 = vunpack.c.h.b16 %v450
    %v1779 = vunpack.c.l.b16 %v451
    %v1780 = vunpack.c.h.b16 %v451
    %v1781 = vunpack.c.l.b16 %v452
    %v1782 = vunpack.c.h.b16 %v452
    %v1783 = vunpack.c.l.b16 %v453
    %v1784 = vunpack.c.h.b16 %v453
    %v1785 = vunpack.c.l.b16 %v454
    %v1786 = vunpack.c.h.b16 %v454
    %v1787 = vunpack.c.l.b16 %v455
    %v1788 = vunpack.c.h.b16 %v455
    %v1789 = vunpack.c.l.b16 %v456
    %v1790 = vunpack.c.h.b16 %v456
    %v1791 = vunpack.c.l.b16 %v457
    %v1792 = vunpack.c.h.b16 %v457
    %v1793 = vunpack.c.l.b16 %v458
    %v1794 = vunpack.c.h.b16 %v458
    %v1795 = vunpack.c.l.b16 %v459
    %v1796 = vunpack.c.h.b16 %v459
    %v1797 = vunpack.c.l.b16 %v460
    %v1798 = vunpack.c.h.b16 %v460
    %v1799 = vunpack.c.l.b16 %v461
    %v1800 = vunpack.c.h.b16 %v461
    %v1801 = vunpack.c.l.b16 %v462
    %v1802 = vunpack.c.h.b16 %v462
    %v1803 = vunpack.c.l.b16 %v463
    %v1804 = vunpack.c.h.b16 %v463
    %v1805 = vunpack.c.l.b16 %v464
    %v1806 = vunpack.c.h.b16 %v464
    %v1807 = vunpack.c.l.b16 %v465
    %v1808 = vunpack.c.h.b16 %v465
    %v1809 = vunpack.c.l.b16 %v466
    %v1810 = vunpack.c.h.b16 %v466
    %v1811 = vunpack.c.l.b16 %v467
    %v1812 = vunpack.c.h.b16 %v467
    %v1813 = vunpack.c.l.b16 %v468
    %v1814 = vunpack.c.h.b16 %v468
    %v1815 = vunpack.c.l.b16 %v469
    %v1816 = vunpack.c.h.b16 %v469
    %v1817 = vunpack.c.l.b16 %v470
    %v1818 = vunpack.c.h.b16 %v470
    %v1819 = vunpack.c.l.b16 %v471
    %v1820 = vunpack.c.h.b16 %v471
    %v1821 = vunpack.c.l.b16 %v472
    %v1822 = vunpack.c.h.b16 %v472
    %v1823 = vunpack.c.l.b16 %v473
    %v1824 = vunpack.c.h.b16 %v473
    %v1825 = vunpack.c.l.b16 %v474
    %v1826 = vunpack.c.h.b16 %v474
    %v1827 = vunpack.c.l.b16 %v475
    %v1828 = vunpack.c.h.b16 %v475
    %v1829 = vunpack.c.l.b16 %v476
    %v1830 = vunpack.c.h.b16 %v476
    %v1831 = vunpack.c.l.b16 %v477
    %v1832 = vunpack.c.h.b16 %v477
    %v1833 = vunpack.c.l.b16 %v478
    %v1834 = vunpack.c.h.b16 %v478
    %v1835 = vunpack.c.l.b16 %v479
    %v1836 = vunpack.c.h.b16 %v479
    %v1837 = vunpack.c.l.b16 %v480
    %v1838 = vunpack.c.h.b16 %v480
    %v1839 = vunpack.c.l.b16 %v481
    %v1840 = vunpack.c.h.b16 %v481
    %v1841 = vunpack.c.l.b16 %v482
    %v1842 = vunpack.c.h.b16 %v482
    %v1843 = vunpack.c.l.b16 %v483
    %v1844 = vunpack.c.h.b16 %v483
    %v1845 = vunpack.c.l.b16 %v484
    %v1846 = vunpack.c.h.b16 %v484
    %v1847 = vunpack.c.l.b16 %v485
    %v1848 = vunpack.c.h.b16 %v485
    %v1849 = vunpack.c.l.b16 %v486
    %v1850 = vunpack.c.h.b16 %v486
    %v1851 = vunpack.c.l.b16 %v487
    %v1852 = vunpack.c.h.b16 %v487
    %v1853 = vunpack.c.l.b16 %v488
    %v1854 = vunpack.c.h.b16 %v488
    %v1855 = vunpack.c.l.b16 %v489
    %v1856 = vunpack.c.h.b16 %v489
    %v1857 = vunpack.c.l.b16 %v490
    %v1858 = vunpack.c.h.b16 %v490
    %v1859 = vunpack.c.l.b16 %v491
    %v1860 = vunpack.c.h.b16 %v491
    %v1861 = vunpack.c.l.b16 %v492
    %v1862 = vunpack.c.h.b16 %v492
    %v1863 = vunpack.c.l.b16 %v493
    %v1864 = vunpack.c.h.b16 %v493
    %v1865 = vunpack.c.l.b16 %v494
    %v1866 = vunpack.c.h.b16 %v494
    %v1867 = vunpack.c.l.b16 %v495
    %v1868 = vunpack.c.h.b16 %v495
    %v1869 = vunpack.c.l.b16 %v496
    %v1870 = vunpack.c.h.b16 %v496
    %v1871 = vunpack.c.l.b16 %v497
    %v1872 = vunpack.c.h.b16 %v497
    %v1873 = vunpack.c.l.b16 %v498
    %v1874 = vunpack.c.h.b16 %v498
    %v1875 = vunpack.c.l.b16 %v499
    %v1876 = vunpack.c.h.b16 %v499
    %v1877 = vunpack.c.l.b16 %v500
    %v1878 = vunpack.c.h.b16 %v500
    %v1879 = vunpack.c.l.b16 %v501
    %v1880 = vunpack.c.h.b16 %v501
    %v1881 = vunpack.c.l.b16 %v502
    %v1882 = vunpack.c.h.b16 %v502
    %v1883 = vunpack.c.l.b16 %v503
    %v1884 = vunpack.c.h.b16 %v503
    %v1885 = vunpack.c.l.b16 %v504
    %v1886 = vunpack.c.h.b16 %v504
    %v1887 = vunpack.c.l.b16 %v505
    %v1888 = vunpack.c.h.b16 %v505
    %v1889 = vunpack.c.l.b16 %v506
    %v1890 = vunpack.c.h.b16 %v506
    %v1891 = vunpack.c.l.b16 %v507
    %v1892 = vunpack.c.h.b16 %v507
    %v1893 = vunpack.c.l.b16 %v508
    %v1894 = vunpack.c.h.b16 %v508
    %v1895 = vunpack.c.l.b16 %v509
    %v1896 = vunpack.c.h.b16 %v509
    %v1897 = vunpack.c.l.b16 %v510
    %v1898 = vunpack.c.h.b16 %v510
    %v1899 = vunpack.c.l.b16 %v511
    %v1900 = vunpack.c.h.b16 %v511
    %v1901 = vunpack.c.l.b16 %v512
    %v1902 = vunpack.c.h.b16 %v512
    %v1903 = vunpack.c.l.b16 %v513
    %v1904 = vunpack.c.h.b16 %v513
    %v1905 = vunpack.c.l.b16 %v514
    %v1906 = vunpack.c.h.b16 %v514
    %v1907 = vunpack.c.l.b16 %v515
    %v1908 = vunpack.c.h.b16 %v515
    %v1909 = vunpack.c.l.b16 %v516
    %v1910 = vunpack.c.h.b16 %v516
    %v1911 = vunpack.c.l.b16 %v517
    %v1912 = vunpack.c.h.b16 %v517
    %v1913 = vunpack.c.l.b16 %v518
    %v1914 = vunpack.c.h.b16 %v518
    %v1915 = vunpack.c.l.b16 %v519
    %v1916 = vunpack.c.h.b16 %v519
    %v1917 = vunpack.c.l.b16 %v520
    %v1918 = vunpack.c.h.b16 %v520
    %v1919 = vunpack.c.l.b16 %v521
    %v1920 = vunpack.c.h.b16 %v521
    %v1921 = vunpack.c.l.b16 %v522
    %v1922 = vunpack.c.h.b16 %v522
    %v1923 = vunpack.c.l.b16 %v523
    %v1924 = vunpack.c.h.b16 %v523
    %v1925 = vunpack.c.l.b16 %v524
    %v1926 = vunpack.c.h.b16 %v524
    %v1927 = vunpack.c.l.b16 %v525
    %v1928 = vunpack.c.h.b16 %v525
    %v1929 = vunpack.c.l.b16 %v526
    %v1930 = vunpack.c.h.b16 %v526
    %v1931 = vunpack.c.l.b16 %v527
    %v1932 = vunpack.c.h.b16 %v527
    %v1933 = vunpack.c.l.b16 %v528
    %v1934 = vunpack.c.h.b16 %v528
    %v1935 = vunpack.c.l.b16 %v529
    %v1936 = vunpack.c.h.b16 %v529
    %v1937 = vunpack.c.l.b16 %v530
    %v1938 = vunpack.c.h.b16 %v530
    %v1939 = vunpack.c.l.b16 %v531
    %v1940 = vunpack.c.h.b16 %v531
    %v1941 = vunpack.c.l.b16 %v532
    %v1942 = vunpack.c.h.b16 %v532
    %v1943 = vunpack.c.l.b16 %v533
    %v1944 = vunpack.c.h.b16 %v533
    %v1945 = vunpack.c.l.b16 %v534
    %v1946 = vunpack.c.h.b16 %v534
    %v1947 = vunpack.c.l.b16 %v535
    %v1948 = vunpack.c.h.b16 %v535
    %v1949 = vunpack.c.l.b16 %v536
    %v1950 = vunpack.c.h.b16 %v536
    %v1951 = vunpack.c.l.b16 %v537
    %v1952 = vunpack.c.h.b16 %v537
    %v1953 = vunpack.c.l.b16 %v538
    %v1954 = vunpack.c.h.b16 %v538
    %v1955 = vunpack.c.l.b16 %v539
    %v1956 = vunpack.c.h.b16 %v539
    %v1957 = vunpack.c.l.b16 %v540
    %v1958 = vunpack.c.h.b16 %v540
    %v1959 = vunpack.c.l.b16 %v541
    %v1960 = vunpack.c.h.b16 %v541
    %v1961 = vunpack.c.l.b16 %v542
    %v1962 = vunpack.c.h.b16 %v542
    %v1963 = vunpack.c.l.b16 %v543
    %v1964 = vunpack.c.h.b16 %v543
    %v1965 = vunpack.c.l.b16 %v544
    %v1966 = vunpack.c.h.b16 %v544
    %v1967 = vunpack.c.l.b16 %v545
    %v1968 = vunpack.c.h.b16 %v545
    %v1969 = vunpack.c.l.b16 %v546
    %v1970 = vunpack.c.h.b16 %v546
    %v1971 = vunpack.c.l.b16 %v547
    %v1972 = vunpack.c.h.b16 %v547
    %v1973 = vunpack.c.l.b16 %v548
    %v1974 = vunpack.c.h.b16 %v548
    %v1975 = vunpack.c.l.b16 %v549
    %v1976 = vunpack.c.h.b16 %v549
    %v1977 = vunpack.c.l.b16 %v550
    %v1978 = vunpack.c.h.b16 %v550
    %v1979 = vunpack.c.l.b16 %v551
    %v1980 = vunpack.c.h.b16 %v551
    %v1981 = vunpack.c.l.b16 %v552
    %v1982 = vunpack.c.h.b16 %v552
    %v1983 = vunpack.c.l.b16 %v553
    %v1984 = vunpack.c.h.b16 %v553
    %v1985 = vunpack.c.l.b16 %v554
    %v1986 = vunpack.c.h.b16 %v554
    %v1987 = vunpack.c.l.b16 %v555
    %v1988 = vunpack.c.h.b16 %v555
    %v1989 = vunpack.c.l.b16 %v556
    %v1990 = vunpack.c.h.b16 %v556
    %v1991 = vunpack.c.l.b16 %v557
    %v1992 = vunpack.c.h.b16 %v557
    %v1993 = vunpack.c.l.b16 %v558
    %v1994 = vunpack.c.h.b16 %v558
    %v1995 = vunpack.c.l.b16 %v559
    %v1996 = vunpack.c.h.b16 %v559
    %v1997 = vunpack.c.l.b16 %v560
    %v1998 = vunpack.c.h.b16 %v560
    %v1999 = vunpack.c.l.b16 %v561
    %v2000 = vunpack.c.h.b16 %v561
    %v2001 = vunpack.c.l.b16 %v562
    %v2002 = vunpack.c.h.b16 %v562
    %v2003 = vunpack.c.l.b16 %v563
    %v2004 = vunpack.c.h.b16 %v563
    %v2005 = vunpack.c.l.b16 %v564
    %v2006 = vunpack.c.h.b16 %v564
    %v2007 = vunpack.c.l.b16 %v565
    %v2008 = vunpack.c.h.b16 %v565
    %v2009 = vunpack.c.l.b16 %v566
    %v2010 = vunpack.c.h.b16 %v566
    %v2011 = vunpack.c.l.b16 %v567
    %v2012 = vunpack.c.h.b16 %v567
    %v2013 = vunpack.c.l.b16 %v568
    %v2014 = vunpack.c.h.b16 %v568
    %v2015 = vunpack.c.l.b16 %v569
    %v2016 = vunpack.c.h.b16 %v569
    %v2017 = vunpack.c.l.b16 %v570
    %v2018 = vunpack.c.h.b16 %v570
    %v2019 = vunpack.c.l.b16 %v571
    %v2020 = vunpack.c.h.b16 %v571
    %v2021 = vunpack.c.l.b16 %v572
    %v2022 = vunpack.c.h.b16 %v572
    %v2023 = vunpack.c.l.b16 %v573
    %v2024 = vunpack.c.h.b16 %v573
    %v2025 = vunpack.c.l.b16 %v574
    %v2026 = vunpack.c.h.b16 %v574
    %v2027 = vunpack.c.l.b16 %v575
    %v2028 = vunpack.c.h.b16 %v575
    %v2029 = vunpack.c.l.b16 %v576
    %v2030 = vunpack.c.h.b16 %v576
    %v2031 = vunpack.c.l.b16 %v577
    %v2032 = vunpack.c.h.b16 %v577
    %v2033 = vunpack.c.l.b16 %v578
    %v2034 = vunpack.c.h.b16 %v578
    %v2035 = vunpack.c.l.b16 %v579
    %v2036 = vunpack.c.h.b16 %v579
    %v2037 = vunpack.c.l.b16 %v580
    %v2038 = vunpack.c.h.b16 %v580
    %v2039 = vunpack.c.l.b16 %v581
    %v2040 = vunpack.c.h.b16 %v581
    %v2041 = vunpack.c.l.b16 %v582
    %v2042 = vunpack.c.h.b16 %v582
    %v2043 = vunpack.c.l.b16 %v583
    %v2044 = vunpack.c.h.b16 %v583
    %v2045 = vunpack.c.l.b16 %v584
    %v2046 = vunpack.c.h.b16 %v584
    %v2047 = vunpack.c.l.b16 %v585
    %v2048 = vunpack.c.h.b16 %v585
    %v2049 = vunpack.c.l.b16 %v586
    %v2050 = vunpack.c.h.b16 %v586
    %v2051 = vunpack.c.l.b16 %v587
    %v2052 = vunpack.c.h.b16 %v587
    %v2053 = vunpack.c.l.b16 %v588
    %v2054 = vunpack.c.h.b16 %v588
    %v2055 = vunpack.c.l.b16 %v589
    %v2056 = vunpack.c.h.b16 %v589
    %v2057 = vunpack.c.l.b16 %v590
    %v2058 = vunpack.c.h.b16 %v590
    %v2059 = vunpack.c.l.b16 %v591
    %v2060 = vunpack.c.h.b16 %v591
    %v2061 = vunpack.c.l.b16 %v592
    %v2062 = vunpack.c.h.b16 %v592
    %v2063 = vunpack.c.l.b16 %v593
    %v2064 = vunpack.c.h.b16 %v593
    %v2065 = vunpack.c.l.b16 %v594
    %v2066 = vunpack.c.h.b16 %v594
    %v2067 = vunpack.c.l.b16 %v595
    %v2068 = vunpack.c.h.b16 %v595
    %v2069 = vunpack.c.l.b16 %v596
    %v2070 = vunpack.c.h.b16 %v596
    %v2071 = vunpack.c.l.b16 %v597
    %v2072 = vunpack.c.h.b16 %v597
    %v2073 = vunpack.c.l.b16 %v598
    %v2074 = vunpack.c.h.b16 %v598
    %v2075 = vunpack.c.l.b16 %v599
    %v2076 = vunpack.c.h.b16 %v599
    %v2077 = vunpack.c.l.b16 %v600
    %v2078 = vunpack.c.h.b16 %v600
    %v2079 = vunpack.c.l.b16 %v601
    %v2080 = vunpack.c.h.b16 %v601
    %v2081 = vunpack.c.l.b16 %v602
    %v2082 = vunpack.c.h.b16 %v602
    %v2083 = vunpack.c.l.b16 %v603
    %v2084 = vunpack.c.h.b16 %v603
    %v2085 = vunpack.c.l.b16 %v604
    %v2086 = vunpack.c.h.b16 %v604
    %v2087 = vunpack.c.l.b16 %v605
    %v2088 = vunpack.c.h.b16 %v605
    %v2089 = vunpack.c.l.b16 %v606
    %v2090 = vunpack.c.h.b16 %v606
    %v2091 = vunpack.c.l.b16 %v607
    %v2092 = vunpack.c.h.b16 %v607
    %v2093 = vunpack.c.l.b16 %v608
    %v2094 = vunpack.c.h.b16 %v608
    %v2095 = vunpack.c.l.b16 %v609
    %v2096 = vunpack.c.h.b16 %v609
    %v2097 = vunpack.c.l.b16 %v610
    %v2098 = vunpack.c.h.b16 %v610
    %v2099 = vunpack.c.l.b16 %v611
    %v2100 = vunpack.c.h.b16 %v611
    %v2101 = vunpack.c.l.b16 %v612
    %v2102 = vunpack.c.h.b16 %v612
    %v2103 = vunpack.c.l.b16 %v613
    %v2104 = vunpack.c.h.b16 %v613
    %v2105 = vunpack.c.l.b16 %v614
    %v2106 = vunpack.c.h.b16 %v614
    %v2107 = vunpack.c.l.b16 %v615
    %v2108 = vunpack.c.h.b16 %v615
    %v2109 = vunpack.c.l.b16 %v616
    %v2110 = vunpack.c.h.b16 %v616
    %v2111 = vunpack.c.l.b16 %v617
    %v2112 = vunpack.c.h.b16 %v617
    %v2113 = vunpack.c.l.b16 %v618
    %v2114 = vunpack.c.h.b16 %v618
    %v2115 = vunpack.c.l.b16 %v619
    %v2116 = vunpack.c.h.b16 %v619
    %v2117 = vunpack.c.l.b16 %v620
    %v2118 = vunpack.c.h.b16 %v620
    %v2119 = vunpack.c.l.b16 %v621
    %v2120 = vunpack.c.h.b16 %v621
    %v2121 = vunpack.c.l.b16 %v622
    %v2122 = vunpack.c.h.b16 %v622
    %v2123 = vunpack.c.l.b16 %v623
    %v2124 = vunpack.c.h.b16 %v623
    %v2125 = vunpack.c.l.b16 %v624
    %v2126 = vunpack.c.h.b16 %v624
    %v2127 = vunpack.c.l.b16 %v625
    %v2128 = vunpack.c.h.b16 %v625
    %v2129 = vunpack.c.l.b16 %v626
    %v2130 = vunpack.c.h.b16 %v626
    %v2131 = vunpack.c.l.b16 %v627
    %v2132 = vunpack.c.h.b16 %v627
    %v2133 = vunpack.c.l.b16 %v628
    %v2134 = vunpack.c.h.b16 %v628
    %v2135 = vunpack.c.l.b16 %v629
    %v2136 = vunpack.c.h.b16 %v629
    %v2137 = vunpack.c.l.b16 %v630
    %v2138 = vunpack.c.h.b16 %v630
    %v2139 = vunpack.c.l.b16 %v631
    %v2140 = vunpack.c.h.b16 %v631
    %v2141 = vunpack.c.l.b16 %v632
    %v2142 = vunpack.c.h.b16 %v632
    %v2143 = vunpack.c.l.b16 %v633
    %v2144 = vunpack.c.h.b16 %v633
    %v2145 = vunpack.c.l.b16 %v634
    %v2146 = vunpack.c.h.b16 %v634
    %v2147 = vunpack.c.l.b16 %v635
    %v2148 = vunpack.c.h.b16 %v635
    %v2149 = vunpack.c.l.b16 %v636
    %v2150 = vunpack.c.h.b16 %v636
    %v2151 = vunpack.c.l.b16 %v637
    %v2152 = vunpack.c.h.b16 %v637
    %v2153 = vunpack.c.l.b16 %v638
    %v2154 = vunpack.c.h.b16 %v638
    %v2155 = vunpack.c.l.b16 %v639
    %v2156 = vunpack.c.h.b16 %v639
    %v2157 = vunpack.c.l.b16 %v640
    %v2158 = vunpack.c.h.b16 %v640
    %v2159 = vunpack.c.l.b16 %v641
    %v2160 = vunpack.c.h.b16 %v641
    %v2161 = vunpack.c.l.b16 %v642
    %v2162 = vunpack.c.h.b16 %v642
    %v2163 = vunpack.c.l.b16 %v643
    %v2164 = vunpack.c.h.b16 %v643
    %v2165 = vunpack.c.l.b16 %v644
    %v2166 = vunpack.c.h.b16 %v644
    %v2167 = vunpack.c.l.b16 %v645
    %v2168 = vunpack.c.h.b16 %v645
    %v2169 = vunpack.c.l.b16 %v646
    %v2170 = vunpack.c.h.b16 %v646
    %v2171 = vunpack.c.l.b16 %v647
    %v2172 = vunpack.c.h.b16 %v647
    %v2173 = vunpack.c.l.b16 %v648
    %v2174 = vunpack.c.h.b16 %v648
    %v2175 = vunpack.c.l.b16 %v649
    %v2176 = vunpack.c.h.b16 %v649
    %v2177 = vunpack.c.l.b16 %v650
    %v2178 = vunpack.c.h.b16 %v650
    %v2179 = vunpack.c.l.b16 %v651
    %v2180 = vunpack.c.h.b16 %v651
    %v2181 = vunpack.c.l.b16 %v652
    %v2182 = vunpack.c.h.b16 %v652
    %v2183 = vunpack.c.l.b16 %v653
    %v2184 = vunpack.c.h.b16 %v653
    %v2185 = vunpack.c.l.b16 %v654
    %v2186 = vunpack.c.h.b16 %v654
    %v2187 = vunpack.c.l.b16 %v655
    %v2188 = vunpack.c.h.b16 %v655
    %v2189 = vunpack.c.l.b16 %v656
    %v2190 = vunpack.c.h.b16 %v656
    %v2191 = vunpack.c.l.b16 %v657
    %v2192 = vunpack.c.h.b16 %v657
    %v2193 = vunpack.c.l.b16 %v658
    %v2194 = vunpack.c.h.b16 %v658
    %v2195 = vunpack.c.l.b16 %v659
    %v2196 = vunpack.c.h.b16 %v659
    %v2197 = vunpack.c.l.b16 %v660
    %v2198 = vunpack.c.h.b16 %v660
    %v2199 = vunpack.c.l.b16 %v661
    %v2200 = vunpack.c.h.b16 %v661
    %v2201 = vunpack.c.l.b16 %v662
    %v2202 = vunpack.c.h.b16 %v662
    %v2203 = vunpack.c.l.b16 %v663
    %v2204 = vunpack.c.h.b16 %v663
    %v2205 = vunpack.c.l.b16 %v664
    %v2206 = vunpack.c.h.b16 %v664
    %v2207 = vunpack.c.l.b16 %v665
    %v2208 = vunpack.c.h.b16 %v665
    %v2209 = vunpack.c.l.b16 %v666
    %v2210 = vunpack.c.h.b16 %v666
    %v2211 = vunpack.c.l.b16 %v667
    %v2212 = vunpack.c.h.b16 %v667
    %v2213 = vunpack.c.l.b16 %v668
    %v2214 = vunpack.c.h.b16 %v668
    %v2215 = vunpack.c.l.b16 %v669
    %v2216 = vunpack.c.h.b16 %v669
    %v2217 = vunpack.c.l.b16 %v670
    %v2218 = vunpack.c.h.b16 %v670
    %v2219 = vunpack.c.l.b16 %v671
    %v2220 = vunpack.c.h.b16 %v671
    %v2221 = vunpack.c.l.b16 %v672
    %v2222 = vunpack.c.h.b16 %v672
    %v2223 = vunpack.c.l.b16 %v673
    %v2224 = vunpack.c.h.b16 %v673
    %v2225 = vunpack.c.l.b16 %v674
    %v2226 = vunpack.c.h.b16 %v674
    %v2227 = vunpack.c.l.b16 %v675
    %v2228 = vunpack.c.h.b16 %v675
    %v2229 = vunpack.c.l.b16 %v676
    %v2230 = vunpack.c.h.b16 %v676
    %v2231 = vpack.c.b16 %v1215, %v1207
    %v2232 = vpack.c.b16 %v1216, %v1208
    %v2233 = vpack.c.b16 %v1217, %v1209
    %v2234 = vpack.c.b16 %v1218, %v1210
    %v2235 = vpack.c.b16 %v1219, %v1211
    %v2236 = vpack.c.b16 %v1220, %v1212
    %v2237 = vpack.c.b16 %v1221, %v1213
    %v2238 = vpack.c.b16 %v1222, %v1214
    %v2239 = vpack.c.b16 %v1231, %v1223
    %v2240 = vpack.c.b16 %v1232, %v1224
    %v2241 = vpack.c.b16 %v1233, %v1225
    %v2242 = vpack.c.b16 %v1234, %v1226
    %v2243 = vpack.c.b16 %v1235, %v1227
    %v2244 = vpack.c.b16 %v1236, %v1228
    %v2245 = vpack.c.b16 %v1237, %v1229
    %v2246 = vpack.c.b16 %v1238, %v1230
    %v2247 = vpack.c.b16 %v1247, %v1239
    %v2248 = vpack.c.b16 %v1248, %v1240
    %v2249 = vpack.c.b16 %v1249, %v1241
    %v2250 = vpack.c.b16 %v1250, %v1242
    %v2251 = vpack.c.b16 %v1251, %v1243
    %v2252 = vpack.c.b16 %v1252, %v1244
    %v2253 = vpack.c.b16 %v1253, %v1245
    %v2254 = vpack.c.b16 %v1254, %v1246
    %v2255 = vpack.c.b16 %v1263, %v1255
    %v2256 = vpack.c.b16 %v1264, %v1256
    %v2257 = vpack.c.b16 %v1265, %v1257
    %v2258 = vpack.c.b16 %v1266, %v1258
    %v2259 = vpack.c.b16 %v1267, %v1259
    %v2260 = vpack.c.b16 %v1268, %v1260
    %v2261 = vpack.c.b16 %v1269, %v1261
    %v2262 = vpack.c.b16 %v1270, %v1262
    %v2263 = vpack.c.b16 %v1279, %v1271
    %v2264 = vpack.c.b16 %v1280, %v1272
    %v2265 = vpack.c.b16 %v1281, %v1273
    %v2266 = vpack.c.b16 %v1282, %v1274
    %v2267 = vpack.c.b16 %v1283, %v1275
    %v2268 = vpack.c.b16 %v1284, %v1276
    %v2269 = vpack.c.b16 %v1285, %v1277
    %v2270 = vpack.c.b16 %v1286, %v1278
    %v2271 = vpack.c.b16 %v1295, %v1287
    %v2272 = vpack.c.b16 %v1296, %v1288
    %v2273 = vpack.c.b16 %v1297, %v1289
    %v2274 = vpack.c.b16 %v1298, %v1290
    %v2275 = vpack.c.b16 %v1299, %v1291
    %v2276 = vpack.c.b16 %v1300, %v1292
    %v2277 = vpack.c.b16 %v1301, %v1293
    %v2278 = vpack.c.b16 %v1302, %v1294
    %v2279 = vpack.c.b16 %v1311, %v1303
    %v2280 = vpack.c.b16 %v1312, %v1304
    %v2281 = vpack.c.b16 %v1313, %v1305
    %v2282 = vpack.c.b16 %v1314, %v1306
    %v2283 = vpack.c.b16 %v1315, %v1307
    %v2284 = vpack.c.b16 %v1316, %v1308
    %v2285 = vpack.c.b16 %v1317, %v1309
    %v2286 = vpack.c.b16 %v1318, %v1310
    %v2287 = vpack.c.b16 %v1327, %v1319
    %v2288 = vpack.c.b16 %v1328, %v1320
    %v2289 = vpack.c.b16 %v1329, %v1321
    %v2290 = vpack.c.b16 %v1330, %v1322
    %v2291 = vpack.c.b16 %v1331, %v1323
    %v2292 = vpack.c.b16 %v1332, %v1324
    %v2293 = vpack.c.b16 %v1333, %v1325
    %v2294 = vpack.c.b16 %v1334, %v1326
    %v2295 = vpack.c.b16 %v1343, %v1335
    %v2296 = vpack.c.b16 %v1344, %v1336
    %v2297 = vpack.c.b16 %v1345, %v1337
    %v2298 = vpack.c.b16 %v1346, %v1338
    %v2299 = vpack.c.b16 %v1347, %v1339
    %v2300 = vpack.c.b16 %v1348, %v1340
    %v2301 = vpack.c.b16 %v1349, %v1341
    %v2302 = vpack.c.b16 %v1350, %v1342
    %v2303 = vpack.c.b16 %v1359, %v1351
    %v2304 = vpack.c.b16 %v1360, %v1352
    %v2305 = vpack.c.b16 %v1361, %v1353
    %v2306 = vpack.c.b16 %v1362, %v1354
    %v2307 = vpack.c.b16 %v1363, %v1355
    %v2308 = vpack.c.b16 %v1364, %v1356
    %v2309 = vpack.c.b16 %v1365, %v1357
    %v2310 = vpack.c.b16 %v1366, %v1358
    %v2311 = vpack.c.b16 %v1375, %v1367
    %v2312 = vpack.c.b16 %v1376, %v1368
    %v2313 = vpack.c.b16 %v1377, %v1369
    %v2314 = vpack.c.b16 %v1378, %v1370
    %v2315 = vpack.c.b16 %v1379, %v1371
    %v2316 = vpack.c.b16 %v1380, %v1372
    %v2317 = vpack.c.b16 %v1381, %v1373
    %v2318 = vpack.c.b16 %v1382, %v1374
    %v2319 = vpack.c.b16 %v1391, %v1383
    %v2320 = vpack.c.b16 %v1392, %v1384
    %v2321 = vpack.c.b16 %v1393, %v1385
    %v2322 = vpack.c.b16 %v1394, %v1386
    %v2323 = vpack.c.b16 %v1395, %v1387
    %v2324 = vpack.c.b16 %v1396, %v1388
    %v2325 = vpack.c.b16 %v1397, %v1389
    %v2326 = vpack.c.b16 %v1398, %v1390
    %v2327 = vpack.c.b16 %v1407, %v1399
    %v2328 = vpack.c.b16 %v1408, %v1400
    %v2329 = vpack.c.b16 %v1409, %v1401
    %v2330 = vpack.c.b16 %v1410, %v1402
    %v2331 = vpack.c.b16 %v1411, %v1403
    %v2332 = vpack.c.b16 %v1412, %v1404
    %v2333 = vpack.c.b16 %v1413, %v1405
    %v2334 = vpack.c.b16 %v1414, %v1406
    %v2335 = vpack.c.b16 %v1423, %v1415
    %v2336 = vpack.c.b16 %v1424, %v1416
    %v2337 = vpack.c.b16 %v1425, %v1417
    %v2338 = vpack.c.b16 %v1426, %v1418
    %v2339 = vpack.c.b16 %v1427, %v1419
    %v2340 = vpack.c.b16 %v1428, %v1420
    %v2341 = vpack.c.b16 %v1429, %v1421
    %v2342 = vpack.c.b16 %v1430, %v1422
    %v2343 = vpack.c.b16 %v1439, %v1431
    %v2344 = vpack.c.b16 %v1440, %v1432
    %v2345 = vpack.c.b16 %v1441, %v1433
    %v2346 = vpack.c.b16 %v1442, %v1434
    %v2347 = vpack.c.b16 %v1443, %v1435
    %v2348 = vpack.c.b16 %v1444, %v1436
    %v2349 = vpack.c.b16 %v1445, %v1437
    %v2350 = vpack.c.b16 %v1446, %v1438
    %v2351 = vpack.c.b16 %v1455, %v1447
    %v2352 = vpack.c.b16 %v1456, %v1448
    %v2353 = vpack.c.b16 %v1457, %v1449
    %v2354 = vpack.c.b16 %v1458, %v1450
    %v2355 = vpack.c.b16 %v1459, %v1451
    %v2356 = vpack.c.b16 %v1460, %v1452
    %v2357 = vpack.c.b16 %v1461, %v1453
    %v2358 = vpack.c.b16 %v1462, %v1454
    %v2359 = vpack.c.b16 %v1471, %v1463
    %v2360 = vpack.c.b16 %v1472, %v1464
    %v2361 = vpack.c.b16 %v1473, %v1465
    %v2362 = vpack.c.b16 %v1474, %v1466
    %v2363 = vpack.c.b16 %v1475, %v1467
    %v2364 = vpack.c.b16 %v1476, %v1468
    %v2365 = vpack.c.b16 %v1477, %v1469
    %v2366 = vpack.c.b16 %v1478, %v1470
    %v2367 = vpack.c.b16 %v1487, %v1479
    %v2368 = vpack.c.b16 %v1488, %v1480
    %v2369 = vpack.c.b16 %v1489, %v1481
    %v2370 = vpack.c.b16 %v1490, %v1482
    %v2371 = vpack.c.b16 %v1491, %v1483
    %v2372 = vpack.c.b16 %v1492, %v1484
    %v2373 = vpack.c.b16 %v1493, %v1485
    %v2374 = vpack.c.b16 %v1494, %v1486
    %v2375 = vpack.c.b16 %v1503, %v1495
    %v2376 = vpack.c.b16 %v1504, %v1496
    %v2377 = vpack.c.b16 %v1505, %v1497
    %v2378 = vpack.c.b16 %v1506, %v1498
    %v2379 = vpack.c.b16 %v1507, %v1499
    %v2380 = vpack.c.b16 %v1508, %v1500
    %v2381 = vpack.c.b16 %v1509, %v1501
    %v2382 = vpack.c.b16 %v1510, %v1502
    %v2383 = vpack.c.b16 %v1519, %v1511
    %v2384 = vpack.c.b16 %v1520, %v1512
    %v2385 = vpack.c.b16 %v1521, %v1513
    %v2386 = vpack.c.b16 %v1522, %v1514
    %v2387 = vpack.c.b16 %v1523, %v1515
    %v2388 = vpack.c.b16 %v1524, %v1516
    %v2389 = vpack.c.b16 %v1525, %v1517
    %v2390 = vpack.c.b16 %v1526, %v1518
    %v2391 = vpack.c.b16 %v1535, %v1527
    %v2392 = vpack.c.b16 %v1536, %v1528
    %v2393 = vpack.c.b16 %v1537, %v1529
    %v2394 = vpack.c.b16 %v1538, %v1530
    %v2395 = vpack.c.b16 %v1539, %v1531
    %v2396 = vpack.c.b16 %v1540, %v1532
    %v2397 = vpack.c.b16 %v1541, %v1533
    %v2398 = vpack.c.b16 %v1542, %v1534
    %v2399 = vpack.c.b16 %v1551, %v1543
    %v2400 = vpack.c.b16 %v1552, %v1544
    %v2401 = vpack.c.b16 %v1553, %v1545
    %v2402 = vpack.c.b16 %v1554, %v1546
    %v2403 = vpack.c.b16 %v1555, %v1547
    %v2404 = vpack.c.b16 %v1556, %v1548
    %v2405 = vpack.c.b16 %v1557, %v1549
    %v2406 = vpack.c.b16 %v1558, %v1550
    %v2407 = vpack.c.b16 %v1567, %v1559
    %v2408 = vpack.c.b16 %v1568, %v1560
    %v2409 = vpack.c.b16 %v1569, %v1561
    %v2410 = vpack.c.b16 %v1570, %v1562
    %v2411 = vpack.c.b16 %v1571, %v1563
    %v2412 = vpack.c.b16 %v1572, %v1564
    %v2413 = vpack.c.b16 %v1573, %v1565
    %v2414 = vpack.c.b16 %v1574, %v1566
    %v2415 = vpack.c.b16 %v1583, %v1575
    %v2416 = vpack.c.b16 %v1584, %v1576
    %v2417 = vpack.c.b16 %v1585, %v1577
    %v2418 = vpack.c.b16 %v1586, %v1578
    %v2419 = vpack.c.b16 %v1587, %v1579
    %v2420 = vpack.c.b16 %v1588, %v1580
    %v2421 = vpack.c.b16 %v1589, %v1581
    %v2422 = vpack.c.b16 %v1590, %v1582
    %v2423 = vpack.c.b16 %v1599, %v1591
    %v2424 = vpack.c.b16 %v1600, %v1592
    %v2425 = vpack.c.b16 %v1601, %v1593
    %v2426 = vpack.c.b16 %v1602, %v1594
    %v2427 = vpack.c.b16 %v1603, %v1595
    %v2428 = vpack.c.b16 %v1604, %v1596
    %v2429 = vpack.c.b16 %v1605, %v1597
    %v2430 = vpack.c.b16 %v1606, %v1598
    %v2431 = vpack.c.b16 %v1615, %v1607
    %v2432 = vpack.c.b16 %v1616, %v1608
    %v2433 = vpack.c.b16 %v1617, %v1609
    %v2434 = vpack.c.b16 %v1618, %v1610
    %v2435 = vpack.c.b16 %v1619, %v1611
    %v2436 = vpack.c.b16 %v1620, %v1612
    %v2437 = vpack.c.b16 %v1621, %v1613
    %v2438 = vpack.c.b16 %v1622, %v1614
    %v2439 = vpack.c.b16 %v1631, %v1623
    %v2440 = vpack.c.b16 %v1632, %v1624
    %v2441 = vpack.c.b16 %v1633, %v1625
    %v2442 = vpack.c.b16 %v1634, %v1626
    %v2443 = vpack.c.b16 %v1635, %v1627
    %v2444 = vpack.c.b16 %v1636, %v1628
    %v2445 = vpack.c.b16 %v1637, %v1629
    %v2446 = vpack.c.b16 %v1638, %v1630
    %v2447 = vpack.c.b16 %v1647, %v1639
    %v2448 = vpack.c.b16 %v1648, %v1640
    %v2449 = vpack.c.b16 %v1649, %v1641
    %v2450 = vpack.c.b16 %v1650, %v1642
    %v2451 = vpack.c.b16 %v1651, %v1643
    %v2452 = vpack.c.b16 %v1652, %v1644
    %v2453 = vpack.c.b16 %v1653, %v1645
    %v2454 = vpack.c.b16 %v1654, %v1646
    %v2455 = vpack.c.b16 %v1663, %v1655
    %v2456 = vpack.c.b16 %v1664, %v1656
    %v2457 = vpack.c.b16 %v1665, %v1657
    %v2458 = vpack.c.b16 %v1666, %v1658
    %v2459 = vpack.c.b16 %v1667, %v1659
    %v2460 = vpack.c.b16 %v1668, %v1660
    %v2461 = vpack.c.b16 %v1669, %v1661
    %v2462 = vpack.c.b16 %v1670, %v1662
    %v2463 = vpack.c.b16 %v1679, %v1671
    %v2464 = vpack.c.b16 %v1680, %v1672
    %v2465 = vpack.c.b16 %v1681, %v1673
    %v2466 = vpack.c.b16 %v1682, %v1674
    %v2467 = vpack.c.b16 %v1683, %v1675
    %v2468 = vpack.c.b16 %v1684, %v1676
    %v2469 = vpack.c.b16 %v1685, %v1677
    %v2470 = vpack.c.b16 %v1686, %v1678
    %v2471 = vpack.c.b16 %v1695, %v1687
    %v2472 = vpack.c.b16 %v1696, %v1688
    %v2473 = vpack.c.b16 %v1697, %v1689
    %v2474 = vpack.c.b16 %v1698, %v1690
    %v2475 = vpack.c.b16 %v1699, %v1691
    %v2476 = vpack.c.b16 %v1700, %v1692
    %v2477 = vpack.c.b16 %v1701, %v1693
    %v2478 = vpack.c.b16 %v1702, %v1694
    %v2479 = vpack.c.b16 %v1711, %v1703
    %v2480 = vpack.c.b16 %v1712, %v1704
    %v2481 = vpack.c.b16 %v1713, %v1705
    %v2482 = vpack.c.b16 %v1714, %v1706
    %v2483 = vpack.c.b16 %v1715, %v1707
    %v2484 = vpack.c.b16 %v1716, %v1708
    %v2485 = vpack.c.b16 %v1717, %v1709
    %v2486 = vpack.c.b16 %v1718, %v1710
    %v2487 = vpack.c.b16 %v1727, %v1719
    %v2488 = vpack.c.b16 %v1728, %v1720
    %v2489 = vpack.c.b16 %v1729, %v1721
    %v2490 = vpack.c.b16 %v1730, %v1722
    %v2491 = vpack.c.b16 %v1731, %v1723
    %v2492 = vpack.c.b16 %v1732, %v1724
    %v2493 = vpack.c.b16 %v1733, %v1725
    %v2494 = vpack.c.b16 %v1734, %v1726
    %v2495 = vpack.c.b16 %v1743, %v1735
    %v2496 = vpack.c.b16 %v1744, %v1736
    %v2497 = vpack.c.b16 %v1745, %v1737
    %v2498 = vpack.c.b16 %v1746, %v1738
    %v2499 = vpack.c.b16 %v1747, %v1739
    %v2500 = vpack.c.b16 %v1748, %v1740
    %v2501 = vpack.c.b16 %v1749, %v1741
    %v2502 = vpack.c.b16 %v1750, %v1742
    %v2503 = vpack.c.b16 %v1759, %v1751
    %v2504 = vpack.c.b16 %v1760, %v1752
    %v2505 = vpack.c.b16 %v1761, %v1753
    %v2506 = vpack.c.b16 %v1762, %v1754
    %v2507 = vpack.c.b16 %v1763, %v1755
    %v2508 = vpack.c.b16 %v1764, %v1756
    %v2509 = vpack.c.b16 %v1765, %v1757
    %v2510 = vpack.c.b16 %v1766, %v1758
    %v2511 = vpack.c.b16 %v1775, %v1767
    %v2512 = vpack.c.b16 %v1776, %v1768
    %v2513 = vpack.c.b16 %v1777, %v1769
    %v2514 = vpack.c.b16 %v1778, %v1770
    %v2515 = vpack.c.b16 %v1779, %v1771
    %v2516 = vpack.c.b16 %v1780, %v1772
    %v2517 = vpack.c.b16 %v1781, %v1773
    %v2518 = vpack.c.b16 %v1782, %v1774
    %v2519 = vpack.c.b16 %v1791, %v1783
    %v2520 = vpack.c.b16 %v1792, %v1784
    %v2521 = vpack.c.b16 %v1793, %v1785
    %v2522 = vpack.c.b16 %v1794, %v1786
    %v2523 = vpack.c.b16 %v1795, %v1787
    %v2524 = vpack.c.b16 %v1796, %v1788
    %v2525 = vpack.c.b16 %v1797, %v1789
    %v2526 = vpack.c.b16 %v1798, %v1790
    %v2527 = vpack.c.b16 %v1807, %v1799
    %v2528 = vpack.c.b16 %v1808, %v1800
    %v2529 = vpack.c.b16 %v1809, %v1801
    %v2530 = vpack.c.b16 %v1810, %v1802
    %v2531 = vpack.c.b16 %v1811, %v1803
    %v2532 = vpack.c.b16 %v1812, %v1804
    %v2533 = vpack.c.b16 %v1813, %v1805
    %v2534 = vpack.c.b16 %v1814, %v1806
    %v2535 = vpack.c.b16 %v1823, %v1815
    %v2536 = vpack.c.b16 %v1824, %v1816
    %v2537 = vpack.c.b16 %v1825, %v1817
    %v2538 = vpack.c.b16 %v1826, %v1818
    %v2539 = vpack.c.b16 %v1827, %v1819
    %v2540 = vpack.c.b16 %v1828, %v1820
    %v2541 = vpack.c.b16 %v1829, %v1821
    %v2542 = vpack.c.b16 %v1830, %v1822
    %v2543 = vpack.c.b16 %v1839, %v1831
    %v2544 = vpack.c.b16 %v1840, %v1832
    %v2545 = vpack.c.b16 %v1841, %v1833
    %v2546 = vpack.c.b16 %v1842, %v1834
    %v2547 = vpack.c.b16 %v1843, %v1835
    %v2548 = vpack.c.b16 %v1844, %v1836
    %v2549 = vpack.c.b16 %v1845, %v1837
    %v2550 = vpack.c.b16 %v1846, %v1838
    %v2551 = vpack.c.b16 %v1855, %v1847
    %v2552 = vpack.c.b16 %v1856, %v1848
    %v2553 = vpack.c.b16 %v1857, %v1849
    %v2554 = vpack.c.b16 %v1858, %v1850
    %v2555 = vpack.c.b16 %v1859, %v1851
    %v2556 = vpack.c.b16 %v1860, %v1852
    %v2557 = vpack.c.b16 %v1861, %v1853
    %v2558 = vpack.c.b16 %v1862, %v1854
    %v2559 = vpack.c.b16 %v1871, %v1863
    %v2560 = vpack.c.b16 %v1872, %v1864
    %v2561 = vpack.c.b16 %v1873, %v1865
    %v2562 = vpack.c.b16 %v1874, %v1866
    %v2563 = vpack.c.b16 %v1875, %v1867
    %v2564 = vpack.c.b16 %v1876, %v1868
    %v2565 = vpack.c.b16 %v1877, %v1869
    %v2566 = vpack.c.b16 %v1878, %v1870
    %v2567 = vpack.c.b16 %v1887, %v1879
    %v2568 = vpack.c.b16 %v1888, %v1880
    %v2569 = vpack.c.b16 %v1889, %v1881
    %v2570 = vpack.c.b16 %v1890, %v1882
    %v2571 = vpack.c.b16 %v1891, %v1883
    %v2572 = vpack.c.b16 %v1892, %v1884
    %v2573 = vpack.c.b16 %v1893, %v1885
    %v2574 = vpack.c.b16 %v1894, %v1886
    %v2575 = vpack.c.b16 %v1903, %v1895
    %v2576 = vpack.c.b16 %v1904, %v1896
    %v2577 = vpack.c.b16 %v1905, %v1897
    %v2578 = vpack.c.b16 %v1906, %v1898
    %v2579 = vpack.c.b16 %v1907, %v1899
    %v2580 = vpack.c.b16 %v1908, %v1900
    %v2581 = vpack.c.b16 %v1909, %v1901
    %v2582 = vpack.c.b16 %v1910, %v1902
    %v2583 = vpack.c.b16 %v1919, %v1911
    %v2584 = vpack.c.b16 %v1920, %v1912
    %v2585 = vpack.c.b16 %v1921, %v1913
    %v2586 = vpack.c.b16 %v1922, %v1914
    %v2587 = vpack.c.b16 %v1923, %v1915
    %v2588 = vpack.c.b16 %v1924, %v1916
    %v2589 = vpack.c.b16 %v1925, %v1917
    %v2590 = vpack.c.b16 %v1926, %v1918
    %v2591 = vpack.c.b16 %v1935, %v1927
    %v2592 = vpack.c.b16 %v1936, %v1928
    %v2593 = vpack.c.b16 %v1937, %v1929
    %v2594 = vpack.c.b16 %v1938, %v1930
    %v2595 = vpack.c.b16 %v1939, %v1931
    %v2596 = vpack.c.b16 %v1940, %v1932
    %v2597 = vpack.c.b16 %v1941, %v1933
    %v2598 = vpack.c.b16 %v1942, %v1934
    %v2599 = vpack.c.b16 %v1951, %v1943
    %v2600 = vpack.c.b16 %v1952, %v1944
    %v2601 = vpack.c.b16 %v1953, %v1945
    %v2602 = vpack.c.b16 %v1954, %v1946
    %v2603 = vpack.c.b16 %v1955, %v1947
    %v2604 = vpack.c.b16 %v1956, %v1948
    %v2605 = vpack.c.b16 %v1957, %v1949
    %v2606 = vpack.c.b16 %v1958, %v1950
    %v2607 = vpack.c.b16 %v1967, %v1959
    %v2608 = vpack.c.b16 %v1968, %v1960
    %v2609 = vpack.c.b16 %v1969, %v1961
    %v2610 = vpack.c.b16 %v1970, %v1962
    %v2611 = vpack.c.b16 %v1971, %v1963
    %v2612 = vpack.c.b16 %v1972, %v1964
    %v2613 = vpack.c.b16 %v1973, %v1965
    %v2614 = vpack.c.b16 %v1974, %v1966
    %v2615 = vpack.c.b16 %v1983, %v1975
    %v2616 = vpack.c.b16 %v1984, %v1976
    %v2617 = vpack.c.b16 %v1985, %v1977
    %v2618 = vpack.c.b16 %v1986, %v1978
    %v2619 = vpack.c.b16 %v1987, %v1979
    %v2620 = vpack.c.b16 %v1988, %v1980
    %v2621 = vpack.c.b16 %v1989, %v1981
    %v2622 = vpack.c.b16 %v1990, %v1982
    %v2623 = vpack.c.b16 %v1999, %v1991
    %v2624 = vpack.c.b16 %v2000, %v1992
    %v2625 = vpack.c.b16 %v2001, %v1993
    %v2626 = vpack.c.b16 %v2002, %v1994
    %v2627 = vpack.c.b16 %v2003, %v1995
    %v2628 = vpack.c.b16 %v2004, %v1996
    %v2629 = vpack.c.b16 %v2005, %v1997
    %v2630 = vpack.c.b16 %v2006, %v1998
    %v2631 = vpack.c.b16 %v2015, %v2007
    %v2632 = vpack.c.b16 %v2016, %v2008
    %v2633 = vpack.c.b16 %v2017, %v2009
    %v2634 = vpack.c.b16 %v2018, %v2010
    %v2635 = vpack.c.b16 %v2019, %v2011
    %v2636 = vpack.c.b16 %v2020, %v2012
    %v2637 = vpack.c.b16 %v2021, %v2013
    %v2638 = vpack.c.b16 %v2022, %v2014
    %v2639 = vpack.c.b16 %v2031, %v2023
    %v2640 = vpack.c.b16 %v2032, %v2024
    %v2641 = vpack.c.b16 %v2033, %v2025
    %v2642 = vpack.c.b16 %v2034, %v2026
    %v2643 = vpack.c.b16 %v2035, %v2027
    %v2644 = vpack.c.b16 %v2036, %v2028
    %v2645 = vpack.c.b16 %v2037, %v2029
    %v2646 = vpack.c.b16 %v2038, %v2030
    %v2647 = vpack.c.b16 %v2047, %v2039
    %v2648 = vpack.c.b16 %v2048, %v2040
    %v2649 = vpack.c.b16 %v2049, %v2041
    %v2650 = vpack.c.b16 %v2050, %v2042
    %v2651 = vpack.c.b16 %v2051, %v2043
    %v2652 = vpack.c.b16 %v2052, %v2044
    %v2653 = vpack.c.b16 %v2053, %v2045
    %v2654 = vpack.c.b16 %v2054, %v2046
    %v2655 = vpack.c.b16 %v2063, %v2055
    %v2656 = vpack.c.b16 %v2064, %v2056
    %v2657 = vpack.c.b16 %v2065, %v2057
    %v2658 = vpack.c.b16 %v2066, %v2058
    %v2659 = vpack.c.b16 %v2067, %v2059
    %v2660 = vpack.c.b16 %v2068, %v2060
    %v2661 = vpack.c.b16 %v2069, %v2061
    %v2662 = vpack.c.b16 %v2070, %v2062
    %v2663 = vpack.c.b16 %v2079, %v2071
    %v2664 = vpack.c.b16 %v2080, %v2072
    %v2665 = vpack.c.b16 %v2081, %v2073
    %v2666 = vpack.c.b16 %v2082, %v2074
    %v2667 = vpack.c.b16 %v2083, %v2075
    %v2668 = vpack.c.b16 %v2084, %v2076
    %v2669 = vpack.c.b16 %v2085, %v2077
    %v2670 = vpack.c.b16 %v2086, %v2078
    %v2671 = vpack.c.b16 %v2095, %v2087
    %v2672 = vpack.c.b16 %v2096, %v2088
    %v2673 = vpack.c.b16 %v2097, %v2089
    %v2674 = vpack.c.b16 %v2098, %v2090
    %v2675 = vpack.c.b16 %v2099, %v2091
    %v2676 = vpack.c.b16 %v2100, %v2092
    %v2677 = vpack.c.b16 %v2101, %v2093
    %v2678 = vpack.c.b16 %v2102, %v2094
    %v2679 = vpack.c.b16 %v2111, %v2103
    %v2680 = vpack.c.b16 %v2112, %v2104
    %v2681 = vpack.c.b16 %v2113, %v2105
    %v2682 = vpack.c.b16 %v2114, %v2106
    %v2683 = vpack.c.b16 %v2115, %v2107
    %v2684 = vpack.c.b16 %v2116, %v2108
    %v2685 = vpack.c.b16 %v2117, %v2109
    %v2686 = vpack.c.b16 %v2118, %v2110
    %v2687 = vpack.c.b16 %v2127, %v2119
    %v2688 = vpack.c.b16 %v2128, %v2120
    %v2689 = vpack.c.b16 %v2129, %v2121
    %v2690 = vpack.c.b16 %v2130, %v2122
    %v2691 = vpack.c.b16 %v2131, %v2123
    %v2692 = vpack.c.b16 %v2132, %v2124
    %v2693 = vpack.c.b16 %v2133, %v2125
    %v2694 = vpack.c.b16 %v2134, %v2126
    %v2695 = vpack.c.b16 %v2143, %v2135
    %v2696 = vpack.c.b16 %v2144, %v2136
    %v2697 = vpack.c.b16 %v2145, %v2137
    %v2698 = vpack.c.b16 %v2146, %v2138
    %v2699 = vpack.c.b16 %v2147, %v2139
    %v2700 = vpack.c.b16 %v2148, %v2140
    %v2701 = vpack.c.b16 %v2149, %v2141
    %v2702 = vpack.c.b16 %v2150, %v2142
    %v2703 = vpack.c.b16 %v2159, %v2151
    %v2704 = vpack.c.b16 %v2160, %v2152
    %v2705 = vpack.c.b16 %v2161, %v2153
    %v2706 = vpack.c.b16 %v2162, %v2154
    %v2707 = vpack.c.b16 %v2163, %v2155
    %v2708 = vpack.c.b16 %v2164, %v2156
    %v2709 = vpack.c.b16 %v2165, %v2157
    %v2710 = vpack.c.b16 %v2166, %v2158
    %v2711 = vpack.c.b16 %v2175, %v2167
    %v2712 = vpack.c.b16 %v2176, %v2168
    %v2713 = vpack.c.b16 %v2177, %v2169
    %v2714 = vpack.c.b16 %v2178, %v2170
    %v2715 = vpack.c.b16 %v2179, %v2171
    %v2716 = vpack.c.b16 %v2180, %v2172
    %v2717 = vpack.c.b16 %v2181, %v2173
    %v2718 = vpack.c.b16 %v2182, %v2174
    %v2719 = vpack.c.b16 %v2191, %v2183
    %v2720 = vpack.c.b16 %v2192, %v2184
    %v2721 = vpack.c.b16 %v2193, %v2185
    %v2722 = vpack.c.b16 %v2194, %v2186
    %v2723 = vpack.c.b16 %v2195, %v2187
    %v2724 = vpack.c.b16 %v2196, %v2188
    %v2725 = vpack.c.b16 %v2197, %v2189
    %v2726 = vpack.c.b16 %v2198, %v2190
    %v2727 = vpack.c.b16 %v2207, %v2199
    %v2728 = vpack.c.b16 %v2208, %v2200
    %v2729 = vpack.c.b16 %v2209, %v2201
    %v2730 = vpack.c.b16 %v2210, %v2202
    %v2731 = vpack.c.b16 %v2211, %v2203
    %v2732 = vpack.c.b16 %v2212, %v2204
    %v2733 = vpack.c.b16 %v2213, %v2205
    %v2734 = vpack.c.b16 %v2214, %v2206
    %v2735 = vpack.c.b16 %v2223, %v2215
    %v2736 = vpack.c.b16 %v2224, %v2216
    %v2737 = vpack.c.b16 %v2225, %v2217
    %v2738 = vpack.c.b16 %v2226, %v2218
    %v2739 = vpack.c.b16 %v2227, %v2219
    %v2740 = vpack.c.b16 %v2228, %v2220
    %v2741 = vpack.c.b16 %v2229, %v2221
    %v2742 = vpack.c.b16 %v2230, %v2222
    %3255 = vmatpush.bf16.msra.mxu0 %v2287
    %3256 = vmatpush.bf16.msra.mxu0 %v2279
    %3257 = vmatpush.bf16.msra.mxu0 %v2271
    %3258 = vmatpush.bf16.msra.mxu0 %v2263
    %3259 = vmatpush.bf16.msra.mxu0 %v2255
    %3260 = vmatpush.bf16.msra.mxu0 %v2247
    %3261 = vmatpush.bf16.msra.mxu0 %v2239
    %3262 = vmatpush.bf16.msra.mxu0 %v2231
    %3263 = vmatmul.bf16.gmra.mxu0 %v157
    %v3264 = vpop.f32.mrf.mxu0
    %v3265 = vadd.f32 %v679, %v3264
    %v3266 = vpop.f32.mrf.mxu0
    %3267 = vdwg.mxu0
    %3268 = vmatpush.bf16.msra.mxu0 %v2351
    %3269 = vmatpush.bf16.msra.mxu0 %v2343
    %3270 = vmatpush.bf16.msra.mxu0 %v2335
    %3271 = vmatpush.bf16.msra.mxu0 %v2327
    %3272 = vmatpush.bf16.msra.mxu0 %v2319
    %3273 = vmatpush.bf16.msra.mxu0 %v2311
    %3274 = vmatpush.bf16.msra.mxu0 %v2303
    %3275 = vmatpush.bf16.msra.mxu0 %v2295
    %3276 = vmatmul.bf16.gmra.mxu0 %v158
    %v3277 = vpop.f32.mrf.mxu0
    %v3278 = vadd.f32 %v3265, %v3277
    %v3279 = vpop.f32.mrf.mxu0
    %3280 = vdwg.mxu0
    %3281 = vmatpush.bf16.msra.mxu0 %v2415
    %3282 = vmatpush.bf16.msra.mxu0 %v2407
    %3283 = vmatpush.bf16.msra.mxu0 %v2399
    %3284 = vmatpush.bf16.msra.mxu0 %v2391
    %3285 = vmatpush.bf16.msra.mxu0 %v2383
    %3286 = vmatpush.bf16.msra.mxu0 %v2375
    %3287 = vmatpush.bf16.msra.mxu0 %v2367
    %3288 = vmatpush.bf16.msra.mxu0 %v2359
    %3289 = vmatmul.bf16.gmra.mxu0 %v159
    %v3290 = vpop.f32.mrf.mxu0
    %v3291 = vadd.f32 %v3278, %v3290
    %v3292 = vpop.f32.mrf.mxu0
    %3293 = vdwg.mxu0
    %3294 = vmatpush.bf16.msra.mxu0 %v2479
    %3295 = vmatpush.bf16.msra.mxu0 %v2471
    %3296 = vmatpush.bf16.msra.mxu0 %v2463
    %3297 = vmatpush.bf16.msra.mxu0 %v2455
    %3298 = vmatpush.bf16.msra.mxu0 %v2447
    %3299 = vmatpush.bf16.msra.mxu0 %v2439
    %3300 = vmatpush.bf16.msra.mxu0 %v2431
    %3301 = vmatpush.bf16.msra.mxu0 %v2423
    %3302 = vmatmul.bf16.gmra.mxu0 %v160
    %v3303 = vpop.f32.mrf.mxu0
    %v3304 = vadd.f32 %v3291, %v3303
    %v3305 = vpop.f32.mrf.mxu0
    %3306 = vdwg.mxu0
    %3307 = vmatpush.bf16.msra.mxu0 %v2543
    %3308 = vmatpush.bf16.msra.mxu0 %v2535
    %3309 = vmatpush.bf16.msra.mxu0 %v2527
    %3310 = vmatpush.bf16.msra.mxu0 %v2519
    %3311 = vmatpush.bf16.msra.mxu0 %v2511
    %3312 = vmatpush.bf16.msra.mxu0 %v2503
    %3313 = vmatpush.bf16.msra.mxu0 %v2495
    %3314 = vmatpush.bf16.msra.mxu0 %v2487
    %3315 = vmatmul.bf16.gmra.mxu0 %v161
    %v3316 = vpop.f32.mrf.mxu0
    %v3317 = vadd.f32 %v3304, %v3316
    %v3318 = vpop.f32.mrf.mxu0
    %3319 = vdwg.mxu0
    %3320 = vmatpush.bf16.msra.mxu0 %v2607
    %3321 = vmatpush.bf16.msra.mxu0 %v2599
    %3322 = vmatpush.bf16.msra.mxu0 %v2591
    %3323 = vmatpush.bf16.msra.mxu0 %v2583
    %3324 = vmatpush.bf16.msra.mxu0 %v2575
    %3325 = vmatpush.bf16.msra.mxu0 %v2567
    %3326 = vmatpush.bf16.msra.mxu0 %v2559
    %3327 = vmatpush.bf16.msra.mxu0 %v2551
    %3328 = vmatmul.bf16.gmra.mxu0 %v162
    %v3329 = vpop.f32.mrf.mxu0
    %v3330 = vadd.f32 %v3317, %v3329
    %v3331 = vpop.f32.mrf.mxu0
    %3332 = vdwg.mxu0
    %3333 = vmatpush.bf16.msra.mxu0 %v2671
    %3334 = vmatpush.bf16.msra.mxu0 %v2663
    %3335 = vmatpush.bf16.msra.mxu0 %v2655
    %3336 = vmatpush.bf16.msra.mxu0 %v2647
    %3337 = vmatpush.bf16.msra.mxu0 %v2639
    %3338 = vmatpush.bf16.msra.mxu0 %v2631
    %3339 = vmatpush.bf16.msra.mxu0 %v2623
    %3340 = vmatpush.bf16.msra.mxu0 %v2615
    %3341 = vmatmul.bf16.gmra.mxu0 %v163
    %v3342 = vpop.f32.mrf.mxu0
    %v3343 = vadd.f32 %v3330, %v3342
    %v3344 = vpop.f32.mrf.mxu0
    %3345 = vdwg.mxu0
    %3346 = vmatpush.bf16.msra.mxu0 %v2735
    %3347 = vmatpush.bf16.msra.mxu0 %v2727
    %3348 = vmatpush.bf16.msra.mxu0 %v2719
    %3349 = vmatpush.bf16.msra.mxu0 %v2711
    %3350 = vmatpush.bf16.msra.mxu0 %v2703
    %3351 = vmatpush.bf16.msra.mxu0 %v2695
    %3352 = vmatpush.bf16.msra.mxu0 %v2687
    %3353 = vmatpush.bf16.msra.mxu0 %v2679
    %3354 = vmatmul.bf16.gmra.mxu0 %v164
    %v3355 = vpop.f32.mrf.mxu0
    %v3356 = vadd.f32 %v3343, %v3355
    %v3357 = vpop.f32.mrf.mxu0
    %3358 = vdwg.mxu0
    %3359 = vmatpush.bf16.msra.mxu0 %v2288
    %3360 = vmatpush.bf16.msra.mxu0 %v2280
    %3361 = vmatpush.bf16.msra.mxu0 %v2272
    %3362 = vmatpush.bf16.msra.mxu0 %v2264
    %3363 = vmatpush.bf16.msra.mxu0 %v2256
    %3364 = vmatpush.bf16.msra.mxu0 %v2248
    %3365 = vmatpush.bf16.msra.mxu0 %v2240
    %3366 = vmatpush.bf16.msra.mxu0 %v2232
    %3367 = vmatmul.bf16.gmra.mxu0 %v157
    %v3368 = vpop.f32.mrf.mxu0
    %v3369 = vadd.f32 %v680, %v3368
    %v3370 = vpop.f32.mrf.mxu0
    %3371 = vdwg.mxu0
    %3372 = vmatpush.bf16.msra.mxu0 %v2352
    %3373 = vmatpush.bf16.msra.mxu0 %v2344
    %3374 = vmatpush.bf16.msra.mxu0 %v2336
    %3375 = vmatpush.bf16.msra.mxu0 %v2328
    %3376 = vmatpush.bf16.msra.mxu0 %v2320
    %3377 = vmatpush.bf16.msra.mxu0 %v2312
    %3378 = vmatpush.bf16.msra.mxu0 %v2304
    %3379 = vmatpush.bf16.msra.mxu0 %v2296
    %3380 = vmatmul.bf16.gmra.mxu0 %v158
    %v3381 = vpop.f32.mrf.mxu0
    %v3382 = vadd.f32 %v3369, %v3381
    %v3383 = vpop.f32.mrf.mxu0
    %3384 = vdwg.mxu0
    %3385 = vmatpush.bf16.msra.mxu0 %v2416
    %3386 = vmatpush.bf16.msra.mxu0 %v2408
    %3387 = vmatpush.bf16.msra.mxu0 %v2400
    %3388 = vmatpush.bf16.msra.mxu0 %v2392
    %3389 = vmatpush.bf16.msra.mxu0 %v2384
    %3390 = vmatpush.bf16.msra.mxu0 %v2376
    %3391 = vmatpush.bf16.msra.mxu0 %v2368
    %3392 = vmatpush.bf16.msra.mxu0 %v2360
    %3393 = vmatmul.bf16.gmra.mxu0 %v159
    %v3394 = vpop.f32.mrf.mxu0
    %v3395 = vadd.f32 %v3382, %v3394
    %v3396 = vpop.f32.mrf.mxu0
    %3397 = vdwg.mxu0
    %3398 = vmatpush.bf16.msra.mxu0 %v2480
    %3399 = vmatpush.bf16.msra.mxu0 %v2472
    %3400 = vmatpush.bf16.msra.mxu0 %v2464
    %3401 = vmatpush.bf16.msra.mxu0 %v2456
    %3402 = vmatpush.bf16.msra.mxu0 %v2448
    %3403 = vmatpush.bf16.msra.mxu0 %v2440
    %3404 = vmatpush.bf16.msra.mxu0 %v2432
    %3405 = vmatpush.bf16.msra.mxu0 %v2424
    %3406 = vmatmul.bf16.gmra.mxu0 %v160
    %v3407 = vpop.f32.mrf.mxu0
    %v3408 = vadd.f32 %v3395, %v3407
    %v3409 = vpop.f32.mrf.mxu0
    %3410 = vdwg.mxu0
    %3411 = vmatpush.bf16.msra.mxu0 %v2544
    %3412 = vmatpush.bf16.msra.mxu0 %v2536
    %3413 = vmatpush.bf16.msra.mxu0 %v2528
    %3414 = vmatpush.bf16.msra.mxu0 %v2520
    %3415 = vmatpush.bf16.msra.mxu0 %v2512
    %3416 = vmatpush.bf16.msra.mxu0 %v2504
    %3417 = vmatpush.bf16.msra.mxu0 %v2496
    %3418 = vmatpush.bf16.msra.mxu0 %v2488
    %3419 = vmatmul.bf16.gmra.mxu0 %v161
    %v3420 = vpop.f32.mrf.mxu0
    %v3421 = vadd.f32 %v3408, %v3420
    %v3422 = vpop.f32.mrf.mxu0
    %3423 = vdwg.mxu0
    %3424 = vmatpush.bf16.msra.mxu0 %v2608
    %3425 = vmatpush.bf16.msra.mxu0 %v2600
    %3426 = vmatpush.bf16.msra.mxu0 %v2592
    %3427 = vmatpush.bf16.msra.mxu0 %v2584
    %3428 = vmatpush.bf16.msra.mxu0 %v2576
    %3429 = vmatpush.bf16.msra.mxu0 %v2568
    %3430 = vmatpush.bf16.msra.mxu0 %v2560
    %3431 = vmatpush.bf16.msra.mxu0 %v2552
    %3432 = vmatmul.bf16.gmra.mxu0 %v162
    %v3433 = vpop.f32.mrf.mxu0
    %v3434 = vadd.f32 %v3421, %v3433
    %v3435 = vpop.f32.mrf.mxu0
    %3436 = vdwg.mxu0
    %3437 = vmatpush.bf16.msra.mxu0 %v2672
    %3438 = vmatpush.bf16.msra.mxu0 %v2664
    %3439 = vmatpush.bf16.msra.mxu0 %v2656
    %3440 = vmatpush.bf16.msra.mxu0 %v2648
    %3441 = vmatpush.bf16.msra.mxu0 %v2640
    %3442 = vmatpush.bf16.msra.mxu0 %v2632
    %3443 = vmatpush.bf16.msra.mxu0 %v2624
    %3444 = vmatpush.bf16.msra.mxu0 %v2616
    %3445 = vmatmul.bf16.gmra.mxu0 %v163
    %v3446 = vpop.f32.mrf.mxu0
    %v3447 = vadd.f32 %v3434, %v3446
    %v3448 = vpop.f32.mrf.mxu0
    %3449 = vdwg.mxu0
    %3450 = vmatpush.bf16.msra.mxu0 %v2736
    %3451 = vmatpush.bf16.msra.mxu0 %v2728
    %3452 = vmatpush.bf16.msra.mxu0 %v2720
    %3453 = vmatpush.bf16.msra.mxu0 %v2712
    %3454 = vmatpush.bf16.msra.mxu0 %v2704
    %3455 = vmatpush.bf16.msra.mxu0 %v2696
    %3456 = vmatpush.bf16.msra.mxu0 %v2688
    %3457 = vmatpush.bf16.msra.mxu0 %v2680
    %3458 = vmatmul.bf16.gmra.mxu0 %v164
    %v3459 = vpop.f32.mrf.mxu0
    %v3460 = vadd.f32 %v3447, %v3459
    %v3461 = vpop.f32.mrf.mxu0
    %3462 = vdwg.mxu0
    %3463 = vmatpush.bf16.msra.mxu0 %v2289
    %3464 = vmatpush.bf16.msra.mxu0 %v2281
    %3465 = vmatpush.bf16.msra.mxu0 %v2273
    %3466 = vmatpush.bf16.msra.mxu0 %v2265
    %3467 = vmatpush.bf16.msra.mxu0 %v2257
    %3468 = vmatpush.bf16.msra.mxu0 %v2249
    %3469 = vmatpush.bf16.msra.mxu0 %v2241
    %3470 = vmatpush.bf16.msra.mxu0 %v2233
    %3471 = vmatmul.bf16.gmra.mxu0 %v157
    %v3472 = vpop.f32.mrf.mxu0
    %v3473 = vadd.f32 %v681, %v3472
    %v3474 = vpop.f32.mrf.mxu0
    %3475 = vdwg.mxu0
    %3476 = vmatpush.bf16.msra.mxu0 %v2353
    %3477 = vmatpush.bf16.msra.mxu0 %v2345
    %3478 = vmatpush.bf16.msra.mxu0 %v2337
    %3479 = vmatpush.bf16.msra.mxu0 %v2329
    %3480 = vmatpush.bf16.msra.mxu0 %v2321
    %3481 = vmatpush.bf16.msra.mxu0 %v2313
    %3482 = vmatpush.bf16.msra.mxu0 %v2305
    %3483 = vmatpush.bf16.msra.mxu0 %v2297
    %3484 = vmatmul.bf16.gmra.mxu0 %v158
    %v3485 = vpop.f32.mrf.mxu0
    %v3486 = vadd.f32 %v3473, %v3485
    %v3487 = vpop.f32.mrf.mxu0
    %3488 = vdwg.mxu0
    %3489 = vmatpush.bf16.msra.mxu0 %v2417
    %3490 = vmatpush.bf16.msra.mxu0 %v2409
    %3491 = vmatpush.bf16.msra.mxu0 %v2401
    %3492 = vmatpush.bf16.msra.mxu0 %v2393
    %3493 = vmatpush.bf16.msra.mxu0 %v2385
    %3494 = vmatpush.bf16.msra.mxu0 %v2377
    %3495 = vmatpush.bf16.msra.mxu0 %v2369
    %3496 = vmatpush.bf16.msra.mxu0 %v2361
    %3497 = vmatmul.bf16.gmra.mxu0 %v159
    %v3498 = vpop.f32.mrf.mxu0
    %v3499 = vadd.f32 %v3486, %v3498
    %v3500 = vpop.f32.mrf.mxu0
    %3501 = vdwg.mxu0
    %3502 = vmatpush.bf16.msra.mxu0 %v2481
    %3503 = vmatpush.bf16.msra.mxu0 %v2473
    %3504 = vmatpush.bf16.msra.mxu0 %v2465
    %3505 = vmatpush.bf16.msra.mxu0 %v2457
    %3506 = vmatpush.bf16.msra.mxu0 %v2449
    %3507 = vmatpush.bf16.msra.mxu0 %v2441
    %3508 = vmatpush.bf16.msra.mxu0 %v2433
    %3509 = vmatpush.bf16.msra.mxu0 %v2425
    %3510 = vmatmul.bf16.gmra.mxu0 %v160
    %v3511 = vpop.f32.mrf.mxu0
    %v3512 = vadd.f32 %v3499, %v3511
    %v3513 = vpop.f32.mrf.mxu0
    %3514 = vdwg.mxu0
    %3515 = vmatpush.bf16.msra.mxu0 %v2545
    %3516 = vmatpush.bf16.msra.mxu0 %v2537
    %3517 = vmatpush.bf16.msra.mxu0 %v2529
    %3518 = vmatpush.bf16.msra.mxu0 %v2521
    %3519 = vmatpush.bf16.msra.mxu0 %v2513
    %3520 = vmatpush.bf16.msra.mxu0 %v2505
    %3521 = vmatpush.bf16.msra.mxu0 %v2497
    %3522 = vmatpush.bf16.msra.mxu0 %v2489
    %3523 = vmatmul.bf16.gmra.mxu0 %v161
    %v3524 = vpop.f32.mrf.mxu0
    %v3525 = vadd.f32 %v3512, %v3524
    %v3526 = vpop.f32.mrf.mxu0
    %3527 = vdwg.mxu0
    %3528 = vmatpush.bf16.msra.mxu0 %v2609
    %3529 = vmatpush.bf16.msra.mxu0 %v2601
    %3530 = vmatpush.bf16.msra.mxu0 %v2593
    %3531 = vmatpush.bf16.msra.mxu0 %v2585
    %3532 = vmatpush.bf16.msra.mxu0 %v2577
    %3533 = vmatpush.bf16.msra.mxu0 %v2569
    %3534 = vmatpush.bf16.msra.mxu0 %v2561
    %3535 = vmatpush.bf16.msra.mxu0 %v2553
    %3536 = vmatmul.bf16.gmra.mxu0 %v162
    %v3537 = vpop.f32.mrf.mxu0
    %v3538 = vadd.f32 %v3525, %v3537
    %v3539 = vpop.f32.mrf.mxu0
    %3540 = vdwg.mxu0
    %3541 = vmatpush.bf16.msra.mxu0 %v2673
    %3542 = vmatpush.bf16.msra.mxu0 %v2665
    %3543 = vmatpush.bf16.msra.mxu0 %v2657
    %3544 = vmatpush.bf16.msra.mxu0 %v2649
    %3545 = vmatpush.bf16.msra.mxu0 %v2641
    %3546 = vmatpush.bf16.msra.mxu0 %v2633
    %3547 = vmatpush.bf16.msra.mxu0 %v2625
    %3548 = vmatpush.bf16.msra.mxu0 %v2617
    %3549 = vmatmul.bf16.gmra.mxu0 %v163
    %v3550 = vpop.f32.mrf.mxu0
    %v3551 = vadd.f32 %v3538, %v3550
    %v3552 = vpop.f32.mrf.mxu0
    %3553 = vdwg.mxu0
    %3554 = vmatpush.bf16.msra.mxu0 %v2737
    %3555 = vmatpush.bf16.msra.mxu0 %v2729
    %3556 = vmatpush.bf16.msra.mxu0 %v2721
    %3557 = vmatpush.bf16.msra.mxu0 %v2713
    %3558 = vmatpush.bf16.msra.mxu0 %v2705
    %3559 = vmatpush.bf16.msra.mxu0 %v2697
    %3560 = vmatpush.bf16.msra.mxu0 %v2689
    %3561 = vmatpush.bf16.msra.mxu0 %v2681
    %3562 = vmatmul.bf16.gmra.mxu0 %v164
    %v3563 = vpop.f32.mrf.mxu0
    %v3564 = vadd.f32 %v3551, %v3563
    %v3565 = vpop.f32.mrf.mxu0
    %3566 = vdwg.mxu0
    %3567 = vmatpush.bf16.msra.mxu0 %v2290
    %3568 = vmatpush.bf16.msra.mxu0 %v2282
    %3569 = vmatpush.bf16.msra.mxu0 %v2274
    %3570 = vmatpush.bf16.msra.mxu0 %v2266
    %3571 = vmatpush.bf16.msra.mxu0 %v2258
    %3572 = vmatpush.bf16.msra.mxu0 %v2250
    %3573 = vmatpush.bf16.msra.mxu0 %v2242
    %3574 = vmatpush.bf16.msra.mxu0 %v2234
    %3575 = vmatmul.bf16.gmra.mxu0 %v157
    %v3576 = vpop.f32.mrf.mxu0
    %v3577 = vadd.f32 %v682, %v3576
    %v3578 = vpop.f32.mrf.mxu0
    %3579 = vdwg.mxu0
    %3580 = vmatpush.bf16.msra.mxu0 %v2354
    %3581 = vmatpush.bf16.msra.mxu0 %v2346
    %3582 = vmatpush.bf16.msra.mxu0 %v2338
    %3583 = vmatpush.bf16.msra.mxu0 %v2330
    %3584 = vmatpush.bf16.msra.mxu0 %v2322
    %3585 = vmatpush.bf16.msra.mxu0 %v2314
    %3586 = vmatpush.bf16.msra.mxu0 %v2306
    %3587 = vmatpush.bf16.msra.mxu0 %v2298
    %3588 = vmatmul.bf16.gmra.mxu0 %v158
    %v3589 = vpop.f32.mrf.mxu0
    %v3590 = vadd.f32 %v3577, %v3589
    %v3591 = vpop.f32.mrf.mxu0
    %3592 = vdwg.mxu0
    %3593 = vmatpush.bf16.msra.mxu0 %v2418
    %3594 = vmatpush.bf16.msra.mxu0 %v2410
    %3595 = vmatpush.bf16.msra.mxu0 %v2402
    %3596 = vmatpush.bf16.msra.mxu0 %v2394
    %3597 = vmatpush.bf16.msra.mxu0 %v2386
    %3598 = vmatpush.bf16.msra.mxu0 %v2378
    %3599 = vmatpush.bf16.msra.mxu0 %v2370
    %3600 = vmatpush.bf16.msra.mxu0 %v2362
    %3601 = vmatmul.bf16.gmra.mxu0 %v159
    %v3602 = vpop.f32.mrf.mxu0
    %v3603 = vadd.f32 %v3590, %v3602
    %v3604 = vpop.f32.mrf.mxu0
    %3605 = vdwg.mxu0
    %3606 = vmatpush.bf16.msra.mxu0 %v2482
    %3607 = vmatpush.bf16.msra.mxu0 %v2474
    %3608 = vmatpush.bf16.msra.mxu0 %v2466
    %3609 = vmatpush.bf16.msra.mxu0 %v2458
    %3610 = vmatpush.bf16.msra.mxu0 %v2450
    %3611 = vmatpush.bf16.msra.mxu0 %v2442
    %3612 = vmatpush.bf16.msra.mxu0 %v2434
    %3613 = vmatpush.bf16.msra.mxu0 %v2426
    %3614 = vmatmul.bf16.gmra.mxu0 %v160
    %v3615 = vpop.f32.mrf.mxu0
    %v3616 = vadd.f32 %v3603, %v3615
    %v3617 = vpop.f32.mrf.mxu0
    %3618 = vdwg.mxu0
    %3619 = vmatpush.bf16.msra.mxu0 %v2546
    %3620 = vmatpush.bf16.msra.mxu0 %v2538
    %3621 = vmatpush.bf16.msra.mxu0 %v2530
    %3622 = vmatpush.bf16.msra.mxu0 %v2522
    %3623 = vmatpush.bf16.msra.mxu0 %v2514
    %3624 = vmatpush.bf16.msra.mxu0 %v2506
    %3625 = vmatpush.bf16.msra.mxu0 %v2498
    %3626 = vmatpush.bf16.msra.mxu0 %v2490
    %3627 = vmatmul.bf16.gmra.mxu0 %v161
    %v3628 = vpop.f32.mrf.mxu0
    %v3629 = vadd.f32 %v3616, %v3628
    %v3630 = vpop.f32.mrf.mxu0
    %3631 = vdwg.mxu0
    %3632 = vmatpush.bf16.msra.mxu0 %v2610
    %3633 = vmatpush.bf16.msra.mxu0 %v2602
    %3634 = vmatpush.bf16.msra.mxu0 %v2594
    %3635 = vmatpush.bf16.msra.mxu0 %v2586
    %3636 = vmatpush.bf16.msra.mxu0 %v2578
    %3637 = vmatpush.bf16.msra.mxu0 %v2570
    %3638 = vmatpush.bf16.msra.mxu0 %v2562
    %3639 = vmatpush.bf16.msra.mxu0 %v2554
    %3640 = vmatmul.bf16.gmra.mxu0 %v162
    %v3641 = vpop.f32.mrf.mxu0
    %v3642 = vadd.f32 %v3629, %v3641
    %v3643 = vpop.f32.mrf.mxu0
    %3644 = vdwg.mxu0
    %3645 = vmatpush.bf16.msra.mxu0 %v2674
    %3646 = vmatpush.bf16.msra.mxu0 %v2666
    %3647 = vmatpush.bf16.msra.mxu0 %v2658
    %3648 = vmatpush.bf16.msra.mxu0 %v2650
    %3649 = vmatpush.bf16.msra.mxu0 %v2642
    %3650 = vmatpush.bf16.msra.mxu0 %v2634
    %3651 = vmatpush.bf16.msra.mxu0 %v2626
    %3652 = vmatpush.bf16.msra.mxu0 %v2618
    %3653 = vmatmul.bf16.gmra.mxu0 %v163
    %v3654 = vpop.f32.mrf.mxu0
    %v3655 = vadd.f32 %v3642, %v3654
    %v3656 = vpop.f32.mrf.mxu0
    %3657 = vdwg.mxu0
    %3658 = vmatpush.bf16.msra.mxu0 %v2738
    %3659 = vmatpush.bf16.msra.mxu0 %v2730
    %3660 = vmatpush.bf16.msra.mxu0 %v2722
    %3661 = vmatpush.bf16.msra.mxu0 %v2714
    %3662 = vmatpush.bf16.msra.mxu0 %v2706
    %3663 = vmatpush.bf16.msra.mxu0 %v2698
    %3664 = vmatpush.bf16.msra.mxu0 %v2690
    %3665 = vmatpush.bf16.msra.mxu0 %v2682
    %3666 = vmatmul.bf16.gmra.mxu0 %v164
    %v3667 = vpop.f32.mrf.mxu0
    %v3668 = vadd.f32 %v3655, %v3667
    %v3669 = vpop.f32.mrf.mxu0
    %3670 = vdwg.mxu0
    %3671 = vmatpush.bf16.msra.mxu0 %v2291
    %3672 = vmatpush.bf16.msra.mxu0 %v2283
    %3673 = vmatpush.bf16.msra.mxu0 %v2275
    %3674 = vmatpush.bf16.msra.mxu0 %v2267
    %3675 = vmatpush.bf16.msra.mxu0 %v2259
    %3676 = vmatpush.bf16.msra.mxu0 %v2251
    %3677 = vmatpush.bf16.msra.mxu0 %v2243
    %3678 = vmatpush.bf16.msra.mxu0 %v2235
    %3679 = vmatmul.bf16.gmra.mxu0 %v157
    %v3680 = vpop.f32.mrf.mxu0
    %v3681 = vadd.f32 %v683, %v3680
    %v3682 = vpop.f32.mrf.mxu0
    %3683 = vdwg.mxu0
    %3684 = vmatpush.bf16.msra.mxu0 %v2355
    %3685 = vmatpush.bf16.msra.mxu0 %v2347
    %3686 = vmatpush.bf16.msra.mxu0 %v2339
    %3687 = vmatpush.bf16.msra.mxu0 %v2331
    %3688 = vmatpush.bf16.msra.mxu0 %v2323
    %3689 = vmatpush.bf16.msra.mxu0 %v2315
    %3690 = vmatpush.bf16.msra.mxu0 %v2307
    %3691 = vmatpush.bf16.msra.mxu0 %v2299
    %3692 = vmatmul.bf16.gmra.mxu0 %v158
    %v3693 = vpop.f32.mrf.mxu0
    %v3694 = vadd.f32 %v3681, %v3693
    %v3695 = vpop.f32.mrf.mxu0
    %3696 = vdwg.mxu0
    %3697 = vmatpush.bf16.msra.mxu0 %v2419
    %3698 = vmatpush.bf16.msra.mxu0 %v2411
    %3699 = vmatpush.bf16.msra.mxu0 %v2403
    %3700 = vmatpush.bf16.msra.mxu0 %v2395
    %3701 = vmatpush.bf16.msra.mxu0 %v2387
    %3702 = vmatpush.bf16.msra.mxu0 %v2379
    %3703 = vmatpush.bf16.msra.mxu0 %v2371
    %3704 = vmatpush.bf16.msra.mxu0 %v2363
    %3705 = vmatmul.bf16.gmra.mxu0 %v159
    %v3706 = vpop.f32.mrf.mxu0
    %v3707 = vadd.f32 %v3694, %v3706
    %v3708 = vpop.f32.mrf.mxu0
    %3709 = vdwg.mxu0
    %3710 = vmatpush.bf16.msra.mxu0 %v2483
    %3711 = vmatpush.bf16.msra.mxu0 %v2475
    %3712 = vmatpush.bf16.msra.mxu0 %v2467
    %3713 = vmatpush.bf16.msra.mxu0 %v2459
    %3714 = vmatpush.bf16.msra.mxu0 %v2451
    %3715 = vmatpush.bf16.msra.mxu0 %v2443
    %3716 = vmatpush.bf16.msra.mxu0 %v2435
    %3717 = vmatpush.bf16.msra.mxu0 %v2427
    %3718 = vmatmul.bf16.gmra.mxu0 %v160
    %v3719 = vpop.f32.mrf.mxu0
    %v3720 = vadd.f32 %v3707, %v3719
    %v3721 = vpop.f32.mrf.mxu0
    %3722 = vdwg.mxu0
    %3723 = vmatpush.bf16.msra.mxu0 %v2547
    %3724 = vmatpush.bf16.msra.mxu0 %v2539
    %3725 = vmatpush.bf16.msra.mxu0 %v2531
    %3726 = vmatpush.bf16.msra.mxu0 %v2523
    %3727 = vmatpush.bf16.msra.mxu0 %v2515
    %3728 = vmatpush.bf16.msra.mxu0 %v2507
    %3729 = vmatpush.bf16.msra.mxu0 %v2499
    %3730 = vmatpush.bf16.msra.mxu0 %v2491
    %3731 = vmatmul.bf16.gmra.mxu0 %v161
    %v3732 = vpop.f32.mrf.mxu0
    %v3733 = vadd.f32 %v3720, %v3732
    %v3734 = vpop.f32.mrf.mxu0
    %3735 = vdwg.mxu0
    %3736 = vmatpush.bf16.msra.mxu0 %v2611
    %3737 = vmatpush.bf16.msra.mxu0 %v2603
    %3738 = vmatpush.bf16.msra.mxu0 %v2595
    %3739 = vmatpush.bf16.msra.mxu0 %v2587
    %3740 = vmatpush.bf16.msra.mxu0 %v2579
    %3741 = vmatpush.bf16.msra.mxu0 %v2571
    %3742 = vmatpush.bf16.msra.mxu0 %v2563
    %3743 = vmatpush.bf16.msra.mxu0 %v2555
    %3744 = vmatmul.bf16.gmra.mxu0 %v162
    %v3745 = vpop.f32.mrf.mxu0
    %v3746 = vadd.f32 %v3733, %v3745
    %v3747 = vpop.f32.mrf.mxu0
    %3748 = vdwg.mxu0
    %3749 = vmatpush.bf16.msra.mxu0 %v2675
    %3750 = vmatpush.bf16.msra.mxu0 %v2667
    %3751 = vmatpush.bf16.msra.mxu0 %v2659
    %3752 = vmatpush.bf16.msra.mxu0 %v2651
    %3753 = vmatpush.bf16.msra.mxu0 %v2643
    %3754 = vmatpush.bf16.msra.mxu0 %v2635
    %3755 = vmatpush.bf16.msra.mxu0 %v2627
    %3756 = vmatpush.bf16.msra.mxu0 %v2619
    %3757 = vmatmul.bf16.gmra.mxu0 %v163
    %v3758 = vpop.f32.mrf.mxu0
    %v3759 = vadd.f32 %v3746, %v3758
    %v3760 = vpop.f32.mrf.mxu0
    %3761 = vdwg.mxu0
    %3762 = vmatpush.bf16.msra.mxu0 %v2739
    %3763 = vmatpush.bf16.msra.mxu0 %v2731
    %3764 = vmatpush.bf16.msra.mxu0 %v2723
    %3765 = vmatpush.bf16.msra.mxu0 %v2715
    %3766 = vmatpush.bf16.msra.mxu0 %v2707
    %3767 = vmatpush.bf16.msra.mxu0 %v2699
    %3768 = vmatpush.bf16.msra.mxu0 %v2691
    %3769 = vmatpush.bf16.msra.mxu0 %v2683
    %3770 = vmatmul.bf16.gmra.mxu0 %v164
    %v3771 = vpop.f32.mrf.mxu0
    %v3772 = vadd.f32 %v3759, %v3771
    %v3773 = vpop.f32.mrf.mxu0
    %3774 = vdwg.mxu0
    %3775 = vmatpush.bf16.msra.mxu0 %v2292
    %3776 = vmatpush.bf16.msra.mxu0 %v2284
    %3777 = vmatpush.bf16.msra.mxu0 %v2276
    %3778 = vmatpush.bf16.msra.mxu0 %v2268
    %3779 = vmatpush.bf16.msra.mxu0 %v2260
    %3780 = vmatpush.bf16.msra.mxu0 %v2252
    %3781 = vmatpush.bf16.msra.mxu0 %v2244
    %3782 = vmatpush.bf16.msra.mxu0 %v2236
    %3783 = vmatmul.bf16.gmra.mxu0 %v157
    %v3784 = vpop.f32.mrf.mxu0
    %v3785 = vadd.f32 %v684, %v3784
    %v3786 = vpop.f32.mrf.mxu0
    %3787 = vdwg.mxu0
    %3788 = vmatpush.bf16.msra.mxu0 %v2356
    %3789 = vmatpush.bf16.msra.mxu0 %v2348
    %3790 = vmatpush.bf16.msra.mxu0 %v2340
    %3791 = vmatpush.bf16.msra.mxu0 %v2332
    %3792 = vmatpush.bf16.msra.mxu0 %v2324
    %3793 = vmatpush.bf16.msra.mxu0 %v2316
    %3794 = vmatpush.bf16.msra.mxu0 %v2308
    %3795 = vmatpush.bf16.msra.mxu0 %v2300
    %3796 = vmatmul.bf16.gmra.mxu0 %v158
    %v3797 = vpop.f32.mrf.mxu0
    %v3798 = vadd.f32 %v3785, %v3797
    %v3799 = vpop.f32.mrf.mxu0
    %3800 = vdwg.mxu0
    %3801 = vmatpush.bf16.msra.mxu0 %v2420
    %3802 = vmatpush.bf16.msra.mxu0 %v2412
    %3803 = vmatpush.bf16.msra.mxu0 %v2404
    %3804 = vmatpush.bf16.msra.mxu0 %v2396
    %3805 = vmatpush.bf16.msra.mxu0 %v2388
    %3806 = vmatpush.bf16.msra.mxu0 %v2380
    %3807 = vmatpush.bf16.msra.mxu0 %v2372
    %3808 = vmatpush.bf16.msra.mxu0 %v2364
    %3809 = vmatmul.bf16.gmra.mxu0 %v159
    %v3810 = vpop.f32.mrf.mxu0
    %v3811 = vadd.f32 %v3798, %v3810
    %v3812 = vpop.f32.mrf.mxu0
    %3813 = vdwg.mxu0
    %3814 = vmatpush.bf16.msra.mxu0 %v2484
    %3815 = vmatpush.bf16.msra.mxu0 %v2476
    %3816 = vmatpush.bf16.msra.mxu0 %v2468
    %3817 = vmatpush.bf16.msra.mxu0 %v2460
    %3818 = vmatpush.bf16.msra.mxu0 %v2452
    %3819 = vmatpush.bf16.msra.mxu0 %v2444
    %3820 = vmatpush.bf16.msra.mxu0 %v2436
    %3821 = vmatpush.bf16.msra.mxu0 %v2428
    %3822 = vmatmul.bf16.gmra.mxu0 %v160
    %v3823 = vpop.f32.mrf.mxu0
    %v3824 = vadd.f32 %v3811, %v3823
    %v3825 = vpop.f32.mrf.mxu0
    %3826 = vdwg.mxu0
    %3827 = vmatpush.bf16.msra.mxu0 %v2548
    %3828 = vmatpush.bf16.msra.mxu0 %v2540
    %3829 = vmatpush.bf16.msra.mxu0 %v2532
    %3830 = vmatpush.bf16.msra.mxu0 %v2524
    %3831 = vmatpush.bf16.msra.mxu0 %v2516
    %3832 = vmatpush.bf16.msra.mxu0 %v2508
    %3833 = vmatpush.bf16.msra.mxu0 %v2500
    %3834 = vmatpush.bf16.msra.mxu0 %v2492
    %3835 = vmatmul.bf16.gmra.mxu0 %v161
    %v3836 = vpop.f32.mrf.mxu0
    %v3837 = vadd.f32 %v3824, %v3836
    %v3838 = vpop.f32.mrf.mxu0
    %3839 = vdwg.mxu0
    %3840 = vmatpush.bf16.msra.mxu0 %v2612
    %3841 = vmatpush.bf16.msra.mxu0 %v2604
    %3842 = vmatpush.bf16.msra.mxu0 %v2596
    %3843 = vmatpush.bf16.msra.mxu0 %v2588
    %3844 = vmatpush.bf16.msra.mxu0 %v2580
    %3845 = vmatpush.bf16.msra.mxu0 %v2572
    %3846 = vmatpush.bf16.msra.mxu0 %v2564
    %3847 = vmatpush.bf16.msra.mxu0 %v2556
    %3848 = vmatmul.bf16.gmra.mxu0 %v162
    %v3849 = vpop.f32.mrf.mxu0
    %v3850 = vadd.f32 %v3837, %v3849
    %v3851 = vpop.f32.mrf.mxu0
    %3852 = vdwg.mxu0
    %3853 = vmatpush.bf16.msra.mxu0 %v2676
    %3854 = vmatpush.bf16.msra.mxu0 %v2668
    %3855 = vmatpush.bf16.msra.mxu0 %v2660
    %3856 = vmatpush.bf16.msra.mxu0 %v2652
    %3857 = vmatpush.bf16.msra.mxu0 %v2644
    %3858 = vmatpush.bf16.msra.mxu0 %v2636
    %3859 = vmatpush.bf16.msra.mxu0 %v2628
    %3860 = vmatpush.bf16.msra.mxu0 %v2620
    %3861 = vmatmul.bf16.gmra.mxu0 %v163
    %v3862 = vpop.f32.mrf.mxu0
    %v3863 = vadd.f32 %v3850, %v3862
    %v3864 = vpop.f32.mrf.mxu0
    %3865 = vdwg.mxu0
    %3866 = vmatpush.bf16.msra.mxu0 %v2740
    %3867 = vmatpush.bf16.msra.mxu0 %v2732
    %3868 = vmatpush.bf16.msra.mxu0 %v2724
    %3869 = vmatpush.bf16.msra.mxu0 %v2716
    %3870 = vmatpush.bf16.msra.mxu0 %v2708
    %3871 = vmatpush.bf16.msra.mxu0 %v2700
    %3872 = vmatpush.bf16.msra.mxu0 %v2692
    %3873 = vmatpush.bf16.msra.mxu0 %v2684
    %3874 = vmatmul.bf16.gmra.mxu0 %v164
    %v3875 = vpop.f32.mrf.mxu0
    %v3876 = vadd.f32 %v3863, %v3875
    %v3877 = vpop.f32.mrf.mxu0
    %3878 = vdwg.mxu0
    %3879 = vmatpush.bf16.msra.mxu0 %v2293
    %3880 = vmatpush.bf16.msra.mxu0 %v2285
    %3881 = vmatpush.bf16.msra.mxu0 %v2277
    %3882 = vmatpush.bf16.msra.mxu0 %v2269
    %3883 = vmatpush.bf16.msra.mxu0 %v2261
    %3884 = vmatpush.bf16.msra.mxu0 %v2253
    %3885 = vmatpush.bf16.msra.mxu0 %v2245
    %3886 = vmatpush.bf16.msra.mxu0 %v2237
    %3887 = vmatmul.bf16.gmra.mxu0 %v157
    %v3888 = vpop.f32.mrf.mxu0
    %v3889 = vadd.f32 %v685, %v3888
    %v3890 = vpop.f32.mrf.mxu0
    %3891 = vdwg.mxu0
    %3892 = vmatpush.bf16.msra.mxu0 %v2357
    %3893 = vmatpush.bf16.msra.mxu0 %v2349
    %3894 = vmatpush.bf16.msra.mxu0 %v2341
    %3895 = vmatpush.bf16.msra.mxu0 %v2333
    %3896 = vmatpush.bf16.msra.mxu0 %v2325
    %3897 = vmatpush.bf16.msra.mxu0 %v2317
    %3898 = vmatpush.bf16.msra.mxu0 %v2309
    %3899 = vmatpush.bf16.msra.mxu0 %v2301
    %3900 = vmatmul.bf16.gmra.mxu0 %v158
    %v3901 = vpop.f32.mrf.mxu0
    %v3902 = vadd.f32 %v3889, %v3901
    %v3903 = vpop.f32.mrf.mxu0
    %3904 = vdwg.mxu0
    %3905 = vmatpush.bf16.msra.mxu0 %v2421
    %3906 = vmatpush.bf16.msra.mxu0 %v2413
    %3907 = vmatpush.bf16.msra.mxu0 %v2405
    %3908 = vmatpush.bf16.msra.mxu0 %v2397
    %3909 = vmatpush.bf16.msra.mxu0 %v2389
    %3910 = vmatpush.bf16.msra.mxu0 %v2381
    %3911 = vmatpush.bf16.msra.mxu0 %v2373
    %3912 = vmatpush.bf16.msra.mxu0 %v2365
    %3913 = vmatmul.bf16.gmra.mxu0 %v159
    %v3914 = vpop.f32.mrf.mxu0
    %v3915 = vadd.f32 %v3902, %v3914
    %v3916 = vpop.f32.mrf.mxu0
    %3917 = vdwg.mxu0
    %3918 = vmatpush.bf16.msra.mxu0 %v2485
    %3919 = vmatpush.bf16.msra.mxu0 %v2477
    %3920 = vmatpush.bf16.msra.mxu0 %v2469
    %3921 = vmatpush.bf16.msra.mxu0 %v2461
    %3922 = vmatpush.bf16.msra.mxu0 %v2453
    %3923 = vmatpush.bf16.msra.mxu0 %v2445
    %3924 = vmatpush.bf16.msra.mxu0 %v2437
    %3925 = vmatpush.bf16.msra.mxu0 %v2429
    %3926 = vmatmul.bf16.gmra.mxu0 %v160
    %v3927 = vpop.f32.mrf.mxu0
    %v3928 = vadd.f32 %v3915, %v3927
    %v3929 = vpop.f32.mrf.mxu0
    %3930 = vdwg.mxu0
    %3931 = vmatpush.bf16.msra.mxu0 %v2549
    %3932 = vmatpush.bf16.msra.mxu0 %v2541
    %3933 = vmatpush.bf16.msra.mxu0 %v2533
    %3934 = vmatpush.bf16.msra.mxu0 %v2525
    %3935 = vmatpush.bf16.msra.mxu0 %v2517
    %3936 = vmatpush.bf16.msra.mxu0 %v2509
    %3937 = vmatpush.bf16.msra.mxu0 %v2501
    %3938 = vmatpush.bf16.msra.mxu0 %v2493
    %3939 = vmatmul.bf16.gmra.mxu0 %v161
    %v3940 = vpop.f32.mrf.mxu0
    %v3941 = vadd.f32 %v3928, %v3940
    %v3942 = vpop.f32.mrf.mxu0
    %3943 = vdwg.mxu0
    %3944 = vmatpush.bf16.msra.mxu0 %v2613
    %3945 = vmatpush.bf16.msra.mxu0 %v2605
    %3946 = vmatpush.bf16.msra.mxu0 %v2597
    %3947 = vmatpush.bf16.msra.mxu0 %v2589
    %3948 = vmatpush.bf16.msra.mxu0 %v2581
    %3949 = vmatpush.bf16.msra.mxu0 %v2573
    %3950 = vmatpush.bf16.msra.mxu0 %v2565
    %3951 = vmatpush.bf16.msra.mxu0 %v2557
    %3952 = vmatmul.bf16.gmra.mxu0 %v162
    %v3953 = vpop.f32.mrf.mxu0
    %v3954 = vadd.f32 %v3941, %v3953
    %v3955 = vpop.f32.mrf.mxu0
    %3956 = vdwg.mxu0
    %3957 = vmatpush.bf16.msra.mxu0 %v2677
    %3958 = vmatpush.bf16.msra.mxu0 %v2669
    %3959 = vmatpush.bf16.msra.mxu0 %v2661
    %3960 = vmatpush.bf16.msra.mxu0 %v2653
    %3961 = vmatpush.bf16.msra.mxu0 %v2645
    %3962 = vmatpush.bf16.msra.mxu0 %v2637
    %3963 = vmatpush.bf16.msra.mxu0 %v2629
    %3964 = vmatpush.bf16.msra.mxu0 %v2621
    %3965 = vmatmul.bf16.gmra.mxu0 %v163
    %v3966 = vpop.f32.mrf.mxu0
    %v3967 = vadd.f32 %v3954, %v3966
    %v3968 = vpop.f32.mrf.mxu0
    %3969 = vdwg.mxu0
    %3970 = vmatpush.bf16.msra.mxu0 %v2741
    %3971 = vmatpush.bf16.msra.mxu0 %v2733
    %3972 = vmatpush.bf16.msra.mxu0 %v2725
    %3973 = vmatpush.bf16.msra.mxu0 %v2717
    %3974 = vmatpush.bf16.msra.mxu0 %v2709
    %3975 = vmatpush.bf16.msra.mxu0 %v2701
    %3976 = vmatpush.bf16.msra.mxu0 %v2693
    %3977 = vmatpush.bf16.msra.mxu0 %v2685
    %3978 = vmatmul.bf16.gmra.mxu0 %v164
    %v3979 = vpop.f32.mrf.mxu0
    %v3980 = vadd.f32 %v3967, %v3979
    %v3981 = vpop.f32.mrf.mxu0
    %3982 = vdwg.mxu0
    %3983 = vmatpush.bf16.msra.mxu0 %v2294
    %3984 = vmatpush.bf16.msra.mxu0 %v2286
    %3985 = vmatpush.bf16.msra.mxu0 %v2278
    %3986 = vmatpush.bf16.msra.mxu0 %v2270
    %3987 = vmatpush.bf16.msra.mxu0 %v2262
    %3988 = vmatpush.bf16.msra.mxu0 %v2254
    %3989 = vmatpush.bf16.msra.mxu0 %v2246
    %3990 = vmatpush.bf16.msra.mxu0 %v2238
    %3991 = vmatmul.bf16.gmra.mxu0 %v157
    %v3992 = vpop.f32.mrf.mxu0
    %v3993 = vadd.f32 %v686, %v3992
    %v3994 = vpop.f32.mrf.mxu0
    %3995 = vdwg.mxu0
    %3996 = vmatpush.bf16.msra.mxu0 %v2358
    %3997 = vmatpush.bf16.msra.mxu0 %v2350
    %3998 = vmatpush.bf16.msra.mxu0 %v2342
    %3999 = vmatpush.bf16.msra.mxu0 %v2334
    %4000 = vmatpush.bf16.msra.mxu0 %v2326
    %4001 = vmatpush.bf16.msra.mxu0 %v2318
    %4002 = vmatpush.bf16.msra.mxu0 %v2310
    %4003 = vmatpush.bf16.msra.mxu0 %v2302
    %4004 = vmatmul.bf16.gmra.mxu0 %v158
    %v4005 = vpop.f32.mrf.mxu0
    %v4006 = vadd.f32 %v3993, %v4005
    %v4007 = vpop.f32.mrf.mxu0
    %4008 = vdwg.mxu0
    %4009 = vmatpush.bf16.msra.mxu0 %v2422
    %4010 = vmatpush.bf16.msra.mxu0 %v2414
    %4011 = vmatpush.bf16.msra.mxu0 %v2406
    %4012 = vmatpush.bf16.msra.mxu0 %v2398
    %4013 = vmatpush.bf16.msra.mxu0 %v2390
    %4014 = vmatpush.bf16.msra.mxu0 %v2382
    %4015 = vmatpush.bf16.msra.mxu0 %v2374
    %4016 = vmatpush.bf16.msra.mxu0 %v2366
    %4017 = vmatmul.bf16.gmra.mxu0 %v159
    %v4018 = vpop.f32.mrf.mxu0
    %v4019 = vadd.f32 %v4006, %v4018
    %v4020 = vpop.f32.mrf.mxu0
    %4021 = vdwg.mxu0
    %4022 = vmatpush.bf16.msra.mxu0 %v2486
    %4023 = vmatpush.bf16.msra.mxu0 %v2478
    %4024 = vmatpush.bf16.msra.mxu0 %v2470
    %4025 = vmatpush.bf16.msra.mxu0 %v2462
    %4026 = vmatpush.bf16.msra.mxu0 %v2454
    %4027 = vmatpush.bf16.msra.mxu0 %v2446
    %4028 = vmatpush.bf16.msra.mxu0 %v2438
    %4029 = vmatpush.bf16.msra.mxu0 %v2430
    %4030 = vmatmul.bf16.gmra.mxu0 %v160
    %v4031 = vpop.f32.mrf.mxu0
    %v4032 = vadd.f32 %v4019, %v4031
    %v4033 = vpop.f32.mrf.mxu0
    %4034 = vdwg.mxu0
    %4035 = vmatpush.bf16.msra.mxu0 %v2550
    %4036 = vmatpush.bf16.msra.mxu0 %v2542
    %4037 = vmatpush.bf16.msra.mxu0 %v2534
    %4038 = vmatpush.bf16.msra.mxu0 %v2526
    %4039 = vmatpush.bf16.msra.mxu0 %v2518
    %4040 = vmatpush.bf16.msra.mxu0 %v2510
    %4041 = vmatpush.bf16.msra.mxu0 %v2502
    %4042 = vmatpush.bf16.msra.mxu0 %v2494
    %4043 = vmatmul.bf16.gmra.mxu0 %v161
    %v4044 = vpop.f32.mrf.mxu0
    %v4045 = vadd.f32 %v4032, %v4044
    %v4046 = vpop.f32.mrf.mxu0
    %4047 = vdwg.mxu0
    %4048 = vmatpush.bf16.msra.mxu0 %v2614
    %4049 = vmatpush.bf16.msra.mxu0 %v2606
    %4050 = vmatpush.bf16.msra.mxu0 %v2598
    %4051 = vmatpush.bf16.msra.mxu0 %v2590
    %4052 = vmatpush.bf16.msra.mxu0 %v2582
    %4053 = vmatpush.bf16.msra.mxu0 %v2574
    %4054 = vmatpush.bf16.msra.mxu0 %v2566
    %4055 = vmatpush.bf16.msra.mxu0 %v2558
    %4056 = vmatmul.bf16.gmra.mxu0 %v162
    %v4057 = vpop.f32.mrf.mxu0
    %v4058 = vadd.f32 %v4045, %v4057
    %v4059 = vpop.f32.mrf.mxu0
    %4060 = vdwg.mxu0
    %4061 = vmatpush.bf16.msra.mxu0 %v2678
    %4062 = vmatpush.bf16.msra.mxu0 %v2670
    %4063 = vmatpush.bf16.msra.mxu0 %v2662
    %4064 = vmatpush.bf16.msra.mxu0 %v2654
    %4065 = vmatpush.bf16.msra.mxu0 %v2646
    %4066 = vmatpush.bf16.msra.mxu0 %v2638
    %4067 = vmatpush.bf16.msra.mxu0 %v2630
    %4068 = vmatpush.bf16.msra.mxu0 %v2622
    %4069 = vmatmul.bf16.gmra.mxu0 %v163
    %v4070 = vpop.f32.mrf.mxu0
    %v4071 = vadd.f32 %v4058, %v4070
    %v4072 = vpop.f32.mrf.mxu0
    %4073 = vdwg.mxu0
    %4074 = vmatpush.bf16.msra.mxu0 %v2742
    %4075 = vmatpush.bf16.msra.mxu0 %v2734
    %4076 = vmatpush.bf16.msra.mxu0 %v2726
    %4077 = vmatpush.bf16.msra.mxu0 %v2718
    %4078 = vmatpush.bf16.msra.mxu0 %v2710
    %4079 = vmatpush.bf16.msra.mxu0 %v2702
    %4080 = vmatpush.bf16.msra.mxu0 %v2694
    %4081 = vmatpush.bf16.msra.mxu0 %v2686
    %4082 = vmatmul.bf16.gmra.mxu0 %v164
    %v4083 = vpop.f32.mrf.mxu0
    %v4084 = vadd.f32 %v4071, %v4083
    %v4085 = vpop.f32.mrf.mxu0
    %4086 = vdwg.mxu0
    %v4087 = vmax.f32 %v3356, 0.0
    %v4088 = vmax.f32 %v3460, 0.0
    %v4089 = vmax.f32 %v3564, 0.0
    %v4090 = vmax.f32 %v3668, 0.0
    %v4091 = vmax.f32 %v3772, 0.0
    %v4092 = vmax.f32 %v3876, 0.0
    %v4093 = vmax.f32 %v3980, 0.0
    %v4094 = vmax.f32 %v4084, 0.0
    %v4095 = vpack.c.bf16 %v4087, %v4087
    %v4096 = vpack.c.bf16 %v4088, %v4088
    %v4097 = vpack.c.bf16 %v4089, %v4089
    %v4098 = vpack.c.bf16 %v4090, %v4090
    %v4099 = vpack.c.bf16 %v4091, %v4091
    %v4100 = vpack.c.bf16 %v4092, %v4092
    %v4101 = vpack.c.bf16 %v4093, %v4093
    %v4102 = vpack.c.bf16 %v4094, %v4094
    %v4103 = vld [vmem:[#allocation6] sm:$0xff]
    %v4104 = vld [vmem:[#allocation6 + $0x8] sm:$0xff]
    %v4105 = vld [vmem:[#allocation6 + $0x10] sm:$0xff]
    %v4106 = vld [vmem:[#allocation6 + $0x18] sm:$0xff]
    %v4107 = vld [vmem:[#allocation6 + $0x20] sm:$0xff]
    %v4108 = vld [vmem:[#allocation6 + $0x28] sm:$0xff]
    %v4109 = vld [vmem:[#allocation6 + $0x30] sm:$0xff]
    %v4110 = vld [vmem:[#allocation6 + $0x38] sm:$0xff]
    %v4111 = vld [vmem:[#allocation6 + $0x40] sm:$0xff]
    %v4112 = vld [vmem:[#allocation6 + $0x48] sm:$0xff]
    %v4113 = vld [vmem:[#allocation6 + $0x50] sm:$0xff]
    %v4114 = vld [vmem:[#allocation6 + $0x58] sm:$0xff]
    %v4115 = vld [vmem:[#allocation6 + $0x60] sm:$0xff]
    %v4116 = vld [vmem:[#allocation6 + $0x68] sm:$0xff]
    %v4117 = vld [vmem:[#allocation6 + $0x70] sm:$0xff]
    %v4118 = vld [vmem:[#allocation6 + $0x78] sm:$0xff]
    %v4119 = vld [vmem:[#allocation6 + $0x80] sm:$0xff]
    %v4120 = vld [vmem:[#allocation6 + $0x88] sm:$0xff]
    %v4121 = vld [vmem:[#allocation6 + $0x90] sm:$0xff]
    %v4122 = vld [vmem:[#allocation6 + $0x98] sm:$0xff]
    %v4123 = vld [vmem:[#allocation6 + $0xa0] sm:$0xff]
    %v4124 = vld [vmem:[#allocation6 + $0xa8] sm:$0xff]
    %v4125 = vld [vmem:[#allocation6 + $0xb0] sm:$0xff]
    %v4126 = vld [vmem:[#allocation6 + $0xb8] sm:$0xff]
    %v4127 = vld [vmem:[#allocation6 + $0xc0] sm:$0xff]
    %v4128 = vld [vmem:[#allocation6 + $0xc8] sm:$0xff]
    %v4129 = vld [vmem:[#allocation6 + $0xd0] sm:$0xff]
    %v4130 = vld [vmem:[#allocation6 + $0xd8] sm:$0xff]
    %v4131 = vld [vmem:[#allocation6 + $0xe0] sm:$0xff]
    %v4132 = vld [vmem:[#allocation6 + $0xe8] sm:$0xff]
    %v4133 = vld [vmem:[#allocation6 + $0xf0] sm:$0xff]
    %v4134 = vld [vmem:[#allocation6 + $0xf8] sm:$0xff]
    %v4135 = vld [vmem:[#allocation6 + $0x100] sm:$0xff]
    %v4136 = vld [vmem:[#allocation6 + $0x108] sm:$0xff]
    %v4137 = vld [vmem:[#allocation6 + $0x110] sm:$0xff]
    %v4138 = vld [vmem:[#allocation6 + $0x118] sm:$0xff]
    %v4139 = vld [vmem:[#allocation6 + $0x120] sm:$0xff]
    %v4140 = vld [vmem:[#allocation6 + $0x128] sm:$0xff]
    %v4141 = vld [vmem:[#allocation6 + $0x130] sm:$0xff]
    %v4142 = vld [vmem:[#allocation6 + $0x138] sm:$0xff]
    %v4143 = vld [vmem:[#allocation6 + $0x140] sm:$0xff]
    %v4144 = vld [vmem:[#allocation6 + $0x148] sm:$0xff]
    %v4145 = vld [vmem:[#allocation6 + $0x150] sm:$0xff]
    %v4146 = vld [vmem:[#allocation6 + $0x158] sm:$0xff]
    %v4147 = vld [vmem:[#allocation6 + $0x160] sm:$0xff]
    %v4148 = vld [vmem:[#allocation6 + $0x168] sm:$0xff]
    %v4149 = vld [vmem:[#allocation6 + $0x170] sm:$0xff]
    %v4150 = vld [vmem:[#allocation6 + $0x178] sm:$0xff]
    %v4151 = vld [vmem:[#allocation6 + $0x180] sm:$0xff]
    %v4152 = vld [vmem:[#allocation6 + $0x188] sm:$0xff]
    %v4153 = vld [vmem:[#allocation6 + $0x190] sm:$0xff]
    %v4154 = vld [vmem:[#allocation6 + $0x198] sm:$0xff]
    %v4155 = vld [vmem:[#allocation6 + $0x1a0] sm:$0xff]
    %v4156 = vld [vmem:[#allocation6 + $0x1a8] sm:$0xff]
    %v4157 = vld [vmem:[#allocation6 + $0x1b0] sm:$0xff]
    %v4158 = vld [vmem:[#allocation6 + $0x1b8] sm:$0xff]
    %v4159 = vld [vmem:[#allocation6 + $0x1c0] sm:$0xff]
    %v4160 = vld [vmem:[#allocation6 + $0x1c8] sm:$0xff]
    %v4161 = vld [vmem:[#allocation6 + $0x1d0] sm:$0xff]
    %v4162 = vld [vmem:[#allocation6 + $0x1d8] sm:$0xff]
    %v4163 = vld [vmem:[#allocation6 + $0x1e0] sm:$0xff]
    %v4164 = vld [vmem:[#allocation6 + $0x1e8] sm:$0xff]
    %v4165 = vld [vmem:[#allocation6 + $0x1f0] sm:$0xff]
    %v4166 = vld [vmem:[#allocation6 + $0x1f8] sm:$0xff]
    %v4167 = vld [vmem:[#allocation6 + $0x200] sm:$0xff]
    %v4168 = vld [vmem:[#allocation6 + $0x208] sm:$0xff]
    %v4169 = vld [vmem:[#allocation6 + $0x210] sm:$0xff]
    %v4170 = vld [vmem:[#allocation6 + $0x218] sm:$0xff]
    %v4171 = vld [vmem:[#allocation6 + $0x220] sm:$0xff]
    %v4172 = vld [vmem:[#allocation6 + $0x228] sm:$0xff]
    %v4173 = vld [vmem:[#allocation6 + $0x230] sm:$0xff]
    %v4174 = vld [vmem:[#allocation6 + $0x238] sm:$0xff]
    %v4175 = vld [vmem:[#allocation6 + $0x240] sm:$0xff]
    %v4176 = vld [vmem:[#allocation6 + $0x248] sm:$0xff]
    %v4177 = vld [vmem:[#allocation6 + $0x250] sm:$0xff]
    %v4178 = vld [vmem:[#allocation6 + $0x258] sm:$0xff]
    %v4179 = vld [vmem:[#allocation6 + $0x260] sm:$0xff]
    %v4180 = vld [vmem:[#allocation6 + $0x268] sm:$0xff]
    %v4181 = vld [vmem:[#allocation6 + $0x270] sm:$0xff]
    %v4182 = vld [vmem:[#allocation6 + $0x278] sm:$0xff]
    %v4183 = vld [vmem:[#allocation6 + $0x280] sm:$0xff]
    %v4184 = vld [vmem:[#allocation6 + $0x288] sm:$0xff]
    %v4185 = vld [vmem:[#allocation6 + $0x290] sm:$0xff]
    %v4186 = vld [vmem:[#allocation6 + $0x298] sm:$0xff]
    %v4187 = vld [vmem:[#allocation6 + $0x2a0] sm:$0xff]
    %v4188 = vld [vmem:[#allocation6 + $0x2a8] sm:$0xff]
    %v4189 = vld [vmem:[#allocation6 + $0x2b0] sm:$0xff]
    %v4190 = vld [vmem:[#allocation6 + $0x2b8] sm:$0xff]
    %v4191 = vld [vmem:[#allocation6 + $0x2c0] sm:$0xff]
    %v4192 = vld [vmem:[#allocation6 + $0x2c8] sm:$0xff]
    %v4193 = vld [vmem:[#allocation6 + $0x2d0] sm:$0xff]
    %v4194 = vld [vmem:[#allocation6 + $0x2d8] sm:$0xff]
    %v4195 = vld [vmem:[#allocation6 + $0x2e0] sm:$0xff]
    %v4196 = vld [vmem:[#allocation6 + $0x2e8] sm:$0xff]
    %v4197 = vld [vmem:[#allocation6 + $0x2f0] sm:$0xff]
    %v4198 = vld [vmem:[#allocation6 + $0x2f8] sm:$0xff]
    %v4199 = vld [vmem:[#allocation6 + $0x300] sm:$0xff]
    %v4200 = vld [vmem:[#allocation6 + $0x308] sm:$0xff]
    %v4201 = vld [vmem:[#allocation6 + $0x310] sm:$0xff]
    %v4202 = vld [vmem:[#allocation6 + $0x318] sm:$0xff]
    %v4203 = vld [vmem:[#allocation6 + $0x320] sm:$0xff]
    %v4204 = vld [vmem:[#allocation6 + $0x328] sm:$0xff]
    %v4205 = vld [vmem:[#allocation6 + $0x330] sm:$0xff]
    %v4206 = vld [vmem:[#allocation6 + $0x338] sm:$0xff]
    %v4207 = vld [vmem:[#allocation6 + $0x340] sm:$0xff]
    %v4208 = vld [vmem:[#allocation6 + $0x348] sm:$0xff]
    %v4209 = vld [vmem:[#allocation6 + $0x350] sm:$0xff]
    %v4210 = vld [vmem:[#allocation6 + $0x358] sm:$0xff]
    %v4211 = vld [vmem:[#allocation6 + $0x360] sm:$0xff]
    %v4212 = vld [vmem:[#allocation6 + $0x368] sm:$0xff]
    %v4213 = vld [vmem:[#allocation6 + $0x370] sm:$0xff]
    %v4214 = vld [vmem:[#allocation6 + $0x378] sm:$0xff]
    %v4215 = vld [vmem:[#allocation6 + $0x380] sm:$0xff]
    %v4216 = vld [vmem:[#allocation6 + $0x388] sm:$0xff]
    %v4217 = vld [vmem:[#allocation6 + $0x390] sm:$0xff]
    %v4218 = vld [vmem:[#allocation6 + $0x398] sm:$0xff]
    %v4219 = vld [vmem:[#allocation6 + $0x3a0] sm:$0xff]
    %v4220 = vld [vmem:[#allocation6 + $0x3a8] sm:$0xff]
    %v4221 = vld [vmem:[#allocation6 + $0x3b0] sm:$0xff]
    %v4222 = vld [vmem:[#allocation6 + $0x3b8] sm:$0xff]
    %v4223 = vld [vmem:[#allocation6 + $0x3c0] sm:$0xff]
    %v4224 = vld [vmem:[#allocation6 + $0x3c8] sm:$0xff]
    %v4225 = vld [vmem:[#allocation6 + $0x3d0] sm:$0xff]
    %v4226 = vld [vmem:[#allocation6 + $0x3d8] sm:$0xff]
    %v4227 = vld [vmem:[#allocation6 + $0x3e0] sm:$0xff]
    %v4228 = vld [vmem:[#allocation6 + $0x3e8] sm:$0xff]
    %v4229 = vld [vmem:[#allocation6 + $0x3f0] sm:$0xff]
    %v4230 = vld [vmem:[#allocation6 + $0x3f8] sm:$0xff]
    %v4231 = vld [vmem:[#allocation6 + $0x400] sm:$0xff]
    %v4232 = vld [vmem:[#allocation6 + $0x408] sm:$0xff]
    %v4233 = vld [vmem:[#allocation6 + $0x410] sm:$0xff]
    %v4234 = vld [vmem:[#allocation6 + $0x418] sm:$0xff]
    %v4235 = vld [vmem:[#allocation6 + $0x420] sm:$0xff]
    %v4236 = vld [vmem:[#allocation6 + $0x428] sm:$0xff]
    %v4237 = vld [vmem:[#allocation6 + $0x430] sm:$0xff]
    %v4238 = vld [vmem:[#allocation6 + $0x438] sm:$0xff]
    %v4239 = vld [vmem:[#allocation6 + $0x440] sm:$0xff]
    %v4240 = vld [vmem:[#allocation6 + $0x448] sm:$0xff]
    %v4241 = vld [vmem:[#allocation6 + $0x450] sm:$0xff]
    %v4242 = vld [vmem:[#allocation6 + $0x458] sm:$0xff]
    %v4243 = vld [vmem:[#allocation6 + $0x460] sm:$0xff]
    %v4244 = vld [vmem:[#allocation6 + $0x468] sm:$0xff]
    %v4245 = vld [vmem:[#allocation6 + $0x470] sm:$0xff]
    %v4246 = vld [vmem:[#allocation6 + $0x478] sm:$0xff]
    %v4247 = vld [vmem:[#allocation6 + $0x480] sm:$0xff]
    %v4248 = vld [vmem:[#allocation6 + $0x488] sm:$0xff]
    %v4249 = vld [vmem:[#allocation6 + $0x490] sm:$0xff]
    %v4250 = vld [vmem:[#allocation6 + $0x498] sm:$0xff]
    %v4251 = vld [vmem:[#allocation6 + $0x4a0] sm:$0xff]
    %v4252 = vld [vmem:[#allocation6 + $0x4a8] sm:$0xff]
    %v4253 = vld [vmem:[#allocation6 + $0x4b0] sm:$0xff]
    %v4254 = vld [vmem:[#allocation6 + $0x4b8] sm:$0xff]
    %v4255 = vld [vmem:[#allocation6 + $0x4c0] sm:$0xff]
    %v4256 = vld [vmem:[#allocation6 + $0x4c8] sm:$0xff]
    %v4257 = vld [vmem:[#allocation6 + $0x4d0] sm:$0xff]
    %v4258 = vld [vmem:[#allocation6 + $0x4d8] sm:$0xff]
    %v4259 = vld [vmem:[#allocation6 + $0x4e0] sm:$0xff]
    %v4260 = vld [vmem:[#allocation6 + $0x4e8] sm:$0xff]
    %v4261 = vld [vmem:[#allocation6 + $0x4f0] sm:$0xff]
    %v4262 = vld [vmem:[#allocation6 + $0x4f8] sm:$0xff]
    %v4263 = vld [vmem:[#allocation6 + $0x500] sm:$0xff]
    %v4264 = vld [vmem:[#allocation6 + $0x508] sm:$0xff]
    %v4265 = vld [vmem:[#allocation6 + $0x510] sm:$0xff]
    %v4266 = vld [vmem:[#allocation6 + $0x518] sm:$0xff]
    %v4267 = vld [vmem:[#allocation6 + $0x520] sm:$0xff]
    %v4268 = vld [vmem:[#allocation6 + $0x528] sm:$0xff]
    %v4269 = vld [vmem:[#allocation6 + $0x530] sm:$0xff]
    %v4270 = vld [vmem:[#allocation6 + $0x538] sm:$0xff]
    %v4271 = vld [vmem:[#allocation6 + $0x540] sm:$0xff]
    %v4272 = vld [vmem:[#allocation6 + $0x548] sm:$0xff]
    %v4273 = vld [vmem:[#allocation6 + $0x550] sm:$0xff]
    %v4274 = vld [vmem:[#allocation6 + $0x558] sm:$0xff]
    %v4275 = vld [vmem:[#allocation6 + $0x560] sm:$0xff]
    %v4276 = vld [vmem:[#allocation6 + $0x568] sm:$0xff]
    %v4277 = vld [vmem:[#allocation6 + $0x570] sm:$0xff]
    %v4278 = vld [vmem:[#allocation6 + $0x578] sm:$0xff]
    %v4279 = vld [vmem:[#allocation6 + $0x580] sm:$0xff]
    %v4280 = vld [vmem:[#allocation6 + $0x588] sm:$0xff]
    %v4281 = vld [vmem:[#allocation6 + $0x590] sm:$0xff]
    %v4282 = vld [vmem:[#allocation6 + $0x598] sm:$0xff]
    %v4283 = vld [vmem:[#allocation6 + $0x5a0] sm:$0xff]
    %v4284 = vld [vmem:[#allocation6 + $0x5a8] sm:$0xff]
    %v4285 = vld [vmem:[#allocation6 + $0x5b0] sm:$0xff]
    %v4286 = vld [vmem:[#allocation6 + $0x5b8] sm:$0xff]
    %v4287 = vld [vmem:[#allocation6 + $0x5c0] sm:$0xff]
    %v4288 = vld [vmem:[#allocation6 + $0x5c8] sm:$0xff]
    %v4289 = vld [vmem:[#allocation6 + $0x5d0] sm:$0xff]
    %v4290 = vld [vmem:[#allocation6 + $0x5d8] sm:$0xff]
    %v4291 = vld [vmem:[#allocation6 + $0x5e0] sm:$0xff]
    %v4292 = vld [vmem:[#allocation6 + $0x5e8] sm:$0xff]
    %v4293 = vld [vmem:[#allocation6 + $0x5f0] sm:$0xff]
    %v4294 = vld [vmem:[#allocation6 + $0x5f8] sm:$0xff]
    %v4295 = vld [vmem:[#allocation6 + $0x600] sm:$0xff]
    %v4296 = vld [vmem:[#allocation6 + $0x608] sm:$0xff]
    %v4297 = vld [vmem:[#allocation6 + $0x610] sm:$0xff]
    %v4298 = vld [vmem:[#allocation6 + $0x618] sm:$0xff]
    %v4299 = vld [vmem:[#allocation6 + $0x620] sm:$0xff]
    %v4300 = vld [vmem:[#allocation6 + $0x628] sm:$0xff]
    %v4301 = vld [vmem:[#allocation6 + $0x630] sm:$0xff]
    %v4302 = vld [vmem:[#allocation6 + $0x638] sm:$0xff]
    %v4303 = vld [vmem:[#allocation6 + $0x640] sm:$0xff]
    %v4304 = vld [vmem:[#allocation6 + $0x648] sm:$0xff]
    %v4305 = vld [vmem:[#allocation6 + $0x650] sm:$0xff]
    %v4306 = vld [vmem:[#allocation6 + $0x658] sm:$0xff]
    %v4307 = vld [vmem:[#allocation6 + $0x660] sm:$0xff]
    %v4308 = vld [vmem:[#allocation6 + $0x668] sm:$0xff]
    %v4309 = vld [vmem:[#allocation6 + $0x670] sm:$0xff]
    %v4310 = vld [vmem:[#allocation6 + $0x678] sm:$0xff]
    %v4311 = vld [vmem:[#allocation6 + $0x680] sm:$0xff]
    %v4312 = vld [vmem:[#allocation6 + $0x688] sm:$0xff]
    %v4313 = vld [vmem:[#allocation6 + $0x690] sm:$0xff]
    %v4314 = vld [vmem:[#allocation6 + $0x698] sm:$0xff]
    %v4315 = vld [vmem:[#allocation6 + $0x6a0] sm:$0xff]
    %v4316 = vld [vmem:[#allocation6 + $0x6a8] sm:$0xff]
    %v4317 = vld [vmem:[#allocation6 + $0x6b0] sm:$0xff]
    %v4318 = vld [vmem:[#allocation6 + $0x6b8] sm:$0xff]
    %v4319 = vld [vmem:[#allocation6 + $0x6c0] sm:$0xff]
    %v4320 = vld [vmem:[#allocation6 + $0x6c8] sm:$0xff]
    %v4321 = vld [vmem:[#allocation6 + $0x6d0] sm:$0xff]
    %v4322 = vld [vmem:[#allocation6 + $0x6d8] sm:$0xff]
    %v4323 = vld [vmem:[#allocation6 + $0x6e0] sm:$0xff]
    %v4324 = vld [vmem:[#allocation6 + $0x6e8] sm:$0xff]
    %v4325 = vld [vmem:[#allocation6 + $0x6f0] sm:$0xff]
    %v4326 = vld [vmem:[#allocation6 + $0x6f8] sm:$0xff]
    %v4327 = vld [vmem:[#allocation6 + $0x700] sm:$0xff]
    %v4328 = vld [vmem:[#allocation6 + $0x708] sm:$0xff]
    %v4329 = vld [vmem:[#allocation6 + $0x710] sm:$0xff]
    %v4330 = vld [vmem:[#allocation6 + $0x718] sm:$0xff]
    %v4331 = vld [vmem:[#allocation6 + $0x720] sm:$0xff]
    %v4332 = vld [vmem:[#allocation6 + $0x728] sm:$0xff]
    %v4333 = vld [vmem:[#allocation6 + $0x730] sm:$0xff]
    %v4334 = vld [vmem:[#allocation6 + $0x738] sm:$0xff]
    %v4335 = vld [vmem:[#allocation6 + $0x740] sm:$0xff]
    %v4336 = vld [vmem:[#allocation6 + $0x748] sm:$0xff]
    %v4337 = vld [vmem:[#allocation6 + $0x750] sm:$0xff]
    %v4338 = vld [vmem:[#allocation6 + $0x758] sm:$0xff]
    %v4339 = vld [vmem:[#allocation6 + $0x760] sm:$0xff]
    %v4340 = vld [vmem:[#allocation6 + $0x768] sm:$0xff]
    %v4341 = vld [vmem:[#allocation6 + $0x770] sm:$0xff]
    %v4342 = vld [vmem:[#allocation6 + $0x778] sm:$0xff]
    %v4343 = vld [vmem:[#allocation6 + $0x780] sm:$0xff]
    %v4344 = vld [vmem:[#allocation6 + $0x788] sm:$0xff]
    %v4345 = vld [vmem:[#allocation6 + $0x790] sm:$0xff]
    %v4346 = vld [vmem:[#allocation6 + $0x798] sm:$0xff]
    %v4347 = vld [vmem:[#allocation6 + $0x7a0] sm:$0xff]
    %v4348 = vld [vmem:[#allocation6 + $0x7a8] sm:$0xff]
    %v4349 = vld [vmem:[#allocation6 + $0x7b0] sm:$0xff]
    %v4350 = vld [vmem:[#allocation6 + $0x7b8] sm:$0xff]
    %v4351 = vld [vmem:[#allocation6 + $0x7c0] sm:$0xff]
    %v4352 = vld [vmem:[#allocation6 + $0x7c8] sm:$0xff]
    %v4353 = vld [vmem:[#allocation6 + $0x7d0] sm:$0xff]
    %v4354 = vld [vmem:[#allocation6 + $0x7d8] sm:$0xff]
    %v4355 = vld [vmem:[#allocation6 + $0x7e0] sm:$0xff]
    %v4356 = vld [vmem:[#allocation6 + $0x7e8] sm:$0xff]
    %v4357 = vld [vmem:[#allocation6 + $0x7f0] sm:$0xff]
    %v4358 = vld [vmem:[#allocation6 + $0x7f8] sm:$0xff]
    %v4359 = vld [vmem:[#allocation6 + $0x800] sm:$0xff]
    %v4360 = vld [vmem:[#allocation6 + $0x808] sm:$0xff]
    %v4361 = vld [vmem:[#allocation6 + $0x810] sm:$0xff]
    %v4362 = vld [vmem:[#allocation6 + $0x818] sm:$0xff]
    %v4363 = vld [vmem:[#allocation6 + $0x820] sm:$0xff]
    %v4364 = vld [vmem:[#allocation6 + $0x828] sm:$0xff]
    %v4365 = vld [vmem:[#allocation6 + $0x830] sm:$0xff]
    %v4366 = vld [vmem:[#allocation6 + $0x838] sm:$0xff]
    %v4367 = vld [vmem:[#allocation6 + $0x840] sm:$0xff]
    %v4368 = vld [vmem:[#allocation6 + $0x848] sm:$0xff]
    %v4369 = vld [vmem:[#allocation6 + $0x850] sm:$0xff]
    %v4370 = vld [vmem:[#allocation6 + $0x858] sm:$0xff]
    %v4371 = vld [vmem:[#allocation6 + $0x860] sm:$0xff]
    %v4372 = vld [vmem:[#allocation6 + $0x868] sm:$0xff]
    %v4373 = vld [vmem:[#allocation6 + $0x870] sm:$0xff]
    %v4374 = vld [vmem:[#allocation6 + $0x878] sm:$0xff]
    %v4375 = vld [vmem:[#allocation6 + $0x880] sm:$0xff]
    %v4376 = vld [vmem:[#allocation6 + $0x888] sm:$0xff]
    %v4377 = vld [vmem:[#allocation6 + $0x890] sm:$0xff]
    %v4378 = vld [vmem:[#allocation6 + $0x898] sm:$0xff]
    %v4379 = vld [vmem:[#allocation6 + $0x8a0] sm:$0xff]
    %v4380 = vld [vmem:[#allocation6 + $0x8a8] sm:$0xff]
    %v4381 = vld [vmem:[#allocation6 + $0x8b0] sm:$0xff]
    %v4382 = vld [vmem:[#allocation6 + $0x8b8] sm:$0xff]
    %v4383 = vld [vmem:[#allocation6 + $0x8c0] sm:$0xff]
    %v4384 = vld [vmem:[#allocation6 + $0x8c8] sm:$0xff]
    %v4385 = vld [vmem:[#allocation6 + $0x8d0] sm:$0xff]
    %v4386 = vld [vmem:[#allocation6 + $0x8d8] sm:$0xff]
    %v4387 = vld [vmem:[#allocation6 + $0x8e0] sm:$0xff]
    %v4388 = vld [vmem:[#allocation6 + $0x8e8] sm:$0xff]
    %v4389 = vld [vmem:[#allocation6 + $0x8f0] sm:$0xff]
    %v4390 = vld [vmem:[#allocation6 + $0x8f8] sm:$0xff]
    %v4391 = vld [vmem:[#allocation6 + $0x900] sm:$0xff]
    %v4392 = vld [vmem:[#allocation6 + $0x908] sm:$0xff]
    %v4393 = vld [vmem:[#allocation6 + $0x910] sm:$0xff]
    %v4394 = vld [vmem:[#allocation6 + $0x918] sm:$0xff]
    %v4395 = vld [vmem:[#allocation6 + $0x920] sm:$0xff]
    %v4396 = vld [vmem:[#allocation6 + $0x928] sm:$0xff]
    %v4397 = vld [vmem:[#allocation6 + $0x930] sm:$0xff]
    %v4398 = vld [vmem:[#allocation6 + $0x938] sm:$0xff]
    %v4399 = vld [vmem:[#allocation6 + $0x940] sm:$0xff]
    %v4400 = vld [vmem:[#allocation6 + $0x948] sm:$0xff]
    %v4401 = vld [vmem:[#allocation6 + $0x950] sm:$0xff]
    %v4402 = vld [vmem:[#allocation6 + $0x958] sm:$0xff]
    %v4403 = vld [vmem:[#allocation6 + $0x960] sm:$0xff]
    %v4404 = vld [vmem:[#allocation6 + $0x968] sm:$0xff]
    %v4405 = vld [vmem:[#allocation6 + $0x970] sm:$0xff]
    %v4406 = vld [vmem:[#allocation6 + $0x978] sm:$0xff]
    %v4407 = vld [vmem:[#allocation6 + $0x980] sm:$0xff]
    %v4408 = vld [vmem:[#allocation6 + $0x988] sm:$0xff]
    %v4409 = vld [vmem:[#allocation6 + $0x990] sm:$0xff]
    %v4410 = vld [vmem:[#allocation6 + $0x998] sm:$0xff]
    %v4411 = vld [vmem:[#allocation6 + $0x9a0] sm:$0xff]
    %v4412 = vld [vmem:[#allocation6 + $0x9a8] sm:$0xff]
    %v4413 = vld [vmem:[#allocation6 + $0x9b0] sm:$0xff]
    %v4414 = vld [vmem:[#allocation6 + $0x9b8] sm:$0xff]
    %v4415 = vld [vmem:[#allocation6 + $0x9c0] sm:$0xff]
    %v4416 = vld [vmem:[#allocation6 + $0x9c8] sm:$0xff]
    %v4417 = vld [vmem:[#allocation6 + $0x9d0] sm:$0xff]
    %v4418 = vld [vmem:[#allocation6 + $0x9d8] sm:$0xff]
    %v4419 = vld [vmem:[#allocation6 + $0x9e0] sm:$0xff]
    %v4420 = vld [vmem:[#allocation6 + $0x9e8] sm:$0xff]
    %v4421 = vld [vmem:[#allocation6 + $0x9f0] sm:$0xff]
    %v4422 = vld [vmem:[#allocation6 + $0x9f8] sm:$0xff]
    %v4423 = vld [vmem:[#allocation6 + $0xa00] sm:$0xff]
    %v4424 = vld [vmem:[#allocation6 + $0xa08] sm:$0xff]
    %v4425 = vld [vmem:[#allocation6 + $0xa10] sm:$0xff]
    %v4426 = vld [vmem:[#allocation6 + $0xa18] sm:$0xff]
    %v4427 = vld [vmem:[#allocation6 + $0xa20] sm:$0xff]
    %v4428 = vld [vmem:[#allocation6 + $0xa28] sm:$0xff]
    %v4429 = vld [vmem:[#allocation6 + $0xa30] sm:$0xff]
    %v4430 = vld [vmem:[#allocation6 + $0xa38] sm:$0xff]
    %v4431 = vld [vmem:[#allocation6 + $0xa40] sm:$0xff]
    %v4432 = vld [vmem:[#allocation6 + $0xa48] sm:$0xff]
    %v4433 = vld [vmem:[#allocation6 + $0xa50] sm:$0xff]
    %v4434 = vld [vmem:[#allocation6 + $0xa58] sm:$0xff]
    %v4435 = vld [vmem:[#allocation6 + $0xa60] sm:$0xff]
    %v4436 = vld [vmem:[#allocation6 + $0xa68] sm:$0xff]
    %v4437 = vld [vmem:[#allocation6 + $0xa70] sm:$0xff]
    %v4438 = vld [vmem:[#allocation6 + $0xa78] sm:$0xff]
    %v4439 = vld [vmem:[#allocation6 + $0xa80] sm:$0xff]
    %v4440 = vld [vmem:[#allocation6 + $0xa88] sm:$0xff]
    %v4441 = vld [vmem:[#allocation6 + $0xa90] sm:$0xff]
    %v4442 = vld [vmem:[#allocation6 + $0xa98] sm:$0xff]
    %v4443 = vld [vmem:[#allocation6 + $0xaa0] sm:$0xff]
    %v4444 = vld [vmem:[#allocation6 + $0xaa8] sm:$0xff]
    %v4445 = vld [vmem:[#allocation6 + $0xab0] sm:$0xff]
    %v4446 = vld [vmem:[#allocation6 + $0xab8] sm:$0xff]
    %v4447 = vld [vmem:[#allocation6 + $0xac0] sm:$0xff]
    %v4448 = vld [vmem:[#allocation6 + $0xac8] sm:$0xff]
    %v4449 = vld [vmem:[#allocation6 + $0xad0] sm:$0xff]
    %v4450 = vld [vmem:[#allocation6 + $0xad8] sm:$0xff]
    %v4451 = vld [vmem:[#allocation6 + $0xae0] sm:$0xff]
    %v4452 = vld [vmem:[#allocation6 + $0xae8] sm:$0xff]
    %v4453 = vld [vmem:[#allocation6 + $0xaf0] sm:$0xff]
    %v4454 = vld [vmem:[#allocation6 + $0xaf8] sm:$0xff]
    %v4455 = vld [vmem:[#allocation6 + $0xb00] sm:$0xff]
    %v4456 = vld [vmem:[#allocation6 + $0xb08] sm:$0xff]
    %v4457 = vld [vmem:[#allocation6 + $0xb10] sm:$0xff]
    %v4458 = vld [vmem:[#allocation6 + $0xb18] sm:$0xff]
    %v4459 = vld [vmem:[#allocation6 + $0xb20] sm:$0xff]
    %v4460 = vld [vmem:[#allocation6 + $0xb28] sm:$0xff]
    %v4461 = vld [vmem:[#allocation6 + $0xb30] sm:$0xff]
    %v4462 = vld [vmem:[#allocation6 + $0xb38] sm:$0xff]
    %v4463 = vld [vmem:[#allocation6 + $0xb40] sm:$0xff]
    %v4464 = vld [vmem:[#allocation6 + $0xb48] sm:$0xff]
    %v4465 = vld [vmem:[#allocation6 + $0xb50] sm:$0xff]
    %v4466 = vld [vmem:[#allocation6 + $0xb58] sm:$0xff]
    %v4467 = vld [vmem:[#allocation6 + $0xb60] sm:$0xff]
    %v4468 = vld [vmem:[#allocation6 + $0xb68] sm:$0xff]
    %v4469 = vld [vmem:[#allocation6 + $0xb70] sm:$0xff]
    %v4470 = vld [vmem:[#allocation6 + $0xb78] sm:$0xff]
    %v4471 = vld [vmem:[#allocation6 + $0xb80] sm:$0xff]
    %v4472 = vld [vmem:[#allocation6 + $0xb88] sm:$0xff]
    %v4473 = vld [vmem:[#allocation6 + $0xb90] sm:$0xff]
    %v4474 = vld [vmem:[#allocation6 + $0xb98] sm:$0xff]
    %v4475 = vld [vmem:[#allocation6 + $0xba0] sm:$0xff]
    %v4476 = vld [vmem:[#allocation6 + $0xba8] sm:$0xff]
    %v4477 = vld [vmem:[#allocation6 + $0xbb0] sm:$0xff]
    %v4478 = vld [vmem:[#allocation6 + $0xbb8] sm:$0xff]
    %v4479 = vld [vmem:[#allocation6 + $0xbc0] sm:$0xff]
    %v4480 = vld [vmem:[#allocation6 + $0xbc8] sm:$0xff]
    %v4481 = vld [vmem:[#allocation6 + $0xbd0] sm:$0xff]
    %v4482 = vld [vmem:[#allocation6 + $0xbd8] sm:$0xff]
    %v4483 = vld [vmem:[#allocation6 + $0xbe0] sm:$0xff]
    %v4484 = vld [vmem:[#allocation6 + $0xbe8] sm:$0xff]
    %v4485 = vld [vmem:[#allocation6 + $0xbf0] sm:$0xff]
    %v4486 = vld [vmem:[#allocation6 + $0xbf8] sm:$0xff]
    %v4487 = vld [vmem:[#allocation6 + $0xc00] sm:$0xff]
    %v4488 = vld [vmem:[#allocation6 + $0xc08] sm:$0xff]
    %v4489 = vld [vmem:[#allocation6 + $0xc10] sm:$0xff]
    %v4490 = vld [vmem:[#allocation6 + $0xc18] sm:$0xff]
    %v4491 = vld [vmem:[#allocation6 + $0xc20] sm:$0xff]
    %v4492 = vld [vmem:[#allocation6 + $0xc28] sm:$0xff]
    %v4493 = vld [vmem:[#allocation6 + $0xc30] sm:$0xff]
    %v4494 = vld [vmem:[#allocation6 + $0xc38] sm:$0xff]
    %v4495 = vld [vmem:[#allocation6 + $0xc40] sm:$0xff]
    %v4496 = vld [vmem:[#allocation6 + $0xc48] sm:$0xff]
    %v4497 = vld [vmem:[#allocation6 + $0xc50] sm:$0xff]
    %v4498 = vld [vmem:[#allocation6 + $0xc58] sm:$0xff]
    %v4499 = vld [vmem:[#allocation6 + $0xc60] sm:$0xff]
    %v4500 = vld [vmem:[#allocation6 + $0xc68] sm:$0xff]
    %v4501 = vld [vmem:[#allocation6 + $0xc70] sm:$0xff]
    %v4502 = vld [vmem:[#allocation6 + $0xc78] sm:$0xff]
    %v4503 = vld [vmem:[#allocation6 + $0xc80] sm:$0xff]
    %v4504 = vld [vmem:[#allocation6 + $0xc88] sm:$0xff]
    %v4505 = vld [vmem:[#allocation6 + $0xc90] sm:$0xff]
    %v4506 = vld [vmem:[#allocation6 + $0xc98] sm:$0xff]
    %v4507 = vld [vmem:[#allocation6 + $0xca0] sm:$0xff]
    %v4508 = vld [vmem:[#allocation6 + $0xca8] sm:$0xff]
    %v4509 = vld [vmem:[#allocation6 + $0xcb0] sm:$0xff]
    %v4510 = vld [vmem:[#allocation6 + $0xcb8] sm:$0xff]
    %v4511 = vld [vmem:[#allocation6 + $0xcc0] sm:$0xff]
    %v4512 = vld [vmem:[#allocation6 + $0xcc8] sm:$0xff]
    %v4513 = vld [vmem:[#allocation6 + $0xcd0] sm:$0xff]
    %v4514 = vld [vmem:[#allocation6 + $0xcd8] sm:$0xff]
    %v4515 = vld [vmem:[#allocation6 + $0xce0] sm:$0xff]
    %v4516 = vld [vmem:[#allocation6 + $0xce8] sm:$0xff]
    %v4517 = vld [vmem:[#allocation6 + $0xcf0] sm:$0xff]
    %v4518 = vld [vmem:[#allocation6 + $0xcf8] sm:$0xff]
    %v4519 = vld [vmem:[#allocation6 + $0xd00] sm:$0xff]
    %v4520 = vld [vmem:[#allocation6 + $0xd08] sm:$0xff]
    %v4521 = vld [vmem:[#allocation6 + $0xd10] sm:$0xff]
    %v4522 = vld [vmem:[#allocation6 + $0xd18] sm:$0xff]
    %v4523 = vld [vmem:[#allocation6 + $0xd20] sm:$0xff]
    %v4524 = vld [vmem:[#allocation6 + $0xd28] sm:$0xff]
    %v4525 = vld [vmem:[#allocation6 + $0xd30] sm:$0xff]
    %v4526 = vld [vmem:[#allocation6 + $0xd38] sm:$0xff]
    %v4527 = vld [vmem:[#allocation6 + $0xd40] sm:$0xff]
    %v4528 = vld [vmem:[#allocation6 + $0xd48] sm:$0xff]
    %v4529 = vld [vmem:[#allocation6 + $0xd50] sm:$0xff]
    %v4530 = vld [vmem:[#allocation6 + $0xd58] sm:$0xff]
    %v4531 = vld [vmem:[#allocation6 + $0xd60] sm:$0xff]
    %v4532 = vld [vmem:[#allocation6 + $0xd68] sm:$0xff]
    %v4533 = vld [vmem:[#allocation6 + $0xd70] sm:$0xff]
    %v4534 = vld [vmem:[#allocation6 + $0xd78] sm:$0xff]
    %v4535 = vld [vmem:[#allocation6 + $0xd80] sm:$0xff]
    %v4536 = vld [vmem:[#allocation6 + $0xd88] sm:$0xff]
    %v4537 = vld [vmem:[#allocation6 + $0xd90] sm:$0xff]
    %v4538 = vld [vmem:[#allocation6 + $0xd98] sm:$0xff]
    %v4539 = vld [vmem:[#allocation6 + $0xda0] sm:$0xff]
    %v4540 = vld [vmem:[#allocation6 + $0xda8] sm:$0xff]
    %v4541 = vld [vmem:[#allocation6 + $0xdb0] sm:$0xff]
    %v4542 = vld [vmem:[#allocation6 + $0xdb8] sm:$0xff]
    %v4543 = vld [vmem:[#allocation6 + $0xdc0] sm:$0xff]
    %v4544 = vld [vmem:[#allocation6 + $0xdc8] sm:$0xff]
    %v4545 = vld [vmem:[#allocation6 + $0xdd0] sm:$0xff]
    %v4546 = vld [vmem:[#allocation6 + $0xdd8] sm:$0xff]
    %v4547 = vld [vmem:[#allocation6 + $0xde0] sm:$0xff]
    %v4548 = vld [vmem:[#allocation6 + $0xde8] sm:$0xff]
    %v4549 = vld [vmem:[#allocation6 + $0xdf0] sm:$0xff]
    %v4550 = vld [vmem:[#allocation6 + $0xdf8] sm:$0xff]
    %v4551 = vld [vmem:[#allocation6 + $0xe00] sm:$0xff]
    %v4552 = vld [vmem:[#allocation6 + $0xe08] sm:$0xff]
    %v4553 = vld [vmem:[#allocation6 + $0xe10] sm:$0xff]
    %v4554 = vld [vmem:[#allocation6 + $0xe18] sm:$0xff]
    %v4555 = vld [vmem:[#allocation6 + $0xe20] sm:$0xff]
    %v4556 = vld [vmem:[#allocation6 + $0xe28] sm:$0xff]
    %v4557 = vld [vmem:[#allocation6 + $0xe30] sm:$0xff]
    %v4558 = vld [vmem:[#allocation6 + $0xe38] sm:$0xff]
    %v4559 = vld [vmem:[#allocation6 + $0xe40] sm:$0xff]
    %v4560 = vld [vmem:[#allocation6 + $0xe48] sm:$0xff]
    %v4561 = vld [vmem:[#allocation6 + $0xe50] sm:$0xff]
    %v4562 = vld [vmem:[#allocation6 + $0xe58] sm:$0xff]
    %v4563 = vld [vmem:[#allocation6 + $0xe60] sm:$0xff]
    %v4564 = vld [vmem:[#allocation6 + $0xe68] sm:$0xff]
    %v4565 = vld [vmem:[#allocation6 + $0xe70] sm:$0xff]
    %v4566 = vld [vmem:[#allocation6 + $0xe78] sm:$0xff]
    %v4567 = vld [vmem:[#allocation6 + $0xe80] sm:$0xff]
    %v4568 = vld [vmem:[#allocation6 + $0xe88] sm:$0xff]
    %v4569 = vld [vmem:[#allocation6 + $0xe90] sm:$0xff]
    %v4570 = vld [vmem:[#allocation6 + $0xe98] sm:$0xff]
    %v4571 = vld [vmem:[#allocation6 + $0xea0] sm:$0xff]
    %v4572 = vld [vmem:[#allocation6 + $0xea8] sm:$0xff]
    %v4573 = vld [vmem:[#allocation6 + $0xeb0] sm:$0xff]
    %v4574 = vld [vmem:[#allocation6 + $0xeb8] sm:$0xff]
    %v4575 = vld [vmem:[#allocation6 + $0xec0] sm:$0xff]
    %v4576 = vld [vmem:[#allocation6 + $0xec8] sm:$0xff]
    %v4577 = vld [vmem:[#allocation6 + $0xed0] sm:$0xff]
    %v4578 = vld [vmem:[#allocation6 + $0xed8] sm:$0xff]
    %v4579 = vld [vmem:[#allocation6 + $0xee0] sm:$0xff]
    %v4580 = vld [vmem:[#allocation6 + $0xee8] sm:$0xff]
    %v4581 = vld [vmem:[#allocation6 + $0xef0] sm:$0xff]
    %v4582 = vld [vmem:[#allocation6 + $0xef8] sm:$0xff]
    %v4583 = vld [vmem:[#allocation6 + $0xf00] sm:$0xff]
    %v4584 = vld [vmem:[#allocation6 + $0xf08] sm:$0xff]
    %v4585 = vld [vmem:[#allocation6 + $0xf10] sm:$0xff]
    %v4586 = vld [vmem:[#allocation6 + $0xf18] sm:$0xff]
    %v4587 = vld [vmem:[#allocation6 + $0xf20] sm:$0xff]
    %v4588 = vld [vmem:[#allocation6 + $0xf28] sm:$0xff]
    %v4589 = vld [vmem:[#allocation6 + $0xf30] sm:$0xff]
    %v4590 = vld [vmem:[#allocation6 + $0xf38] sm:$0xff]
    %v4591 = vld [vmem:[#allocation6 + $0xf40] sm:$0xff]
    %v4592 = vld [vmem:[#allocation6 + $0xf48] sm:$0xff]
    %v4593 = vld [vmem:[#allocation6 + $0xf50] sm:$0xff]
    %v4594 = vld [vmem:[#allocation6 + $0xf58] sm:$0xff]
    %v4595 = vld [vmem:[#allocation6 + $0xf60] sm:$0xff]
    %v4596 = vld [vmem:[#allocation6 + $0xf68] sm:$0xff]
    %v4597 = vld [vmem:[#allocation6 + $0xf70] sm:$0xff]
    %v4598 = vld [vmem:[#allocation6 + $0xf78] sm:$0xff]
    %v4599 = vld [vmem:[#allocation6 + $0xf80] sm:$0xff]
    %v4600 = vld [vmem:[#allocation6 + $0xf88] sm:$0xff]
    %v4601 = vld [vmem:[#allocation6 + $0xf90] sm:$0xff]
    %v4602 = vld [vmem:[#allocation6 + $0xf98] sm:$0xff]
    %v4603 = vld [vmem:[#allocation6 + $0xfa0] sm:$0xff]
    %v4604 = vld [vmem:[#allocation6 + $0xfa8] sm:$0xff]
    %v4605 = vld [vmem:[#allocation6 + $0xfb0] sm:$0xff]
    %v4606 = vld [vmem:[#allocation6 + $0xfb8] sm:$0xff]
    %v4607 = vld [vmem:[#allocation6 + $0xfc0] sm:$0xff]
    %v4608 = vld [vmem:[#allocation6 + $0xfc8] sm:$0xff]
    %v4609 = vld [vmem:[#allocation6 + $0xfd0] sm:$0xff]
    %v4610 = vld [vmem:[#allocation6 + $0xfd8] sm:$0xff]
    %v4611 = vld [vmem:[#allocation6 + $0xfe0] sm:$0xff]
    %v4612 = vld [vmem:[#allocation6 + $0xfe8] sm:$0xff]
    %v4613 = vld [vmem:[#allocation6 + $0xff0] sm:$0xff]
    %v4614 = vld [vmem:[#allocation6 + $0xff8] sm:$0xff]
    %v4615 = vld [vmem:[#allocation7] sm:$0xff]
    %v4617 = vperm.slane %v4615, 0
    %v4618 = vperm.slane %v4615, 1
    %v4619 = vperm.slane %v4615, 2
    %v4620 = vperm.slane %v4615, 3
    %v4621 = vperm.slane %v4615, 4
    %v4622 = vperm.slane %v4615, 5
    %v4623 = vperm.slane %v4615, 6
    %v4624 = vperm.slane %v4615, 7
    %v5145 = vunpack.c.l.b16 %v4103
    %v5146 = vunpack.c.h.b16 %v4103
    %v5147 = vunpack.c.l.b16 %v4104
    %v5148 = vunpack.c.h.b16 %v4104
    %v5149 = vunpack.c.l.b16 %v4105
    %v5150 = vunpack.c.h.b16 %v4105
    %v5151 = vunpack.c.l.b16 %v4106
    %v5152 = vunpack.c.h.b16 %v4106
    %v5153 = vunpack.c.l.b16 %v4107
    %v5154 = vunpack.c.h.b16 %v4107
    %v5155 = vunpack.c.l.b16 %v4108
    %v5156 = vunpack.c.h.b16 %v4108
    %v5157 = vunpack.c.l.b16 %v4109
    %v5158 = vunpack.c.h.b16 %v4109
    %v5159 = vunpack.c.l.b16 %v4110
    %v5160 = vunpack.c.h.b16 %v4110
    %v5161 = vunpack.c.l.b16 %v4111
    %v5162 = vunpack.c.h.b16 %v4111
    %v5163 = vunpack.c.l.b16 %v4112
    %v5164 = vunpack.c.h.b16 %v4112
    %v5165 = vunpack.c.l.b16 %v4113
    %v5166 = vunpack.c.h.b16 %v4113
    %v5167 = vunpack.c.l.b16 %v4114
    %v5168 = vunpack.c.h.b16 %v4114
    %v5169 = vunpack.c.l.b16 %v4115
    %v5170 = vunpack.c.h.b16 %v4115
    %v5171 = vunpack.c.l.b16 %v4116
    %v5172 = vunpack.c.h.b16 %v4116
    %v5173 = vunpack.c.l.b16 %v4117
    %v5174 = vunpack.c.h.b16 %v4117
    %v5175 = vunpack.c.l.b16 %v4118
    %v5176 = vunpack.c.h.b16 %v4118
    %v5177 = vunpack.c.l.b16 %v4119
    %v5178 = vunpack.c.h.b16 %v4119
    %v5179 = vunpack.c.l.b16 %v4120
    %v5180 = vunpack.c.h.b16 %v4120
    %v5181 = vunpack.c.l.b16 %v4121
    %v5182 = vunpack.c.h.b16 %v4121
    %v5183 = vunpack.c.l.b16 %v4122
    %v5184 = vunpack.c.h.b16 %v4122
    %v5185 = vunpack.c.l.b16 %v4123
    %v5186 = vunpack.c.h.b16 %v4123
    %v5187 = vunpack.c.l.b16 %v4124
    %v5188 = vunpack.c.h.b16 %v4124
    %v5189 = vunpack.c.l.b16 %v4125
    %v5190 = vunpack.c.h.b16 %v4125
    %v5191 = vunpack.c.l.b16 %v4126
    %v5192 = vunpack.c.h.b16 %v4126
    %v5193 = vunpack.c.l.b16 %v4127
    %v5194 = vunpack.c.h.b16 %v4127
    %v5195 = vunpack.c.l.b16 %v4128
    %v5196 = vunpack.c.h.b16 %v4128
    %v5197 = vunpack.c.l.b16 %v4129
    %v5198 = vunpack.c.h.b16 %v4129
    %v5199 = vunpack.c.l.b16 %v4130
    %v5200 = vunpack.c.h.b16 %v4130
    %v5201 = vunpack.c.l.b16 %v4131
    %v5202 = vunpack.c.h.b16 %v4131
    %v5203 = vunpack.c.l.b16 %v4132
    %v5204 = vunpack.c.h.b16 %v4132
    %v5205 = vunpack.c.l.b16 %v4133
    %v5206 = vunpack.c.h.b16 %v4133
    %v5207 = vunpack.c.l.b16 %v4134
    %v5208 = vunpack.c.h.b16 %v4134
    %v5209 = vunpack.c.l.b16 %v4135
    %v5210 = vunpack.c.h.b16 %v4135
    %v5211 = vunpack.c.l.b16 %v4136
    %v5212 = vunpack.c.h.b16 %v4136
    %v5213 = vunpack.c.l.b16 %v4137
    %v5214 = vunpack.c.h.b16 %v4137
    %v5215 = vunpack.c.l.b16 %v4138
    %v5216 = vunpack.c.h.b16 %v4138
    %v5217 = vunpack.c.l.b16 %v4139
    %v5218 = vunpack.c.h.b16 %v4139
    %v5219 = vunpack.c.l.b16 %v4140
    %v5220 = vunpack.c.h.b16 %v4140
    %v5221 = vunpack.c.l.b16 %v4141
    %v5222 = vunpack.c.h.b16 %v4141
    %v5223 = vunpack.c.l.b16 %v4142
    %v5224 = vunpack.c.h.b16 %v4142
    %v5225 = vunpack.c.l.b16 %v4143
    %v5226 = vunpack.c.h.b16 %v4143
    %v5227 = vunpack.c.l.b16 %v4144
    %v5228 = vunpack.c.h.b16 %v4144
    %v5229 = vunpack.c.l.b16 %v4145
    %v5230 = vunpack.c.h.b16 %v4145
    %v5231 = vunpack.c.l.b16 %v4146
    %v5232 = vunpack.c.h.b16 %v4146
    %v5233 = vunpack.c.l.b16 %v4147
    %v5234 = vunpack.c.h.b16 %v4147
    %v5235 = vunpack.c.l.b16 %v4148
    %v5236 = vunpack.c.h.b16 %v4148
    %v5237 = vunpack.c.l.b16 %v4149
    %v5238 = vunpack.c.h.b16 %v4149
    %v5239 = vunpack.c.l.b16 %v4150
    %v5240 = vunpack.c.h.b16 %v4150
    %v5241 = vunpack.c.l.b16 %v4151
    %v5242 = vunpack.c.h.b16 %v4151
    %v5243 = vunpack.c.l.b16 %v4152
    %v5244 = vunpack.c.h.b16 %v4152
    %v5245 = vunpack.c.l.b16 %v4153
    %v5246 = vunpack.c.h.b16 %v4153
    %v5247 = vunpack.c.l.b16 %v4154
    %v5248 = vunpack.c.h.b16 %v4154
    %v5249 = vunpack.c.l.b16 %v4155
    %v5250 = vunpack.c.h.b16 %v4155
    %v5251 = vunpack.c.l.b16 %v4156
    %v5252 = vunpack.c.h.b16 %v4156
    %v5253 = vunpack.c.l.b16 %v4157
    %v5254 = vunpack.c.h.b16 %v4157
    %v5255 = vunpack.c.l.b16 %v4158
    %v5256 = vunpack.c.h.b16 %v4158
    %v5257 = vunpack.c.l.b16 %v4159
    %v5258 = vunpack.c.h.b16 %v4159
    %v5259 = vunpack.c.l.b16 %v4160
    %v5260 = vunpack.c.h.b16 %v4160
    %v5261 = vunpack.c.l.b16 %v4161
    %v5262 = vunpack.c.h.b16 %v4161
    %v5263 = vunpack.c.l.b16 %v4162
    %v5264 = vunpack.c.h.b16 %v4162
    %v5265 = vunpack.c.l.b16 %v4163
    %v5266 = vunpack.c.h.b16 %v4163
    %v5267 = vunpack.c.l.b16 %v4164
    %v5268 = vunpack.c.h.b16 %v4164
    %v5269 = vunpack.c.l.b16 %v4165
    %v5270 = vunpack.c.h.b16 %v4165
    %v5271 = vunpack.c.l.b16 %v4166
    %v5272 = vunpack.c.h.b16 %v4166
    %v5273 = vunpack.c.l.b16 %v4167
    %v5274 = vunpack.c.h.b16 %v4167
    %v5275 = vunpack.c.l.b16 %v4168
    %v5276 = vunpack.c.h.b16 %v4168
    %v5277 = vunpack.c.l.b16 %v4169
    %v5278 = vunpack.c.h.b16 %v4169
    %v5279 = vunpack.c.l.b16 %v4170
    %v5280 = vunpack.c.h.b16 %v4170
    %v5281 = vunpack.c.l.b16 %v4171
    %v5282 = vunpack.c.h.b16 %v4171
    %v5283 = vunpack.c.l.b16 %v4172
    %v5284 = vunpack.c.h.b16 %v4172
    %v5285 = vunpack.c.l.b16 %v4173
    %v5286 = vunpack.c.h.b16 %v4173
    %v5287 = vunpack.c.l.b16 %v4174
    %v5288 = vunpack.c.h.b16 %v4174
    %v5289 = vunpack.c.l.b16 %v4175
    %v5290 = vunpack.c.h.b16 %v4175
    %v5291 = vunpack.c.l.b16 %v4176
    %v5292 = vunpack.c.h.b16 %v4176
    %v5293 = vunpack.c.l.b16 %v4177
    %v5294 = vunpack.c.h.b16 %v4177
    %v5295 = vunpack.c.l.b16 %v4178
    %v5296 = vunpack.c.h.b16 %v4178
    %v5297 = vunpack.c.l.b16 %v4179
    %v5298 = vunpack.c.h.b16 %v4179
    %v5299 = vunpack.c.l.b16 %v4180
    %v5300 = vunpack.c.h.b16 %v4180
    %v5301 = vunpack.c.l.b16 %v4181
    %v5302 = vunpack.c.h.b16 %v4181
    %v5303 = vunpack.c.l.b16 %v4182
    %v5304 = vunpack.c.h.b16 %v4182
    %v5305 = vunpack.c.l.b16 %v4183
    %v5306 = vunpack.c.h.b16 %v4183
    %v5307 = vunpack.c.l.b16 %v4184
    %v5308 = vunpack.c.h.b16 %v4184
    %v5309 = vunpack.c.l.b16 %v4185
    %v5310 = vunpack.c.h.b16 %v4185
    %v5311 = vunpack.c.l.b16 %v4186
    %v5312 = vunpack.c.h.b16 %v4186
    %v5313 = vunpack.c.l.b16 %v4187
    %v5314 = vunpack.c.h.b16 %v4187
    %v5315 = vunpack.c.l.b16 %v4188
    %v5316 = vunpack.c.h.b16 %v4188
    %v5317 = vunpack.c.l.b16 %v4189
    %v5318 = vunpack.c.h.b16 %v4189
    %v5319 = vunpack.c.l.b16 %v4190
    %v5320 = vunpack.c.h.b16 %v4190
    %v5321 = vunpack.c.l.b16 %v4191
    %v5322 = vunpack.c.h.b16 %v4191
    %v5323 = vunpack.c.l.b16 %v4192
    %v5324 = vunpack.c.h.b16 %v4192
    %v5325 = vunpack.c.l.b16 %v4193
    %v5326 = vunpack.c.h.b16 %v4193
    %v5327 = vunpack.c.l.b16 %v4194
    %v5328 = vunpack.c.h.b16 %v4194
    %v5329 = vunpack.c.l.b16 %v4195
    %v5330 = vunpack.c.h.b16 %v4195
    %v5331 = vunpack.c.l.b16 %v4196
    %v5332 = vunpack.c.h.b16 %v4196
    %v5333 = vunpack.c.l.b16 %v4197
    %v5334 = vunpack.c.h.b16 %v4197
    %v5335 = vunpack.c.l.b16 %v4198
    %v5336 = vunpack.c.h.b16 %v4198
    %v5337 = vunpack.c.l.b16 %v4199
    %v5338 = vunpack.c.h.b16 %v4199
    %v5339 = vunpack.c.l.b16 %v4200
    %v5340 = vunpack.c.h.b16 %v4200
    %v5341 = vunpack.c.l.b16 %v4201
    %v5342 = vunpack.c.h.b16 %v4201
    %v5343 = vunpack.c.l.b16 %v4202
    %v5344 = vunpack.c.h.b16 %v4202
    %v5345 = vunpack.c.l.b16 %v4203
    %v5346 = vunpack.c.h.b16 %v4203
    %v5347 = vunpack.c.l.b16 %v4204
    %v5348 = vunpack.c.h.b16 %v4204
    %v5349 = vunpack.c.l.b16 %v4205
    %v5350 = vunpack.c.h.b16 %v4205
    %v5351 = vunpack.c.l.b16 %v4206
    %v5352 = vunpack.c.h.b16 %v4206
    %v5353 = vunpack.c.l.b16 %v4207
    %v5354 = vunpack.c.h.b16 %v4207
    %v5355 = vunpack.c.l.b16 %v4208
    %v5356 = vunpack.c.h.b16 %v4208
    %v5357 = vunpack.c.l.b16 %v4209
    %v5358 = vunpack.c.h.b16 %v4209
    %v5359 = vunpack.c.l.b16 %v4210
    %v5360 = vunpack.c.h.b16 %v4210
    %v5361 = vunpack.c.l.b16 %v4211
    %v5362 = vunpack.c.h.b16 %v4211
    %v5363 = vunpack.c.l.b16 %v4212
    %v5364 = vunpack.c.h.b16 %v4212
    %v5365 = vunpack.c.l.b16 %v4213
    %v5366 = vunpack.c.h.b16 %v4213
    %v5367 = vunpack.c.l.b16 %v4214
    %v5368 = vunpack.c.h.b16 %v4214
    %v5369 = vunpack.c.l.b16 %v4215
    %v5370 = vunpack.c.h.b16 %v4215
    %v5371 = vunpack.c.l.b16 %v4216
    %v5372 = vunpack.c.h.b16 %v4216
    %v5373 = vunpack.c.l.b16 %v4217
    %v5374 = vunpack.c.h.b16 %v4217
    %v5375 = vunpack.c.l.b16 %v4218
    %v5376 = vunpack.c.h.b16 %v4218
    %v5377 = vunpack.c.l.b16 %v4219
    %v5378 = vunpack.c.h.b16 %v4219
    %v5379 = vunpack.c.l.b16 %v4220
    %v5380 = vunpack.c.h.b16 %v4220
    %v5381 = vunpack.c.l.b16 %v4221
    %v5382 = vunpack.c.h.b16 %v4221
    %v5383 = vunpack.c.l.b16 %v4222
    %v5384 = vunpack.c.h.b16 %v4222
    %v5385 = vunpack.c.l.b16 %v4223
    %v5386 = vunpack.c.h.b16 %v4223
    %v5387 = vunpack.c.l.b16 %v4224
    %v5388 = vunpack.c.h.b16 %v4224
    %v5389 = vunpack.c.l.b16 %v4225
    %v5390 = vunpack.c.h.b16 %v4225
    %v5391 = vunpack.c.l.b16 %v4226
    %v5392 = vunpack.c.h.b16 %v4226
    %v5393 = vunpack.c.l.b16 %v4227
    %v5394 = vunpack.c.h.b16 %v4227
    %v5395 = vunpack.c.l.b16 %v4228
    %v5396 = vunpack.c.h.b16 %v4228
    %v5397 = vunpack.c.l.b16 %v4229
    %v5398 = vunpack.c.h.b16 %v4229
    %v5399 = vunpack.c.l.b16 %v4230
    %v5400 = vunpack.c.h.b16 %v4230
    %v5401 = vunpack.c.l.b16 %v4231
    %v5402 = vunpack.c.h.b16 %v4231
    %v5403 = vunpack.c.l.b16 %v4232
    %v5404 = vunpack.c.h.b16 %v4232
    %v5405 = vunpack.c.l.b16 %v4233
    %v5406 = vunpack.c.h.b16 %v4233
    %v5407 = vunpack.c.l.b16 %v4234
    %v5408 = vunpack.c.h.b16 %v4234
    %v5409 = vunpack.c.l.b16 %v4235
    %v5410 = vunpack.c.h.b16 %v4235
    %v5411 = vunpack.c.l.b16 %v4236
    %v5412 = vunpack.c.h.b16 %v4236
    %v5413 = vunpack.c.l.b16 %v4237
    %v5414 = vunpack.c.h.b16 %v4237
    %v5415 = vunpack.c.l.b16 %v4238
    %v5416 = vunpack.c.h.b16 %v4238
    %v5417 = vunpack.c.l.b16 %v4239
    %v5418 = vunpack.c.h.b16 %v4239
    %v5419 = vunpack.c.l.b16 %v4240
    %v5420 = vunpack.c.h.b16 %v4240
    %v5421 = vunpack.c.l.b16 %v4241
    %v5422 = vunpack.c.h.b16 %v4241
    %v5423 = vunpack.c.l.b16 %v4242
    %v5424 = vunpack.c.h.b16 %v4242
    %v5425 = vunpack.c.l.b16 %v4243
    %v5426 = vunpack.c.h.b16 %v4243
    %v5427 = vunpack.c.l.b16 %v4244
    %v5428 = vunpack.c.h.b16 %v4244
    %v5429 = vunpack.c.l.b16 %v4245
    %v5430 = vunpack.c.h.b16 %v4245
    %v5431 = vunpack.c.l.b16 %v4246
    %v5432 = vunpack.c.h.b16 %v4246
    %v5433 = vunpack.c.l.b16 %v4247
    %v5434 = vunpack.c.h.b16 %v4247
    %v5435 = vunpack.c.l.b16 %v4248
    %v5436 = vunpack.c.h.b16 %v4248
    %v5437 = vunpack.c.l.b16 %v4249
    %v5438 = vunpack.c.h.b16 %v4249
    %v5439 = vunpack.c.l.b16 %v4250
    %v5440 = vunpack.c.h.b16 %v4250
    %v5441 = vunpack.c.l.b16 %v4251
    %v5442 = vunpack.c.h.b16 %v4251
    %v5443 = vunpack.c.l.b16 %v4252
    %v5444 = vunpack.c.h.b16 %v4252
    %v5445 = vunpack.c.l.b16 %v4253
    %v5446 = vunpack.c.h.b16 %v4253
    %v5447 = vunpack.c.l.b16 %v4254
    %v5448 = vunpack.c.h.b16 %v4254
    %v5449 = vunpack.c.l.b16 %v4255
    %v5450 = vunpack.c.h.b16 %v4255
    %v5451 = vunpack.c.l.b16 %v4256
    %v5452 = vunpack.c.h.b16 %v4256
    %v5453 = vunpack.c.l.b16 %v4257
    %v5454 = vunpack.c.h.b16 %v4257
    %v5455 = vunpack.c.l.b16 %v4258
    %v5456 = vunpack.c.h.b16 %v4258
    %v5457 = vunpack.c.l.b16 %v4259
    %v5458 = vunpack.c.h.b16 %v4259
    %v5459 = vunpack.c.l.b16 %v4260
    %v5460 = vunpack.c.h.b16 %v4260
    %v5461 = vunpack.c.l.b16 %v4261
    %v5462 = vunpack.c.h.b16 %v4261
    %v5463 = vunpack.c.l.b16 %v4262
    %v5464 = vunpack.c.h.b16 %v4262
    %v5465 = vunpack.c.l.b16 %v4263
    %v5466 = vunpack.c.h.b16 %v4263
    %v5467 = vunpack.c.l.b16 %v4264
    %v5468 = vunpack.c.h.b16 %v4264
    %v5469 = vunpack.c.l.b16 %v4265
    %v5470 = vunpack.c.h.b16 %v4265
    %v5471 = vunpack.c.l.b16 %v4266
    %v5472 = vunpack.c.h.b16 %v4266
    %v5473 = vunpack.c.l.b16 %v4267
    %v5474 = vunpack.c.h.b16 %v4267
    %v5475 = vunpack.c.l.b16 %v4268
    %v5476 = vunpack.c.h.b16 %v4268
    %v5477 = vunpack.c.l.b16 %v4269
    %v5478 = vunpack.c.h.b16 %v4269
    %v5479 = vunpack.c.l.b16 %v4270
    %v5480 = vunpack.c.h.b16 %v4270
    %v5481 = vunpack.c.l.b16 %v4271
    %v5482 = vunpack.c.h.b16 %v4271
    %v5483 = vunpack.c.l.b16 %v4272
    %v5484 = vunpack.c.h.b16 %v4272
    %v5485 = vunpack.c.l.b16 %v4273
    %v5486 = vunpack.c.h.b16 %v4273
    %v5487 = vunpack.c.l.b16 %v4274
    %v5488 = vunpack.c.h.b16 %v4274
    %v5489 = vunpack.c.l.b16 %v4275
    %v5490 = vunpack.c.h.b16 %v4275
    %v5491 = vunpack.c.l.b16 %v4276
    %v5492 = vunpack.c.h.b16 %v4276
    %v5493 = vunpack.c.l.b16 %v4277
    %v5494 = vunpack.c.h.b16 %v4277
    %v5495 = vunpack.c.l.b16 %v4278
    %v5496 = vunpack.c.h.b16 %v4278
    %v5497 = vunpack.c.l.b16 %v4279
    %v5498 = vunpack.c.h.b16 %v4279
    %v5499 = vunpack.c.l.b16 %v4280
    %v5500 = vunpack.c.h.b16 %v4280
    %v5501 = vunpack.c.l.b16 %v4281
    %v5502 = vunpack.c.h.b16 %v4281
    %v5503 = vunpack.c.l.b16 %v4282
    %v5504 = vunpack.c.h.b16 %v4282
    %v5505 = vunpack.c.l.b16 %v4283
    %v5506 = vunpack.c.h.b16 %v4283
    %v5507 = vunpack.c.l.b16 %v4284
    %v5508 = vunpack.c.h.b16 %v4284
    %v5509 = vunpack.c.l.b16 %v4285
    %v5510 = vunpack.c.h.b16 %v4285
    %v5511 = vunpack.c.l.b16 %v4286
    %v5512 = vunpack.c.h.b16 %v4286
    %v5513 = vunpack.c.l.b16 %v4287
    %v5514 = vunpack.c.h.b16 %v4287
    %v5515 = vunpack.c.l.b16 %v4288
    %v5516 = vunpack.c.h.b16 %v4288
    %v5517 = vunpack.c.l.b16 %v4289
    %v5518 = vunpack.c.h.b16 %v4289
    %v5519 = vunpack.c.l.b16 %v4290
    %v5520 = vunpack.c.h.b16 %v4290
    %v5521 = vunpack.c.l.b16 %v4291
    %v5522 = vunpack.c.h.b16 %v4291
    %v5523 = vunpack.c.l.b16 %v4292
    %v5524 = vunpack.c.h.b16 %v4292
    %v5525 = vunpack.c.l.b16 %v4293
    %v5526 = vunpack.c.h.b16 %v4293
    %v5527 = vunpack.c.l.b16 %v4294
    %v5528 = vunpack.c.h.b16 %v4294
    %v5529 = vunpack.c.l.b16 %v4295
    %v5530 = vunpack.c.h.b16 %v4295
    %v5531 = vunpack.c.l.b16 %v4296
    %v5532 = vunpack.c.h.b16 %v4296
    %v5533 = vunpack.c.l.b16 %v4297
    %v5534 = vunpack.c.h.b16 %v4297
    %v5535 = vunpack.c.l.b16 %v4298
    %v5536 = vunpack.c.h.b16 %v4298
    %v5537 = vunpack.c.l.b16 %v4299
    %v5538 = vunpack.c.h.b16 %v4299
    %v5539 = vunpack.c.l.b16 %v4300
    %v5540 = vunpack.c.h.b16 %v4300
    %v5541 = vunpack.c.l.b16 %v4301
    %v5542 = vunpack.c.h.b16 %v4301
    %v5543 = vunpack.c.l.b16 %v4302
    %v5544 = vunpack.c.h.b16 %v4302
    %v5545 = vunpack.c.l.b16 %v4303
    %v5546 = vunpack.c.h.b16 %v4303
    %v5547 = vunpack.c.l.b16 %v4304
    %v5548 = vunpack.c.h.b16 %v4304
    %v5549 = vunpack.c.l.b16 %v4305
    %v5550 = vunpack.c.h.b16 %v4305
    %v5551 = vunpack.c.l.b16 %v4306
    %v5552 = vunpack.c.h.b16 %v4306
    %v5553 = vunpack.c.l.b16 %v4307
    %v5554 = vunpack.c.h.b16 %v4307
    %v5555 = vunpack.c.l.b16 %v4308
    %v5556 = vunpack.c.h.b16 %v4308
    %v5557 = vunpack.c.l.b16 %v4309
    %v5558 = vunpack.c.h.b16 %v4309
    %v5559 = vunpack.c.l.b16 %v4310
    %v5560 = vunpack.c.h.b16 %v4310
    %v5561 = vunpack.c.l.b16 %v4311
    %v5562 = vunpack.c.h.b16 %v4311
    %v5563 = vunpack.c.l.b16 %v4312
    %v5564 = vunpack.c.h.b16 %v4312
    %v5565 = vunpack.c.l.b16 %v4313
    %v5566 = vunpack.c.h.b16 %v4313
    %v5567 = vunpack.c.l.b16 %v4314
    %v5568 = vunpack.c.h.b16 %v4314
    %v5569 = vunpack.c.l.b16 %v4315
    %v5570 = vunpack.c.h.b16 %v4315
    %v5571 = vunpack.c.l.b16 %v4316
    %v5572 = vunpack.c.h.b16 %v4316
    %v5573 = vunpack.c.l.b16 %v4317
    %v5574 = vunpack.c.h.b16 %v4317
    %v5575 = vunpack.c.l.b16 %v4318
    %v5576 = vunpack.c.h.b16 %v4318
    %v5577 = vunpack.c.l.b16 %v4319
    %v5578 = vunpack.c.h.b16 %v4319
    %v5579 = vunpack.c.l.b16 %v4320
    %v5580 = vunpack.c.h.b16 %v4320
    %v5581 = vunpack.c.l.b16 %v4321
    %v5582 = vunpack.c.h.b16 %v4321
    %v5583 = vunpack.c.l.b16 %v4322
    %v5584 = vunpack.c.h.b16 %v4322
    %v5585 = vunpack.c.l.b16 %v4323
    %v5586 = vunpack.c.h.b16 %v4323
    %v5587 = vunpack.c.l.b16 %v4324
    %v5588 = vunpack.c.h.b16 %v4324
    %v5589 = vunpack.c.l.b16 %v4325
    %v5590 = vunpack.c.h.b16 %v4325
    %v5591 = vunpack.c.l.b16 %v4326
    %v5592 = vunpack.c.h.b16 %v4326
    %v5593 = vunpack.c.l.b16 %v4327
    %v5594 = vunpack.c.h.b16 %v4327
    %v5595 = vunpack.c.l.b16 %v4328
    %v5596 = vunpack.c.h.b16 %v4328
    %v5597 = vunpack.c.l.b16 %v4329
    %v5598 = vunpack.c.h.b16 %v4329
    %v5599 = vunpack.c.l.b16 %v4330
    %v5600 = vunpack.c.h.b16 %v4330
    %v5601 = vunpack.c.l.b16 %v4331
    %v5602 = vunpack.c.h.b16 %v4331
    %v5603 = vunpack.c.l.b16 %v4332
    %v5604 = vunpack.c.h.b16 %v4332
    %v5605 = vunpack.c.l.b16 %v4333
    %v5606 = vunpack.c.h.b16 %v4333
    %v5607 = vunpack.c.l.b16 %v4334
    %v5608 = vunpack.c.h.b16 %v4334
    %v5609 = vunpack.c.l.b16 %v4335
    %v5610 = vunpack.c.h.b16 %v4335
    %v5611 = vunpack.c.l.b16 %v4336
    %v5612 = vunpack.c.h.b16 %v4336
    %v5613 = vunpack.c.l.b16 %v4337
    %v5614 = vunpack.c.h.b16 %v4337
    %v5615 = vunpack.c.l.b16 %v4338
    %v5616 = vunpack.c.h.b16 %v4338
    %v5617 = vunpack.c.l.b16 %v4339
    %v5618 = vunpack.c.h.b16 %v4339
    %v5619 = vunpack.c.l.b16 %v4340
    %v5620 = vunpack.c.h.b16 %v4340
    %v5621 = vunpack.c.l.b16 %v4341
    %v5622 = vunpack.c.h.b16 %v4341
    %v5623 = vunpack.c.l.b16 %v4342
    %v5624 = vunpack.c.h.b16 %v4342
    %v5625 = vunpack.c.l.b16 %v4343
    %v5626 = vunpack.c.h.b16 %v4343
    %v5627 = vunpack.c.l.b16 %v4344
    %v5628 = vunpack.c.h.b16 %v4344
    %v5629 = vunpack.c.l.b16 %v4345
    %v5630 = vunpack.c.h.b16 %v4345
    %v5631 = vunpack.c.l.b16 %v4346
    %v5632 = vunpack.c.h.b16 %v4346
    %v5633 = vunpack.c.l.b16 %v4347
    %v5634 = vunpack.c.h.b16 %v4347
    %v5635 = vunpack.c.l.b16 %v4348
    %v5636 = vunpack.c.h.b16 %v4348
    %v5637 = vunpack.c.l.b16 %v4349
    %v5638 = vunpack.c.h.b16 %v4349
    %v5639 = vunpack.c.l.b16 %v4350
    %v5640 = vunpack.c.h.b16 %v4350
    %v5641 = vunpack.c.l.b16 %v4351
    %v5642 = vunpack.c.h.b16 %v4351
    %v5643 = vunpack.c.l.b16 %v4352
    %v5644 = vunpack.c.h.b16 %v4352
    %v5645 = vunpack.c.l.b16 %v4353
    %v5646 = vunpack.c.h.b16 %v4353
    %v5647 = vunpack.c.l.b16 %v4354
    %v5648 = vunpack.c.h.b16 %v4354
    %v5649 = vunpack.c.l.b16 %v4355
    %v5650 = vunpack.c.h.b16 %v4355
    %v5651 = vunpack.c.l.b16 %v4356
    %v5652 = vunpack.c.h.b16 %v4356
    %v5653 = vunpack.c.l.b16 %v4357
    %v5654 = vunpack.c.h.b16 %v4357
    %v5655 = vunpack.c.l.b16 %v4358
    %v5656 = vunpack.c.h.b16 %v4358
    %v5657 = vunpack.c.l.b16 %v4359
    %v5658 = vunpack.c.h.b16 %v4359
    %v5659 = vunpack.c.l.b16 %v4360
    %v5660 = vunpack.c.h.b16 %v4360
    %v5661 = vunpack.c.l.b16 %v4361
    %v5662 = vunpack.c.h.b16 %v4361
    %v5663 = vunpack.c.l.b16 %v4362
    %v5664 = vunpack.c.h.b16 %v4362
    %v5665 = vunpack.c.l.b16 %v4363
    %v5666 = vunpack.c.h.b16 %v4363
    %v5667 = vunpack.c.l.b16 %v4364
    %v5668 = vunpack.c.h.b16 %v4364
    %v5669 = vunpack.c.l.b16 %v4365
    %v5670 = vunpack.c.h.b16 %v4365
    %v5671 = vunpack.c.l.b16 %v4366
    %v5672 = vunpack.c.h.b16 %v4366
    %v5673 = vunpack.c.l.b16 %v4367
    %v5674 = vunpack.c.h.b16 %v4367
    %v5675 = vunpack.c.l.b16 %v4368
    %v5676 = vunpack.c.h.b16 %v4368
    %v5677 = vunpack.c.l.b16 %v4369
    %v5678 = vunpack.c.h.b16 %v4369
    %v5679 = vunpack.c.l.b16 %v4370
    %v5680 = vunpack.c.h.b16 %v4370
    %v5681 = vunpack.c.l.b16 %v4371
    %v5682 = vunpack.c.h.b16 %v4371
    %v5683 = vunpack.c.l.b16 %v4372
    %v5684 = vunpack.c.h.b16 %v4372
    %v5685 = vunpack.c.l.b16 %v4373
    %v5686 = vunpack.c.h.b16 %v4373
    %v5687 = vunpack.c.l.b16 %v4374
    %v5688 = vunpack.c.h.b16 %v4374
    %v5689 = vunpack.c.l.b16 %v4375
    %v5690 = vunpack.c.h.b16 %v4375
    %v5691 = vunpack.c.l.b16 %v4376
    %v5692 = vunpack.c.h.b16 %v4376
    %v5693 = vunpack.c.l.b16 %v4377
    %v5694 = vunpack.c.h.b16 %v4377
    %v5695 = vunpack.c.l.b16 %v4378
    %v5696 = vunpack.c.h.b16 %v4378
    %v5697 = vunpack.c.l.b16 %v4379
    %v5698 = vunpack.c.h.b16 %v4379
    %v5699 = vunpack.c.l.b16 %v4380
    %v5700 = vunpack.c.h.b16 %v4380
    %v5701 = vunpack.c.l.b16 %v4381
    %v5702 = vunpack.c.h.b16 %v4381
    %v5703 = vunpack.c.l.b16 %v4382
    %v5704 = vunpack.c.h.b16 %v4382
    %v5705 = vunpack.c.l.b16 %v4383
    %v5706 = vunpack.c.h.b16 %v4383
    %v5707 = vunpack.c.l.b16 %v4384
    %v5708 = vunpack.c.h.b16 %v4384
    %v5709 = vunpack.c.l.b16 %v4385
    %v5710 = vunpack.c.h.b16 %v4385
    %v5711 = vunpack.c.l.b16 %v4386
    %v5712 = vunpack.c.h.b16 %v4386
    %v5713 = vunpack.c.l.b16 %v4387
    %v5714 = vunpack.c.h.b16 %v4387
    %v5715 = vunpack.c.l.b16 %v4388
    %v5716 = vunpack.c.h.b16 %v4388
    %v5717 = vunpack.c.l.b16 %v4389
    %v5718 = vunpack.c.h.b16 %v4389
    %v5719 = vunpack.c.l.b16 %v4390
    %v5720 = vunpack.c.h.b16 %v4390
    %v5721 = vunpack.c.l.b16 %v4391
    %v5722 = vunpack.c.h.b16 %v4391
    %v5723 = vunpack.c.l.b16 %v4392
    %v5724 = vunpack.c.h.b16 %v4392
    %v5725 = vunpack.c.l.b16 %v4393
    %v5726 = vunpack.c.h.b16 %v4393
    %v5727 = vunpack.c.l.b16 %v4394
    %v5728 = vunpack.c.h.b16 %v4394
    %v5729 = vunpack.c.l.b16 %v4395
    %v5730 = vunpack.c.h.b16 %v4395
    %v5731 = vunpack.c.l.b16 %v4396
    %v5732 = vunpack.c.h.b16 %v4396
    %v5733 = vunpack.c.l.b16 %v4397
    %v5734 = vunpack.c.h.b16 %v4397
    %v5735 = vunpack.c.l.b16 %v4398
    %v5736 = vunpack.c.h.b16 %v4398
    %v5737 = vunpack.c.l.b16 %v4399
    %v5738 = vunpack.c.h.b16 %v4399
    %v5739 = vunpack.c.l.b16 %v4400
    %v5740 = vunpack.c.h.b16 %v4400
    %v5741 = vunpack.c.l.b16 %v4401
    %v5742 = vunpack.c.h.b16 %v4401
    %v5743 = vunpack.c.l.b16 %v4402
    %v5744 = vunpack.c.h.b16 %v4402
    %v5745 = vunpack.c.l.b16 %v4403
    %v5746 = vunpack.c.h.b16 %v4403
    %v5747 = vunpack.c.l.b16 %v4404
    %v5748 = vunpack.c.h.b16 %v4404
    %v5749 = vunpack.c.l.b16 %v4405
    %v5750 = vunpack.c.h.b16 %v4405
    %v5751 = vunpack.c.l.b16 %v4406
    %v5752 = vunpack.c.h.b16 %v4406
    %v5753 = vunpack.c.l.b16 %v4407
    %v5754 = vunpack.c.h.b16 %v4407
    %v5755 = vunpack.c.l.b16 %v4408
    %v5756 = vunpack.c.h.b16 %v4408
    %v5757 = vunpack.c.l.b16 %v4409
    %v5758 = vunpack.c.h.b16 %v4409
    %v5759 = vunpack.c.l.b16 %v4410
    %v5760 = vunpack.c.h.b16 %v4410
    %v5761 = vunpack.c.l.b16 %v4411
    %v5762 = vunpack.c.h.b16 %v4411
    %v5763 = vunpack.c.l.b16 %v4412
    %v5764 = vunpack.c.h.b16 %v4412
    %v5765 = vunpack.c.l.b16 %v4413
    %v5766 = vunpack.c.h.b16 %v4413
    %v5767 = vunpack.c.l.b16 %v4414
    %v5768 = vunpack.c.h.b16 %v4414
    %v5769 = vunpack.c.l.b16 %v4415
    %v5770 = vunpack.c.h.b16 %v4415
    %v5771 = vunpack.c.l.b16 %v4416
    %v5772 = vunpack.c.h.b16 %v4416
    %v5773 = vunpack.c.l.b16 %v4417
    %v5774 = vunpack.c.h.b16 %v4417
    %v5775 = vunpack.c.l.b16 %v4418
    %v5776 = vunpack.c.h.b16 %v4418
    %v5777 = vunpack.c.l.b16 %v4419
    %v5778 = vunpack.c.h.b16 %v4419
    %v5779 = vunpack.c.l.b16 %v4420
    %v5780 = vunpack.c.h.b16 %v4420
    %v5781 = vunpack.c.l.b16 %v4421
    %v5782 = vunpack.c.h.b16 %v4421
    %v5783 = vunpack.c.l.b16 %v4422
    %v5784 = vunpack.c.h.b16 %v4422
    %v5785 = vunpack.c.l.b16 %v4423
    %v5786 = vunpack.c.h.b16 %v4423
    %v5787 = vunpack.c.l.b16 %v4424
    %v5788 = vunpack.c.h.b16 %v4424
    %v5789 = vunpack.c.l.b16 %v4425
    %v5790 = vunpack.c.h.b16 %v4425
    %v5791 = vunpack.c.l.b16 %v4426
    %v5792 = vunpack.c.h.b16 %v4426
    %v5793 = vunpack.c.l.b16 %v4427
    %v5794 = vunpack.c.h.b16 %v4427
    %v5795 = vunpack.c.l.b16 %v4428
    %v5796 = vunpack.c.h.b16 %v4428
    %v5797 = vunpack.c.l.b16 %v4429
    %v5798 = vunpack.c.h.b16 %v4429
    %v5799 = vunpack.c.l.b16 %v4430
    %v5800 = vunpack.c.h.b16 %v4430
    %v5801 = vunpack.c.l.b16 %v4431
    %v5802 = vunpack.c.h.b16 %v4431
    %v5803 = vunpack.c.l.b16 %v4432
    %v5804 = vunpack.c.h.b16 %v4432
    %v5805 = vunpack.c.l.b16 %v4433
    %v5806 = vunpack.c.h.b16 %v4433
    %v5807 = vunpack.c.l.b16 %v4434
    %v5808 = vunpack.c.h.b16 %v4434
    %v5809 = vunpack.c.l.b16 %v4435
    %v5810 = vunpack.c.h.b16 %v4435
    %v5811 = vunpack.c.l.b16 %v4436
    %v5812 = vunpack.c.h.b16 %v4436
    %v5813 = vunpack.c.l.b16 %v4437
    %v5814 = vunpack.c.h.b16 %v4437
    %v5815 = vunpack.c.l.b16 %v4438
    %v5816 = vunpack.c.h.b16 %v4438
    %v5817 = vunpack.c.l.b16 %v4439
    %v5818 = vunpack.c.h.b16 %v4439
    %v5819 = vunpack.c.l.b16 %v4440
    %v5820 = vunpack.c.h.b16 %v4440
    %v5821 = vunpack.c.l.b16 %v4441
    %v5822 = vunpack.c.h.b16 %v4441
    %v5823 = vunpack.c.l.b16 %v4442
    %v5824 = vunpack.c.h.b16 %v4442
    %v5825 = vunpack.c.l.b16 %v4443
    %v5826 = vunpack.c.h.b16 %v4443
    %v5827 = vunpack.c.l.b16 %v4444
    %v5828 = vunpack.c.h.b16 %v4444
    %v5829 = vunpack.c.l.b16 %v4445
    %v5830 = vunpack.c.h.b16 %v4445
    %v5831 = vunpack.c.l.b16 %v4446
    %v5832 = vunpack.c.h.b16 %v4446
    %v5833 = vunpack.c.l.b16 %v4447
    %v5834 = vunpack.c.h.b16 %v4447
    %v5835 = vunpack.c.l.b16 %v4448
    %v5836 = vunpack.c.h.b16 %v4448
    %v5837 = vunpack.c.l.b16 %v4449
    %v5838 = vunpack.c.h.b16 %v4449
    %v5839 = vunpack.c.l.b16 %v4450
    %v5840 = vunpack.c.h.b16 %v4450
    %v5841 = vunpack.c.l.b16 %v4451
    %v5842 = vunpack.c.h.b16 %v4451
    %v5843 = vunpack.c.l.b16 %v4452
    %v5844 = vunpack.c.h.b16 %v4452
    %v5845 = vunpack.c.l.b16 %v4453
    %v5846 = vunpack.c.h.b16 %v4453
    %v5847 = vunpack.c.l.b16 %v4454
    %v5848 = vunpack.c.h.b16 %v4454
    %v5849 = vunpack.c.l.b16 %v4455
    %v5850 = vunpack.c.h.b16 %v4455
    %v5851 = vunpack.c.l.b16 %v4456
    %v5852 = vunpack.c.h.b16 %v4456
    %v5853 = vunpack.c.l.b16 %v4457
    %v5854 = vunpack.c.h.b16 %v4457
    %v5855 = vunpack.c.l.b16 %v4458
    %v5856 = vunpack.c.h.b16 %v4458
    %v5857 = vunpack.c.l.b16 %v4459
    %v5858 = vunpack.c.h.b16 %v4459
    %v5859 = vunpack.c.l.b16 %v4460
    %v5860 = vunpack.c.h.b16 %v4460
    %v5861 = vunpack.c.l.b16 %v4461
    %v5862 = vunpack.c.h.b16 %v4461
    %v5863 = vunpack.c.l.b16 %v4462
    %v5864 = vunpack.c.h.b16 %v4462
    %v5865 = vunpack.c.l.b16 %v4463
    %v5866 = vunpack.c.h.b16 %v4463
    %v5867 = vunpack.c.l.b16 %v4464
    %v5868 = vunpack.c.h.b16 %v4464
    %v5869 = vunpack.c.l.b16 %v4465
    %v5870 = vunpack.c.h.b16 %v4465
    %v5871 = vunpack.c.l.b16 %v4466
    %v5872 = vunpack.c.h.b16 %v4466
    %v5873 = vunpack.c.l.b16 %v4467
    %v5874 = vunpack.c.h.b16 %v4467
    %v5875 = vunpack.c.l.b16 %v4468
    %v5876 = vunpack.c.h.b16 %v4468
    %v5877 = vunpack.c.l.b16 %v4469
    %v5878 = vunpack.c.h.b16 %v4469
    %v5879 = vunpack.c.l.b16 %v4470
    %v5880 = vunpack.c.h.b16 %v4470
    %v5881 = vunpack.c.l.b16 %v4471
    %v5882 = vunpack.c.h.b16 %v4471
    %v5883 = vunpack.c.l.b16 %v4472
    %v5884 = vunpack.c.h.b16 %v4472
    %v5885 = vunpack.c.l.b16 %v4473
    %v5886 = vunpack.c.h.b16 %v4473
    %v5887 = vunpack.c.l.b16 %v4474
    %v5888 = vunpack.c.h.b16 %v4474
    %v5889 = vunpack.c.l.b16 %v4475
    %v5890 = vunpack.c.h.b16 %v4475
    %v5891 = vunpack.c.l.b16 %v4476
    %v5892 = vunpack.c.h.b16 %v4476
    %v5893 = vunpack.c.l.b16 %v4477
    %v5894 = vunpack.c.h.b16 %v4477
    %v5895 = vunpack.c.l.b16 %v4478
    %v5896 = vunpack.c.h.b16 %v4478
    %v5897 = vunpack.c.l.b16 %v4479
    %v5898 = vunpack.c.h.b16 %v4479
    %v5899 = vunpack.c.l.b16 %v4480
    %v5900 = vunpack.c.h.b16 %v4480
    %v5901 = vunpack.c.l.b16 %v4481
    %v5902 = vunpack.c.h.b16 %v4481
    %v5903 = vunpack.c.l.b16 %v4482
    %v5904 = vunpack.c.h.b16 %v4482
    %v5905 = vunpack.c.l.b16 %v4483
    %v5906 = vunpack.c.h.b16 %v4483
    %v5907 = vunpack.c.l.b16 %v4484
    %v5908 = vunpack.c.h.b16 %v4484
    %v5909 = vunpack.c.l.b16 %v4485
    %v5910 = vunpack.c.h.b16 %v4485
    %v5911 = vunpack.c.l.b16 %v4486
    %v5912 = vunpack.c.h.b16 %v4486
    %v5913 = vunpack.c.l.b16 %v4487
    %v5914 = vunpack.c.h.b16 %v4487
    %v5915 = vunpack.c.l.b16 %v4488
    %v5916 = vunpack.c.h.b16 %v4488
    %v5917 = vunpack.c.l.b16 %v4489
    %v5918 = vunpack.c.h.b16 %v4489
    %v5919 = vunpack.c.l.b16 %v4490
    %v5920 = vunpack.c.h.b16 %v4490
    %v5921 = vunpack.c.l.b16 %v4491
    %v5922 = vunpack.c.h.b16 %v4491
    %v5923 = vunpack.c.l.b16 %v4492
    %v5924 = vunpack.c.h.b16 %v4492
    %v5925 = vunpack.c.l.b16 %v4493
    %v5926 = vunpack.c.h.b16 %v4493
    %v5927 = vunpack.c.l.b16 %v4494
    %v5928 = vunpack.c.h.b16 %v4494
    %v5929 = vunpack.c.l.b16 %v4495
    %v5930 = vunpack.c.h.b16 %v4495
    %v5931 = vunpack.c.l.b16 %v4496
    %v5932 = vunpack.c.h.b16 %v4496
    %v5933 = vunpack.c.l.b16 %v4497
    %v5934 = vunpack.c.h.b16 %v4497
    %v5935 = vunpack.c.l.b16 %v4498
    %v5936 = vunpack.c.h.b16 %v4498
    %v5937 = vunpack.c.l.b16 %v4499
    %v5938 = vunpack.c.h.b16 %v4499
    %v5939 = vunpack.c.l.b16 %v4500
    %v5940 = vunpack.c.h.b16 %v4500
    %v5941 = vunpack.c.l.b16 %v4501
    %v5942 = vunpack.c.h.b16 %v4501
    %v5943 = vunpack.c.l.b16 %v4502
    %v5944 = vunpack.c.h.b16 %v4502
    %v5945 = vunpack.c.l.b16 %v4503
    %v5946 = vunpack.c.h.b16 %v4503
    %v5947 = vunpack.c.l.b16 %v4504
    %v5948 = vunpack.c.h.b16 %v4504
    %v5949 = vunpack.c.l.b16 %v4505
    %v5950 = vunpack.c.h.b16 %v4505
    %v5951 = vunpack.c.l.b16 %v4506
    %v5952 = vunpack.c.h.b16 %v4506
    %v5953 = vunpack.c.l.b16 %v4507
    %v5954 = vunpack.c.h.b16 %v4507
    %v5955 = vunpack.c.l.b16 %v4508
    %v5956 = vunpack.c.h.b16 %v4508
    %v5957 = vunpack.c.l.b16 %v4509
    %v5958 = vunpack.c.h.b16 %v4509
    %v5959 = vunpack.c.l.b16 %v4510
    %v5960 = vunpack.c.h.b16 %v4510
    %v5961 = vunpack.c.l.b16 %v4511
    %v5962 = vunpack.c.h.b16 %v4511
    %v5963 = vunpack.c.l.b16 %v4512
    %v5964 = vunpack.c.h.b16 %v4512
    %v5965 = vunpack.c.l.b16 %v4513
    %v5966 = vunpack.c.h.b16 %v4513
    %v5967 = vunpack.c.l.b16 %v4514
    %v5968 = vunpack.c.h.b16 %v4514
    %v5969 = vunpack.c.l.b16 %v4515
    %v5970 = vunpack.c.h.b16 %v4515
    %v5971 = vunpack.c.l.b16 %v4516
    %v5972 = vunpack.c.h.b16 %v4516
    %v5973 = vunpack.c.l.b16 %v4517
    %v5974 = vunpack.c.h.b16 %v4517
    %v5975 = vunpack.c.l.b16 %v4518
    %v5976 = vunpack.c.h.b16 %v4518
    %v5977 = vunpack.c.l.b16 %v4519
    %v5978 = vunpack.c.h.b16 %v4519
    %v5979 = vunpack.c.l.b16 %v4520
    %v5980 = vunpack.c.h.b16 %v4520
    %v5981 = vunpack.c.l.b16 %v4521
    %v5982 = vunpack.c.h.b16 %v4521
    %v5983 = vunpack.c.l.b16 %v4522
    %v5984 = vunpack.c.h.b16 %v4522
    %v5985 = vunpack.c.l.b16 %v4523
    %v5986 = vunpack.c.h.b16 %v4523
    %v5987 = vunpack.c.l.b16 %v4524
    %v5988 = vunpack.c.h.b16 %v4524
    %v5989 = vunpack.c.l.b16 %v4525
    %v5990 = vunpack.c.h.b16 %v4525
    %v5991 = vunpack.c.l.b16 %v4526
    %v5992 = vunpack.c.h.b16 %v4526
    %v5993 = vunpack.c.l.b16 %v4527
    %v5994 = vunpack.c.h.b16 %v4527
    %v5995 = vunpack.c.l.b16 %v4528
    %v5996 = vunpack.c.h.b16 %v4528
    %v5997 = vunpack.c.l.b16 %v4529
    %v5998 = vunpack.c.h.b16 %v4529
    %v5999 = vunpack.c.l.b16 %v4530
    %v6000 = vunpack.c.h.b16 %v4530
    %v6001 = vunpack.c.l.b16 %v4531
    %v6002 = vunpack.c.h.b16 %v4531
    %v6003 = vunpack.c.l.b16 %v4532
    %v6004 = vunpack.c.h.b16 %v4532
    %v6005 = vunpack.c.l.b16 %v4533
    %v6006 = vunpack.c.h.b16 %v4533
    %v6007 = vunpack.c.l.b16 %v4534
    %v6008 = vunpack.c.h.b16 %v4534
    %v6009 = vunpack.c.l.b16 %v4535
    %v6010 = vunpack.c.h.b16 %v4535
    %v6011 = vunpack.c.l.b16 %v4536
    %v6012 = vunpack.c.h.b16 %v4536
    %v6013 = vunpack.c.l.b16 %v4537
    %v6014 = vunpack.c.h.b16 %v4537
    %v6015 = vunpack.c.l.b16 %v4538
    %v6016 = vunpack.c.h.b16 %v4538
    %v6017 = vunpack.c.l.b16 %v4539
    %v6018 = vunpack.c.h.b16 %v4539
    %v6019 = vunpack.c.l.b16 %v4540
    %v6020 = vunpack.c.h.b16 %v4540
    %v6021 = vunpack.c.l.b16 %v4541
    %v6022 = vunpack.c.h.b16 %v4541
    %v6023 = vunpack.c.l.b16 %v4542
    %v6024 = vunpack.c.h.b16 %v4542
    %v6025 = vunpack.c.l.b16 %v4543
    %v6026 = vunpack.c.h.b16 %v4543
    %v6027 = vunpack.c.l.b16 %v4544
    %v6028 = vunpack.c.h.b16 %v4544
    %v6029 = vunpack.c.l.b16 %v4545
    %v6030 = vunpack.c.h.b16 %v4545
    %v6031 = vunpack.c.l.b16 %v4546
    %v6032 = vunpack.c.h.b16 %v4546
    %v6033 = vunpack.c.l.b16 %v4547
    %v6034 = vunpack.c.h.b16 %v4547
    %v6035 = vunpack.c.l.b16 %v4548
    %v6036 = vunpack.c.h.b16 %v4548
    %v6037 = vunpack.c.l.b16 %v4549
    %v6038 = vunpack.c.h.b16 %v4549
    %v6039 = vunpack.c.l.b16 %v4550
    %v6040 = vunpack.c.h.b16 %v4550
    %v6041 = vunpack.c.l.b16 %v4551
    %v6042 = vunpack.c.h.b16 %v4551
    %v6043 = vunpack.c.l.b16 %v4552
    %v6044 = vunpack.c.h.b16 %v4552
    %v6045 = vunpack.c.l.b16 %v4553
    %v6046 = vunpack.c.h.b16 %v4553
    %v6047 = vunpack.c.l.b16 %v4554
    %v6048 = vunpack.c.h.b16 %v4554
    %v6049 = vunpack.c.l.b16 %v4555
    %v6050 = vunpack.c.h.b16 %v4555
    %v6051 = vunpack.c.l.b16 %v4556
    %v6052 = vunpack.c.h.b16 %v4556
    %v6053 = vunpack.c.l.b16 %v4557
    %v6054 = vunpack.c.h.b16 %v4557
    %v6055 = vunpack.c.l.b16 %v4558
    %v6056 = vunpack.c.h.b16 %v4558
    %v6057 = vunpack.c.l.b16 %v4559
    %v6058 = vunpack.c.h.b16 %v4559
    %v6059 = vunpack.c.l.b16 %v4560
    %v6060 = vunpack.c.h.b16 %v4560
    %v6061 = vunpack.c.l.b16 %v4561
    %v6062 = vunpack.c.h.b16 %v4561
    %v6063 = vunpack.c.l.b16 %v4562
    %v6064 = vunpack.c.h.b16 %v4562
    %v6065 = vunpack.c.l.b16 %v4563
    %v6066 = vunpack.c.h.b16 %v4563
    %v6067 = vunpack.c.l.b16 %v4564
    %v6068 = vunpack.c.h.b16 %v4564
    %v6069 = vunpack.c.l.b16 %v4565
    %v6070 = vunpack.c.h.b16 %v4565
    %v6071 = vunpack.c.l.b16 %v4566
    %v6072 = vunpack.c.h.b16 %v4566
    %v6073 = vunpack.c.l.b16 %v4567
    %v6074 = vunpack.c.h.b16 %v4567
    %v6075 = vunpack.c.l.b16 %v4568
    %v6076 = vunpack.c.h.b16 %v4568
    %v6077 = vunpack.c.l.b16 %v4569
    %v6078 = vunpack.c.h.b16 %v4569
    %v6079 = vunpack.c.l.b16 %v4570
    %v6080 = vunpack.c.h.b16 %v4570
    %v6081 = vunpack.c.l.b16 %v4571
    %v6082 = vunpack.c.h.b16 %v4571
    %v6083 = vunpack.c.l.b16 %v4572
    %v6084 = vunpack.c.h.b16 %v4572
    %v6085 = vunpack.c.l.b16 %v4573
    %v6086 = vunpack.c.h.b16 %v4573
    %v6087 = vunpack.c.l.b16 %v4574
    %v6088 = vunpack.c.h.b16 %v4574
    %v6089 = vunpack.c.l.b16 %v4575
    %v6090 = vunpack.c.h.b16 %v4575
    %v6091 = vunpack.c.l.b16 %v4576
    %v6092 = vunpack.c.h.b16 %v4576
    %v6093 = vunpack.c.l.b16 %v4577
    %v6094 = vunpack.c.h.b16 %v4577
    %v6095 = vunpack.c.l.b16 %v4578
    %v6096 = vunpack.c.h.b16 %v4578
    %v6097 = vunpack.c.l.b16 %v4579
    %v6098 = vunpack.c.h.b16 %v4579
    %v6099 = vunpack.c.l.b16 %v4580
    %v6100 = vunpack.c.h.b16 %v4580
    %v6101 = vunpack.c.l.b16 %v4581
    %v6102 = vunpack.c.h.b16 %v4581
    %v6103 = vunpack.c.l.b16 %v4582
    %v6104 = vunpack.c.h.b16 %v4582
    %v6105 = vunpack.c.l.b16 %v4583
    %v6106 = vunpack.c.h.b16 %v4583
    %v6107 = vunpack.c.l.b16 %v4584
    %v6108 = vunpack.c.h.b16 %v4584
    %v6109 = vunpack.c.l.b16 %v4585
    %v6110 = vunpack.c.h.b16 %v4585
    %v6111 = vunpack.c.l.b16 %v4586
    %v6112 = vunpack.c.h.b16 %v4586
    %v6113 = vunpack.c.l.b16 %v4587
    %v6114 = vunpack.c.h.b16 %v4587
    %v6115 = vunpack.c.l.b16 %v4588
    %v6116 = vunpack.c.h.b16 %v4588
    %v6117 = vunpack.c.l.b16 %v4589
    %v6118 = vunpack.c.h.b16 %v4589
    %v6119 = vunpack.c.l.b16 %v4590
    %v6120 = vunpack.c.h.b16 %v4590
    %v6121 = vunpack.c.l.b16 %v4591
    %v6122 = vunpack.c.h.b16 %v4591
    %v6123 = vunpack.c.l.b16 %v4592
    %v6124 = vunpack.c.h.b16 %v4592
    %v6125 = vunpack.c.l.b16 %v4593
    %v6126 = vunpack.c.h.b16 %v4593
    %v6127 = vunpack.c.l.b16 %v4594
    %v6128 = vunpack.c.h.b16 %v4594
    %v6129 = vunpack.c.l.b16 %v4595
    %v6130 = vunpack.c.h.b16 %v4595
    %v6131 = vunpack.c.l.b16 %v4596
    %v6132 = vunpack.c.h.b16 %v4596
    %v6133 = vunpack.c.l.b16 %v4597
    %v6134 = vunpack.c.h.b16 %v4597
    %v6135 = vunpack.c.l.b16 %v4598
    %v6136 = vunpack.c.h.b16 %v4598
    %v6137 = vunpack.c.l.b16 %v4599
    %v6138 = vunpack.c.h.b16 %v4599
    %v6139 = vunpack.c.l.b16 %v4600
    %v6140 = vunpack.c.h.b16 %v4600
    %v6141 = vunpack.c.l.b16 %v4601
    %v6142 = vunpack.c.h.b16 %v4601
    %v6143 = vunpack.c.l.b16 %v4602
    %v6144 = vunpack.c.h.b16 %v4602
    %v6145 = vunpack.c.l.b16 %v4603
    %v6146 = vunpack.c.h.b16 %v4603
    %v6147 = vunpack.c.l.b16 %v4604
    %v6148 = vunpack.c.h.b16 %v4604
    %v6149 = vunpack.c.l.b16 %v4605
    %v6150 = vunpack.c.h.b16 %v4605
    %v6151 = vunpack.c.l.b16 %v4606
    %v6152 = vunpack.c.h.b16 %v4606
    %v6153 = vunpack.c.l.b16 %v4607
    %v6154 = vunpack.c.h.b16 %v4607
    %v6155 = vunpack.c.l.b16 %v4608
    %v6156 = vunpack.c.h.b16 %v4608
    %v6157 = vunpack.c.l.b16 %v4609
    %v6158 = vunpack.c.h.b16 %v4609
    %v6159 = vunpack.c.l.b16 %v4610
    %v6160 = vunpack.c.h.b16 %v4610
    %v6161 = vunpack.c.l.b16 %v4611
    %v6162 = vunpack.c.h.b16 %v4611
    %v6163 = vunpack.c.l.b16 %v4612
    %v6164 = vunpack.c.h.b16 %v4612
    %v6165 = vunpack.c.l.b16 %v4613
    %v6166 = vunpack.c.h.b16 %v4613
    %v6167 = vunpack.c.l.b16 %v4614
    %v6168 = vunpack.c.h.b16 %v4614
    %v6169 = vpack.c.b16 %v5153, %v5145
    %v6170 = vpack.c.b16 %v5154, %v5146
    %v6171 = vpack.c.b16 %v5155, %v5147
    %v6172 = vpack.c.b16 %v5156, %v5148
    %v6173 = vpack.c.b16 %v5157, %v5149
    %v6174 = vpack.c.b16 %v5158, %v5150
    %v6175 = vpack.c.b16 %v5159, %v5151
    %v6176 = vpack.c.b16 %v5160, %v5152
    %v6177 = vpack.c.b16 %v5169, %v5161
    %v6178 = vpack.c.b16 %v5170, %v5162
    %v6179 = vpack.c.b16 %v5171, %v5163
    %v6180 = vpack.c.b16 %v5172, %v5164
    %v6181 = vpack.c.b16 %v5173, %v5165
    %v6182 = vpack.c.b16 %v5174, %v5166
    %v6183 = vpack.c.b16 %v5175, %v5167
    %v6184 = vpack.c.b16 %v5176, %v5168
    %v6185 = vpack.c.b16 %v5185, %v5177
    %v6186 = vpack.c.b16 %v5186, %v5178
    %v6187 = vpack.c.b16 %v5187, %v5179
    %v6188 = vpack.c.b16 %v5188, %v5180
    %v6189 = vpack.c.b16 %v5189, %v5181
    %v6190 = vpack.c.b16 %v5190, %v5182
    %v6191 = vpack.c.b16 %v5191, %v5183
    %v6192 = vpack.c.b16 %v5192, %v5184
    %v6193 = vpack.c.b16 %v5201, %v5193
    %v6194 = vpack.c.b16 %v5202, %v5194
    %v6195 = vpack.c.b16 %v5203, %v5195
    %v6196 = vpack.c.b16 %v5204, %v5196
    %v6197 = vpack.c.b16 %v5205, %v5197
    %v6198 = vpack.c.b16 %v5206, %v5198
    %v6199 = vpack.c.b16 %v5207, %v5199
    %v6200 = vpack.c.b16 %v5208, %v5200
    %v6201 = vpack.c.b16 %v5217, %v5209
    %v6202 = vpack.c.b16 %v5218, %v5210
    %v6203 = vpack.c.b16 %v5219, %v5211
    %v6204 = vpack.c.b16 %v5220, %v5212
    %v6205 = vpack.c.b16 %v5221, %v5213
    %v6206 = vpack.c.b16 %v5222, %v5214
    %v6207 = vpack.c.b16 %v5223, %v5215
    %v6208 = vpack.c.b16 %v5224, %v5216
    %v6209 = vpack.c.b16 %v5233, %v5225
    %v6210 = vpack.c.b16 %v5234, %v5226
    %v6211 = vpack.c.b16 %v5235, %v5227
    %v6212 = vpack.c.b16 %v5236, %v5228
    %v6213 = vpack.c.b16 %v5237, %v5229
    %v6214 = vpack.c.b16 %v5238, %v5230
    %v6215 = vpack.c.b16 %v5239, %v5231
    %v6216 = vpack.c.b16 %v5240, %v5232
    %v6217 = vpack.c.b16 %v5249, %v5241
    %v6218 = vpack.c.b16 %v5250, %v5242
    %v6219 = vpack.c.b16 %v5251, %v5243
    %v6220 = vpack.c.b16 %v5252, %v5244
    %v6221 = vpack.c.b16 %v5253, %v5245
    %v6222 = vpack.c.b16 %v5254, %v5246
    %v6223 = vpack.c.b16 %v5255, %v5247
    %v6224 = vpack.c.b16 %v5256, %v5248
    %v6225 = vpack.c.b16 %v5265, %v5257
    %v6226 = vpack.c.b16 %v5266, %v5258
    %v6227 = vpack.c.b16 %v5267, %v5259
    %v6228 = vpack.c.b16 %v5268, %v5260
    %v6229 = vpack.c.b16 %v5269, %v5261
    %v6230 = vpack.c.b16 %v5270, %v5262
    %v6231 = vpack.c.b16 %v5271, %v5263
    %v6232 = vpack.c.b16 %v5272, %v5264
    %v6233 = vpack.c.b16 %v5281, %v5273
    %v6234 = vpack.c.b16 %v5282, %v5274
    %v6235 = vpack.c.b16 %v5283, %v5275
    %v6236 = vpack.c.b16 %v5284, %v5276
    %v6237 = vpack.c.b16 %v5285, %v5277
    %v6238 = vpack.c.b16 %v5286, %v5278
    %v6239 = vpack.c.b16 %v5287, %v5279
    %v6240 = vpack.c.b16 %v5288, %v5280
    %v6241 = vpack.c.b16 %v5297, %v5289
    %v6242 = vpack.c.b16 %v5298, %v5290
    %v6243 = vpack.c.b16 %v5299, %v5291
    %v6244 = vpack.c.b16 %v5300, %v5292
    %v6245 = vpack.c.b16 %v5301, %v5293
    %v6246 = vpack.c.b16 %v5302, %v5294
    %v6247 = vpack.c.b16 %v5303, %v5295
    %v6248 = vpack.c.b16 %v5304, %v5296
    %v6249 = vpack.c.b16 %v5313, %v5305
    %v6250 = vpack.c.b16 %v5314, %v5306
    %v6251 = vpack.c.b16 %v5315, %v5307
    %v6252 = vpack.c.b16 %v5316, %v5308
    %v6253 = vpack.c.b16 %v5317, %v5309
    %v6254 = vpack.c.b16 %v5318, %v5310
    %v6255 = vpack.c.b16 %v5319, %v5311
    %v6256 = vpack.c.b16 %v5320, %v5312
    %v6257 = vpack.c.b16 %v5329, %v5321
    %v6258 = vpack.c.b16 %v5330, %v5322
    %v6259 = vpack.c.b16 %v5331, %v5323
    %v6260 = vpack.c.b16 %v5332, %v5324
    %v6261 = vpack.c.b16 %v5333, %v5325
    %v6262 = vpack.c.b16 %v5334, %v5326
    %v6263 = vpack.c.b16 %v5335, %v5327
    %v6264 = vpack.c.b16 %v5336, %v5328
    %v6265 = vpack.c.b16 %v5345, %v5337
    %v6266 = vpack.c.b16 %v5346, %v5338
    %v6267 = vpack.c.b16 %v5347, %v5339
    %v6268 = vpack.c.b16 %v5348, %v5340
    %v6269 = vpack.c.b16 %v5349, %v5341
    %v6270 = vpack.c.b16 %v5350, %v5342
    %v6271 = vpack.c.b16 %v5351, %v5343
    %v6272 = vpack.c.b16 %v5352, %v5344
    %v6273 = vpack.c.b16 %v5361, %v5353
    %v6274 = vpack.c.b16 %v5362, %v5354
    %v6275 = vpack.c.b16 %v5363, %v5355
    %v6276 = vpack.c.b16 %v5364, %v5356
    %v6277 = vpack.c.b16 %v5365, %v5357
    %v6278 = vpack.c.b16 %v5366, %v5358
    %v6279 = vpack.c.b16 %v5367, %v5359
    %v6280 = vpack.c.b16 %v5368, %v5360
    %v6281 = vpack.c.b16 %v5377, %v5369
    %v6282 = vpack.c.b16 %v5378, %v5370
    %v6283 = vpack.c.b16 %v5379, %v5371
    %v6284 = vpack.c.b16 %v5380, %v5372
    %v6285 = vpack.c.b16 %v5381, %v5373
    %v6286 = vpack.c.b16 %v5382, %v5374
    %v6287 = vpack.c.b16 %v5383, %v5375
    %v6288 = vpack.c.b16 %v5384, %v5376
    %v6289 = vpack.c.b16 %v5393, %v5385
    %v6290 = vpack.c.b16 %v5394, %v5386
    %v6291 = vpack.c.b16 %v5395, %v5387
    %v6292 = vpack.c.b16 %v5396, %v5388
    %v6293 = vpack.c.b16 %v5397, %v5389
    %v6294 = vpack.c.b16 %v5398, %v5390
    %v6295 = vpack.c.b16 %v5399, %v5391
    %v6296 = vpack.c.b16 %v5400, %v5392
    %v6297 = vpack.c.b16 %v5409, %v5401
    %v6298 = vpack.c.b16 %v5410, %v5402
    %v6299 = vpack.c.b16 %v5411, %v5403
    %v6300 = vpack.c.b16 %v5412, %v5404
    %v6301 = vpack.c.b16 %v5413, %v5405
    %v6302 = vpack.c.b16 %v5414, %v5406
    %v6303 = vpack.c.b16 %v5415, %v5407
    %v6304 = vpack.c.b16 %v5416, %v5408
    %v6305 = vpack.c.b16 %v5425, %v5417
    %v6306 = vpack.c.b16 %v5426, %v5418
    %v6307 = vpack.c.b16 %v5427, %v5419
    %v6308 = vpack.c.b16 %v5428, %v5420
    %v6309 = vpack.c.b16 %v5429, %v5421
    %v6310 = vpack.c.b16 %v5430, %v5422
    %v6311 = vpack.c.b16 %v5431, %v5423
    %v6312 = vpack.c.b16 %v5432, %v5424
    %v6313 = vpack.c.b16 %v5441, %v5433
    %v6314 = vpack.c.b16 %v5442, %v5434
    %v6315 = vpack.c.b16 %v5443, %v5435
    %v6316 = vpack.c.b16 %v5444, %v5436
    %v6317 = vpack.c.b16 %v5445, %v5437
    %v6318 = vpack.c.b16 %v5446, %v5438
    %v6319 = vpack.c.b16 %v5447, %v5439
    %v6320 = vpack.c.b16 %v5448, %v5440
    %v6321 = vpack.c.b16 %v5457, %v5449
    %v6322 = vpack.c.b16 %v5458, %v5450
    %v6323 = vpack.c.b16 %v5459, %v5451
    %v6324 = vpack.c.b16 %v5460, %v5452
    %v6325 = vpack.c.b16 %v5461, %v5453
    %v6326 = vpack.c.b16 %v5462, %v5454
    %v6327 = vpack.c.b16 %v5463, %v5455
    %v6328 = vpack.c.b16 %v5464, %v5456
    %v6329 = vpack.c.b16 %v5473, %v5465
    %v6330 = vpack.c.b16 %v5474, %v5466
    %v6331 = vpack.c.b16 %v5475, %v5467
    %v6332 = vpack.c.b16 %v5476, %v5468
    %v6333 = vpack.c.b16 %v5477, %v5469
    %v6334 = vpack.c.b16 %v5478, %v5470
    %v6335 = vpack.c.b16 %v5479, %v5471
    %v6336 = vpack.c.b16 %v5480, %v5472
    %v6337 = vpack.c.b16 %v5489, %v5481
    %v6338 = vpack.c.b16 %v5490, %v5482
    %v6339 = vpack.c.b16 %v5491, %v5483
    %v6340 = vpack.c.b16 %v5492, %v5484
    %v6341 = vpack.c.b16 %v5493, %v5485
    %v6342 = vpack.c.b16 %v5494, %v5486
    %v6343 = vpack.c.b16 %v5495, %v5487
    %v6344 = vpack.c.b16 %v5496, %v5488
    %v6345 = vpack.c.b16 %v5505, %v5497
    %v6346 = vpack.c.b16 %v5506, %v5498
    %v6347 = vpack.c.b16 %v5507, %v5499
    %v6348 = vpack.c.b16 %v5508, %v5500
    %v6349 = vpack.c.b16 %v5509, %v5501
    %v6350 = vpack.c.b16 %v5510, %v5502
    %v6351 = vpack.c.b16 %v5511, %v5503
    %v6352 = vpack.c.b16 %v5512, %v5504
    %v6353 = vpack.c.b16 %v5521, %v5513
    %v6354 = vpack.c.b16 %v5522, %v5514
    %v6355 = vpack.c.b16 %v5523, %v5515
    %v6356 = vpack.c.b16 %v5524, %v5516
    %v6357 = vpack.c.b16 %v5525, %v5517
    %v6358 = vpack.c.b16 %v5526, %v5518
    %v6359 = vpack.c.b16 %v5527, %v5519
    %v6360 = vpack.c.b16 %v5528, %v5520
    %v6361 = vpack.c.b16 %v5537, %v5529
    %v6362 = vpack.c.b16 %v5538, %v5530
    %v6363 = vpack.c.b16 %v5539, %v5531
    %v6364 = vpack.c.b16 %v5540, %v5532
    %v6365 = vpack.c.b16 %v5541, %v5533
    %v6366 = vpack.c.b16 %v5542, %v5534
    %v6367 = vpack.c.b16 %v5543, %v5535
    %v6368 = vpack.c.b16 %v5544, %v5536
    %v6369 = vpack.c.b16 %v5553, %v5545
    %v6370 = vpack.c.b16 %v5554, %v5546
    %v6371 = vpack.c.b16 %v5555, %v5547
    %v6372 = vpack.c.b16 %v5556, %v5548
    %v6373 = vpack.c.b16 %v5557, %v5549
    %v6374 = vpack.c.b16 %v5558, %v5550
    %v6375 = vpack.c.b16 %v5559, %v5551
    %v6376 = vpack.c.b16 %v5560, %v5552
    %v6377 = vpack.c.b16 %v5569, %v5561
    %v6378 = vpack.c.b16 %v5570, %v5562
    %v6379 = vpack.c.b16 %v5571, %v5563
    %v6380 = vpack.c.b16 %v5572, %v5564
    %v6381 = vpack.c.b16 %v5573, %v5565
    %v6382 = vpack.c.b16 %v5574, %v5566
    %v6383 = vpack.c.b16 %v5575, %v5567
    %v6384 = vpack.c.b16 %v5576, %v5568
    %v6385 = vpack.c.b16 %v5585, %v5577
    %v6386 = vpack.c.b16 %v5586, %v5578
    %v6387 = vpack.c.b16 %v5587, %v5579
    %v6388 = vpack.c.b16 %v5588, %v5580
    %v6389 = vpack.c.b16 %v5589, %v5581
    %v6390 = vpack.c.b16 %v5590, %v5582
    %v6391 = vpack.c.b16 %v5591, %v5583
    %v6392 = vpack.c.b16 %v5592, %v5584
    %v6393 = vpack.c.b16 %v5601, %v5593
    %v6394 = vpack.c.b16 %v5602, %v5594
    %v6395 = vpack.c.b16 %v5603, %v5595
    %v6396 = vpack.c.b16 %v5604, %v5596
    %v6397 = vpack.c.b16 %v5605, %v5597
    %v6398 = vpack.c.b16 %v5606, %v5598
    %v6399 = vpack.c.b16 %v5607, %v5599
    %v6400 = vpack.c.b16 %v5608, %v5600
    %v6401 = vpack.c.b16 %v5617, %v5609
    %v6402 = vpack.c.b16 %v5618, %v5610
    %v6403 = vpack.c.b16 %v5619, %v5611
    %v6404 = vpack.c.b16 %v5620, %v5612
    %v6405 = vpack.c.b16 %v5621, %v5613
    %v6406 = vpack.c.b16 %v5622, %v5614
    %v6407 = vpack.c.b16 %v5623, %v5615
    %v6408 = vpack.c.b16 %v5624, %v5616
    %v6409 = vpack.c.b16 %v5633, %v5625
    %v6410 = vpack.c.b16 %v5634, %v5626
    %v6411 = vpack.c.b16 %v5635, %v5627
    %v6412 = vpack.c.b16 %v5636, %v5628
    %v6413 = vpack.c.b16 %v5637, %v5629
    %v6414 = vpack.c.b16 %v5638, %v5630
    %v6415 = vpack.c.b16 %v5639, %v5631
    %v6416 = vpack.c.b16 %v5640, %v5632
    %v6417 = vpack.c.b16 %v5649, %v5641
    %v6418 = vpack.c.b16 %v5650, %v5642
    %v6419 = vpack.c.b16 %v5651, %v5643
    %v6420 = vpack.c.b16 %v5652, %v5644
    %v6421 = vpack.c.b16 %v5653, %v5645
    %v6422 = vpack.c.b16 %v5654, %v5646
    %v6423 = vpack.c.b16 %v5655, %v5647
    %v6424 = vpack.c.b16 %v5656, %v5648
    %v6425 = vpack.c.b16 %v5665, %v5657
    %v6426 = vpack.c.b16 %v5666, %v5658
    %v6427 = vpack.c.b16 %v5667, %v5659
    %v6428 = vpack.c.b16 %v5668, %v5660
    %v6429 = vpack.c.b16 %v5669, %v5661
    %v6430 = vpack.c.b16 %v5670, %v5662
    %v6431 = vpack.c.b16 %v5671, %v5663
    %v6432 = vpack.c.b16 %v5672, %v5664
    %v6433 = vpack.c.b16 %v5681, %v5673
    %v6434 = vpack.c.b16 %v5682, %v5674
    %v6435 = vpack.c.b16 %v5683, %v5675
    %v6436 = vpack.c.b16 %v5684, %v5676
    %v6437 = vpack.c.b16 %v5685, %v5677
    %v6438 = vpack.c.b16 %v5686, %v5678
    %v6439 = vpack.c.b16 %v5687, %v5679
    %v6440 = vpack.c.b16 %v5688, %v5680
    %v6441 = vpack.c.b16 %v5697, %v5689
    %v6442 = vpack.c.b16 %v5698, %v5690
    %v6443 = vpack.c.b16 %v5699, %v5691
    %v6444 = vpack.c.b16 %v5700, %v5692
    %v6445 = vpack.c.b16 %v5701, %v5693
    %v6446 = vpack.c.b16 %v5702, %v5694
    %v6447 = vpack.c.b16 %v5703, %v5695
    %v6448 = vpack.c.b16 %v5704, %v5696
    %v6449 = vpack.c.b16 %v5713, %v5705
    %v6450 = vpack.c.b16 %v5714, %v5706
    %v6451 = vpack.c.b16 %v5715, %v5707
    %v6452 = vpack.c.b16 %v5716, %v5708
    %v6453 = vpack.c.b16 %v5717, %v5709
    %v6454 = vpack.c.b16 %v5718, %v5710
    %v6455 = vpack.c.b16 %v5719, %v5711
    %v6456 = vpack.c.b16 %v5720, %v5712
    %v6457 = vpack.c.b16 %v5729, %v5721
    %v6458 = vpack.c.b16 %v5730, %v5722
    %v6459 = vpack.c.b16 %v5731, %v5723
    %v6460 = vpack.c.b16 %v5732, %v5724
    %v6461 = vpack.c.b16 %v5733, %v5725
    %v6462 = vpack.c.b16 %v5734, %v5726
    %v6463 = vpack.c.b16 %v5735, %v5727
    %v6464 = vpack.c.b16 %v5736, %v5728
    %v6465 = vpack.c.b16 %v5745, %v5737
    %v6466 = vpack.c.b16 %v5746, %v5738
    %v6467 = vpack.c.b16 %v5747, %v5739
    %v6468 = vpack.c.b16 %v5748, %v5740
    %v6469 = vpack.c.b16 %v5749, %v5741
    %v6470 = vpack.c.b16 %v5750, %v5742
    %v6471 = vpack.c.b16 %v5751, %v5743
    %v6472 = vpack.c.b16 %v5752, %v5744
    %v6473 = vpack.c.b16 %v5761, %v5753
    %v6474 = vpack.c.b16 %v5762, %v5754
    %v6475 = vpack.c.b16 %v5763, %v5755
    %v6476 = vpack.c.b16 %v5764, %v5756
    %v6477 = vpack.c.b16 %v5765, %v5757
    %v6478 = vpack.c.b16 %v5766, %v5758
    %v6479 = vpack.c.b16 %v5767, %v5759
    %v6480 = vpack.c.b16 %v5768, %v5760
    %v6481 = vpack.c.b16 %v5777, %v5769
    %v6482 = vpack.c.b16 %v5778, %v5770
    %v6483 = vpack.c.b16 %v5779, %v5771
    %v6484 = vpack.c.b16 %v5780, %v5772
    %v6485 = vpack.c.b16 %v5781, %v5773
    %v6486 = vpack.c.b16 %v5782, %v5774
    %v6487 = vpack.c.b16 %v5783, %v5775
    %v6488 = vpack.c.b16 %v5784, %v5776
    %v6489 = vpack.c.b16 %v5793, %v5785
    %v6490 = vpack.c.b16 %v5794, %v5786
    %v6491 = vpack.c.b16 %v5795, %v5787
    %v6492 = vpack.c.b16 %v5796, %v5788
    %v6493 = vpack.c.b16 %v5797, %v5789
    %v6494 = vpack.c.b16 %v5798, %v5790
    %v6495 = vpack.c.b16 %v5799, %v5791
    %v6496 = vpack.c.b16 %v5800, %v5792
    %v6497 = vpack.c.b16 %v5809, %v5801
    %v6498 = vpack.c.b16 %v5810, %v5802
    %v6499 = vpack.c.b16 %v5811, %v5803
    %v6500 = vpack.c.b16 %v5812, %v5804
    %v6501 = vpack.c.b16 %v5813, %v5805
    %v6502 = vpack.c.b16 %v5814, %v5806
    %v6503 = vpack.c.b16 %v5815, %v5807
    %v6504 = vpack.c.b16 %v5816, %v5808
    %v6505 = vpack.c.b16 %v5825, %v5817
    %v6506 = vpack.c.b16 %v5826, %v5818
    %v6507 = vpack.c.b16 %v5827, %v5819
    %v6508 = vpack.c.b16 %v5828, %v5820
    %v6509 = vpack.c.b16 %v5829, %v5821
    %v6510 = vpack.c.b16 %v5830, %v5822
    %v6511 = vpack.c.b16 %v5831, %v5823
    %v6512 = vpack.c.b16 %v5832, %v5824
    %v6513 = vpack.c.b16 %v5841, %v5833
    %v6514 = vpack.c.b16 %v5842, %v5834
    %v6515 = vpack.c.b16 %v5843, %v5835
    %v6516 = vpack.c.b16 %v5844, %v5836
    %v6517 = vpack.c.b16 %v5845, %v5837
    %v6518 = vpack.c.b16 %v5846, %v5838
    %v6519 = vpack.c.b16 %v5847, %v5839
    %v6520 = vpack.c.b16 %v5848, %v5840
    %v6521 = vpack.c.b16 %v5857, %v5849
    %v6522 = vpack.c.b16 %v5858, %v5850
    %v6523 = vpack.c.b16 %v5859, %v5851
    %v6524 = vpack.c.b16 %v5860, %v5852
    %v6525 = vpack.c.b16 %v5861, %v5853
    %v6526 = vpack.c.b16 %v5862, %v5854
    %v6527 = vpack.c.b16 %v5863, %v5855
    %v6528 = vpack.c.b16 %v5864, %v5856
    %v6529 = vpack.c.b16 %v5873, %v5865
    %v6530 = vpack.c.b16 %v5874, %v5866
    %v6531 = vpack.c.b16 %v5875, %v5867
    %v6532 = vpack.c.b16 %v5876, %v5868
    %v6533 = vpack.c.b16 %v5877, %v5869
    %v6534 = vpack.c.b16 %v5878, %v5870
    %v6535 = vpack.c.b16 %v5879, %v5871
    %v6536 = vpack.c.b16 %v5880, %v5872
    %v6537 = vpack.c.b16 %v5889, %v5881
    %v6538 = vpack.c.b16 %v5890, %v5882
    %v6539 = vpack.c.b16 %v5891, %v5883
    %v6540 = vpack.c.b16 %v5892, %v5884
    %v6541 = vpack.c.b16 %v5893, %v5885
    %v6542 = vpack.c.b16 %v5894, %v5886
    %v6543 = vpack.c.b16 %v5895, %v5887
    %v6544 = vpack.c.b16 %v5896, %v5888
    %v6545 = vpack.c.b16 %v5905, %v5897
    %v6546 = vpack.c.b16 %v5906, %v5898
    %v6547 = vpack.c.b16 %v5907, %v5899
    %v6548 = vpack.c.b16 %v5908, %v5900
    %v6549 = vpack.c.b16 %v5909, %v5901
    %v6550 = vpack.c.b16 %v5910, %v5902
    %v6551 = vpack.c.b16 %v5911, %v5903
    %v6552 = vpack.c.b16 %v5912, %v5904
    %v6553 = vpack.c.b16 %v5921, %v5913
    %v6554 = vpack.c.b16 %v5922, %v5914
    %v6555 = vpack.c.b16 %v5923, %v5915
    %v6556 = vpack.c.b16 %v5924, %v5916
    %v6557 = vpack.c.b16 %v5925, %v5917
    %v6558 = vpack.c.b16 %v5926, %v5918
    %v6559 = vpack.c.b16 %v5927, %v5919
    %v6560 = vpack.c.b16 %v5928, %v5920
    %v6561 = vpack.c.b16 %v5937, %v5929
    %v6562 = vpack.c.b16 %v5938, %v5930
    %v6563 = vpack.c.b16 %v5939, %v5931
    %v6564 = vpack.c.b16 %v5940, %v5932
    %v6565 = vpack.c.b16 %v5941, %v5933
    %v6566 = vpack.c.b16 %v5942, %v5934
    %v6567 = vpack.c.b16 %v5943, %v5935
    %v6568 = vpack.c.b16 %v5944, %v5936
    %v6569 = vpack.c.b16 %v5953, %v5945
    %v6570 = vpack.c.b16 %v5954, %v5946
    %v6571 = vpack.c.b16 %v5955, %v5947
    %v6572 = vpack.c.b16 %v5956, %v5948
    %v6573 = vpack.c.b16 %v5957, %v5949
    %v6574 = vpack.c.b16 %v5958, %v5950
    %v6575 = vpack.c.b16 %v5959, %v5951
    %v6576 = vpack.c.b16 %v5960, %v5952
    %v6577 = vpack.c.b16 %v5969, %v5961
    %v6578 = vpack.c.b16 %v5970, %v5962
    %v6579 = vpack.c.b16 %v5971, %v5963
    %v6580 = vpack.c.b16 %v5972, %v5964
    %v6581 = vpack.c.b16 %v5973, %v5965
    %v6582 = vpack.c.b16 %v5974, %v5966
    %v6583 = vpack.c.b16 %v5975, %v5967
    %v6584 = vpack.c.b16 %v5976, %v5968
    %v6585 = vpack.c.b16 %v5985, %v5977
    %v6586 = vpack.c.b16 %v5986, %v5978
    %v6587 = vpack.c.b16 %v5987, %v5979
    %v6588 = vpack.c.b16 %v5988, %v5980
    %v6589 = vpack.c.b16 %v5989, %v5981
    %v6590 = vpack.c.b16 %v5990, %v5982
    %v6591 = vpack.c.b16 %v5991, %v5983
    %v6592 = vpack.c.b16 %v5992, %v5984
    %v6593 = vpack.c.b16 %v6001, %v5993
    %v6594 = vpack.c.b16 %v6002, %v5994
    %v6595 = vpack.c.b16 %v6003, %v5995
    %v6596 = vpack.c.b16 %v6004, %v5996
    %v6597 = vpack.c.b16 %v6005, %v5997
    %v6598 = vpack.c.b16 %v6006, %v5998
    %v6599 = vpack.c.b16 %v6007, %v5999
    %v6600 = vpack.c.b16 %v6008, %v6000
    %v6601 = vpack.c.b16 %v6017, %v6009
    %v6602 = vpack.c.b16 %v6018, %v6010
    %v6603 = vpack.c.b16 %v6019, %v6011
    %v6604 = vpack.c.b16 %v6020, %v6012
    %v6605 = vpack.c.b16 %v6021, %v6013
    %v6606 = vpack.c.b16 %v6022, %v6014
    %v6607 = vpack.c.b16 %v6023, %v6015
    %v6608 = vpack.c.b16 %v6024, %v6016
    %v6609 = vpack.c.b16 %v6033, %v6025
    %v6610 = vpack.c.b16 %v6034, %v6026
    %v6611 = vpack.c.b16 %v6035, %v6027
    %v6612 = vpack.c.b16 %v6036, %v6028
    %v6613 = vpack.c.b16 %v6037, %v6029
    %v6614 = vpack.c.b16 %v6038, %v6030
    %v6615 = vpack.c.b16 %v6039, %v6031
    %v6616 = vpack.c.b16 %v6040, %v6032
    %v6617 = vpack.c.b16 %v6049, %v6041
    %v6618 = vpack.c.b16 %v6050, %v6042
    %v6619 = vpack.c.b16 %v6051, %v6043
    %v6620 = vpack.c.b16 %v6052, %v6044
    %v6621 = vpack.c.b16 %v6053, %v6045
    %v6622 = vpack.c.b16 %v6054, %v6046
    %v6623 = vpack.c.b16 %v6055, %v6047
    %v6624 = vpack.c.b16 %v6056, %v6048
    %v6625 = vpack.c.b16 %v6065, %v6057
    %v6626 = vpack.c.b16 %v6066, %v6058
    %v6627 = vpack.c.b16 %v6067, %v6059
    %v6628 = vpack.c.b16 %v6068, %v6060
    %v6629 = vpack.c.b16 %v6069, %v6061
    %v6630 = vpack.c.b16 %v6070, %v6062
    %v6631 = vpack.c.b16 %v6071, %v6063
    %v6632 = vpack.c.b16 %v6072, %v6064
    %v6633 = vpack.c.b16 %v6081, %v6073
    %v6634 = vpack.c.b16 %v6082, %v6074
    %v6635 = vpack.c.b16 %v6083, %v6075
    %v6636 = vpack.c.b16 %v6084, %v6076
    %v6637 = vpack.c.b16 %v6085, %v6077
    %v6638 = vpack.c.b16 %v6086, %v6078
    %v6639 = vpack.c.b16 %v6087, %v6079
    %v6640 = vpack.c.b16 %v6088, %v6080
    %v6641 = vpack.c.b16 %v6097, %v6089
    %v6642 = vpack.c.b16 %v6098, %v6090
    %v6643 = vpack.c.b16 %v6099, %v6091
    %v6644 = vpack.c.b16 %v6100, %v6092
    %v6645 = vpack.c.b16 %v6101, %v6093
    %v6646 = vpack.c.b16 %v6102, %v6094
    %v6647 = vpack.c.b16 %v6103, %v6095
    %v6648 = vpack.c.b16 %v6104, %v6096
    %v6649 = vpack.c.b16 %v6113, %v6105
    %v6650 = vpack.c.b16 %v6114, %v6106
    %v6651 = vpack.c.b16 %v6115, %v6107
    %v6652 = vpack.c.b16 %v6116, %v6108
    %v6653 = vpack.c.b16 %v6117, %v6109
    %v6654 = vpack.c.b16 %v6118, %v6110
    %v6655 = vpack.c.b16 %v6119, %v6111
    %v6656 = vpack.c.b16 %v6120, %v6112
    %v6657 = vpack.c.b16 %v6129, %v6121
    %v6658 = vpack.c.b16 %v6130, %v6122
    %v6659 = vpack.c.b16 %v6131, %v6123
    %v6660 = vpack.c.b16 %v6132, %v6124
    %v6661 = vpack.c.b16 %v6133, %v6125
    %v6662 = vpack.c.b16 %v6134, %v6126
    %v6663 = vpack.c.b16 %v6135, %v6127
    %v6664 = vpack.c.b16 %v6136, %v6128
    %v6665 = vpack.c.b16 %v6145, %v6137
    %v6666 = vpack.c.b16 %v6146, %v6138
    %v6667 = vpack.c.b16 %v6147, %v6139
    %v6668 = vpack.c.b16 %v6148, %v6140
    %v6669 = vpack.c.b16 %v6149, %v6141
    %v6670 = vpack.c.b16 %v6150, %v6142
    %v6671 = vpack.c.b16 %v6151, %v6143
    %v6672 = vpack.c.b16 %v6152, %v6144
    %v6673 = vpack.c.b16 %v6161, %v6153
    %v6674 = vpack.c.b16 %v6162, %v6154
    %v6675 = vpack.c.b16 %v6163, %v6155
    %v6676 = vpack.c.b16 %v6164, %v6156
    %v6677 = vpack.c.b16 %v6165, %v6157
    %v6678 = vpack.c.b16 %v6166, %v6158
    %v6679 = vpack.c.b16 %v6167, %v6159
    %v6680 = vpack.c.b16 %v6168, %v6160
    %7193 = vmatpush.bf16.msra.mxu0 %v6225
    %7194 = vmatpush.bf16.msra.mxu0 %v6217
    %7195 = vmatpush.bf16.msra.mxu0 %v6209
    %7196 = vmatpush.bf16.msra.mxu0 %v6201
    %7197 = vmatpush.bf16.msra.mxu0 %v6193
    %7198 = vmatpush.bf16.msra.mxu0 %v6185
    %7199 = vmatpush.bf16.msra.mxu0 %v6177
    %7200 = vmatpush.bf16.msra.mxu0 %v6169
    %7201 = vmatmul.bf16.gmra.mxu0 %v4095
    %v7202 = vpop.f32.mrf.mxu0
    %v7203 = vadd.f32 %v4617, %v7202
    %v7204 = vpop.f32.mrf.mxu0
    %7205 = vdwg.mxu0
    %7206 = vmatpush.bf16.msra.mxu0 %v6289
    %7207 = vmatpush.bf16.msra.mxu0 %v6281
    %7208 = vmatpush.bf16.msra.mxu0 %v6273
    %7209 = vmatpush.bf16.msra.mxu0 %v6265
    %7210 = vmatpush.bf16.msra.mxu0 %v6257
    %7211 = vmatpush.bf16.msra.mxu0 %v6249
    %7212 = vmatpush.bf16.msra.mxu0 %v6241
    %7213 = vmatpush.bf16.msra.mxu0 %v6233
    %7214 = vmatmul.bf16.gmra.mxu0 %v4096
    %v7215 = vpop.f32.mrf.mxu0
    %v7216 = vadd.f32 %v7203, %v7215
    %v7217 = vpop.f32.mrf.mxu0
    %7218 = vdwg.mxu0
    %7219 = vmatpush.bf16.msra.mxu0 %v6353
    %7220 = vmatpush.bf16.msra.mxu0 %v6345
    %7221 = vmatpush.bf16.msra.mxu0 %v6337
    %7222 = vmatpush.bf16.msra.mxu0 %v6329
    %7223 = vmatpush.bf16.msra.mxu0 %v6321
    %7224 = vmatpush.bf16.msra.mxu0 %v6313
    %7225 = vmatpush.bf16.msra.mxu0 %v6305
    %7226 = vmatpush.bf16.msra.mxu0 %v6297
    %7227 = vmatmul.bf16.gmra.mxu0 %v4097
    %v7228 = vpop.f32.mrf.mxu0
    %v7229 = vadd.f32 %v7216, %v7228
    %v7230 = vpop.f32.mrf.mxu0
    %7231 = vdwg.mxu0
    %7232 = vmatpush.bf16.msra.mxu0 %v6417
    %7233 = vmatpush.bf16.msra.mxu0 %v6409
    %7234 = vmatpush.bf16.msra.mxu0 %v6401
    %7235 = vmatpush.bf16.msra.mxu0 %v6393
    %7236 = vmatpush.bf16.msra.mxu0 %v6385
    %7237 = vmatpush.bf16.msra.mxu0 %v6377
    %7238 = vmatpush.bf16.msra.mxu0 %v6369
    %7239 = vmatpush.bf16.msra.mxu0 %v6361
    %7240 = vmatmul.bf16.gmra.mxu0 %v4098
    %v7241 = vpop.f32.mrf.mxu0
    %v7242 = vadd.f32 %v7229, %v7241
    %v7243 = vpop.f32.mrf.mxu0
    %7244 = vdwg.mxu0
    %7245 = vmatpush.bf16.msra.mxu0 %v6481
    %7246 = vmatpush.bf16.msra.mxu0 %v6473
    %7247 = vmatpush.bf16.msra.mxu0 %v6465
    %7248 = vmatpush.bf16.msra.mxu0 %v6457
    %7249 = vmatpush.bf16.msra.mxu0 %v6449
    %7250 = vmatpush.bf16.msra.mxu0 %v6441
    %7251 = vmatpush.bf16.msra.mxu0 %v6433
    %7252 = vmatpush.bf16.msra.mxu0 %v6425
    %7253 = vmatmul.bf16.gmra.mxu0 %v4099
    %v7254 = vpop.f32.mrf.mxu0
    %v7255 = vadd.f32 %v7242, %v7254
    %v7256 = vpop.f32.mrf.mxu0
    %7257 = vdwg.mxu0
    %7258 = vmatpush.bf16.msra.mxu0 %v6545
    %7259 = vmatpush.bf16.msra.mxu0 %v6537
    %7260 = vmatpush.bf16.msra.mxu0 %v6529
    %7261 = vmatpush.bf16.msra.mxu0 %v6521
    %7262 = vmatpush.bf16.msra.mxu0 %v6513
    %7263 = vmatpush.bf16.msra.mxu0 %v6505
    %7264 = vmatpush.bf16.msra.mxu0 %v6497
    %7265 = vmatpush.bf16.msra.mxu0 %v6489
    %7266 = vmatmul.bf16.gmra.mxu0 %v4100
    %v7267 = vpop.f32.mrf.mxu0
    %v7268 = vadd.f32 %v7255, %v7267
    %v7269 = vpop.f32.mrf.mxu0
    %7270 = vdwg.mxu0
    %7271 = vmatpush.bf16.msra.mxu0 %v6609
    %7272 = vmatpush.bf16.msra.mxu0 %v6601
    %7273 = vmatpush.bf16.msra.mxu0 %v6593
    %7274 = vmatpush.bf16.msra.mxu0 %v6585
    %7275 = vmatpush.bf16.msra.mxu0 %v6577
    %7276 = vmatpush.bf16.msra.mxu0 %v6569
    %7277 = vmatpush.bf16.msra.mxu0 %v6561
    %7278 = vmatpush.bf16.msra.mxu0 %v6553
    %7279 = vmatmul.bf16.gmra.mxu0 %v4101
    %v7280 = vpop.f32.mrf.mxu0
    %v7281 = vadd.f32 %v7268, %v7280
    %v7282 = vpop.f32.mrf.mxu0
    %7283 = vdwg.mxu0
    %7284 = vmatpush.bf16.msra.mxu0 %v6673
    %7285 = vmatpush.bf16.msra.mxu0 %v6665
    %7286 = vmatpush.bf16.msra.mxu0 %v6657
    %7287 = vmatpush.bf16.msra.mxu0 %v6649
    %7288 = vmatpush.bf16.msra.mxu0 %v6641
    %7289 = vmatpush.bf16.msra.mxu0 %v6633
    %7290 = vmatpush.bf16.msra.mxu0 %v6625
    %7291 = vmatpush.bf16.msra.mxu0 %v6617
    %7292 = vmatmul.bf16.gmra.mxu0 %v4102
    %v7293 = vpop.f32.mrf.mxu0
    %v7294 = vadd.f32 %v7281, %v7293
    %v7295 = vpop.f32.mrf.mxu0
    %7296 = vdwg.mxu0
    %7297 = vmatpush.bf16.msra.mxu0 %v6226
    %7298 = vmatpush.bf16.msra.mxu0 %v6218
    %7299 = vmatpush.bf16.msra.mxu0 %v6210
    %7300 = vmatpush.bf16.msra.mxu0 %v6202
    %7301 = vmatpush.bf16.msra.mxu0 %v6194
    %7302 = vmatpush.bf16.msra.mxu0 %v6186
    %7303 = vmatpush.bf16.msra.mxu0 %v6178
    %7304 = vmatpush.bf16.msra.mxu0 %v6170
    %7305 = vmatmul.bf16.gmra.mxu0 %v4095
    %v7306 = vpop.f32.mrf.mxu0
    %v7307 = vadd.f32 %v4618, %v7306
    %v7308 = vpop.f32.mrf.mxu0
    %7309 = vdwg.mxu0
    %7310 = vmatpush.bf16.msra.mxu0 %v6290
    %7311 = vmatpush.bf16.msra.mxu0 %v6282
    %7312 = vmatpush.bf16.msra.mxu0 %v6274
    %7313 = vmatpush.bf16.msra.mxu0 %v6266
    %7314 = vmatpush.bf16.msra.mxu0 %v6258
    %7315 = vmatpush.bf16.msra.mxu0 %v6250
    %7316 = vmatpush.bf16.msra.mxu0 %v6242
    %7317 = vmatpush.bf16.msra.mxu0 %v6234
    %7318 = vmatmul.bf16.gmra.mxu0 %v4096
    %v7319 = vpop.f32.mrf.mxu0
    %v7320 = vadd.f32 %v7307, %v7319
    %v7321 = vpop.f32.mrf.mxu0
    %7322 = vdwg.mxu0
    %7323 = vmatpush.bf16.msra.mxu0 %v6354
    %7324 = vmatpush.bf16.msra.mxu0 %v6346
    %7325 = vmatpush.bf16.msra.mxu0 %v6338
    %7326 = vmatpush.bf16.msra.mxu0 %v6330
    %7327 = vmatpush.bf16.msra.mxu0 %v6322
    %7328 = vmatpush.bf16.msra.mxu0 %v6314
    %7329 = vmatpush.bf16.msra.mxu0 %v6306
    %7330 = vmatpush.bf16.msra.mxu0 %v6298
    %7331 = vmatmul.bf16.gmra.mxu0 %v4097
    %v7332 = vpop.f32.mrf.mxu0
    %v7333 = vadd.f32 %v7320, %v7332
    %v7334 = vpop.f32.mrf.mxu0
    %7335 = vdwg.mxu0
    %7336 = vmatpush.bf16.msra.mxu0 %v6418
    %7337 = vmatpush.bf16.msra.mxu0 %v6410
    %7338 = vmatpush.bf16.msra.mxu0 %v6402
    %7339 = vmatpush.bf16.msra.mxu0 %v6394
    %7340 = vmatpush.bf16.msra.mxu0 %v6386
    %7341 = vmatpush.bf16.msra.mxu0 %v6378
    %7342 = vmatpush.bf16.msra.mxu0 %v6370
    %7343 = vmatpush.bf16.msra.mxu0 %v6362
    %7344 = vmatmul.bf16.gmra.mxu0 %v4098
    %v7345 = vpop.f32.mrf.mxu0
    %v7346 = vadd.f32 %v7333, %v7345
    %v7347 = vpop.f32.mrf.mxu0
    %7348 = vdwg.mxu0
    %7349 = vmatpush.bf16.msra.mxu0 %v6482
    %7350 = vmatpush.bf16.msra.mxu0 %v6474
    %7351 = vmatpush.bf16.msra.mxu0 %v6466
    %7352 = vmatpush.bf16.msra.mxu0 %v6458
    %7353 = vmatpush.bf16.msra.mxu0 %v6450
    %7354 = vmatpush.bf16.msra.mxu0 %v6442
    %7355 = vmatpush.bf16.msra.mxu0 %v6434
    %7356 = vmatpush.bf16.msra.mxu0 %v6426
    %7357 = vmatmul.bf16.gmra.mxu0 %v4099
    %v7358 = vpop.f32.mrf.mxu0
    %v7359 = vadd.f32 %v7346, %v7358
    %v7360 = vpop.f32.mrf.mxu0
    %7361 = vdwg.mxu0
    %7362 = vmatpush.bf16.msra.mxu0 %v6546
    %7363 = vmatpush.bf16.msra.mxu0 %v6538
    %7364 = vmatpush.bf16.msra.mxu0 %v6530
    %7365 = vmatpush.bf16.msra.mxu0 %v6522
    %7366 = vmatpush.bf16.msra.mxu0 %v6514
    %7367 = vmatpush.bf16.msra.mxu0 %v6506
    %7368 = vmatpush.bf16.msra.mxu0 %v6498
    %7369 = vmatpush.bf16.msra.mxu0 %v6490
    %7370 = vmatmul.bf16.gmra.mxu0 %v4100
    %v7371 = vpop.f32.mrf.mxu0
    %v7372 = vadd.f32 %v7359, %v7371
    %v7373 = vpop.f32.mrf.mxu0
    %7374 = vdwg.mxu0
    %7375 = vmatpush.bf16.msra.mxu0 %v6610
    %7376 = vmatpush.bf16.msra.mxu0 %v6602
    %7377 = vmatpush.bf16.msra.mxu0 %v6594
    %7378 = vmatpush.bf16.msra.mxu0 %v6586
    %7379 = vmatpush.bf16.msra.mxu0 %v6578
    %7380 = vmatpush.bf16.msra.mxu0 %v6570
    %7381 = vmatpush.bf16.msra.mxu0 %v6562
    %7382 = vmatpush.bf16.msra.mxu0 %v6554
    %7383 = vmatmul.bf16.gmra.mxu0 %v4101
    %v7384 = vpop.f32.mrf.mxu0
    %v7385 = vadd.f32 %v7372, %v7384
    %v7386 = vpop.f32.mrf.mxu0
    %7387 = vdwg.mxu0
    %7388 = vmatpush.bf16.msra.mxu0 %v6674
    %7389 = vmatpush.bf16.msra.mxu0 %v6666
    %7390 = vmatpush.bf16.msra.mxu0 %v6658
    %7391 = vmatpush.bf16.msra.mxu0 %v6650
    %7392 = vmatpush.bf16.msra.mxu0 %v6642
    %7393 = vmatpush.bf16.msra.mxu0 %v6634
    %7394 = vmatpush.bf16.msra.mxu0 %v6626
    %7395 = vmatpush.bf16.msra.mxu0 %v6618
    %7396 = vmatmul.bf16.gmra.mxu0 %v4102
    %v7397 = vpop.f32.mrf.mxu0
    %v7398 = vadd.f32 %v7385, %v7397
    %v7399 = vpop.f32.mrf.mxu0
    %7400 = vdwg.mxu0
    %7401 = vmatpush.bf16.msra.mxu0 %v6227
    %7402 = vmatpush.bf16.msra.mxu0 %v6219
    %7403 = vmatpush.bf16.msra.mxu0 %v6211
    %7404 = vmatpush.bf16.msra.mxu0 %v6203
    %7405 = vmatpush.bf16.msra.mxu0 %v6195
    %7406 = vmatpush.bf16.msra.mxu0 %v6187
    %7407 = vmatpush.bf16.msra.mxu0 %v6179
    %7408 = vmatpush.bf16.msra.mxu0 %v6171
    %7409 = vmatmul.bf16.gmra.mxu0 %v4095
    %v7410 = vpop.f32.mrf.mxu0
    %v7411 = vadd.f32 %v4619, %v7410
    %v7412 = vpop.f32.mrf.mxu0
    %7413 = vdwg.mxu0
    %7414 = vmatpush.bf16.msra.mxu0 %v6291
    %7415 = vmatpush.bf16.msra.mxu0 %v6283
    %7416 = vmatpush.bf16.msra.mxu0 %v6275
    %7417 = vmatpush.bf16.msra.mxu0 %v6267
    %7418 = vmatpush.bf16.msra.mxu0 %v6259
    %7419 = vmatpush.bf16.msra.mxu0 %v6251
    %7420 = vmatpush.bf16.msra.mxu0 %v6243
    %7421 = vmatpush.bf16.msra.mxu0 %v6235
    %7422 = vmatmul.bf16.gmra.mxu0 %v4096
    %v7423 = vpop.f32.mrf.mxu0
    %v7424 = vadd.f32 %v7411, %v7423
    %v7425 = vpop.f32.mrf.mxu0
    %7426 = vdwg.mxu0
    %7427 = vmatpush.bf16.msra.mxu0 %v6355
    %7428 = vmatpush.bf16.msra.mxu0 %v6347
    %7429 = vmatpush.bf16.msra.mxu0 %v6339
    %7430 = vmatpush.bf16.msra.mxu0 %v6331
    %7431 = vmatpush.bf16.msra.mxu0 %v6323
    %7432 = vmatpush.bf16.msra.mxu0 %v6315
    %7433 = vmatpush.bf16.msra.mxu0 %v6307
    %7434 = vmatpush.bf16.msra.mxu0 %v6299
    %7435 = vmatmul.bf16.gmra.mxu0 %v4097
    %v7436 = vpop.f32.mrf.mxu0
    %v7437 = vadd.f32 %v7424, %v7436
    %v7438 = vpop.f32.mrf.mxu0
    %7439 = vdwg.mxu0
    %7440 = vmatpush.bf16.msra.mxu0 %v6419
    %7441 = vmatpush.bf16.msra.mxu0 %v6411
    %7442 = vmatpush.bf16.msra.mxu0 %v6403
    %7443 = vmatpush.bf16.msra.mxu0 %v6395
    %7444 = vmatpush.bf16.msra.mxu0 %v6387
    %7445 = vmatpush.bf16.msra.mxu0 %v6379
    %7446 = vmatpush.bf16.msra.mxu0 %v6371
    %7447 = vmatpush.bf16.msra.mxu0 %v6363
    %7448 = vmatmul.bf16.gmra.mxu0 %v4098
    %v7449 = vpop.f32.mrf.mxu0
    %v7450 = vadd.f32 %v7437, %v7449
    %v7451 = vpop.f32.mrf.mxu0
    %7452 = vdwg.mxu0
    %7453 = vmatpush.bf16.msra.mxu0 %v6483
    %7454 = vmatpush.bf16.msra.mxu0 %v6475
    %7455 = vmatpush.bf16.msra.mxu0 %v6467
    %7456 = vmatpush.bf16.msra.mxu0 %v6459
    %7457 = vmatpush.bf16.msra.mxu0 %v6451
    %7458 = vmatpush.bf16.msra.mxu0 %v6443
    %7459 = vmatpush.bf16.msra.mxu0 %v6435
    %7460 = vmatpush.bf16.msra.mxu0 %v6427
    %7461 = vmatmul.bf16.gmra.mxu0 %v4099
    %v7462 = vpop.f32.mrf.mxu0
    %v7463 = vadd.f32 %v7450, %v7462
    %v7464 = vpop.f32.mrf.mxu0
    %7465 = vdwg.mxu0
    %7466 = vmatpush.bf16.msra.mxu0 %v6547
    %7467 = vmatpush.bf16.msra.mxu0 %v6539
    %7468 = vmatpush.bf16.msra.mxu0 %v6531
    %7469 = vmatpush.bf16.msra.mxu0 %v6523
    %7470 = vmatpush.bf16.msra.mxu0 %v6515
    %7471 = vmatpush.bf16.msra.mxu0 %v6507
    %7472 = vmatpush.bf16.msra.mxu0 %v6499
    %7473 = vmatpush.bf16.msra.mxu0 %v6491
    %7474 = vmatmul.bf16.gmra.mxu0 %v4100
    %v7475 = vpop.f32.mrf.mxu0
    %v7476 = vadd.f32 %v7463, %v7475
    %v7477 = vpop.f32.mrf.mxu0
    %7478 = vdwg.mxu0
    %7479 = vmatpush.bf16.msra.mxu0 %v6611
    %7480 = vmatpush.bf16.msra.mxu0 %v6603
    %7481 = vmatpush.bf16.msra.mxu0 %v6595
    %7482 = vmatpush.bf16.msra.mxu0 %v6587
    %7483 = vmatpush.bf16.msra.mxu0 %v6579
    %7484 = vmatpush.bf16.msra.mxu0 %v6571
    %7485 = vmatpush.bf16.msra.mxu0 %v6563
    %7486 = vmatpush.bf16.msra.mxu0 %v6555
    %7487 = vmatmul.bf16.gmra.mxu0 %v4101
    %v7488 = vpop.f32.mrf.mxu0
    %v7489 = vadd.f32 %v7476, %v7488
    %v7490 = vpop.f32.mrf.mxu0
    %7491 = vdwg.mxu0
    %7492 = vmatpush.bf16.msra.mxu0 %v6675
    %7493 = vmatpush.bf16.msra.mxu0 %v6667
    %7494 = vmatpush.bf16.msra.mxu0 %v6659
    %7495 = vmatpush.bf16.msra.mxu0 %v6651
    %7496 = vmatpush.bf16.msra.mxu0 %v6643
    %7497 = vmatpush.bf16.msra.mxu0 %v6635
    %7498 = vmatpush.bf16.msra.mxu0 %v6627
    %7499 = vmatpush.bf16.msra.mxu0 %v6619
    %7500 = vmatmul.bf16.gmra.mxu0 %v4102
    %v7501 = vpop.f32.mrf.mxu0
    %v7502 = vadd.f32 %v7489, %v7501
    %v7503 = vpop.f32.mrf.mxu0
    %7504 = vdwg.mxu0
    %7505 = vmatpush.bf16.msra.mxu0 %v6228
    %7506 = vmatpush.bf16.msra.mxu0 %v6220
    %7507 = vmatpush.bf16.msra.mxu0 %v6212
    %7508 = vmatpush.bf16.msra.mxu0 %v6204
    %7509 = vmatpush.bf16.msra.mxu0 %v6196
    %7510 = vmatpush.bf16.msra.mxu0 %v6188
    %7511 = vmatpush.bf16.msra.mxu0 %v6180
    %7512 = vmatpush.bf16.msra.mxu0 %v6172
    %7513 = vmatmul.bf16.gmra.mxu0 %v4095
    %v7514 = vpop.f32.mrf.mxu0
    %v7515 = vadd.f32 %v4620, %v7514
    %v7516 = vpop.f32.mrf.mxu0
    %7517 = vdwg.mxu0
    %7518 = vmatpush.bf16.msra.mxu0 %v6292
    %7519 = vmatpush.bf16.msra.mxu0 %v6284
    %7520 = vmatpush.bf16.msra.mxu0 %v6276
    %7521 = vmatpush.bf16.msra.mxu0 %v6268
    %7522 = vmatpush.bf16.msra.mxu0 %v6260
    %7523 = vmatpush.bf16.msra.mxu0 %v6252
    %7524 = vmatpush.bf16.msra.mxu0 %v6244
    %7525 = vmatpush.bf16.msra.mxu0 %v6236
    %7526 = vmatmul.bf16.gmra.mxu0 %v4096
    %v7527 = vpop.f32.mrf.mxu0
    %v7528 = vadd.f32 %v7515, %v7527
    %v7529 = vpop.f32.mrf.mxu0
    %7530 = vdwg.mxu0
    %7531 = vmatpush.bf16.msra.mxu0 %v6356
    %7532 = vmatpush.bf16.msra.mxu0 %v6348
    %7533 = vmatpush.bf16.msra.mxu0 %v6340
    %7534 = vmatpush.bf16.msra.mxu0 %v6332
    %7535 = vmatpush.bf16.msra.mxu0 %v6324
    %7536 = vmatpush.bf16.msra.mxu0 %v6316
    %7537 = vmatpush.bf16.msra.mxu0 %v6308
    %7538 = vmatpush.bf16.msra.mxu0 %v6300
    %7539 = vmatmul.bf16.gmra.mxu0 %v4097
    %v7540 = vpop.f32.mrf.mxu0
    %v7541 = vadd.f32 %v7528, %v7540
    %v7542 = vpop.f32.mrf.mxu0
    %7543 = vdwg.mxu0
    %7544 = vmatpush.bf16.msra.mxu0 %v6420
    %7545 = vmatpush.bf16.msra.mxu0 %v6412
    %7546 = vmatpush.bf16.msra.mxu0 %v6404
    %7547 = vmatpush.bf16.msra.mxu0 %v6396
    %7548 = vmatpush.bf16.msra.mxu0 %v6388
    %7549 = vmatpush.bf16.msra.mxu0 %v6380
    %7550 = vmatpush.bf16.msra.mxu0 %v6372
    %7551 = vmatpush.bf16.msra.mxu0 %v6364
    %7552 = vmatmul.bf16.gmra.mxu0 %v4098
    %v7553 = vpop.f32.mrf.mxu0
    %v7554 = vadd.f32 %v7541, %v7553
    %v7555 = vpop.f32.mrf.mxu0
    %7556 = vdwg.mxu0
    %7557 = vmatpush.bf16.msra.mxu0 %v6484
    %7558 = vmatpush.bf16.msra.mxu0 %v6476
    %7559 = vmatpush.bf16.msra.mxu0 %v6468
    %7560 = vmatpush.bf16.msra.mxu0 %v6460
    %7561 = vmatpush.bf16.msra.mxu0 %v6452
    %7562 = vmatpush.bf16.msra.mxu0 %v6444
    %7563 = vmatpush.bf16.msra.mxu0 %v6436
    %7564 = vmatpush.bf16.msra.mxu0 %v6428
    %7565 = vmatmul.bf16.gmra.mxu0 %v4099
    %v7566 = vpop.f32.mrf.mxu0
    %v7567 = vadd.f32 %v7554, %v7566
    %v7568 = vpop.f32.mrf.mxu0
    %7569 = vdwg.mxu0
    %7570 = vmatpush.bf16.msra.mxu0 %v6548
    %7571 = vmatpush.bf16.msra.mxu0 %v6540
    %7572 = vmatpush.bf16.msra.mxu0 %v6532
    %7573 = vmatpush.bf16.msra.mxu0 %v6524
    %7574 = vmatpush.bf16.msra.mxu0 %v6516
    %7575 = vmatpush.bf16.msra.mxu0 %v6508
    %7576 = vmatpush.bf16.msra.mxu0 %v6500
    %7577 = vmatpush.bf16.msra.mxu0 %v6492
    %7578 = vmatmul.bf16.gmra.mxu0 %v4100
    %v7579 = vpop.f32.mrf.mxu0
    %v7580 = vadd.f32 %v7567, %v7579
    %v7581 = vpop.f32.mrf.mxu0
    %7582 = vdwg.mxu0
    %7583 = vmatpush.bf16.msra.mxu0 %v6612
    %7584 = vmatpush.bf16.msra.mxu0 %v6604
    %7585 = vmatpush.bf16.msra.mxu0 %v6596
    %7586 = vmatpush.bf16.msra.mxu0 %v6588
    %7587 = vmatpush.bf16.msra.mxu0 %v6580
    %7588 = vmatpush.bf16.msra.mxu0 %v6572
    %7589 = vmatpush.bf16.msra.mxu0 %v6564
    %7590 = vmatpush.bf16.msra.mxu0 %v6556
    %7591 = vmatmul.bf16.gmra.mxu0 %v4101
    %v7592 = vpop.f32.mrf.mxu0
    %v7593 = vadd.f32 %v7580, %v7592
    %v7594 = vpop.f32.mrf.mxu0
    %7595 = vdwg.mxu0
    %7596 = vmatpush.bf16.msra.mxu0 %v6676
    %7597 = vmatpush.bf16.msra.mxu0 %v6668
    %7598 = vmatpush.bf16.msra.mxu0 %v6660
    %7599 = vmatpush.bf16.msra.mxu0 %v6652
    %7600 = vmatpush.bf16.msra.mxu0 %v6644
    %7601 = vmatpush.bf16.msra.mxu0 %v6636
    %7602 = vmatpush.bf16.msra.mxu0 %v6628
    %7603 = vmatpush.bf16.msra.mxu0 %v6620
    %7604 = vmatmul.bf16.gmra.mxu0 %v4102
    %v7605 = vpop.f32.mrf.mxu0
    %v7606 = vadd.f32 %v7593, %v7605
    %v7607 = vpop.f32.mrf.mxu0
    %7608 = vdwg.mxu0
    %7609 = vmatpush.bf16.msra.mxu0 %v6229
    %7610 = vmatpush.bf16.msra.mxu0 %v6221
    %7611 = vmatpush.bf16.msra.mxu0 %v6213
    %7612 = vmatpush.bf16.msra.mxu0 %v6205
    %7613 = vmatpush.bf16.msra.mxu0 %v6197
    %7614 = vmatpush.bf16.msra.mxu0 %v6189
    %7615 = vmatpush.bf16.msra.mxu0 %v6181
    %7616 = vmatpush.bf16.msra.mxu0 %v6173
    %7617 = vmatmul.bf16.gmra.mxu0 %v4095
    %v7618 = vpop.f32.mrf.mxu0
    %v7619 = vadd.f32 %v4621, %v7618
    %v7620 = vpop.f32.mrf.mxu0
    %7621 = vdwg.mxu0
    %7622 = vmatpush.bf16.msra.mxu0 %v6293
    %7623 = vmatpush.bf16.msra.mxu0 %v6285
    %7624 = vmatpush.bf16.msra.mxu0 %v6277
    %7625 = vmatpush.bf16.msra.mxu0 %v6269
    %7626 = vmatpush.bf16.msra.mxu0 %v6261
    %7627 = vmatpush.bf16.msra.mxu0 %v6253
    %7628 = vmatpush.bf16.msra.mxu0 %v6245
    %7629 = vmatpush.bf16.msra.mxu0 %v6237
    %7630 = vmatmul.bf16.gmra.mxu0 %v4096
    %v7631 = vpop.f32.mrf.mxu0
    %v7632 = vadd.f32 %v7619, %v7631
    %v7633 = vpop.f32.mrf.mxu0
    %7634 = vdwg.mxu0
    %7635 = vmatpush.bf16.msra.mxu0 %v6357
    %7636 = vmatpush.bf16.msra.mxu0 %v6349
    %7637 = vmatpush.bf16.msra.mxu0 %v6341
    %7638 = vmatpush.bf16.msra.mxu0 %v6333
    %7639 = vmatpush.bf16.msra.mxu0 %v6325
    %7640 = vmatpush.bf16.msra.mxu0 %v6317
    %7641 = vmatpush.bf16.msra.mxu0 %v6309
    %7642 = vmatpush.bf16.msra.mxu0 %v6301
    %7643 = vmatmul.bf16.gmra.mxu0 %v4097
    %v7644 = vpop.f32.mrf.mxu0
    %v7645 = vadd.f32 %v7632, %v7644
    %v7646 = vpop.f32.mrf.mxu0
    %7647 = vdwg.mxu0
    %7648 = vmatpush.bf16.msra.mxu0 %v6421
    %7649 = vmatpush.bf16.msra.mxu0 %v6413
    %7650 = vmatpush.bf16.msra.mxu0 %v6405
    %7651 = vmatpush.bf16.msra.mxu0 %v6397
    %7652 = vmatpush.bf16.msra.mxu0 %v6389
    %7653 = vmatpush.bf16.msra.mxu0 %v6381
    %7654 = vmatpush.bf16.msra.mxu0 %v6373
    %7655 = vmatpush.bf16.msra.mxu0 %v6365
    %7656 = vmatmul.bf16.gmra.mxu0 %v4098
    %v7657 = vpop.f32.mrf.mxu0
    %v7658 = vadd.f32 %v7645, %v7657
    %v7659 = vpop.f32.mrf.mxu0
    %7660 = vdwg.mxu0
    %7661 = vmatpush.bf16.msra.mxu0 %v6485
    %7662 = vmatpush.bf16.msra.mxu0 %v6477
    %7663 = vmatpush.bf16.msra.mxu0 %v6469
    %7664 = vmatpush.bf16.msra.mxu0 %v6461
    %7665 = vmatpush.bf16.msra.mxu0 %v6453
    %7666 = vmatpush.bf16.msra.mxu0 %v6445
    %7667 = vmatpush.bf16.msra.mxu0 %v6437
    %7668 = vmatpush.bf16.msra.mxu0 %v6429
    %7669 = vmatmul.bf16.gmra.mxu0 %v4099
    %v7670 = vpop.f32.mrf.mxu0
    %v7671 = vadd.f32 %v7658, %v7670
    %v7672 = vpop.f32.mrf.mxu0
    %7673 = vdwg.mxu0
    %7674 = vmatpush.bf16.msra.mxu0 %v6549
    %7675 = vmatpush.bf16.msra.mxu0 %v6541
    %7676 = vmatpush.bf16.msra.mxu0 %v6533
    %7677 = vmatpush.bf16.msra.mxu0 %v6525
    %7678 = vmatpush.bf16.msra.mxu0 %v6517
    %7679 = vmatpush.bf16.msra.mxu0 %v6509
    %7680 = vmatpush.bf16.msra.mxu0 %v6501
    %7681 = vmatpush.bf16.msra.mxu0 %v6493
    %7682 = vmatmul.bf16.gmra.mxu0 %v4100
    %v7683 = vpop.f32.mrf.mxu0
    %v7684 = vadd.f32 %v7671, %v7683
    %v7685 = vpop.f32.mrf.mxu0
    %7686 = vdwg.mxu0
    %7687 = vmatpush.bf16.msra.mxu0 %v6613
    %7688 = vmatpush.bf16.msra.mxu0 %v6605
    %7689 = vmatpush.bf16.msra.mxu0 %v6597
    %7690 = vmatpush.bf16.msra.mxu0 %v6589
    %7691 = vmatpush.bf16.msra.mxu0 %v6581
    %7692 = vmatpush.bf16.msra.mxu0 %v6573
    %7693 = vmatpush.bf16.msra.mxu0 %v6565
    %7694 = vmatpush.bf16.msra.mxu0 %v6557
    %7695 = vmatmul.bf16.gmra.mxu0 %v4101
    %v7696 = vpop.f32.mrf.mxu0
    %v7697 = vadd.f32 %v7684, %v7696
    %v7698 = vpop.f32.mrf.mxu0
    %7699 = vdwg.mxu0
    %7700 = vmatpush.bf16.msra.mxu0 %v6677
    %7701 = vmatpush.bf16.msra.mxu0 %v6669
    %7702 = vmatpush.bf16.msra.mxu0 %v6661
    %7703 = vmatpush.bf16.msra.mxu0 %v6653
    %7704 = vmatpush.bf16.msra.mxu0 %v6645
    %7705 = vmatpush.bf16.msra.mxu0 %v6637
    %7706 = vmatpush.bf16.msra.mxu0 %v6629
    %7707 = vmatpush.bf16.msra.mxu0 %v6621
    %7708 = vmatmul.bf16.gmra.mxu0 %v4102
    %v7709 = vpop.f32.mrf.mxu0
    %v7710 = vadd.f32 %v7697, %v7709
    %v7711 = vpop.f32.mrf.mxu0
    %7712 = vdwg.mxu0
    %7713 = vmatpush.bf16.msra.mxu0 %v6230
    %7714 = vmatpush.bf16.msra.mxu0 %v6222
    %7715 = vmatpush.bf16.msra.mxu0 %v6214
    %7716 = vmatpush.bf16.msra.mxu0 %v6206
    %7717 = vmatpush.bf16.msra.mxu0 %v6198
    %7718 = vmatpush.bf16.msra.mxu0 %v6190
    %7719 = vmatpush.bf16.msra.mxu0 %v6182
    %7720 = vmatpush.bf16.msra.mxu0 %v6174
    %7721 = vmatmul.bf16.gmra.mxu0 %v4095
    %v7722 = vpop.f32.mrf.mxu0
    %v7723 = vadd.f32 %v4622, %v7722
    %v7724 = vpop.f32.mrf.mxu0
    %7725 = vdwg.mxu0
    %7726 = vmatpush.bf16.msra.mxu0 %v6294
    %7727 = vmatpush.bf16.msra.mxu0 %v6286
    %7728 = vmatpush.bf16.msra.mxu0 %v6278
    %7729 = vmatpush.bf16.msra.mxu0 %v6270
    %7730 = vmatpush.bf16.msra.mxu0 %v6262
    %7731 = vmatpush.bf16.msra.mxu0 %v6254
    %7732 = vmatpush.bf16.msra.mxu0 %v6246
    %7733 = vmatpush.bf16.msra.mxu0 %v6238
    %7734 = vmatmul.bf16.gmra.mxu0 %v4096
    %v7735 = vpop.f32.mrf.mxu0
    %v7736 = vadd.f32 %v7723, %v7735
    %v7737 = vpop.f32.mrf.mxu0
    %7738 = vdwg.mxu0
    %7739 = vmatpush.bf16.msra.mxu0 %v6358
    %7740 = vmatpush.bf16.msra.mxu0 %v6350
    %7741 = vmatpush.bf16.msra.mxu0 %v6342
    %7742 = vmatpush.bf16.msra.mxu0 %v6334
    %7743 = vmatpush.bf16.msra.mxu0 %v6326
    %7744 = vmatpush.bf16.msra.mxu0 %v6318
    %7745 = vmatpush.bf16.msra.mxu0 %v6310
    %7746 = vmatpush.bf16.msra.mxu0 %v6302
    %7747 = vmatmul.bf16.gmra.mxu0 %v4097
    %v7748 = vpop.f32.mrf.mxu0
    %v7749 = vadd.f32 %v7736, %v7748
    %v7750 = vpop.f32.mrf.mxu0
    %7751 = vdwg.mxu0
    %7752 = vmatpush.bf16.msra.mxu0 %v6422
    %7753 = vmatpush.bf16.msra.mxu0 %v6414
    %7754 = vmatpush.bf16.msra.mxu0 %v6406
    %7755 = vmatpush.bf16.msra.mxu0 %v6398
    %7756 = vmatpush.bf16.msra.mxu0 %v6390
    %7757 = vmatpush.bf16.msra.mxu0 %v6382
    %7758 = vmatpush.bf16.msra.mxu0 %v6374
    %7759 = vmatpush.bf16.msra.mxu0 %v6366
    %7760 = vmatmul.bf16.gmra.mxu0 %v4098
    %v7761 = vpop.f32.mrf.mxu0
    %v7762 = vadd.f32 %v7749, %v7761
    %v7763 = vpop.f32.mrf.mxu0
    %7764 = vdwg.mxu0
    %7765 = vmatpush.bf16.msra.mxu0 %v6486
    %7766 = vmatpush.bf16.msra.mxu0 %v6478
    %7767 = vmatpush.bf16.msra.mxu0 %v6470
    %7768 = vmatpush.bf16.msra.mxu0 %v6462
    %7769 = vmatpush.bf16.msra.mxu0 %v6454
    %7770 = vmatpush.bf16.msra.mxu0 %v6446
    %7771 = vmatpush.bf16.msra.mxu0 %v6438
    %7772 = vmatpush.bf16.msra.mxu0 %v6430
    %7773 = vmatmul.bf16.gmra.mxu0 %v4099
    %v7774 = vpop.f32.mrf.mxu0
    %v7775 = vadd.f32 %v7762, %v7774
    %v7776 = vpop.f32.mrf.mxu0
    %7777 = vdwg.mxu0
    %7778 = vmatpush.bf16.msra.mxu0 %v6550
    %7779 = vmatpush.bf16.msra.mxu0 %v6542
    %7780 = vmatpush.bf16.msra.mxu0 %v6534
    %7781 = vmatpush.bf16.msra.mxu0 %v6526
    %7782 = vmatpush.bf16.msra.mxu0 %v6518
    %7783 = vmatpush.bf16.msra.mxu0 %v6510
    %7784 = vmatpush.bf16.msra.mxu0 %v6502
    %7785 = vmatpush.bf16.msra.mxu0 %v6494
    %7786 = vmatmul.bf16.gmra.mxu0 %v4100
    %v7787 = vpop.f32.mrf.mxu0
    %v7788 = vadd.f32 %v7775, %v7787
    %v7789 = vpop.f32.mrf.mxu0
    %7790 = vdwg.mxu0
    %7791 = vmatpush.bf16.msra.mxu0 %v6614
    %7792 = vmatpush.bf16.msra.mxu0 %v6606
    %7793 = vmatpush.bf16.msra.mxu0 %v6598
    %7794 = vmatpush.bf16.msra.mxu0 %v6590
    %7795 = vmatpush.bf16.msra.mxu0 %v6582
    %7796 = vmatpush.bf16.msra.mxu0 %v6574
    %7797 = vmatpush.bf16.msra.mxu0 %v6566
    %7798 = vmatpush.bf16.msra.mxu0 %v6558
    %7799 = vmatmul.bf16.gmra.mxu0 %v4101
    %v7800 = vpop.f32.mrf.mxu0
    %v7801 = vadd.f32 %v7788, %v7800
    %v7802 = vpop.f32.mrf.mxu0
    %7803 = vdwg.mxu0
    %7804 = vmatpush.bf16.msra.mxu0 %v6678
    %7805 = vmatpush.bf16.msra.mxu0 %v6670
    %7806 = vmatpush.bf16.msra.mxu0 %v6662
    %7807 = vmatpush.bf16.msra.mxu0 %v6654
    %7808 = vmatpush.bf16.msra.mxu0 %v6646
    %7809 = vmatpush.bf16.msra.mxu0 %v6638
    %7810 = vmatpush.bf16.msra.mxu0 %v6630
    %7811 = vmatpush.bf16.msra.mxu0 %v6622
    %7812 = vmatmul.bf16.gmra.mxu0 %v4102
    %v7813 = vpop.f32.mrf.mxu0
    %v7814 = vadd.f32 %v7801, %v7813
    %v7815 = vpop.f32.mrf.mxu0
    %7816 = vdwg.mxu0
    %7817 = vmatpush.bf16.msra.mxu0 %v6231
    %7818 = vmatpush.bf16.msra.mxu0 %v6223
    %7819 = vmatpush.bf16.msra.mxu0 %v6215
    %7820 = vmatpush.bf16.msra.mxu0 %v6207
    %7821 = vmatpush.bf16.msra.mxu0 %v6199
    %7822 = vmatpush.bf16.msra.mxu0 %v6191
    %7823 = vmatpush.bf16.msra.mxu0 %v6183
    %7824 = vmatpush.bf16.msra.mxu0 %v6175
    %7825 = vmatmul.bf16.gmra.mxu0 %v4095
    %v7826 = vpop.f32.mrf.mxu0
    %v7827 = vadd.f32 %v4623, %v7826
    %v7828 = vpop.f32.mrf.mxu0
    %7829 = vdwg.mxu0
    %7830 = vmatpush.bf16.msra.mxu0 %v6295
    %7831 = vmatpush.bf16.msra.mxu0 %v6287
    %7832 = vmatpush.bf16.msra.mxu0 %v6279
    %7833 = vmatpush.bf16.msra.mxu0 %v6271
    %7834 = vmatpush.bf16.msra.mxu0 %v6263
    %7835 = vmatpush.bf16.msra.mxu0 %v6255
    %7836 = vmatpush.bf16.msra.mxu0 %v6247
    %7837 = vmatpush.bf16.msra.mxu0 %v6239
    %7838 = vmatmul.bf16.gmra.mxu0 %v4096
    %v7839 = vpop.f32.mrf.mxu0
    %v7840 = vadd.f32 %v7827, %v7839
    %v7841 = vpop.f32.mrf.mxu0
    %7842 = vdwg.mxu0
    %7843 = vmatpush.bf16.msra.mxu0 %v6359
    %7844 = vmatpush.bf16.msra.mxu0 %v6351
    %7845 = vmatpush.bf16.msra.mxu0 %v6343
    %7846 = vmatpush.bf16.msra.mxu0 %v6335
    %7847 = vmatpush.bf16.msra.mxu0 %v6327
    %7848 = vmatpush.bf16.msra.mxu0 %v6319
    %7849 = vmatpush.bf16.msra.mxu0 %v6311
    %7850 = vmatpush.bf16.msra.mxu0 %v6303
    %7851 = vmatmul.bf16.gmra.mxu0 %v4097
    %v7852 = vpop.f32.mrf.mxu0
    %v7853 = vadd.f32 %v7840, %v7852
    %v7854 = vpop.f32.mrf.mxu0
    %7855 = vdwg.mxu0
    %7856 = vmatpush.bf16.msra.mxu0 %v6423
    %7857 = vmatpush.bf16.msra.mxu0 %v6415
    %7858 = vmatpush.bf16.msra.mxu0 %v6407
    %7859 = vmatpush.bf16.msra.mxu0 %v6399
    %7860 = vmatpush.bf16.msra.mxu0 %v6391
    %7861 = vmatpush.bf16.msra.mxu0 %v6383
    %7862 = vmatpush.bf16.msra.mxu0 %v6375
    %7863 = vmatpush.bf16.msra.mxu0 %v6367
    %7864 = vmatmul.bf16.gmra.mxu0 %v4098
    %v7865 = vpop.f32.mrf.mxu0
    %v7866 = vadd.f32 %v7853, %v7865
    %v7867 = vpop.f32.mrf.mxu0
    %7868 = vdwg.mxu0
    %7869 = vmatpush.bf16.msra.mxu0 %v6487
    %7870 = vmatpush.bf16.msra.mxu0 %v6479
    %7871 = vmatpush.bf16.msra.mxu0 %v6471
    %7872 = vmatpush.bf16.msra.mxu0 %v6463
    %7873 = vmatpush.bf16.msra.mxu0 %v6455
    %7874 = vmatpush.bf16.msra.mxu0 %v6447
    %7875 = vmatpush.bf16.msra.mxu0 %v6439
    %7876 = vmatpush.bf16.msra.mxu0 %v6431
    %7877 = vmatmul.bf16.gmra.mxu0 %v4099
    %v7878 = vpop.f32.mrf.mxu0
    %v7879 = vadd.f32 %v7866, %v7878
    %v7880 = vpop.f32.mrf.mxu0
    %7881 = vdwg.mxu0
    %7882 = vmatpush.bf16.msra.mxu0 %v6551
    %7883 = vmatpush.bf16.msra.mxu0 %v6543
    %7884 = vmatpush.bf16.msra.mxu0 %v6535
    %7885 = vmatpush.bf16.msra.mxu0 %v6527
    %7886 = vmatpush.bf16.msra.mxu0 %v6519
    %7887 = vmatpush.bf16.msra.mxu0 %v6511
    %7888 = vmatpush.bf16.msra.mxu0 %v6503
    %7889 = vmatpush.bf16.msra.mxu0 %v6495
    %7890 = vmatmul.bf16.gmra.mxu0 %v4100
    %v7891 = vpop.f32.mrf.mxu0
    %v7892 = vadd.f32 %v7879, %v7891
    %v7893 = vpop.f32.mrf.mxu0
    %7894 = vdwg.mxu0
    %7895 = vmatpush.bf16.msra.mxu0 %v6615
    %7896 = vmatpush.bf16.msra.mxu0 %v6607
    %7897 = vmatpush.bf16.msra.mxu0 %v6599
    %7898 = vmatpush.bf16.msra.mxu0 %v6591
    %7899 = vmatpush.bf16.msra.mxu0 %v6583
    %7900 = vmatpush.bf16.msra.mxu0 %v6575
    %7901 = vmatpush.bf16.msra.mxu0 %v6567
    %7902 = vmatpush.bf16.msra.mxu0 %v6559
    %7903 = vmatmul.bf16.gmra.mxu0 %v4101
    %v7904 = vpop.f32.mrf.mxu0
    %v7905 = vadd.f32 %v7892, %v7904
    %v7906 = vpop.f32.mrf.mxu0
    %7907 = vdwg.mxu0
    %7908 = vmatpush.bf16.msra.mxu0 %v6679
    %7909 = vmatpush.bf16.msra.mxu0 %v6671
    %7910 = vmatpush.bf16.msra.mxu0 %v6663
    %7911 = vmatpush.bf16.msra.mxu0 %v6655
    %7912 = vmatpush.bf16.msra.mxu0 %v6647
    %7913 = vmatpush.bf16.msra.mxu0 %v6639
    %7914 = vmatpush.bf16.msra.mxu0 %v6631
    %7915 = vmatpush.bf16.msra.mxu0 %v6623
    %7916 = vmatmul.bf16.gmra.mxu0 %v4102
    %v7917 = vpop.f32.mrf.mxu0
    %v7918 = vadd.f32 %v7905, %v7917
    %v7919 = vpop.f32.mrf.mxu0
    %7920 = vdwg.mxu0
    %7921 = vmatpush.bf16.msra.mxu0 %v6232
    %7922 = vmatpush.bf16.msra.mxu0 %v6224
    %7923 = vmatpush.bf16.msra.mxu0 %v6216
    %7924 = vmatpush.bf16.msra.mxu0 %v6208
    %7925 = vmatpush.bf16.msra.mxu0 %v6200
    %7926 = vmatpush.bf16.msra.mxu0 %v6192
    %7927 = vmatpush.bf16.msra.mxu0 %v6184
    %7928 = vmatpush.bf16.msra.mxu0 %v6176
    %7929 = vmatmul.bf16.gmra.mxu0 %v4095
    %v7930 = vpop.f32.mrf.mxu0
    %v7931 = vadd.f32 %v4624, %v7930
    %v7932 = vpop.f32.mrf.mxu0
    %7933 = vdwg.mxu0
    %7934 = vmatpush.bf16.msra.mxu0 %v6296
    %7935 = vmatpush.bf16.msra.mxu0 %v6288
    %7936 = vmatpush.bf16.msra.mxu0 %v6280
    %7937 = vmatpush.bf16.msra.mxu0 %v6272
    %7938 = vmatpush.bf16.msra.mxu0 %v6264
    %7939 = vmatpush.bf16.msra.mxu0 %v6256
    %7940 = vmatpush.bf16.msra.mxu0 %v6248
    %7941 = vmatpush.bf16.msra.mxu0 %v6240
    %7942 = vmatmul.bf16.gmra.mxu0 %v4096
    %v7943 = vpop.f32.mrf.mxu0
    %v7944 = vadd.f32 %v7931, %v7943
    %v7945 = vpop.f32.mrf.mxu0
    %7946 = vdwg.mxu0
    %7947 = vmatpush.bf16.msra.mxu0 %v6360
    %7948 = vmatpush.bf16.msra.mxu0 %v6352
    %7949 = vmatpush.bf16.msra.mxu0 %v6344
    %7950 = vmatpush.bf16.msra.mxu0 %v6336
    %7951 = vmatpush.bf16.msra.mxu0 %v6328
    %7952 = vmatpush.bf16.msra.mxu0 %v6320
    %7953 = vmatpush.bf16.msra.mxu0 %v6312
    %7954 = vmatpush.bf16.msra.mxu0 %v6304
    %7955 = vmatmul.bf16.gmra.mxu0 %v4097
    %v7956 = vpop.f32.mrf.mxu0
    %v7957 = vadd.f32 %v7944, %v7956
    %v7958 = vpop.f32.mrf.mxu0
    %7959 = vdwg.mxu0
    %7960 = vmatpush.bf16.msra.mxu0 %v6424
    %7961 = vmatpush.bf16.msra.mxu0 %v6416
    %7962 = vmatpush.bf16.msra.mxu0 %v6408
    %7963 = vmatpush.bf16.msra.mxu0 %v6400
    %7964 = vmatpush.bf16.msra.mxu0 %v6392
    %7965 = vmatpush.bf16.msra.mxu0 %v6384
    %7966 = vmatpush.bf16.msra.mxu0 %v6376
    %7967 = vmatpush.bf16.msra.mxu0 %v6368
    %7968 = vmatmul.bf16.gmra.mxu0 %v4098
    %v7969 = vpop.f32.mrf.mxu0
    %v7970 = vadd.f32 %v7957, %v7969
    %v7971 = vpop.f32.mrf.mxu0
    %7972 = vdwg.mxu0
    %7973 = vmatpush.bf16.msra.mxu0 %v6488
    %7974 = vmatpush.bf16.msra.mxu0 %v6480
    %7975 = vmatpush.bf16.msra.mxu0 %v6472
    %7976 = vmatpush.bf16.msra.mxu0 %v6464
    %7977 = vmatpush.bf16.msra.mxu0 %v6456
    %7978 = vmatpush.bf16.msra.mxu0 %v6448
    %7979 = vmatpush.bf16.msra.mxu0 %v6440
    %7980 = vmatpush.bf16.msra.mxu0 %v6432
    %7981 = vmatmul.bf16.gmra.mxu0 %v4099
    %v7982 = vpop.f32.mrf.mxu0
    %v7983 = vadd.f32 %v7970, %v7982
    %v7984 = vpop.f32.mrf.mxu0
    %7985 = vdwg.mxu0
    %7986 = vmatpush.bf16.msra.mxu0 %v6552
    %7987 = vmatpush.bf16.msra.mxu0 %v6544
    %7988 = vmatpush.bf16.msra.mxu0 %v6536
    %7989 = vmatpush.bf16.msra.mxu0 %v6528
    %7990 = vmatpush.bf16.msra.mxu0 %v6520
    %7991 = vmatpush.bf16.msra.mxu0 %v6512
    %7992 = vmatpush.bf16.msra.mxu0 %v6504
    %7993 = vmatpush.bf16.msra.mxu0 %v6496
    %7994 = vmatmul.bf16.gmra.mxu0 %v4100
    %v7995 = vpop.f32.mrf.mxu0
    %v7996 = vadd.f32 %v7983, %v7995
    %v7997 = vpop.f32.mrf.mxu0
    %7998 = vdwg.mxu0
    %7999 = vmatpush.bf16.msra.mxu0 %v6616
    %8000 = vmatpush.bf16.msra.mxu0 %v6608
    %8001 = vmatpush.bf16.msra.mxu0 %v6600
    %8002 = vmatpush.bf16.msra.mxu0 %v6592
    %8003 = vmatpush.bf16.msra.mxu0 %v6584
    %8004 = vmatpush.bf16.msra.mxu0 %v6576
    %8005 = vmatpush.bf16.msra.mxu0 %v6568
    %8006 = vmatpush.bf16.msra.mxu0 %v6560
    %8007 = vmatmul.bf16.gmra.mxu0 %v4101
    %v8008 = vpop.f32.mrf.mxu0
    %v8009 = vadd.f32 %v7996, %v8008
    %v8010 = vpop.f32.mrf.mxu0
    %8011 = vdwg.mxu0
    %8012 = vmatpush.bf16.msra.mxu0 %v6680
    %8013 = vmatpush.bf16.msra.mxu0 %v6672
    %8014 = vmatpush.bf16.msra.mxu0 %v6664
    %8015 = vmatpush.bf16.msra.mxu0 %v6656
    %8016 = vmatpush.bf16.msra.mxu0 %v6648
    %8017 = vmatpush.bf16.msra.mxu0 %v6640
    %8018 = vmatpush.bf16.msra.mxu0 %v6632
    %8019 = vmatpush.bf16.msra.mxu0 %v6624
    %8020 = vmatmul.bf16.gmra.mxu0 %v4102
    %v8021 = vpop.f32.mrf.mxu0
    %v8022 = vadd.f32 %v8009, %v8021
    %v8023 = vpop.f32.mrf.mxu0
    %8024 = vdwg.mxu0
    %v8025 = vmax.f32 %v7294, 0.0
    %v8026 = vmax.f32 %v7398, 0.0
    %v8027 = vmax.f32 %v7502, 0.0
    %v8028 = vmax.f32 %v7606, 0.0
    %v8029 = vmax.f32 %v7710, 0.0
    %v8030 = vmax.f32 %v7814, 0.0
    %v8031 = vmax.f32 %v7918, 0.0
    %v8032 = vmax.f32 %v8022, 0.0
    %v8033 = vpack.c.bf16 %v8025, %v8025
    %v8034 = vpack.c.bf16 %v8026, %v8026
    %v8035 = vpack.c.bf16 %v8027, %v8027
    %v8036 = vpack.c.bf16 %v8028, %v8028
    %v8037 = vpack.c.bf16 %v8029, %v8029
    %v8038 = vpack.c.bf16 %v8030, %v8030
    %v8039 = vpack.c.bf16 %v8031, %v8031
    %v8040 = vpack.c.bf16 %v8032, %v8032
    %v8041 = vld [vmem:[#allocation9] sm:$0xff]
    %v8042 = vld [vmem:[#allocation9 + $0x8] sm:$0xff]
    %v8043 = vld [vmem:[#allocation9 + $0x10] sm:$0xff]
    %v8044 = vld [vmem:[#allocation9 + $0x18] sm:$0xff]
    %v8045 = vld [vmem:[#allocation9 + $0x20] sm:$0xff]
    %v8046 = vld [vmem:[#allocation9 + $0x28] sm:$0xff]
    %v8047 = vld [vmem:[#allocation9 + $0x30] sm:$0xff]
    %v8048 = vld [vmem:[#allocation9 + $0x38] sm:$0xff]
    %v8049 = vld [vmem:[#allocation9 + $0x40] sm:$0xff]
    %v8050 = vld [vmem:[#allocation9 + $0x48] sm:$0xff]
    %v8051 = vld [vmem:[#allocation9 + $0x50] sm:$0xff]
    %v8052 = vld [vmem:[#allocation9 + $0x58] sm:$0xff]
    %v8053 = vld [vmem:[#allocation9 + $0x60] sm:$0xff]
    %v8054 = vld [vmem:[#allocation9 + $0x68] sm:$0xff]
    %v8055 = vld [vmem:[#allocation9 + $0x70] sm:$0xff]
    %v8056 = vld [vmem:[#allocation9 + $0x78] sm:$0xff]
    %v8057 = vld [vmem:[#allocation9 + $0x80] sm:$0xff]
    %v8058 = vld [vmem:[#allocation9 + $0x88] sm:$0xff]
    %v8059 = vld [vmem:[#allocation9 + $0x90] sm:$0xff]
    %v8060 = vld [vmem:[#allocation9 + $0x98] sm:$0xff]
    %v8061 = vld [vmem:[#allocation9 + $0xa0] sm:$0xff]
    %v8062 = vld [vmem:[#allocation9 + $0xa8] sm:$0xff]
    %v8063 = vld [vmem:[#allocation9 + $0xb0] sm:$0xff]
    %v8064 = vld [vmem:[#allocation9 + $0xb8] sm:$0xff]
    %v8065 = vld [vmem:[#allocation9 + $0xc0] sm:$0xff]
    %v8066 = vld [vmem:[#allocation9 + $0xc8] sm:$0xff]
    %v8067 = vld [vmem:[#allocation9 + $0xd0] sm:$0xff]
    %v8068 = vld [vmem:[#allocation9 + $0xd8] sm:$0xff]
    %v8069 = vld [vmem:[#allocation9 + $0xe0] sm:$0xff]
    %v8070 = vld [vmem:[#allocation9 + $0xe8] sm:$0xff]
    %v8071 = vld [vmem:[#allocation9 + $0xf0] sm:$0xff]
    %v8072 = vld [vmem:[#allocation9 + $0xf8] sm:$0xff]
    %v8073 = vld [vmem:[#allocation9 + $0x100] sm:$0xff]
    %v8074 = vld [vmem:[#allocation9 + $0x108] sm:$0xff]
    %v8075 = vld [vmem:[#allocation9 + $0x110] sm:$0xff]
    %v8076 = vld [vmem:[#allocation9 + $0x118] sm:$0xff]
    %v8077 = vld [vmem:[#allocation9 + $0x120] sm:$0xff]
    %v8078 = vld [vmem:[#allocation9 + $0x128] sm:$0xff]
    %v8079 = vld [vmem:[#allocation9 + $0x130] sm:$0xff]
    %v8080 = vld [vmem:[#allocation9 + $0x138] sm:$0xff]
    %v8081 = vld [vmem:[#allocation9 + $0x140] sm:$0xff]
    %v8082 = vld [vmem:[#allocation9 + $0x148] sm:$0xff]
    %v8083 = vld [vmem:[#allocation9 + $0x150] sm:$0xff]
    %v8084 = vld [vmem:[#allocation9 + $0x158] sm:$0xff]
    %v8085 = vld [vmem:[#allocation9 + $0x160] sm:$0xff]
    %v8086 = vld [vmem:[#allocation9 + $0x168] sm:$0xff]
    %v8087 = vld [vmem:[#allocation9 + $0x170] sm:$0xff]
    %v8088 = vld [vmem:[#allocation9 + $0x178] sm:$0xff]
    %v8089 = vld [vmem:[#allocation9 + $0x180] sm:$0xff]
    %v8090 = vld [vmem:[#allocation9 + $0x188] sm:$0xff]
    %v8091 = vld [vmem:[#allocation9 + $0x190] sm:$0xff]
    %v8092 = vld [vmem:[#allocation9 + $0x198] sm:$0xff]
    %v8093 = vld [vmem:[#allocation9 + $0x1a0] sm:$0xff]
    %v8094 = vld [vmem:[#allocation9 + $0x1a8] sm:$0xff]
    %v8095 = vld [vmem:[#allocation9 + $0x1b0] sm:$0xff]
    %v8096 = vld [vmem:[#allocation9 + $0x1b8] sm:$0xff]
    %v8097 = vld [vmem:[#allocation9 + $0x1c0] sm:$0xff]
    %v8098 = vld [vmem:[#allocation9 + $0x1c8] sm:$0xff]
    %v8099 = vld [vmem:[#allocation9 + $0x1d0] sm:$0xff]
    %v8100 = vld [vmem:[#allocation9 + $0x1d8] sm:$0xff]
    %v8101 = vld [vmem:[#allocation9 + $0x1e0] sm:$0xff]
    %v8102 = vld [vmem:[#allocation9 + $0x1e8] sm:$0xff]
    %v8103 = vld [vmem:[#allocation9 + $0x1f0] sm:$0xff]
    %v8104 = vld [vmem:[#allocation9 + $0x1f8] sm:$0xff]
    %v8105 = vld [vmem:[#allocation9 + $0x200] sm:$0xff]
    %v8106 = vld [vmem:[#allocation9 + $0x208] sm:$0xff]
    %v8107 = vld [vmem:[#allocation9 + $0x210] sm:$0xff]
    %v8108 = vld [vmem:[#allocation9 + $0x218] sm:$0xff]
    %v8109 = vld [vmem:[#allocation9 + $0x220] sm:$0xff]
    %v8110 = vld [vmem:[#allocation9 + $0x228] sm:$0xff]
    %v8111 = vld [vmem:[#allocation9 + $0x230] sm:$0xff]
    %v8112 = vld [vmem:[#allocation9 + $0x238] sm:$0xff]
    %v8113 = vld [vmem:[#allocation9 + $0x240] sm:$0xff]
    %v8114 = vld [vmem:[#allocation9 + $0x248] sm:$0xff]
    %v8115 = vld [vmem:[#allocation9 + $0x250] sm:$0xff]
    %v8116 = vld [vmem:[#allocation9 + $0x258] sm:$0xff]
    %v8117 = vld [vmem:[#allocation9 + $0x260] sm:$0xff]
    %v8118 = vld [vmem:[#allocation9 + $0x268] sm:$0xff]
    %v8119 = vld [vmem:[#allocation9 + $0x270] sm:$0xff]
    %v8120 = vld [vmem:[#allocation9 + $0x278] sm:$0xff]
    %v8121 = vld [vmem:[#allocation9 + $0x280] sm:$0xff]
    %v8122 = vld [vmem:[#allocation9 + $0x288] sm:$0xff]
    %v8123 = vld [vmem:[#allocation9 + $0x290] sm:$0xff]
    %v8124 = vld [vmem:[#allocation9 + $0x298] sm:$0xff]
    %v8125 = vld [vmem:[#allocation9 + $0x2a0] sm:$0xff]
    %v8126 = vld [vmem:[#allocation9 + $0x2a8] sm:$0xff]
    %v8127 = vld [vmem:[#allocation9 + $0x2b0] sm:$0xff]
    %v8128 = vld [vmem:[#allocation9 + $0x2b8] sm:$0xff]
    %v8129 = vld [vmem:[#allocation9 + $0x2c0] sm:$0xff]
    %v8130 = vld [vmem:[#allocation9 + $0x2c8] sm:$0xff]
    %v8131 = vld [vmem:[#allocation9 + $0x2d0] sm:$0xff]
    %v8132 = vld [vmem:[#allocation9 + $0x2d8] sm:$0xff]
    %v8133 = vld [vmem:[#allocation9 + $0x2e0] sm:$0xff]
    %v8134 = vld [vmem:[#allocation9 + $0x2e8] sm:$0xff]
    %v8135 = vld [vmem:[#allocation9 + $0x2f0] sm:$0xff]
    %v8136 = vld [vmem:[#allocation9 + $0x2f8] sm:$0xff]
    %v8137 = vld [vmem:[#allocation9 + $0x300] sm:$0xff]
    %v8138 = vld [vmem:[#allocation9 + $0x308] sm:$0xff]
    %v8139 = vld [vmem:[#allocation9 + $0x310] sm:$0xff]
    %v8140 = vld [vmem:[#allocation9 + $0x318] sm:$0xff]
    %v8141 = vld [vmem:[#allocation9 + $0x320] sm:$0xff]
    %v8142 = vld [vmem:[#allocation9 + $0x328] sm:$0xff]
    %v8143 = vld [vmem:[#allocation9 + $0x330] sm:$0xff]
    %v8144 = vld [vmem:[#allocation9 + $0x338] sm:$0xff]
    %v8145 = vld [vmem:[#allocation9 + $0x340] sm:$0xff]
    %v8146 = vld [vmem:[#allocation9 + $0x348] sm:$0xff]
    %v8147 = vld [vmem:[#allocation9 + $0x350] sm:$0xff]
    %v8148 = vld [vmem:[#allocation9 + $0x358] sm:$0xff]
    %v8149 = vld [vmem:[#allocation9 + $0x360] sm:$0xff]
    %v8150 = vld [vmem:[#allocation9 + $0x368] sm:$0xff]
    %v8151 = vld [vmem:[#allocation9 + $0x370] sm:$0xff]
    %v8152 = vld [vmem:[#allocation9 + $0x378] sm:$0xff]
    %v8153 = vld [vmem:[#allocation9 + $0x380] sm:$0xff]
    %v8154 = vld [vmem:[#allocation9 + $0x388] sm:$0xff]
    %v8155 = vld [vmem:[#allocation9 + $0x390] sm:$0xff]
    %v8156 = vld [vmem:[#allocation9 + $0x398] sm:$0xff]
    %v8157 = vld [vmem:[#allocation9 + $0x3a0] sm:$0xff]
    %v8158 = vld [vmem:[#allocation9 + $0x3a8] sm:$0xff]
    %v8159 = vld [vmem:[#allocation9 + $0x3b0] sm:$0xff]
    %v8160 = vld [vmem:[#allocation9 + $0x3b8] sm:$0xff]
    %v8161 = vld [vmem:[#allocation9 + $0x3c0] sm:$0xff]
    %v8162 = vld [vmem:[#allocation9 + $0x3c8] sm:$0xff]
    %v8163 = vld [vmem:[#allocation9 + $0x3d0] sm:$0xff]
    %v8164 = vld [vmem:[#allocation9 + $0x3d8] sm:$0xff]
    %v8165 = vld [vmem:[#allocation9 + $0x3e0] sm:$0xff]
    %v8166 = vld [vmem:[#allocation9 + $0x3e8] sm:$0xff]
    %v8167 = vld [vmem:[#allocation9 + $0x3f0] sm:$0xff]
    %v8168 = vld [vmem:[#allocation9 + $0x3f8] sm:$0xff]
    %v8169 = vld [vmem:[#allocation9 + $0x400] sm:$0xff]
    %v8170 = vld [vmem:[#allocation9 + $0x408] sm:$0xff]
    %v8171 = vld [vmem:[#allocation9 + $0x410] sm:$0xff]
    %v8172 = vld [vmem:[#allocation9 + $0x418] sm:$0xff]
    %v8173 = vld [vmem:[#allocation9 + $0x420] sm:$0xff]
    %v8174 = vld [vmem:[#allocation9 + $0x428] sm:$0xff]
    %v8175 = vld [vmem:[#allocation9 + $0x430] sm:$0xff]
    %v8176 = vld [vmem:[#allocation9 + $0x438] sm:$0xff]
    %v8177 = vld [vmem:[#allocation9 + $0x440] sm:$0xff]
    %v8178 = vld [vmem:[#allocation9 + $0x448] sm:$0xff]
    %v8179 = vld [vmem:[#allocation9 + $0x450] sm:$0xff]
    %v8180 = vld [vmem:[#allocation9 + $0x458] sm:$0xff]
    %v8181 = vld [vmem:[#allocation9 + $0x460] sm:$0xff]
    %v8182 = vld [vmem:[#allocation9 + $0x468] sm:$0xff]
    %v8183 = vld [vmem:[#allocation9 + $0x470] sm:$0xff]
    %v8184 = vld [vmem:[#allocation9 + $0x478] sm:$0xff]
    %v8185 = vld [vmem:[#allocation9 + $0x480] sm:$0xff]
    %v8186 = vld [vmem:[#allocation9 + $0x488] sm:$0xff]
    %v8187 = vld [vmem:[#allocation9 + $0x490] sm:$0xff]
    %v8188 = vld [vmem:[#allocation9 + $0x498] sm:$0xff]
    %v8189 = vld [vmem:[#allocation9 + $0x4a0] sm:$0xff]
    %v8190 = vld [vmem:[#allocation9 + $0x4a8] sm:$0xff]
    %v8191 = vld [vmem:[#allocation9 + $0x4b0] sm:$0xff]
    %v8192 = vld [vmem:[#allocation9 + $0x4b8] sm:$0xff]
    %v8193 = vld [vmem:[#allocation9 + $0x4c0] sm:$0xff]
    %v8194 = vld [vmem:[#allocation9 + $0x4c8] sm:$0xff]
    %v8195 = vld [vmem:[#allocation9 + $0x4d0] sm:$0xff]
    %v8196 = vld [vmem:[#allocation9 + $0x4d8] sm:$0xff]
    %v8197 = vld [vmem:[#allocation9 + $0x4e0] sm:$0xff]
    %v8198 = vld [vmem:[#allocation9 + $0x4e8] sm:$0xff]
    %v8199 = vld [vmem:[#allocation9 + $0x4f0] sm:$0xff]
    %v8200 = vld [vmem:[#allocation9 + $0x4f8] sm:$0xff]
    %v8201 = vld [vmem:[#allocation9 + $0x500] sm:$0xff]
    %v8202 = vld [vmem:[#allocation9 + $0x508] sm:$0xff]
    %v8203 = vld [vmem:[#allocation9 + $0x510] sm:$0xff]
    %v8204 = vld [vmem:[#allocation9 + $0x518] sm:$0xff]
    %v8205 = vld [vmem:[#allocation9 + $0x520] sm:$0xff]
    %v8206 = vld [vmem:[#allocation9 + $0x528] sm:$0xff]
    %v8207 = vld [vmem:[#allocation9 + $0x530] sm:$0xff]
    %v8208 = vld [vmem:[#allocation9 + $0x538] sm:$0xff]
    %v8209 = vld [vmem:[#allocation9 + $0x540] sm:$0xff]
    %v8210 = vld [vmem:[#allocation9 + $0x548] sm:$0xff]
    %v8211 = vld [vmem:[#allocation9 + $0x550] sm:$0xff]
    %v8212 = vld [vmem:[#allocation9 + $0x558] sm:$0xff]
    %v8213 = vld [vmem:[#allocation9 + $0x560] sm:$0xff]
    %v8214 = vld [vmem:[#allocation9 + $0x568] sm:$0xff]
    %v8215 = vld [vmem:[#allocation9 + $0x570] sm:$0xff]
    %v8216 = vld [vmem:[#allocation9 + $0x578] sm:$0xff]
    %v8217 = vld [vmem:[#allocation9 + $0x580] sm:$0xff]
    %v8218 = vld [vmem:[#allocation9 + $0x588] sm:$0xff]
    %v8219 = vld [vmem:[#allocation9 + $0x590] sm:$0xff]
    %v8220 = vld [vmem:[#allocation9 + $0x598] sm:$0xff]
    %v8221 = vld [vmem:[#allocation9 + $0x5a0] sm:$0xff]
    %v8222 = vld [vmem:[#allocation9 + $0x5a8] sm:$0xff]
    %v8223 = vld [vmem:[#allocation9 + $0x5b0] sm:$0xff]
    %v8224 = vld [vmem:[#allocation9 + $0x5b8] sm:$0xff]
    %v8225 = vld [vmem:[#allocation9 + $0x5c0] sm:$0xff]
    %v8226 = vld [vmem:[#allocation9 + $0x5c8] sm:$0xff]
    %v8227 = vld [vmem:[#allocation9 + $0x5d0] sm:$0xff]
    %v8228 = vld [vmem:[#allocation9 + $0x5d8] sm:$0xff]
    %v8229 = vld [vmem:[#allocation9 + $0x5e0] sm:$0xff]
    %v8230 = vld [vmem:[#allocation9 + $0x5e8] sm:$0xff]
    %v8231 = vld [vmem:[#allocation9 + $0x5f0] sm:$0xff]
    %v8232 = vld [vmem:[#allocation9 + $0x5f8] sm:$0xff]
    %v8233 = vld [vmem:[#allocation9 + $0x600] sm:$0xff]
    %v8234 = vld [vmem:[#allocation9 + $0x608] sm:$0xff]
    %v8235 = vld [vmem:[#allocation9 + $0x610] sm:$0xff]
    %v8236 = vld [vmem:[#allocation9 + $0x618] sm:$0xff]
    %v8237 = vld [vmem:[#allocation9 + $0x620] sm:$0xff]
    %v8238 = vld [vmem:[#allocation9 + $0x628] sm:$0xff]
    %v8239 = vld [vmem:[#allocation9 + $0x630] sm:$0xff]
    %v8240 = vld [vmem:[#allocation9 + $0x638] sm:$0xff]
    %v8241 = vld [vmem:[#allocation9 + $0x640] sm:$0xff]
    %v8242 = vld [vmem:[#allocation9 + $0x648] sm:$0xff]
    %v8243 = vld [vmem:[#allocation9 + $0x650] sm:$0xff]
    %v8244 = vld [vmem:[#allocation9 + $0x658] sm:$0xff]
    %v8245 = vld [vmem:[#allocation9 + $0x660] sm:$0xff]
    %v8246 = vld [vmem:[#allocation9 + $0x668] sm:$0xff]
    %v8247 = vld [vmem:[#allocation9 + $0x670] sm:$0xff]
    %v8248 = vld [vmem:[#allocation9 + $0x678] sm:$0xff]
    %v8249 = vld [vmem:[#allocation9 + $0x680] sm:$0xff]
    %v8250 = vld [vmem:[#allocation9 + $0x688] sm:$0xff]
    %v8251 = vld [vmem:[#allocation9 + $0x690] sm:$0xff]
    %v8252 = vld [vmem:[#allocation9 + $0x698] sm:$0xff]
    %v8253 = vld [vmem:[#allocation9 + $0x6a0] sm:$0xff]
    %v8254 = vld [vmem:[#allocation9 + $0x6a8] sm:$0xff]
    %v8255 = vld [vmem:[#allocation9 + $0x6b0] sm:$0xff]
    %v8256 = vld [vmem:[#allocation9 + $0x6b8] sm:$0xff]
    %v8257 = vld [vmem:[#allocation9 + $0x6c0] sm:$0xff]
    %v8258 = vld [vmem:[#allocation9 + $0x6c8] sm:$0xff]
    %v8259 = vld [vmem:[#allocation9 + $0x6d0] sm:$0xff]
    %v8260 = vld [vmem:[#allocation9 + $0x6d8] sm:$0xff]
    %v8261 = vld [vmem:[#allocation9 + $0x6e0] sm:$0xff]
    %v8262 = vld [vmem:[#allocation9 + $0x6e8] sm:$0xff]
    %v8263 = vld [vmem:[#allocation9 + $0x6f0] sm:$0xff]
    %v8264 = vld [vmem:[#allocation9 + $0x6f8] sm:$0xff]
    %v8265 = vld [vmem:[#allocation9 + $0x700] sm:$0xff]
    %v8266 = vld [vmem:[#allocation9 + $0x708] sm:$0xff]
    %v8267 = vld [vmem:[#allocation9 + $0x710] sm:$0xff]
    %v8268 = vld [vmem:[#allocation9 + $0x718] sm:$0xff]
    %v8269 = vld [vmem:[#allocation9 + $0x720] sm:$0xff]
    %v8270 = vld [vmem:[#allocation9 + $0x728] sm:$0xff]
    %v8271 = vld [vmem:[#allocation9 + $0x730] sm:$0xff]
    %v8272 = vld [vmem:[#allocation9 + $0x738] sm:$0xff]
    %v8273 = vld [vmem:[#allocation9 + $0x740] sm:$0xff]
    %v8274 = vld [vmem:[#allocation9 + $0x748] sm:$0xff]
    %v8275 = vld [vmem:[#allocation9 + $0x750] sm:$0xff]
    %v8276 = vld [vmem:[#allocation9 + $0x758] sm:$0xff]
    %v8277 = vld [vmem:[#allocation9 + $0x760] sm:$0xff]
    %v8278 = vld [vmem:[#allocation9 + $0x768] sm:$0xff]
    %v8279 = vld [vmem:[#allocation9 + $0x770] sm:$0xff]
    %v8280 = vld [vmem:[#allocation9 + $0x778] sm:$0xff]
    %v8281 = vld [vmem:[#allocation9 + $0x780] sm:$0xff]
    %v8282 = vld [vmem:[#allocation9 + $0x788] sm:$0xff]
    %v8283 = vld [vmem:[#allocation9 + $0x790] sm:$0xff]
    %v8284 = vld [vmem:[#allocation9 + $0x798] sm:$0xff]
    %v8285 = vld [vmem:[#allocation9 + $0x7a0] sm:$0xff]
    %v8286 = vld [vmem:[#allocation9 + $0x7a8] sm:$0xff]
    %v8287 = vld [vmem:[#allocation9 + $0x7b0] sm:$0xff]
    %v8288 = vld [vmem:[#allocation9 + $0x7b8] sm:$0xff]
    %v8289 = vld [vmem:[#allocation9 + $0x7c0] sm:$0xff]
    %v8290 = vld [vmem:[#allocation9 + $0x7c8] sm:$0xff]
    %v8291 = vld [vmem:[#allocation9 + $0x7d0] sm:$0xff]
    %v8292 = vld [vmem:[#allocation9 + $0x7d8] sm:$0xff]
    %v8293 = vld [vmem:[#allocation9 + $0x7e0] sm:$0xff]
    %v8294 = vld [vmem:[#allocation9 + $0x7e8] sm:$0xff]
    %v8295 = vld [vmem:[#allocation9 + $0x7f0] sm:$0xff]
    %v8296 = vld [vmem:[#allocation9 + $0x7f8] sm:$0xff]
    %v8297 = vld [vmem:[#allocation9 + $0x800] sm:$0xff]
    %v8298 = vld [vmem:[#allocation9 + $0x808] sm:$0xff]
    %v8299 = vld [vmem:[#allocation9 + $0x810] sm:$0xff]
    %v8300 = vld [vmem:[#allocation9 + $0x818] sm:$0xff]
    %v8301 = vld [vmem:[#allocation9 + $0x820] sm:$0xff]
    %v8302 = vld [vmem:[#allocation9 + $0x828] sm:$0xff]
    %v8303 = vld [vmem:[#allocation9 + $0x830] sm:$0xff]
    %v8304 = vld [vmem:[#allocation9 + $0x838] sm:$0xff]
    %v8305 = vld [vmem:[#allocation9 + $0x840] sm:$0xff]
    %v8306 = vld [vmem:[#allocation9 + $0x848] sm:$0xff]
    %v8307 = vld [vmem:[#allocation9 + $0x850] sm:$0xff]
    %v8308 = vld [vmem:[#allocation9 + $0x858] sm:$0xff]
    %v8309 = vld [vmem:[#allocation9 + $0x860] sm:$0xff]
    %v8310 = vld [vmem:[#allocation9 + $0x868] sm:$0xff]
    %v8311 = vld [vmem:[#allocation9 + $0x870] sm:$0xff]
    %v8312 = vld [vmem:[#allocation9 + $0x878] sm:$0xff]
    %v8313 = vld [vmem:[#allocation9 + $0x880] sm:$0xff]
    %v8314 = vld [vmem:[#allocation9 + $0x888] sm:$0xff]
    %v8315 = vld [vmem:[#allocation9 + $0x890] sm:$0xff]
    %v8316 = vld [vmem:[#allocation9 + $0x898] sm:$0xff]
    %v8317 = vld [vmem:[#allocation9 + $0x8a0] sm:$0xff]
    %v8318 = vld [vmem:[#allocation9 + $0x8a8] sm:$0xff]
    %v8319 = vld [vmem:[#allocation9 + $0x8b0] sm:$0xff]
    %v8320 = vld [vmem:[#allocation9 + $0x8b8] sm:$0xff]
    %v8321 = vld [vmem:[#allocation9 + $0x8c0] sm:$0xff]
    %v8322 = vld [vmem:[#allocation9 + $0x8c8] sm:$0xff]
    %v8323 = vld [vmem:[#allocation9 + $0x8d0] sm:$0xff]
    %v8324 = vld [vmem:[#allocation9 + $0x8d8] sm:$0xff]
    %v8325 = vld [vmem:[#allocation9 + $0x8e0] sm:$0xff]
    %v8326 = vld [vmem:[#allocation9 + $0x8e8] sm:$0xff]
    %v8327 = vld [vmem:[#allocation9 + $0x8f0] sm:$0xff]
    %v8328 = vld [vmem:[#allocation9 + $0x8f8] sm:$0xff]
    %v8329 = vld [vmem:[#allocation9 + $0x900] sm:$0xff]
    %v8330 = vld [vmem:[#allocation9 + $0x908] sm:$0xff]
    %v8331 = vld [vmem:[#allocation9 + $0x910] sm:$0xff]
    %v8332 = vld [vmem:[#allocation9 + $0x918] sm:$0xff]
    %v8333 = vld [vmem:[#allocation9 + $0x920] sm:$0xff]
    %v8334 = vld [vmem:[#allocation9 + $0x928] sm:$0xff]
    %v8335 = vld [vmem:[#allocation9 + $0x930] sm:$0xff]
    %v8336 = vld [vmem:[#allocation9 + $0x938] sm:$0xff]
    %v8337 = vld [vmem:[#allocation9 + $0x940] sm:$0xff]
    %v8338 = vld [vmem:[#allocation9 + $0x948] sm:$0xff]
    %v8339 = vld [vmem:[#allocation9 + $0x950] sm:$0xff]
    %v8340 = vld [vmem:[#allocation9 + $0x958] sm:$0xff]
    %v8341 = vld [vmem:[#allocation9 + $0x960] sm:$0xff]
    %v8342 = vld [vmem:[#allocation9 + $0x968] sm:$0xff]
    %v8343 = vld [vmem:[#allocation9 + $0x970] sm:$0xff]
    %v8344 = vld [vmem:[#allocation9 + $0x978] sm:$0xff]
    %v8345 = vld [vmem:[#allocation9 + $0x980] sm:$0xff]
    %v8346 = vld [vmem:[#allocation9 + $0x988] sm:$0xff]
    %v8347 = vld [vmem:[#allocation9 + $0x990] sm:$0xff]
    %v8348 = vld [vmem:[#allocation9 + $0x998] sm:$0xff]
    %v8349 = vld [vmem:[#allocation9 + $0x9a0] sm:$0xff]
    %v8350 = vld [vmem:[#allocation9 + $0x9a8] sm:$0xff]
    %v8351 = vld [vmem:[#allocation9 + $0x9b0] sm:$0xff]
    %v8352 = vld [vmem:[#allocation9 + $0x9b8] sm:$0xff]
    %v8353 = vld [vmem:[#allocation9 + $0x9c0] sm:$0xff]
    %v8354 = vld [vmem:[#allocation9 + $0x9c8] sm:$0xff]
    %v8355 = vld [vmem:[#allocation9 + $0x9d0] sm:$0xff]
    %v8356 = vld [vmem:[#allocation9 + $0x9d8] sm:$0xff]
    %v8357 = vld [vmem:[#allocation9 + $0x9e0] sm:$0xff]
    %v8358 = vld [vmem:[#allocation9 + $0x9e8] sm:$0xff]
    %v8359 = vld [vmem:[#allocation9 + $0x9f0] sm:$0xff]
    %v8360 = vld [vmem:[#allocation9 + $0x9f8] sm:$0xff]
    %v8361 = vld [vmem:[#allocation9 + $0xa00] sm:$0xff]
    %v8362 = vld [vmem:[#allocation9 + $0xa08] sm:$0xff]
    %v8363 = vld [vmem:[#allocation9 + $0xa10] sm:$0xff]
    %v8364 = vld [vmem:[#allocation9 + $0xa18] sm:$0xff]
    %v8365 = vld [vmem:[#allocation9 + $0xa20] sm:$0xff]
    %v8366 = vld [vmem:[#allocation9 + $0xa28] sm:$0xff]
    %v8367 = vld [vmem:[#allocation9 + $0xa30] sm:$0xff]
    %v8368 = vld [vmem:[#allocation9 + $0xa38] sm:$0xff]
    %v8369 = vld [vmem:[#allocation9 + $0xa40] sm:$0xff]
    %v8370 = vld [vmem:[#allocation9 + $0xa48] sm:$0xff]
    %v8371 = vld [vmem:[#allocation9 + $0xa50] sm:$0xff]
    %v8372 = vld [vmem:[#allocation9 + $0xa58] sm:$0xff]
    %v8373 = vld [vmem:[#allocation9 + $0xa60] sm:$0xff]
    %v8374 = vld [vmem:[#allocation9 + $0xa68] sm:$0xff]
    %v8375 = vld [vmem:[#allocation9 + $0xa70] sm:$0xff]
    %v8376 = vld [vmem:[#allocation9 + $0xa78] sm:$0xff]
    %v8377 = vld [vmem:[#allocation9 + $0xa80] sm:$0xff]
    %v8378 = vld [vmem:[#allocation9 + $0xa88] sm:$0xff]
    %v8379 = vld [vmem:[#allocation9 + $0xa90] sm:$0xff]
    %v8380 = vld [vmem:[#allocation9 + $0xa98] sm:$0xff]
    %v8381 = vld [vmem:[#allocation9 + $0xaa0] sm:$0xff]
    %v8382 = vld [vmem:[#allocation9 + $0xaa8] sm:$0xff]
    %v8383 = vld [vmem:[#allocation9 + $0xab0] sm:$0xff]
    %v8384 = vld [vmem:[#allocation9 + $0xab8] sm:$0xff]
    %v8385 = vld [vmem:[#allocation9 + $0xac0] sm:$0xff]
    %v8386 = vld [vmem:[#allocation9 + $0xac8] sm:$0xff]
    %v8387 = vld [vmem:[#allocation9 + $0xad0] sm:$0xff]
    %v8388 = vld [vmem:[#allocation9 + $0xad8] sm:$0xff]
    %v8389 = vld [vmem:[#allocation9 + $0xae0] sm:$0xff]
    %v8390 = vld [vmem:[#allocation9 + $0xae8] sm:$0xff]
    %v8391 = vld [vmem:[#allocation9 + $0xaf0] sm:$0xff]
    %v8392 = vld [vmem:[#allocation9 + $0xaf8] sm:$0xff]
    %v8393 = vld [vmem:[#allocation9 + $0xb00] sm:$0xff]
    %v8394 = vld [vmem:[#allocation9 + $0xb08] sm:$0xff]
    %v8395 = vld [vmem:[#allocation9 + $0xb10] sm:$0xff]
    %v8396 = vld [vmem:[#allocation9 + $0xb18] sm:$0xff]
    %v8397 = vld [vmem:[#allocation9 + $0xb20] sm:$0xff]
    %v8398 = vld [vmem:[#allocation9 + $0xb28] sm:$0xff]
    %v8399 = vld [vmem:[#allocation9 + $0xb30] sm:$0xff]
    %v8400 = vld [vmem:[#allocation9 + $0xb38] sm:$0xff]
    %v8401 = vld [vmem:[#allocation9 + $0xb40] sm:$0xff]
    %v8402 = vld [vmem:[#allocation9 + $0xb48] sm:$0xff]
    %v8403 = vld [vmem:[#allocation9 + $0xb50] sm:$0xff]
    %v8404 = vld [vmem:[#allocation9 + $0xb58] sm:$0xff]
    %v8405 = vld [vmem:[#allocation9 + $0xb60] sm:$0xff]
    %v8406 = vld [vmem:[#allocation9 + $0xb68] sm:$0xff]
    %v8407 = vld [vmem:[#allocation9 + $0xb70] sm:$0xff]
    %v8408 = vld [vmem:[#allocation9 + $0xb78] sm:$0xff]
    %v8409 = vld [vmem:[#allocation9 + $0xb80] sm:$0xff]
    %v8410 = vld [vmem:[#allocation9 + $0xb88] sm:$0xff]
    %v8411 = vld [vmem:[#allocation9 + $0xb90] sm:$0xff]
    %v8412 = vld [vmem:[#allocation9 + $0xb98] sm:$0xff]
    %v8413 = vld [vmem:[#allocation9 + $0xba0] sm:$0xff]
    %v8414 = vld [vmem:[#allocation9 + $0xba8] sm:$0xff]
    %v8415 = vld [vmem:[#allocation9 + $0xbb0] sm:$0xff]
    %v8416 = vld [vmem:[#allocation9 + $0xbb8] sm:$0xff]
    %v8417 = vld [vmem:[#allocation9 + $0xbc0] sm:$0xff]
    %v8418 = vld [vmem:[#allocation9 + $0xbc8] sm:$0xff]
    %v8419 = vld [vmem:[#allocation9 + $0xbd0] sm:$0xff]
    %v8420 = vld [vmem:[#allocation9 + $0xbd8] sm:$0xff]
    %v8421 = vld [vmem:[#allocation9 + $0xbe0] sm:$0xff]
    %v8422 = vld [vmem:[#allocation9 + $0xbe8] sm:$0xff]
    %v8423 = vld [vmem:[#allocation9 + $0xbf0] sm:$0xff]
    %v8424 = vld [vmem:[#allocation9 + $0xbf8] sm:$0xff]
    %v8425 = vld [vmem:[#allocation9 + $0xc00] sm:$0xff]
    %v8426 = vld [vmem:[#allocation9 + $0xc08] sm:$0xff]
    %v8427 = vld [vmem:[#allocation9 + $0xc10] sm:$0xff]
    %v8428 = vld [vmem:[#allocation9 + $0xc18] sm:$0xff]
    %v8429 = vld [vmem:[#allocation9 + $0xc20] sm:$0xff]
    %v8430 = vld [vmem:[#allocation9 + $0xc28] sm:$0xff]
    %v8431 = vld [vmem:[#allocation9 + $0xc30] sm:$0xff]
    %v8432 = vld [vmem:[#allocation9 + $0xc38] sm:$0xff]
    %v8433 = vld [vmem:[#allocation9 + $0xc40] sm:$0xff]
    %v8434 = vld [vmem:[#allocation9 + $0xc48] sm:$0xff]
    %v8435 = vld [vmem:[#allocation9 + $0xc50] sm:$0xff]
    %v8436 = vld [vmem:[#allocation9 + $0xc58] sm:$0xff]
    %v8437 = vld [vmem:[#allocation9 + $0xc60] sm:$0xff]
    %v8438 = vld [vmem:[#allocation9 + $0xc68] sm:$0xff]
    %v8439 = vld [vmem:[#allocation9 + $0xc70] sm:$0xff]
    %v8440 = vld [vmem:[#allocation9 + $0xc78] sm:$0xff]
    %v8441 = vld [vmem:[#allocation9 + $0xc80] sm:$0xff]
    %v8442 = vld [vmem:[#allocation9 + $0xc88] sm:$0xff]
    %v8443 = vld [vmem:[#allocation9 + $0xc90] sm:$0xff]
    %v8444 = vld [vmem:[#allocation9 + $0xc98] sm:$0xff]
    %v8445 = vld [vmem:[#allocation9 + $0xca0] sm:$0xff]
    %v8446 = vld [vmem:[#allocation9 + $0xca8] sm:$0xff]
    %v8447 = vld [vmem:[#allocation9 + $0xcb0] sm:$0xff]
    %v8448 = vld [vmem:[#allocation9 + $0xcb8] sm:$0xff]
    %v8449 = vld [vmem:[#allocation9 + $0xcc0] sm:$0xff]
    %v8450 = vld [vmem:[#allocation9 + $0xcc8] sm:$0xff]
    %v8451 = vld [vmem:[#allocation9 + $0xcd0] sm:$0xff]
    %v8452 = vld [vmem:[#allocation9 + $0xcd8] sm:$0xff]
    %v8453 = vld [vmem:[#allocation9 + $0xce0] sm:$0xff]
    %v8454 = vld [vmem:[#allocation9 + $0xce8] sm:$0xff]
    %v8455 = vld [vmem:[#allocation9 + $0xcf0] sm:$0xff]
    %v8456 = vld [vmem:[#allocation9 + $0xcf8] sm:$0xff]
    %v8457 = vld [vmem:[#allocation9 + $0xd00] sm:$0xff]
    %v8458 = vld [vmem:[#allocation9 + $0xd08] sm:$0xff]
    %v8459 = vld [vmem:[#allocation9 + $0xd10] sm:$0xff]
    %v8460 = vld [vmem:[#allocation9 + $0xd18] sm:$0xff]
    %v8461 = vld [vmem:[#allocation9 + $0xd20] sm:$0xff]
    %v8462 = vld [vmem:[#allocation9 + $0xd28] sm:$0xff]
    %v8463 = vld [vmem:[#allocation9 + $0xd30] sm:$0xff]
    %v8464 = vld [vmem:[#allocation9 + $0xd38] sm:$0xff]
    %v8465 = vld [vmem:[#allocation9 + $0xd40] sm:$0xff]
    %v8466 = vld [vmem:[#allocation9 + $0xd48] sm:$0xff]
    %v8467 = vld [vmem:[#allocation9 + $0xd50] sm:$0xff]
    %v8468 = vld [vmem:[#allocation9 + $0xd58] sm:$0xff]
    %v8469 = vld [vmem:[#allocation9 + $0xd60] sm:$0xff]
    %v8470 = vld [vmem:[#allocation9 + $0xd68] sm:$0xff]
    %v8471 = vld [vmem:[#allocation9 + $0xd70] sm:$0xff]
    %v8472 = vld [vmem:[#allocation9 + $0xd78] sm:$0xff]
    %v8473 = vld [vmem:[#allocation9 + $0xd80] sm:$0xff]
    %v8474 = vld [vmem:[#allocation9 + $0xd88] sm:$0xff]
    %v8475 = vld [vmem:[#allocation9 + $0xd90] sm:$0xff]
    %v8476 = vld [vmem:[#allocation9 + $0xd98] sm:$0xff]
    %v8477 = vld [vmem:[#allocation9 + $0xda0] sm:$0xff]
    %v8478 = vld [vmem:[#allocation9 + $0xda8] sm:$0xff]
    %v8479 = vld [vmem:[#allocation9 + $0xdb0] sm:$0xff]
    %v8480 = vld [vmem:[#allocation9 + $0xdb8] sm:$0xff]
    %v8481 = vld [vmem:[#allocation9 + $0xdc0] sm:$0xff]
    %v8482 = vld [vmem:[#allocation9 + $0xdc8] sm:$0xff]
    %v8483 = vld [vmem:[#allocation9 + $0xdd0] sm:$0xff]
    %v8484 = vld [vmem:[#allocation9 + $0xdd8] sm:$0xff]
    %v8485 = vld [vmem:[#allocation9 + $0xde0] sm:$0xff]
    %v8486 = vld [vmem:[#allocation9 + $0xde8] sm:$0xff]
    %v8487 = vld [vmem:[#allocation9 + $0xdf0] sm:$0xff]
    %v8488 = vld [vmem:[#allocation9 + $0xdf8] sm:$0xff]
    %v8489 = vld [vmem:[#allocation9 + $0xe00] sm:$0xff]
    %v8490 = vld [vmem:[#allocation9 + $0xe08] sm:$0xff]
    %v8491 = vld [vmem:[#allocation9 + $0xe10] sm:$0xff]
    %v8492 = vld [vmem:[#allocation9 + $0xe18] sm:$0xff]
    %v8493 = vld [vmem:[#allocation9 + $0xe20] sm:$0xff]
    %v8494 = vld [vmem:[#allocation9 + $0xe28] sm:$0xff]
    %v8495 = vld [vmem:[#allocation9 + $0xe30] sm:$0xff]
    %v8496 = vld [vmem:[#allocation9 + $0xe38] sm:$0xff]
    %v8497 = vld [vmem:[#allocation9 + $0xe40] sm:$0xff]
    %v8498 = vld [vmem:[#allocation9 + $0xe48] sm:$0xff]
    %v8499 = vld [vmem:[#allocation9 + $0xe50] sm:$0xff]
    %v8500 = vld [vmem:[#allocation9 + $0xe58] sm:$0xff]
    %v8501 = vld [vmem:[#allocation9 + $0xe60] sm:$0xff]
    %v8502 = vld [vmem:[#allocation9 + $0xe68] sm:$0xff]
    %v8503 = vld [vmem:[#allocation9 + $0xe70] sm:$0xff]
    %v8504 = vld [vmem:[#allocation9 + $0xe78] sm:$0xff]
    %v8505 = vld [vmem:[#allocation9 + $0xe80] sm:$0xff]
    %v8506 = vld [vmem:[#allocation9 + $0xe88] sm:$0xff]
    %v8507 = vld [vmem:[#allocation9 + $0xe90] sm:$0xff]
    %v8508 = vld [vmem:[#allocation9 + $0xe98] sm:$0xff]
    %v8509 = vld [vmem:[#allocation9 + $0xea0] sm:$0xff]
    %v8510 = vld [vmem:[#allocation9 + $0xea8] sm:$0xff]
    %v8511 = vld [vmem:[#allocation9 + $0xeb0] sm:$0xff]
    %v8512 = vld [vmem:[#allocation9 + $0xeb8] sm:$0xff]
    %v8513 = vld [vmem:[#allocation9 + $0xec0] sm:$0xff]
    %v8514 = vld [vmem:[#allocation9 + $0xec8] sm:$0xff]
    %v8515 = vld [vmem:[#allocation9 + $0xed0] sm:$0xff]
    %v8516 = vld [vmem:[#allocation9 + $0xed8] sm:$0xff]
    %v8517 = vld [vmem:[#allocation9 + $0xee0] sm:$0xff]
    %v8518 = vld [vmem:[#allocation9 + $0xee8] sm:$0xff]
    %v8519 = vld [vmem:[#allocation9 + $0xef0] sm:$0xff]
    %v8520 = vld [vmem:[#allocation9 + $0xef8] sm:$0xff]
    %v8521 = vld [vmem:[#allocation9 + $0xf00] sm:$0xff]
    %v8522 = vld [vmem:[#allocation9 + $0xf08] sm:$0xff]
    %v8523 = vld [vmem:[#allocation9 + $0xf10] sm:$0xff]
    %v8524 = vld [vmem:[#allocation9 + $0xf18] sm:$0xff]
    %v8525 = vld [vmem:[#allocation9 + $0xf20] sm:$0xff]
    %v8526 = vld [vmem:[#allocation9 + $0xf28] sm:$0xff]
    %v8527 = vld [vmem:[#allocation9 + $0xf30] sm:$0xff]
    %v8528 = vld [vmem:[#allocation9 + $0xf38] sm:$0xff]
    %v8529 = vld [vmem:[#allocation9 + $0xf40] sm:$0xff]
    %v8530 = vld [vmem:[#allocation9 + $0xf48] sm:$0xff]
    %v8531 = vld [vmem:[#allocation9 + $0xf50] sm:$0xff]
    %v8532 = vld [vmem:[#allocation9 + $0xf58] sm:$0xff]
    %v8533 = vld [vmem:[#allocation9 + $0xf60] sm:$0xff]
    %v8534 = vld [vmem:[#allocation9 + $0xf68] sm:$0xff]
    %v8535 = vld [vmem:[#allocation9 + $0xf70] sm:$0xff]
    %v8536 = vld [vmem:[#allocation9 + $0xf78] sm:$0xff]
    %v8537 = vld [vmem:[#allocation9 + $0xf80] sm:$0xff]
    %v8538 = vld [vmem:[#allocation9 + $0xf88] sm:$0xff]
    %v8539 = vld [vmem:[#allocation9 + $0xf90] sm:$0xff]
    %v8540 = vld [vmem:[#allocation9 + $0xf98] sm:$0xff]
    %v8541 = vld [vmem:[#allocation9 + $0xfa0] sm:$0xff]
    %v8542 = vld [vmem:[#allocation9 + $0xfa8] sm:$0xff]
    %v8543 = vld [vmem:[#allocation9 + $0xfb0] sm:$0xff]
    %v8544 = vld [vmem:[#allocation9 + $0xfb8] sm:$0xff]
    %v8545 = vld [vmem:[#allocation9 + $0xfc0] sm:$0xff]
    %v8546 = vld [vmem:[#allocation9 + $0xfc8] sm:$0xff]
    %v8547 = vld [vmem:[#allocation9 + $0xfd0] sm:$0xff]
    %v8548 = vld [vmem:[#allocation9 + $0xfd8] sm:$0xff]
    %v8549 = vld [vmem:[#allocation9 + $0xfe0] sm:$0xff]
    %v8550 = vld [vmem:[#allocation9 + $0xfe8] sm:$0xff]
    %v8551 = vld [vmem:[#allocation9 + $0xff0] sm:$0xff]
    %v8552 = vld [vmem:[#allocation9 + $0xff8] sm:$0xff]
    %v8553 = vld [vmem:[#allocation10] sm:$0xff]
    %v8555 = vperm.slane %v8553, 0
    %v8556 = vperm.slane %v8553, 1
    %v8557 = vperm.slane %v8553, 2
    %v8558 = vperm.slane %v8553, 3
    %v8559 = vperm.slane %v8553, 4
    %v8560 = vperm.slane %v8553, 5
    %v8561 = vperm.slane %v8553, 6
    %v8562 = vperm.slane %v8553, 7
    %v9083 = vunpack.c.l.b16 %v8041
    %v9084 = vunpack.c.h.b16 %v8041
    %v9085 = vunpack.c.l.b16 %v8042
    %v9086 = vunpack.c.h.b16 %v8042
    %v9087 = vunpack.c.l.b16 %v8043
    %v9088 = vunpack.c.h.b16 %v8043
    %v9089 = vunpack.c.l.b16 %v8044
    %v9090 = vunpack.c.h.b16 %v8044
    %v9091 = vunpack.c.l.b16 %v8045
    %v9092 = vunpack.c.h.b16 %v8045
    %v9093 = vunpack.c.l.b16 %v8046
    %v9094 = vunpack.c.h.b16 %v8046
    %v9095 = vunpack.c.l.b16 %v8047
    %v9096 = vunpack.c.h.b16 %v8047
    %v9097 = vunpack.c.l.b16 %v8048
    %v9098 = vunpack.c.h.b16 %v8048
    %v9099 = vunpack.c.l.b16 %v8049
    %v9100 = vunpack.c.h.b16 %v8049
    %v9101 = vunpack.c.l.b16 %v8050
    %v9102 = vunpack.c.h.b16 %v8050
    %v9103 = vunpack.c.l.b16 %v8051
    %v9104 = vunpack.c.h.b16 %v8051
    %v9105 = vunpack.c.l.b16 %v8052
    %v9106 = vunpack.c.h.b16 %v8052
    %v9107 = vunpack.c.l.b16 %v8053
    %v9108 = vunpack.c.h.b16 %v8053
    %v9109 = vunpack.c.l.b16 %v8054
    %v9110 = vunpack.c.h.b16 %v8054
    %v9111 = vunpack.c.l.b16 %v8055
    %v9112 = vunpack.c.h.b16 %v8055
    %v9113 = vunpack.c.l.b16 %v8056
    %v9114 = vunpack.c.h.b16 %v8056
    %v9115 = vunpack.c.l.b16 %v8057
    %v9116 = vunpack.c.h.b16 %v8057
    %v9117 = vunpack.c.l.b16 %v8058
    %v9118 = vunpack.c.h.b16 %v8058
    %v9119 = vunpack.c.l.b16 %v8059
    %v9120 = vunpack.c.h.b16 %v8059
    %v9121 = vunpack.c.l.b16 %v8060
    %v9122 = vunpack.c.h.b16 %v8060
    %v9123 = vunpack.c.l.b16 %v8061
    %v9124 = vunpack.c.h.b16 %v8061
    %v9125 = vunpack.c.l.b16 %v8062
    %v9126 = vunpack.c.h.b16 %v8062
    %v9127 = vunpack.c.l.b16 %v8063
    %v9128 = vunpack.c.h.b16 %v8063
    %v9129 = vunpack.c.l.b16 %v8064
    %v9130 = vunpack.c.h.b16 %v8064
    %v9131 = vunpack.c.l.b16 %v8065
    %v9132 = vunpack.c.h.b16 %v8065
    %v9133 = vunpack.c.l.b16 %v8066
    %v9134 = vunpack.c.h.b16 %v8066
    %v9135 = vunpack.c.l.b16 %v8067
    %v9136 = vunpack.c.h.b16 %v8067
    %v9137 = vunpack.c.l.b16 %v8068
    %v9138 = vunpack.c.h.b16 %v8068
    %v9139 = vunpack.c.l.b16 %v8069
    %v9140 = vunpack.c.h.b16 %v8069
    %v9141 = vunpack.c.l.b16 %v8070
    %v9142 = vunpack.c.h.b16 %v8070
    %v9143 = vunpack.c.l.b16 %v8071
    %v9144 = vunpack.c.h.b16 %v8071
    %v9145 = vunpack.c.l.b16 %v8072
    %v9146 = vunpack.c.h.b16 %v8072
    %v9147 = vunpack.c.l.b16 %v8073
    %v9148 = vunpack.c.h.b16 %v8073
    %v9149 = vunpack.c.l.b16 %v8074
    %v9150 = vunpack.c.h.b16 %v8074
    %v9151 = vunpack.c.l.b16 %v8075
    %v9152 = vunpack.c.h.b16 %v8075
    %v9153 = vunpack.c.l.b16 %v8076
    %v9154 = vunpack.c.h.b16 %v8076
    %v9155 = vunpack.c.l.b16 %v8077
    %v9156 = vunpack.c.h.b16 %v8077
    %v9157 = vunpack.c.l.b16 %v8078
    %v9158 = vunpack.c.h.b16 %v8078
    %v9159 = vunpack.c.l.b16 %v8079
    %v9160 = vunpack.c.h.b16 %v8079
    %v9161 = vunpack.c.l.b16 %v8080
    %v9162 = vunpack.c.h.b16 %v8080
    %v9163 = vunpack.c.l.b16 %v8081
    %v9164 = vunpack.c.h.b16 %v8081
    %v9165 = vunpack.c.l.b16 %v8082
    %v9166 = vunpack.c.h.b16 %v8082
    %v9167 = vunpack.c.l.b16 %v8083
    %v9168 = vunpack.c.h.b16 %v8083
    %v9169 = vunpack.c.l.b16 %v8084
    %v9170 = vunpack.c.h.b16 %v8084
    %v9171 = vunpack.c.l.b16 %v8085
    %v9172 = vunpack.c.h.b16 %v8085
    %v9173 = vunpack.c.l.b16 %v8086
    %v9174 = vunpack.c.h.b16 %v8086
    %v9175 = vunpack.c.l.b16 %v8087
    %v9176 = vunpack.c.h.b16 %v8087
    %v9177 = vunpack.c.l.b16 %v8088
    %v9178 = vunpack.c.h.b16 %v8088
    %v9179 = vunpack.c.l.b16 %v8089
    %v9180 = vunpack.c.h.b16 %v8089
    %v9181 = vunpack.c.l.b16 %v8090
    %v9182 = vunpack.c.h.b16 %v8090
    %v9183 = vunpack.c.l.b16 %v8091
    %v9184 = vunpack.c.h.b16 %v8091
    %v9185 = vunpack.c.l.b16 %v8092
    %v9186 = vunpack.c.h.b16 %v8092
    %v9187 = vunpack.c.l.b16 %v8093
    %v9188 = vunpack.c.h.b16 %v8093
    %v9189 = vunpack.c.l.b16 %v8094
    %v9190 = vunpack.c.h.b16 %v8094
    %v9191 = vunpack.c.l.b16 %v8095
    %v9192 = vunpack.c.h.b16 %v8095
    %v9193 = vunpack.c.l.b16 %v8096
    %v9194 = vunpack.c.h.b16 %v8096
    %v9195 = vunpack.c.l.b16 %v8097
    %v9196 = vunpack.c.h.b16 %v8097
    %v9197 = vunpack.c.l.b16 %v8098
    %v9198 = vunpack.c.h.b16 %v8098
    %v9199 = vunpack.c.l.b16 %v8099
    %v9200 = vunpack.c.h.b16 %v8099
    %v9201 = vunpack.c.l.b16 %v8100
    %v9202 = vunpack.c.h.b16 %v8100
    %v9203 = vunpack.c.l.b16 %v8101
    %v9204 = vunpack.c.h.b16 %v8101
    %v9205 = vunpack.c.l.b16 %v8102
    %v9206 = vunpack.c.h.b16 %v8102
    %v9207 = vunpack.c.l.b16 %v8103
    %v9208 = vunpack.c.h.b16 %v8103
    %v9209 = vunpack.c.l.b16 %v8104
    %v9210 = vunpack.c.h.b16 %v8104
    %v9211 = vunpack.c.l.b16 %v8105
    %v9212 = vunpack.c.h.b16 %v8105
    %v9213 = vunpack.c.l.b16 %v8106
    %v9214 = vunpack.c.h.b16 %v8106
    %v9215 = vunpack.c.l.b16 %v8107
    %v9216 = vunpack.c.h.b16 %v8107
    %v9217 = vunpack.c.l.b16 %v8108
    %v9218 = vunpack.c.h.b16 %v8108
    %v9219 = vunpack.c.l.b16 %v8109
    %v9220 = vunpack.c.h.b16 %v8109
    %v9221 = vunpack.c.l.b16 %v8110
    %v9222 = vunpack.c.h.b16 %v8110
    %v9223 = vunpack.c.l.b16 %v8111
    %v9224 = vunpack.c.h.b16 %v8111
    %v9225 = vunpack.c.l.b16 %v8112
    %v9226 = vunpack.c.h.b16 %v8112
    %v9227 = vunpack.c.l.b16 %v8113
    %v9228 = vunpack.c.h.b16 %v8113
    %v9229 = vunpack.c.l.b16 %v8114
    %v9230 = vunpack.c.h.b16 %v8114
    %v9231 = vunpack.c.l.b16 %v8115
    %v9232 = vunpack.c.h.b16 %v8115
    %v9233 = vunpack.c.l.b16 %v8116
    %v9234 = vunpack.c.h.b16 %v8116
    %v9235 = vunpack.c.l.b16 %v8117
    %v9236 = vunpack.c.h.b16 %v8117
    %v9237 = vunpack.c.l.b16 %v8118
    %v9238 = vunpack.c.h.b16 %v8118
    %v9239 = vunpack.c.l.b16 %v8119
    %v9240 = vunpack.c.h.b16 %v8119
    %v9241 = vunpack.c.l.b16 %v8120
    %v9242 = vunpack.c.h.b16 %v8120
    %v9243 = vunpack.c.l.b16 %v8121
    %v9244 = vunpack.c.h.b16 %v8121
    %v9245 = vunpack.c.l.b16 %v8122
    %v9246 = vunpack.c.h.b16 %v8122
    %v9247 = vunpack.c.l.b16 %v8123
    %v9248 = vunpack.c.h.b16 %v8123
    %v9249 = vunpack.c.l.b16 %v8124
    %v9250 = vunpack.c.h.b16 %v8124
    %v9251 = vunpack.c.l.b16 %v8125
    %v9252 = vunpack.c.h.b16 %v8125
    %v9253 = vunpack.c.l.b16 %v8126
    %v9254 = vunpack.c.h.b16 %v8126
    %v9255 = vunpack.c.l.b16 %v8127
    %v9256 = vunpack.c.h.b16 %v8127
    %v9257 = vunpack.c.l.b16 %v8128
    %v9258 = vunpack.c.h.b16 %v8128
    %v9259 = vunpack.c.l.b16 %v8129
    %v9260 = vunpack.c.h.b16 %v8129
    %v9261 = vunpack.c.l.b16 %v8130
    %v9262 = vunpack.c.h.b16 %v8130
    %v9263 = vunpack.c.l.b16 %v8131
    %v9264 = vunpack.c.h.b16 %v8131
    %v9265 = vunpack.c.l.b16 %v8132
    %v9266 = vunpack.c.h.b16 %v8132
    %v9267 = vunpack.c.l.b16 %v8133
    %v9268 = vunpack.c.h.b16 %v8133
    %v9269 = vunpack.c.l.b16 %v8134
    %v9270 = vunpack.c.h.b16 %v8134
    %v9271 = vunpack.c.l.b16 %v8135
    %v9272 = vunpack.c.h.b16 %v8135
    %v9273 = vunpack.c.l.b16 %v8136
    %v9274 = vunpack.c.h.b16 %v8136
    %v9275 = vunpack.c.l.b16 %v8137
    %v9276 = vunpack.c.h.b16 %v8137
    %v9277 = vunpack.c.l.b16 %v8138
    %v9278 = vunpack.c.h.b16 %v8138
    %v9279 = vunpack.c.l.b16 %v8139
    %v9280 = vunpack.c.h.b16 %v8139
    %v9281 = vunpack.c.l.b16 %v8140
    %v9282 = vunpack.c.h.b16 %v8140
    %v9283 = vunpack.c.l.b16 %v8141
    %v9284 = vunpack.c.h.b16 %v8141
    %v9285 = vunpack.c.l.b16 %v8142
    %v9286 = vunpack.c.h.b16 %v8142
    %v9287 = vunpack.c.l.b16 %v8143
    %v9288 = vunpack.c.h.b16 %v8143
    %v9289 = vunpack.c.l.b16 %v8144
    %v9290 = vunpack.c.h.b16 %v8144
    %v9291 = vunpack.c.l.b16 %v8145
    %v9292 = vunpack.c.h.b16 %v8145
    %v9293 = vunpack.c.l.b16 %v8146
    %v9294 = vunpack.c.h.b16 %v8146
    %v9295 = vunpack.c.l.b16 %v8147
    %v9296 = vunpack.c.h.b16 %v8147
    %v9297 = vunpack.c.l.b16 %v8148
    %v9298 = vunpack.c.h.b16 %v8148
    %v9299 = vunpack.c.l.b16 %v8149
    %v9300 = vunpack.c.h.b16 %v8149
    %v9301 = vunpack.c.l.b16 %v8150
    %v9302 = vunpack.c.h.b16 %v8150
    %v9303 = vunpack.c.l.b16 %v8151
    %v9304 = vunpack.c.h.b16 %v8151
    %v9305 = vunpack.c.l.b16 %v8152
    %v9306 = vunpack.c.h.b16 %v8152
    %v9307 = vunpack.c.l.b16 %v8153
    %v9308 = vunpack.c.h.b16 %v8153
    %v9309 = vunpack.c.l.b16 %v8154
    %v9310 = vunpack.c.h.b16 %v8154
    %v9311 = vunpack.c.l.b16 %v8155
    %v9312 = vunpack.c.h.b16 %v8155
    %v9313 = vunpack.c.l.b16 %v8156
    %v9314 = vunpack.c.h.b16 %v8156
    %v9315 = vunpack.c.l.b16 %v8157
    %v9316 = vunpack.c.h.b16 %v8157
    %v9317 = vunpack.c.l.b16 %v8158
    %v9318 = vunpack.c.h.b16 %v8158
    %v9319 = vunpack.c.l.b16 %v8159
    %v9320 = vunpack.c.h.b16 %v8159
    %v9321 = vunpack.c.l.b16 %v8160
    %v9322 = vunpack.c.h.b16 %v8160
    %v9323 = vunpack.c.l.b16 %v8161
    %v9324 = vunpack.c.h.b16 %v8161
    %v9325 = vunpack.c.l.b16 %v8162
    %v9326 = vunpack.c.h.b16 %v8162
    %v9327 = vunpack.c.l.b16 %v8163
    %v9328 = vunpack.c.h.b16 %v8163
    %v9329 = vunpack.c.l.b16 %v8164
    %v9330 = vunpack.c.h.b16 %v8164
    %v9331 = vunpack.c.l.b16 %v8165
    %v9332 = vunpack.c.h.b16 %v8165
    %v9333 = vunpack.c.l.b16 %v8166
    %v9334 = vunpack.c.h.b16 %v8166
    %v9335 = vunpack.c.l.b16 %v8167
    %v9336 = vunpack.c.h.b16 %v8167
    %v9337 = vunpack.c.l.b16 %v8168
    %v9338 = vunpack.c.h.b16 %v8168
    %v9339 = vunpack.c.l.b16 %v8169
    %v9340 = vunpack.c.h.b16 %v8169
    %v9341 = vunpack.c.l.b16 %v8170
    %v9342 = vunpack.c.h.b16 %v8170
    %v9343 = vunpack.c.l.b16 %v8171
    %v9344 = vunpack.c.h.b16 %v8171
    %v9345 = vunpack.c.l.b16 %v8172
    %v9346 = vunpack.c.h.b16 %v8172
    %v9347 = vunpack.c.l.b16 %v8173
    %v9348 = vunpack.c.h.b16 %v8173
    %v9349 = vunpack.c.l.b16 %v8174
    %v9350 = vunpack.c.h.b16 %v8174
    %v9351 = vunpack.c.l.b16 %v8175
    %v9352 = vunpack.c.h.b16 %v8175
    %v9353 = vunpack.c.l.b16 %v8176
    %v9354 = vunpack.c.h.b16 %v8176
    %v9355 = vunpack.c.l.b16 %v8177
    %v9356 = vunpack.c.h.b16 %v8177
    %v9357 = vunpack.c.l.b16 %v8178
    %v9358 = vunpack.c.h.b16 %v8178
    %v9359 = vunpack.c.l.b16 %v8179
    %v9360 = vunpack.c.h.b16 %v8179
    %v9361 = vunpack.c.l.b16 %v8180
    %v9362 = vunpack.c.h.b16 %v8180
    %v9363 = vunpack.c.l.b16 %v8181
    %v9364 = vunpack.c.h.b16 %v8181
    %v9365 = vunpack.c.l.b16 %v8182
    %v9366 = vunpack.c.h.b16 %v8182
    %v9367 = vunpack.c.l.b16 %v8183
    %v9368 = vunpack.c.h.b16 %v8183
    %v9369 = vunpack.c.l.b16 %v8184
    %v9370 = vunpack.c.h.b16 %v8184
    %v9371 = vunpack.c.l.b16 %v8185
    %v9372 = vunpack.c.h.b16 %v8185
    %v9373 = vunpack.c.l.b16 %v8186
    %v9374 = vunpack.c.h.b16 %v8186
    %v9375 = vunpack.c.l.b16 %v8187
    %v9376 = vunpack.c.h.b16 %v8187
    %v9377 = vunpack.c.l.b16 %v8188
    %v9378 = vunpack.c.h.b16 %v8188
    %v9379 = vunpack.c.l.b16 %v8189
    %v9380 = vunpack.c.h.b16 %v8189
    %v9381 = vunpack.c.l.b16 %v8190
    %v9382 = vunpack.c.h.b16 %v8190
    %v9383 = vunpack.c.l.b16 %v8191
    %v9384 = vunpack.c.h.b16 %v8191
    %v9385 = vunpack.c.l.b16 %v8192
    %v9386 = vunpack.c.h.b16 %v8192
    %v9387 = vunpack.c.l.b16 %v8193
    %v9388 = vunpack.c.h.b16 %v8193
    %v9389 = vunpack.c.l.b16 %v8194
    %v9390 = vunpack.c.h.b16 %v8194
    %v9391 = vunpack.c.l.b16 %v8195
    %v9392 = vunpack.c.h.b16 %v8195
    %v9393 = vunpack.c.l.b16 %v8196
    %v9394 = vunpack.c.h.b16 %v8196
    %v9395 = vunpack.c.l.b16 %v8197
    %v9396 = vunpack.c.h.b16 %v8197
    %v9397 = vunpack.c.l.b16 %v8198
    %v9398 = vunpack.c.h.b16 %v8198
    %v9399 = vunpack.c.l.b16 %v8199
    %v9400 = vunpack.c.h.b16 %v8199
    %v9401 = vunpack.c.l.b16 %v8200
    %v9402 = vunpack.c.h.b16 %v8200
    %v9403 = vunpack.c.l.b16 %v8201
    %v9404 = vunpack.c.h.b16 %v8201
    %v9405 = vunpack.c.l.b16 %v8202
    %v9406 = vunpack.c.h.b16 %v8202
    %v9407 = vunpack.c.l.b16 %v8203
    %v9408 = vunpack.c.h.b16 %v8203
    %v9409 = vunpack.c.l.b16 %v8204
    %v9410 = vunpack.c.h.b16 %v8204
    %v9411 = vunpack.c.l.b16 %v8205
    %v9412 = vunpack.c.h.b16 %v8205
    %v9413 = vunpack.c.l.b16 %v8206
    %v9414 = vunpack.c.h.b16 %v8206
    %v9415 = vunpack.c.l.b16 %v8207
    %v9416 = vunpack.c.h.b16 %v8207
    %v9417 = vunpack.c.l.b16 %v8208
    %v9418 = vunpack.c.h.b16 %v8208
    %v9419 = vunpack.c.l.b16 %v8209
    %v9420 = vunpack.c.h.b16 %v8209
    %v9421 = vunpack.c.l.b16 %v8210
    %v9422 = vunpack.c.h.b16 %v8210
    %v9423 = vunpack.c.l.b16 %v8211
    %v9424 = vunpack.c.h.b16 %v8211
    %v9425 = vunpack.c.l.b16 %v8212
    %v9426 = vunpack.c.h.b16 %v8212
    %v9427 = vunpack.c.l.b16 %v8213
    %v9428 = vunpack.c.h.b16 %v8213
    %v9429 = vunpack.c.l.b16 %v8214
    %v9430 = vunpack.c.h.b16 %v8214
    %v9431 = vunpack.c.l.b16 %v8215
    %v9432 = vunpack.c.h.b16 %v8215
    %v9433 = vunpack.c.l.b16 %v8216
    %v9434 = vunpack.c.h.b16 %v8216
    %v9435 = vunpack.c.l.b16 %v8217
    %v9436 = vunpack.c.h.b16 %v8217
    %v9437 = vunpack.c.l.b16 %v8218
    %v9438 = vunpack.c.h.b16 %v8218
    %v9439 = vunpack.c.l.b16 %v8219
    %v9440 = vunpack.c.h.b16 %v8219
    %v9441 = vunpack.c.l.b16 %v8220
    %v9442 = vunpack.c.h.b16 %v8220
    %v9443 = vunpack.c.l.b16 %v8221
    %v9444 = vunpack.c.h.b16 %v8221
    %v9445 = vunpack.c.l.b16 %v8222
    %v9446 = vunpack.c.h.b16 %v8222
    %v9447 = vunpack.c.l.b16 %v8223
    %v9448 = vunpack.c.h.b16 %v8223
    %v9449 = vunpack.c.l.b16 %v8224
    %v9450 = vunpack.c.h.b16 %v8224
    %v9451 = vunpack.c.l.b16 %v8225
    %v9452 = vunpack.c.h.b16 %v8225
    %v9453 = vunpack.c.l.b16 %v8226
    %v9454 = vunpack.c.h.b16 %v8226
    %v9455 = vunpack.c.l.b16 %v8227
    %v9456 = vunpack.c.h.b16 %v8227
    %v9457 = vunpack.c.l.b16 %v8228
    %v9458 = vunpack.c.h.b16 %v8228
    %v9459 = vunpack.c.l.b16 %v8229
    %v9460 = vunpack.c.h.b16 %v8229
    %v9461 = vunpack.c.l.b16 %v8230
    %v9462 = vunpack.c.h.b16 %v8230
    %v9463 = vunpack.c.l.b16 %v8231
    %v9464 = vunpack.c.h.b16 %v8231
    %v9465 = vunpack.c.l.b16 %v8232
    %v9466 = vunpack.c.h.b16 %v8232
    %v9467 = vunpack.c.l.b16 %v8233
    %v9468 = vunpack.c.h.b16 %v8233
    %v9469 = vunpack.c.l.b16 %v8234
    %v9470 = vunpack.c.h.b16 %v8234
    %v9471 = vunpack.c.l.b16 %v8235
    %v9472 = vunpack.c.h.b16 %v8235
    %v9473 = vunpack.c.l.b16 %v8236
    %v9474 = vunpack.c.h.b16 %v8236
    %v9475 = vunpack.c.l.b16 %v8237
    %v9476 = vunpack.c.h.b16 %v8237
    %v9477 = vunpack.c.l.b16 %v8238
    %v9478 = vunpack.c.h.b16 %v8238
    %v9479 = vunpack.c.l.b16 %v8239
    %v9480 = vunpack.c.h.b16 %v8239
    %v9481 = vunpack.c.l.b16 %v8240
    %v9482 = vunpack.c.h.b16 %v8240
    %v9483 = vunpack.c.l.b16 %v8241
    %v9484 = vunpack.c.h.b16 %v8241
    %v9485 = vunpack.c.l.b16 %v8242
    %v9486 = vunpack.c.h.b16 %v8242
    %v9487 = vunpack.c.l.b16 %v8243
    %v9488 = vunpack.c.h.b16 %v8243
    %v9489 = vunpack.c.l.b16 %v8244
    %v9490 = vunpack.c.h.b16 %v8244
    %v9491 = vunpack.c.l.b16 %v8245
    %v9492 = vunpack.c.h.b16 %v8245
    %v9493 = vunpack.c.l.b16 %v8246
    %v9494 = vunpack.c.h.b16 %v8246
    %v9495 = vunpack.c.l.b16 %v8247
    %v9496 = vunpack.c.h.b16 %v8247
    %v9497 = vunpack.c.l.b16 %v8248
    %v9498 = vunpack.c.h.b16 %v8248
    %v9499 = vunpack.c.l.b16 %v8249
    %v9500 = vunpack.c.h.b16 %v8249
    %v9501 = vunpack.c.l.b16 %v8250
    %v9502 = vunpack.c.h.b16 %v8250
    %v9503 = vunpack.c.l.b16 %v8251
    %v9504 = vunpack.c.h.b16 %v8251
    %v9505 = vunpack.c.l.b16 %v8252
    %v9506 = vunpack.c.h.b16 %v8252
    %v9507 = vunpack.c.l.b16 %v8253
    %v9508 = vunpack.c.h.b16 %v8253
    %v9509 = vunpack.c.l.b16 %v8254
    %v9510 = vunpack.c.h.b16 %v8254
    %v9511 = vunpack.c.l.b16 %v8255
    %v9512 = vunpack.c.h.b16 %v8255
    %v9513 = vunpack.c.l.b16 %v8256
    %v9514 = vunpack.c.h.b16 %v8256
    %v9515 = vunpack.c.l.b16 %v8257
    %v9516 = vunpack.c.h.b16 %v8257
    %v9517 = vunpack.c.l.b16 %v8258
    %v9518 = vunpack.c.h.b16 %v8258
    %v9519 = vunpack.c.l.b16 %v8259
    %v9520 = vunpack.c.h.b16 %v8259
    %v9521 = vunpack.c.l.b16 %v8260
    %v9522 = vunpack.c.h.b16 %v8260
    %v9523 = vunpack.c.l.b16 %v8261
    %v9524 = vunpack.c.h.b16 %v8261
    %v9525 = vunpack.c.l.b16 %v8262
    %v9526 = vunpack.c.h.b16 %v8262
    %v9527 = vunpack.c.l.b16 %v8263
    %v9528 = vunpack.c.h.b16 %v8263
    %v9529 = vunpack.c.l.b16 %v8264
    %v9530 = vunpack.c.h.b16 %v8264
    %v9531 = vunpack.c.l.b16 %v8265
    %v9532 = vunpack.c.h.b16 %v8265
    %v9533 = vunpack.c.l.b16 %v8266
    %v9534 = vunpack.c.h.b16 %v8266
    %v9535 = vunpack.c.l.b16 %v8267
    %v9536 = vunpack.c.h.b16 %v8267
    %v9537 = vunpack.c.l.b16 %v8268
    %v9538 = vunpack.c.h.b16 %v8268
    %v9539 = vunpack.c.l.b16 %v8269
    %v9540 = vunpack.c.h.b16 %v8269
    %v9541 = vunpack.c.l.b16 %v8270
    %v9542 = vunpack.c.h.b16 %v8270
    %v9543 = vunpack.c.l.b16 %v8271
    %v9544 = vunpack.c.h.b16 %v8271
    %v9545 = vunpack.c.l.b16 %v8272
    %v9546 = vunpack.c.h.b16 %v8272
    %v9547 = vunpack.c.l.b16 %v8273
    %v9548 = vunpack.c.h.b16 %v8273
    %v9549 = vunpack.c.l.b16 %v8274
    %v9550 = vunpack.c.h.b16 %v8274
    %v9551 = vunpack.c.l.b16 %v8275
    %v9552 = vunpack.c.h.b16 %v8275
    %v9553 = vunpack.c.l.b16 %v8276
    %v9554 = vunpack.c.h.b16 %v8276
    %v9555 = vunpack.c.l.b16 %v8277
    %v9556 = vunpack.c.h.b16 %v8277
    %v9557 = vunpack.c.l.b16 %v8278
    %v9558 = vunpack.c.h.b16 %v8278
    %v9559 = vunpack.c.l.b16 %v8279
    %v9560 = vunpack.c.h.b16 %v8279
    %v9561 = vunpack.c.l.b16 %v8280
    %v9562 = vunpack.c.h.b16 %v8280
    %v9563 = vunpack.c.l.b16 %v8281
    %v9564 = vunpack.c.h.b16 %v8281
    %v9565 = vunpack.c.l.b16 %v8282
    %v9566 = vunpack.c.h.b16 %v8282
    %v9567 = vunpack.c.l.b16 %v8283
    %v9568 = vunpack.c.h.b16 %v8283
    %v9569 = vunpack.c.l.b16 %v8284
    %v9570 = vunpack.c.h.b16 %v8284
    %v9571 = vunpack.c.l.b16 %v8285
    %v9572 = vunpack.c.h.b16 %v8285
    %v9573 = vunpack.c.l.b16 %v8286
    %v9574 = vunpack.c.h.b16 %v8286
    %v9575 = vunpack.c.l.b16 %v8287
    %v9576 = vunpack.c.h.b16 %v8287
    %v9577 = vunpack.c.l.b16 %v8288
    %v9578 = vunpack.c.h.b16 %v8288
    %v9579 = vunpack.c.l.b16 %v8289
    %v9580 = vunpack.c.h.b16 %v8289
    %v9581 = vunpack.c.l.b16 %v8290
    %v9582 = vunpack.c.h.b16 %v8290
    %v9583 = vunpack.c.l.b16 %v8291
    %v9584 = vunpack.c.h.b16 %v8291
    %v9585 = vunpack.c.l.b16 %v8292
    %v9586 = vunpack.c.h.b16 %v8292
    %v9587 = vunpack.c.l.b16 %v8293
    %v9588 = vunpack.c.h.b16 %v8293
    %v9589 = vunpack.c.l.b16 %v8294
    %v9590 = vunpack.c.h.b16 %v8294
    %v9591 = vunpack.c.l.b16 %v8295
    %v9592 = vunpack.c.h.b16 %v8295
    %v9593 = vunpack.c.l.b16 %v8296
    %v9594 = vunpack.c.h.b16 %v8296
    %v9595 = vunpack.c.l.b16 %v8297
    %v9596 = vunpack.c.h.b16 %v8297
    %v9597 = vunpack.c.l.b16 %v8298
    %v9598 = vunpack.c.h.b16 %v8298
    %v9599 = vunpack.c.l.b16 %v8299
    %v9600 = vunpack.c.h.b16 %v8299
    %v9601 = vunpack.c.l.b16 %v8300
    %v9602 = vunpack.c.h.b16 %v8300
    %v9603 = vunpack.c.l.b16 %v8301
    %v9604 = vunpack.c.h.b16 %v8301
    %v9605 = vunpack.c.l.b16 %v8302
    %v9606 = vunpack.c.h.b16 %v8302
    %v9607 = vunpack.c.l.b16 %v8303
    %v9608 = vunpack.c.h.b16 %v8303
    %v9609 = vunpack.c.l.b16 %v8304
    %v9610 = vunpack.c.h.b16 %v8304
    %v9611 = vunpack.c.l.b16 %v8305
    %v9612 = vunpack.c.h.b16 %v8305
    %v9613 = vunpack.c.l.b16 %v8306
    %v9614 = vunpack.c.h.b16 %v8306
    %v9615 = vunpack.c.l.b16 %v8307
    %v9616 = vunpack.c.h.b16 %v8307
    %v9617 = vunpack.c.l.b16 %v8308
    %v9618 = vunpack.c.h.b16 %v8308
    %v9619 = vunpack.c.l.b16 %v8309
    %v9620 = vunpack.c.h.b16 %v8309
    %v9621 = vunpack.c.l.b16 %v8310
    %v9622 = vunpack.c.h.b16 %v8310
    %v9623 = vunpack.c.l.b16 %v8311
    %v9624 = vunpack.c.h.b16 %v8311
    %v9625 = vunpack.c.l.b16 %v8312
    %v9626 = vunpack.c.h.b16 %v8312
    %v9627 = vunpack.c.l.b16 %v8313
    %v9628 = vunpack.c.h.b16 %v8313
    %v9629 = vunpack.c.l.b16 %v8314
    %v9630 = vunpack.c.h.b16 %v8314
    %v9631 = vunpack.c.l.b16 %v8315
    %v9632 = vunpack.c.h.b16 %v8315
    %v9633 = vunpack.c.l.b16 %v8316
    %v9634 = vunpack.c.h.b16 %v8316
    %v9635 = vunpack.c.l.b16 %v8317
    %v9636 = vunpack.c.h.b16 %v8317
    %v9637 = vunpack.c.l.b16 %v8318
    %v9638 = vunpack.c.h.b16 %v8318
    %v9639 = vunpack.c.l.b16 %v8319
    %v9640 = vunpack.c.h.b16 %v8319
    %v9641 = vunpack.c.l.b16 %v8320
    %v9642 = vunpack.c.h.b16 %v8320
    %v9643 = vunpack.c.l.b16 %v8321
    %v9644 = vunpack.c.h.b16 %v8321
    %v9645 = vunpack.c.l.b16 %v8322
    %v9646 = vunpack.c.h.b16 %v8322
    %v9647 = vunpack.c.l.b16 %v8323
    %v9648 = vunpack.c.h.b16 %v8323
    %v9649 = vunpack.c.l.b16 %v8324
    %v9650 = vunpack.c.h.b16 %v8324
    %v9651 = vunpack.c.l.b16 %v8325
    %v9652 = vunpack.c.h.b16 %v8325
    %v9653 = vunpack.c.l.b16 %v8326
    %v9654 = vunpack.c.h.b16 %v8326
    %v9655 = vunpack.c.l.b16 %v8327
    %v9656 = vunpack.c.h.b16 %v8327
    %v9657 = vunpack.c.l.b16 %v8328
    %v9658 = vunpack.c.h.b16 %v8328
    %v9659 = vunpack.c.l.b16 %v8329
    %v9660 = vunpack.c.h.b16 %v8329
    %v9661 = vunpack.c.l.b16 %v8330
    %v9662 = vunpack.c.h.b16 %v8330
    %v9663 = vunpack.c.l.b16 %v8331
    %v9664 = vunpack.c.h.b16 %v8331
    %v9665 = vunpack.c.l.b16 %v8332
    %v9666 = vunpack.c.h.b16 %v8332
    %v9667 = vunpack.c.l.b16 %v8333
    %v9668 = vunpack.c.h.b16 %v8333
    %v9669 = vunpack.c.l.b16 %v8334
    %v9670 = vunpack.c.h.b16 %v8334
    %v9671 = vunpack.c.l.b16 %v8335
    %v9672 = vunpack.c.h.b16 %v8335
    %v9673 = vunpack.c.l.b16 %v8336
    %v9674 = vunpack.c.h.b16 %v8336
    %v9675 = vunpack.c.l.b16 %v8337
    %v9676 = vunpack.c.h.b16 %v8337
    %v9677 = vunpack.c.l.b16 %v8338
    %v9678 = vunpack.c.h.b16 %v8338
    %v9679 = vunpack.c.l.b16 %v8339
    %v9680 = vunpack.c.h.b16 %v8339
    %v9681 = vunpack.c.l.b16 %v8340
    %v9682 = vunpack.c.h.b16 %v8340
    %v9683 = vunpack.c.l.b16 %v8341
    %v9684 = vunpack.c.h.b16 %v8341
    %v9685 = vunpack.c.l.b16 %v8342
    %v9686 = vunpack.c.h.b16 %v8342
    %v9687 = vunpack.c.l.b16 %v8343
    %v9688 = vunpack.c.h.b16 %v8343
    %v9689 = vunpack.c.l.b16 %v8344
    %v9690 = vunpack.c.h.b16 %v8344
    %v9691 = vunpack.c.l.b16 %v8345
    %v9692 = vunpack.c.h.b16 %v8345
    %v9693 = vunpack.c.l.b16 %v8346
    %v9694 = vunpack.c.h.b16 %v8346
    %v9695 = vunpack.c.l.b16 %v8347
    %v9696 = vunpack.c.h.b16 %v8347
    %v9697 = vunpack.c.l.b16 %v8348
    %v9698 = vunpack.c.h.b16 %v8348
    %v9699 = vunpack.c.l.b16 %v8349
    %v9700 = vunpack.c.h.b16 %v8349
    %v9701 = vunpack.c.l.b16 %v8350
    %v9702 = vunpack.c.h.b16 %v8350
    %v9703 = vunpack.c.l.b16 %v8351
    %v9704 = vunpack.c.h.b16 %v8351
    %v9705 = vunpack.c.l.b16 %v8352
    %v9706 = vunpack.c.h.b16 %v8352
    %v9707 = vunpack.c.l.b16 %v8353
    %v9708 = vunpack.c.h.b16 %v8353
    %v9709 = vunpack.c.l.b16 %v8354
    %v9710 = vunpack.c.h.b16 %v8354
    %v9711 = vunpack.c.l.b16 %v8355
    %v9712 = vunpack.c.h.b16 %v8355
    %v9713 = vunpack.c.l.b16 %v8356
    %v9714 = vunpack.c.h.b16 %v8356
    %v9715 = vunpack.c.l.b16 %v8357
    %v9716 = vunpack.c.h.b16 %v8357
    %v9717 = vunpack.c.l.b16 %v8358
    %v9718 = vunpack.c.h.b16 %v8358
    %v9719 = vunpack.c.l.b16 %v8359
    %v9720 = vunpack.c.h.b16 %v8359
    %v9721 = vunpack.c.l.b16 %v8360
    %v9722 = vunpack.c.h.b16 %v8360
    %v9723 = vunpack.c.l.b16 %v8361
    %v9724 = vunpack.c.h.b16 %v8361
    %v9725 = vunpack.c.l.b16 %v8362
    %v9726 = vunpack.c.h.b16 %v8362
    %v9727 = vunpack.c.l.b16 %v8363
    %v9728 = vunpack.c.h.b16 %v8363
    %v9729 = vunpack.c.l.b16 %v8364
    %v9730 = vunpack.c.h.b16 %v8364
    %v9731 = vunpack.c.l.b16 %v8365
    %v9732 = vunpack.c.h.b16 %v8365
    %v9733 = vunpack.c.l.b16 %v8366
    %v9734 = vunpack.c.h.b16 %v8366
    %v9735 = vunpack.c.l.b16 %v8367
    %v9736 = vunpack.c.h.b16 %v8367
    %v9737 = vunpack.c.l.b16 %v8368
    %v9738 = vunpack.c.h.b16 %v8368
    %v9739 = vunpack.c.l.b16 %v8369
    %v9740 = vunpack.c.h.b16 %v8369
    %v9741 = vunpack.c.l.b16 %v8370
    %v9742 = vunpack.c.h.b16 %v8370
    %v9743 = vunpack.c.l.b16 %v8371
    %v9744 = vunpack.c.h.b16 %v8371
    %v9745 = vunpack.c.l.b16 %v8372
    %v9746 = vunpack.c.h.b16 %v8372
    %v9747 = vunpack.c.l.b16 %v8373
    %v9748 = vunpack.c.h.b16 %v8373
    %v9749 = vunpack.c.l.b16 %v8374
    %v9750 = vunpack.c.h.b16 %v8374
    %v9751 = vunpack.c.l.b16 %v8375
    %v9752 = vunpack.c.h.b16 %v8375
    %v9753 = vunpack.c.l.b16 %v8376
    %v9754 = vunpack.c.h.b16 %v8376
    %v9755 = vunpack.c.l.b16 %v8377
    %v9756 = vunpack.c.h.b16 %v8377
    %v9757 = vunpack.c.l.b16 %v8378
    %v9758 = vunpack.c.h.b16 %v8378
    %v9759 = vunpack.c.l.b16 %v8379
    %v9760 = vunpack.c.h.b16 %v8379
    %v9761 = vunpack.c.l.b16 %v8380
    %v9762 = vunpack.c.h.b16 %v8380
    %v9763 = vunpack.c.l.b16 %v8381
    %v9764 = vunpack.c.h.b16 %v8381
    %v9765 = vunpack.c.l.b16 %v8382
    %v9766 = vunpack.c.h.b16 %v8382
    %v9767 = vunpack.c.l.b16 %v8383
    %v9768 = vunpack.c.h.b16 %v8383
    %v9769 = vunpack.c.l.b16 %v8384
    %v9770 = vunpack.c.h.b16 %v8384
    %v9771 = vunpack.c.l.b16 %v8385
    %v9772 = vunpack.c.h.b16 %v8385
    %v9773 = vunpack.c.l.b16 %v8386
    %v9774 = vunpack.c.h.b16 %v8386
    %v9775 = vunpack.c.l.b16 %v8387
    %v9776 = vunpack.c.h.b16 %v8387
    %v9777 = vunpack.c.l.b16 %v8388
    %v9778 = vunpack.c.h.b16 %v8388
    %v9779 = vunpack.c.l.b16 %v8389
    %v9780 = vunpack.c.h.b16 %v8389
    %v9781 = vunpack.c.l.b16 %v8390
    %v9782 = vunpack.c.h.b16 %v8390
    %v9783 = vunpack.c.l.b16 %v8391
    %v9784 = vunpack.c.h.b16 %v8391
    %v9785 = vunpack.c.l.b16 %v8392
    %v9786 = vunpack.c.h.b16 %v8392
    %v9787 = vunpack.c.l.b16 %v8393
    %v9788 = vunpack.c.h.b16 %v8393
    %v9789 = vunpack.c.l.b16 %v8394
    %v9790 = vunpack.c.h.b16 %v8394
    %v9791 = vunpack.c.l.b16 %v8395
    %v9792 = vunpack.c.h.b16 %v8395
    %v9793 = vunpack.c.l.b16 %v8396
    %v9794 = vunpack.c.h.b16 %v8396
    %v9795 = vunpack.c.l.b16 %v8397
    %v9796 = vunpack.c.h.b16 %v8397
    %v9797 = vunpack.c.l.b16 %v8398
    %v9798 = vunpack.c.h.b16 %v8398
    %v9799 = vunpack.c.l.b16 %v8399
    %v9800 = vunpack.c.h.b16 %v8399
    %v9801 = vunpack.c.l.b16 %v8400
    %v9802 = vunpack.c.h.b16 %v8400
    %v9803 = vunpack.c.l.b16 %v8401
    %v9804 = vunpack.c.h.b16 %v8401
    %v9805 = vunpack.c.l.b16 %v8402
    %v9806 = vunpack.c.h.b16 %v8402
    %v9807 = vunpack.c.l.b16 %v8403
    %v9808 = vunpack.c.h.b16 %v8403
    %v9809 = vunpack.c.l.b16 %v8404
    %v9810 = vunpack.c.h.b16 %v8404
    %v9811 = vunpack.c.l.b16 %v8405
    %v9812 = vunpack.c.h.b16 %v8405
    %v9813 = vunpack.c.l.b16 %v8406
    %v9814 = vunpack.c.h.b16 %v8406
    %v9815 = vunpack.c.l.b16 %v8407
    %v9816 = vunpack.c.h.b16 %v8407
    %v9817 = vunpack.c.l.b16 %v8408
    %v9818 = vunpack.c.h.b16 %v8408
    %v9819 = vunpack.c.l.b16 %v8409
    %v9820 = vunpack.c.h.b16 %v8409
    %v9821 = vunpack.c.l.b16 %v8410
    %v9822 = vunpack.c.h.b16 %v8410
    %v9823 = vunpack.c.l.b16 %v8411
    %v9824 = vunpack.c.h.b16 %v8411
    %v9825 = vunpack.c.l.b16 %v8412
    %v9826 = vunpack.c.h.b16 %v8412
    %v9827 = vunpack.c.l.b16 %v8413
    %v9828 = vunpack.c.h.b16 %v8413
    %v9829 = vunpack.c.l.b16 %v8414
    %v9830 = vunpack.c.h.b16 %v8414
    %v9831 = vunpack.c.l.b16 %v8415
    %v9832 = vunpack.c.h.b16 %v8415
    %v9833 = vunpack.c.l.b16 %v8416
    %v9834 = vunpack.c.h.b16 %v8416
    %v9835 = vunpack.c.l.b16 %v8417
    %v9836 = vunpack.c.h.b16 %v8417
    %v9837 = vunpack.c.l.b16 %v8418
    %v9838 = vunpack.c.h.b16 %v8418
    %v9839 = vunpack.c.l.b16 %v8419
    %v9840 = vunpack.c.h.b16 %v8419
    %v9841 = vunpack.c.l.b16 %v8420
    %v9842 = vunpack.c.h.b16 %v8420
    %v9843 = vunpack.c.l.b16 %v8421
    %v9844 = vunpack.c.h.b16 %v8421
    %v9845 = vunpack.c.l.b16 %v8422
    %v9846 = vunpack.c.h.b16 %v8422
    %v9847 = vunpack.c.l.b16 %v8423
    %v9848 = vunpack.c.h.b16 %v8423
    %v9849 = vunpack.c.l.b16 %v8424
    %v9850 = vunpack.c.h.b16 %v8424
    %v9851 = vunpack.c.l.b16 %v8425
    %v9852 = vunpack.c.h.b16 %v8425
    %v9853 = vunpack.c.l.b16 %v8426
    %v9854 = vunpack.c.h.b16 %v8426
    %v9855 = vunpack.c.l.b16 %v8427
    %v9856 = vunpack.c.h.b16 %v8427
    %v9857 = vunpack.c.l.b16 %v8428
    %v9858 = vunpack.c.h.b16 %v8428
    %v9859 = vunpack.c.l.b16 %v8429
    %v9860 = vunpack.c.h.b16 %v8429
    %v9861 = vunpack.c.l.b16 %v8430
    %v9862 = vunpack.c.h.b16 %v8430
    %v9863 = vunpack.c.l.b16 %v8431
    %v9864 = vunpack.c.h.b16 %v8431
    %v9865 = vunpack.c.l.b16 %v8432
    %v9866 = vunpack.c.h.b16 %v8432
    %v9867 = vunpack.c.l.b16 %v8433
    %v9868 = vunpack.c.h.b16 %v8433
    %v9869 = vunpack.c.l.b16 %v8434
    %v9870 = vunpack.c.h.b16 %v8434
    %v9871 = vunpack.c.l.b16 %v8435
    %v9872 = vunpack.c.h.b16 %v8435
    %v9873 = vunpack.c.l.b16 %v8436
    %v9874 = vunpack.c.h.b16 %v8436
    %v9875 = vunpack.c.l.b16 %v8437
    %v9876 = vunpack.c.h.b16 %v8437
    %v9877 = vunpack.c.l.b16 %v8438
    %v9878 = vunpack.c.h.b16 %v8438
    %v9879 = vunpack.c.l.b16 %v8439
    %v9880 = vunpack.c.h.b16 %v8439
    %v9881 = vunpack.c.l.b16 %v8440
    %v9882 = vunpack.c.h.b16 %v8440
    %v9883 = vunpack.c.l.b16 %v8441
    %v9884 = vunpack.c.h.b16 %v8441
    %v9885 = vunpack.c.l.b16 %v8442
    %v9886 = vunpack.c.h.b16 %v8442
    %v9887 = vunpack.c.l.b16 %v8443
    %v9888 = vunpack.c.h.b16 %v8443
    %v9889 = vunpack.c.l.b16 %v8444
    %v9890 = vunpack.c.h.b16 %v8444
    %v9891 = vunpack.c.l.b16 %v8445
    %v9892 = vunpack.c.h.b16 %v8445
    %v9893 = vunpack.c.l.b16 %v8446
    %v9894 = vunpack.c.h.b16 %v8446
    %v9895 = vunpack.c.l.b16 %v8447
    %v9896 = vunpack.c.h.b16 %v8447
    %v9897 = vunpack.c.l.b16 %v8448
    %v9898 = vunpack.c.h.b16 %v8448
    %v9899 = vunpack.c.l.b16 %v8449
    %v9900 = vunpack.c.h.b16 %v8449
    %v9901 = vunpack.c.l.b16 %v8450
    %v9902 = vunpack.c.h.b16 %v8450
    %v9903 = vunpack.c.l.b16 %v8451
    %v9904 = vunpack.c.h.b16 %v8451
    %v9905 = vunpack.c.l.b16 %v8452
    %v9906 = vunpack.c.h.b16 %v8452
    %v9907 = vunpack.c.l.b16 %v8453
    %v9908 = vunpack.c.h.b16 %v8453
    %v9909 = vunpack.c.l.b16 %v8454
    %v9910 = vunpack.c.h.b16 %v8454
    %v9911 = vunpack.c.l.b16 %v8455
    %v9912 = vunpack.c.h.b16 %v8455
    %v9913 = vunpack.c.l.b16 %v8456
    %v9914 = vunpack.c.h.b16 %v8456
    %v9915 = vunpack.c.l.b16 %v8457
    %v9916 = vunpack.c.h.b16 %v8457
    %v9917 = vunpack.c.l.b16 %v8458
    %v9918 = vunpack.c.h.b16 %v8458
    %v9919 = vunpack.c.l.b16 %v8459
    %v9920 = vunpack.c.h.b16 %v8459
    %v9921 = vunpack.c.l.b16 %v8460
    %v9922 = vunpack.c.h.b16 %v8460
    %v9923 = vunpack.c.l.b16 %v8461
    %v9924 = vunpack.c.h.b16 %v8461
    %v9925 = vunpack.c.l.b16 %v8462
    %v9926 = vunpack.c.h.b16 %v8462
    %v9927 = vunpack.c.l.b16 %v8463
    %v9928 = vunpack.c.h.b16 %v8463
    %v9929 = vunpack.c.l.b16 %v8464
    %v9930 = vunpack.c.h.b16 %v8464
    %v9931 = vunpack.c.l.b16 %v8465
    %v9932 = vunpack.c.h.b16 %v8465
    %v9933 = vunpack.c.l.b16 %v8466
    %v9934 = vunpack.c.h.b16 %v8466
    %v9935 = vunpack.c.l.b16 %v8467
    %v9936 = vunpack.c.h.b16 %v8467
    %v9937 = vunpack.c.l.b16 %v8468
    %v9938 = vunpack.c.h.b16 %v8468
    %v9939 = vunpack.c.l.b16 %v8469
    %v9940 = vunpack.c.h.b16 %v8469
    %v9941 = vunpack.c.l.b16 %v8470
    %v9942 = vunpack.c.h.b16 %v8470
    %v9943 = vunpack.c.l.b16 %v8471
    %v9944 = vunpack.c.h.b16 %v8471
    %v9945 = vunpack.c.l.b16 %v8472
    %v9946 = vunpack.c.h.b16 %v8472
    %v9947 = vunpack.c.l.b16 %v8473
    %v9948 = vunpack.c.h.b16 %v8473
    %v9949 = vunpack.c.l.b16 %v8474
    %v9950 = vunpack.c.h.b16 %v8474
    %v9951 = vunpack.c.l.b16 %v8475
    %v9952 = vunpack.c.h.b16 %v8475
    %v9953 = vunpack.c.l.b16 %v8476
    %v9954 = vunpack.c.h.b16 %v8476
    %v9955 = vunpack.c.l.b16 %v8477
    %v9956 = vunpack.c.h.b16 %v8477
    %v9957 = vunpack.c.l.b16 %v8478
    %v9958 = vunpack.c.h.b16 %v8478
    %v9959 = vunpack.c.l.b16 %v8479
    %v9960 = vunpack.c.h.b16 %v8479
    %v9961 = vunpack.c.l.b16 %v8480
    %v9962 = vunpack.c.h.b16 %v8480
    %v9963 = vunpack.c.l.b16 %v8481
    %v9964 = vunpack.c.h.b16 %v8481
    %v9965 = vunpack.c.l.b16 %v8482
    %v9966 = vunpack.c.h.b16 %v8482
    %v9967 = vunpack.c.l.b16 %v8483
    %v9968 = vunpack.c.h.b16 %v8483
    %v9969 = vunpack.c.l.b16 %v8484
    %v9970 = vunpack.c.h.b16 %v8484
    %v9971 = vunpack.c.l.b16 %v8485
    %v9972 = vunpack.c.h.b16 %v8485
    %v9973 = vunpack.c.l.b16 %v8486
    %v9974 = vunpack.c.h.b16 %v8486
    %v9975 = vunpack.c.l.b16 %v8487
    %v9976 = vunpack.c.h.b16 %v8487
    %v9977 = vunpack.c.l.b16 %v8488
    %v9978 = vunpack.c.h.b16 %v8488
    %v9979 = vunpack.c.l.b16 %v8489
    %v9980 = vunpack.c.h.b16 %v8489
    %v9981 = vunpack.c.l.b16 %v8490
    %v9982 = vunpack.c.h.b16 %v8490
    %v9983 = vunpack.c.l.b16 %v8491
    %v9984 = vunpack.c.h.b16 %v8491
    %v9985 = vunpack.c.l.b16 %v8492
    %v9986 = vunpack.c.h.b16 %v8492
    %v9987 = vunpack.c.l.b16 %v8493
    %v9988 = vunpack.c.h.b16 %v8493
    %v9989 = vunpack.c.l.b16 %v8494
    %v9990 = vunpack.c.h.b16 %v8494
    %v9991 = vunpack.c.l.b16 %v8495
    %v9992 = vunpack.c.h.b16 %v8495
    %v9993 = vunpack.c.l.b16 %v8496
    %v9994 = vunpack.c.h.b16 %v8496
    %v9995 = vunpack.c.l.b16 %v8497
    %v9996 = vunpack.c.h.b16 %v8497
    %v9997 = vunpack.c.l.b16 %v8498
    %v9998 = vunpack.c.h.b16 %v8498
    %v9999 = vunpack.c.l.b16 %v8499
    %v10000 = vunpack.c.h.b16 %v8499
    %v10001 = vunpack.c.l.b16 %v8500
    %v10002 = vunpack.c.h.b16 %v8500
    %v10003 = vunpack.c.l.b16 %v8501
    %v10004 = vunpack.c.h.b16 %v8501
    %v10005 = vunpack.c.l.b16 %v8502
    %v10006 = vunpack.c.h.b16 %v8502
    %v10007 = vunpack.c.l.b16 %v8503
    %v10008 = vunpack.c.h.b16 %v8503
    %v10009 = vunpack.c.l.b16 %v8504
    %v10010 = vunpack.c.h.b16 %v8504
    %v10011 = vunpack.c.l.b16 %v8505
    %v10012 = vunpack.c.h.b16 %v8505
    %v10013 = vunpack.c.l.b16 %v8506
    %v10014 = vunpack.c.h.b16 %v8506
    %v10015 = vunpack.c.l.b16 %v8507
    %v10016 = vunpack.c.h.b16 %v8507
    %v10017 = vunpack.c.l.b16 %v8508
    %v10018 = vunpack.c.h.b16 %v8508
    %v10019 = vunpack.c.l.b16 %v8509
    %v10020 = vunpack.c.h.b16 %v8509
    %v10021 = vunpack.c.l.b16 %v8510
    %v10022 = vunpack.c.h.b16 %v8510
    %v10023 = vunpack.c.l.b16 %v8511
    %v10024 = vunpack.c.h.b16 %v8511
    %v10025 = vunpack.c.l.b16 %v8512
    %v10026 = vunpack.c.h.b16 %v8512
    %v10027 = vunpack.c.l.b16 %v8513
    %v10028 = vunpack.c.h.b16 %v8513
    %v10029 = vunpack.c.l.b16 %v8514
    %v10030 = vunpack.c.h.b16 %v8514
    %v10031 = vunpack.c.l.b16 %v8515
    %v10032 = vunpack.c.h.b16 %v8515
    %v10033 = vunpack.c.l.b16 %v8516
    %v10034 = vunpack.c.h.b16 %v8516
    %v10035 = vunpack.c.l.b16 %v8517
    %v10036 = vunpack.c.h.b16 %v8517
    %v10037 = vunpack.c.l.b16 %v8518
    %v10038 = vunpack.c.h.b16 %v8518
    %v10039 = vunpack.c.l.b16 %v8519
    %v10040 = vunpack.c.h.b16 %v8519
    %v10041 = vunpack.c.l.b16 %v8520
    %v10042 = vunpack.c.h.b16 %v8520
    %v10043 = vunpack.c.l.b16 %v8521
    %v10044 = vunpack.c.h.b16 %v8521
    %v10045 = vunpack.c.l.b16 %v8522
    %v10046 = vunpack.c.h.b16 %v8522
    %v10047 = vunpack.c.l.b16 %v8523
    %v10048 = vunpack.c.h.b16 %v8523
    %v10049 = vunpack.c.l.b16 %v8524
    %v10050 = vunpack.c.h.b16 %v8524
    %v10051 = vunpack.c.l.b16 %v8525
    %v10052 = vunpack.c.h.b16 %v8525
    %v10053 = vunpack.c.l.b16 %v8526
    %v10054 = vunpack.c.h.b16 %v8526
    %v10055 = vunpack.c.l.b16 %v8527
    %v10056 = vunpack.c.h.b16 %v8527
    %v10057 = vunpack.c.l.b16 %v8528
    %v10058 = vunpack.c.h.b16 %v8528
    %v10059 = vunpack.c.l.b16 %v8529
    %v10060 = vunpack.c.h.b16 %v8529
    %v10061 = vunpack.c.l.b16 %v8530
    %v10062 = vunpack.c.h.b16 %v8530
    %v10063 = vunpack.c.l.b16 %v8531
    %v10064 = vunpack.c.h.b16 %v8531
    %v10065 = vunpack.c.l.b16 %v8532
    %v10066 = vunpack.c.h.b16 %v8532
    %v10067 = vunpack.c.l.b16 %v8533
    %v10068 = vunpack.c.h.b16 %v8533
    %v10069 = vunpack.c.l.b16 %v8534
    %v10070 = vunpack.c.h.b16 %v8534
    %v10071 = vunpack.c.l.b16 %v8535
    %v10072 = vunpack.c.h.b16 %v8535
    %v10073 = vunpack.c.l.b16 %v8536
    %v10074 = vunpack.c.h.b16 %v8536
    %v10075 = vunpack.c.l.b16 %v8537
    %v10076 = vunpack.c.h.b16 %v8537
    %v10077 = vunpack.c.l.b16 %v8538
    %v10078 = vunpack.c.h.b16 %v8538
    %v10079 = vunpack.c.l.b16 %v8539
    %v10080 = vunpack.c.h.b16 %v8539
    %v10081 = vunpack.c.l.b16 %v8540
    %v10082 = vunpack.c.h.b16 %v8540
    %v10083 = vunpack.c.l.b16 %v8541
    %v10084 = vunpack.c.h.b16 %v8541
    %v10085 = vunpack.c.l.b16 %v8542
    %v10086 = vunpack.c.h.b16 %v8542
    %v10087 = vunpack.c.l.b16 %v8543
    %v10088 = vunpack.c.h.b16 %v8543
    %v10089 = vunpack.c.l.b16 %v8544
    %v10090 = vunpack.c.h.b16 %v8544
    %v10091 = vunpack.c.l.b16 %v8545
    %v10092 = vunpack.c.h.b16 %v8545
    %v10093 = vunpack.c.l.b16 %v8546
    %v10094 = vunpack.c.h.b16 %v8546
    %v10095 = vunpack.c.l.b16 %v8547
    %v10096 = vunpack.c.h.b16 %v8547
    %v10097 = vunpack.c.l.b16 %v8548
    %v10098 = vunpack.c.h.b16 %v8548
    %v10099 = vunpack.c.l.b16 %v8549
    %v10100 = vunpack.c.h.b16 %v8549
    %v10101 = vunpack.c.l.b16 %v8550
    %v10102 = vunpack.c.h.b16 %v8550
    %v10103 = vunpack.c.l.b16 %v8551
    %v10104 = vunpack.c.h.b16 %v8551
    %v10105 = vunpack.c.l.b16 %v8552
    %v10106 = vunpack.c.h.b16 %v8552
    %v10107 = vpack.c.b16 %v9091, %v9083
    %v10108 = vpack.c.b16 %v9092, %v9084
    %v10109 = vpack.c.b16 %v9093, %v9085
    %v10110 = vpack.c.b16 %v9094, %v9086
    %v10111 = vpack.c.b16 %v9095, %v9087
    %v10112 = vpack.c.b16 %v9096, %v9088
    %v10113 = vpack.c.b16 %v9097, %v9089
    %v10114 = vpack.c.b16 %v9098, %v9090
    %v10115 = vpack.c.b16 %v9107, %v9099
    %v10116 = vpack.c.b16 %v9108, %v9100
    %v10117 = vpack.c.b16 %v9109, %v9101
    %v10118 = vpack.c.b16 %v9110, %v9102
    %v10119 = vpack.c.b16 %v9111, %v9103
    %v10120 = vpack.c.b16 %v9112, %v9104
    %v10121 = vpack.c.b16 %v9113, %v9105
    %v10122 = vpack.c.b16 %v9114, %v9106
    %v10123 = vpack.c.b16 %v9123, %v9115
    %v10124 = vpack.c.b16 %v9124, %v9116
    %v10125 = vpack.c.b16 %v9125, %v9117
    %v10126 = vpack.c.b16 %v9126, %v9118
    %v10127 = vpack.c.b16 %v9127, %v9119
    %v10128 = vpack.c.b16 %v9128, %v9120
    %v10129 = vpack.c.b16 %v9129, %v9121
    %v10130 = vpack.c.b16 %v9130, %v9122
    %v10131 = vpack.c.b16 %v9139, %v9131
    %v10132 = vpack.c.b16 %v9140, %v9132
    %v10133 = vpack.c.b16 %v9141, %v9133
    %v10134 = vpack.c.b16 %v9142, %v9134
    %v10135 = vpack.c.b16 %v9143, %v9135
    %v10136 = vpack.c.b16 %v9144, %v9136
    %v10137 = vpack.c.b16 %v9145, %v9137
    %v10138 = vpack.c.b16 %v9146, %v9138
    %v10139 = vpack.c.b16 %v9155, %v9147
    %v10140 = vpack.c.b16 %v9156, %v9148
    %v10141 = vpack.c.b16 %v9157, %v9149
    %v10142 = vpack.c.b16 %v9158, %v9150
    %v10143 = vpack.c.b16 %v9159, %v9151
    %v10144 = vpack.c.b16 %v9160, %v9152
    %v10145 = vpack.c.b16 %v9161, %v9153
    %v10146 = vpack.c.b16 %v9162, %v9154
    %v10147 = vpack.c.b16 %v9171, %v9163
    %v10148 = vpack.c.b16 %v9172, %v9164
    %v10149 = vpack.c.b16 %v9173, %v9165
    %v10150 = vpack.c.b16 %v9174, %v9166
    %v10151 = vpack.c.b16 %v9175, %v9167
    %v10152 = vpack.c.b16 %v9176, %v9168
    %v10153 = vpack.c.b16 %v9177, %v9169
    %v10154 = vpack.c.b16 %v9178, %v9170
    %v10155 = vpack.c.b16 %v9187, %v9179
    %v10156 = vpack.c.b16 %v9188, %v9180
    %v10157 = vpack.c.b16 %v9189, %v9181
    %v10158 = vpack.c.b16 %v9190, %v9182
    %v10159 = vpack.c.b16 %v9191, %v9183
    %v10160 = vpack.c.b16 %v9192, %v9184
    %v10161 = vpack.c.b16 %v9193, %v9185
    %v10162 = vpack.c.b16 %v9194, %v9186
    %v10163 = vpack.c.b16 %v9203, %v9195
    %v10164 = vpack.c.b16 %v9204, %v9196
    %v10165 = vpack.c.b16 %v9205, %v9197
    %v10166 = vpack.c.b16 %v9206, %v9198
    %v10167 = vpack.c.b16 %v9207, %v9199
    %v10168 = vpack.c.b16 %v9208, %v9200
    %v10169 = vpack.c.b16 %v9209, %v9201
    %v10170 = vpack.c.b16 %v9210, %v9202
    %v10171 = vpack.c.b16 %v9219, %v9211
    %v10172 = vpack.c.b16 %v9220, %v9212
    %v10173 = vpack.c.b16 %v9221, %v9213
    %v10174 = vpack.c.b16 %v9222, %v9214
    %v10175 = vpack.c.b16 %v9223, %v9215
    %v10176 = vpack.c.b16 %v9224, %v9216
    %v10177 = vpack.c.b16 %v9225, %v9217
    %v10178 = vpack.c.b16 %v9226, %v9218
    %v10179 = vpack.c.b16 %v9235, %v9227
    %v10180 = vpack.c.b16 %v9236, %v9228
    %v10181 = vpack.c.b16 %v9237, %v9229
    %v10182 = vpack.c.b16 %v9238, %v9230
    %v10183 = vpack.c.b16 %v9239, %v9231
    %v10184 = vpack.c.b16 %v9240, %v9232
    %v10185 = vpack.c.b16 %v9241, %v9233
    %v10186 = vpack.c.b16 %v9242, %v9234
    %v10187 = vpack.c.b16 %v9251, %v9243
    %v10188 = vpack.c.b16 %v9252, %v9244
    %v10189 = vpack.c.b16 %v9253, %v9245
    %v10190 = vpack.c.b16 %v9254, %v9246
    %v10191 = vpack.c.b16 %v9255, %v9247
    %v10192 = vpack.c.b16 %v9256, %v9248
    %v10193 = vpack.c.b16 %v9257, %v9249
    %v10194 = vpack.c.b16 %v9258, %v9250
    %v10195 = vpack.c.b16 %v9267, %v9259
    %v10196 = vpack.c.b16 %v9268, %v9260
    %v10197 = vpack.c.b16 %v9269, %v9261
    %v10198 = vpack.c.b16 %v9270, %v9262
    %v10199 = vpack.c.b16 %v9271, %v9263
    %v10200 = vpack.c.b16 %v9272, %v9264
    %v10201 = vpack.c.b16 %v9273, %v9265
    %v10202 = vpack.c.b16 %v9274, %v9266
    %v10203 = vpack.c.b16 %v9283, %v9275
    %v10204 = vpack.c.b16 %v9284, %v9276
    %v10205 = vpack.c.b16 %v9285, %v9277
    %v10206 = vpack.c.b16 %v9286, %v9278
    %v10207 = vpack.c.b16 %v9287, %v9279
    %v10208 = vpack.c.b16 %v9288, %v9280
    %v10209 = vpack.c.b16 %v9289, %v9281
    %v10210 = vpack.c.b16 %v9290, %v9282
    %v10211 = vpack.c.b16 %v9299, %v9291
    %v10212 = vpack.c.b16 %v9300, %v9292
    %v10213 = vpack.c.b16 %v9301, %v9293
    %v10214 = vpack.c.b16 %v9302, %v9294
    %v10215 = vpack.c.b16 %v9303, %v9295
    %v10216 = vpack.c.b16 %v9304, %v9296
    %v10217 = vpack.c.b16 %v9305, %v9297
    %v10218 = vpack.c.b16 %v9306, %v9298
    %v10219 = vpack.c.b16 %v9315, %v9307
    %v10220 = vpack.c.b16 %v9316, %v9308
    %v10221 = vpack.c.b16 %v9317, %v9309
    %v10222 = vpack.c.b16 %v9318, %v9310
    %v10223 = vpack.c.b16 %v9319, %v9311
    %v10224 = vpack.c.b16 %v9320, %v9312
    %v10225 = vpack.c.b16 %v9321, %v9313
    %v10226 = vpack.c.b16 %v9322, %v9314
    %v10227 = vpack.c.b16 %v9331, %v9323
    %v10228 = vpack.c.b16 %v9332, %v9324
    %v10229 = vpack.c.b16 %v9333, %v9325
    %v10230 = vpack.c.b16 %v9334, %v9326
    %v10231 = vpack.c.b16 %v9335, %v9327
    %v10232 = vpack.c.b16 %v9336, %v9328
    %v10233 = vpack.c.b16 %v9337, %v9329
    %v10234 = vpack.c.b16 %v9338, %v9330
    %v10235 = vpack.c.b16 %v9347, %v9339
    %v10236 = vpack.c.b16 %v9348, %v9340
    %v10237 = vpack.c.b16 %v9349, %v9341
    %v10238 = vpack.c.b16 %v9350, %v9342
    %v10239 = vpack.c.b16 %v9351, %v9343
    %v10240 = vpack.c.b16 %v9352, %v9344
    %v10241 = vpack.c.b16 %v9353, %v9345
    %v10242 = vpack.c.b16 %v9354, %v9346
    %v10243 = vpack.c.b16 %v9363, %v9355
    %v10244 = vpack.c.b16 %v9364, %v9356
    %v10245 = vpack.c.b16 %v9365, %v9357
    %v10246 = vpack.c.b16 %v9366, %v9358
    %v10247 = vpack.c.b16 %v9367, %v9359
    %v10248 = vpack.c.b16 %v9368, %v9360
    %v10249 = vpack.c.b16 %v9369, %v9361
    %v10250 = vpack.c.b16 %v9370, %v9362
    %v10251 = vpack.c.b16 %v9379, %v9371
    %v10252 = vpack.c.b16 %v9380, %v9372
    %v10253 = vpack.c.b16 %v9381, %v9373
    %v10254 = vpack.c.b16 %v9382, %v9374
    %v10255 = vpack.c.b16 %v9383, %v9375
    %v10256 = vpack.c.b16 %v9384, %v9376
    %v10257 = vpack.c.b16 %v9385, %v9377
    %v10258 = vpack.c.b16 %v9386, %v9378
    %v10259 = vpack.c.b16 %v9395, %v9387
    %v10260 = vpack.c.b16 %v9396, %v9388
    %v10261 = vpack.c.b16 %v9397, %v9389
    %v10262 = vpack.c.b16 %v9398, %v9390
    %v10263 = vpack.c.b16 %v9399, %v9391
    %v10264 = vpack.c.b16 %v9400, %v9392
    %v10265 = vpack.c.b16 %v9401, %v9393
    %v10266 = vpack.c.b16 %v9402, %v9394
    %v10267 = vpack.c.b16 %v9411, %v9403
    %v10268 = vpack.c.b16 %v9412, %v9404
    %v10269 = vpack.c.b16 %v9413, %v9405
    %v10270 = vpack.c.b16 %v9414, %v9406
    %v10271 = vpack.c.b16 %v9415, %v9407
    %v10272 = vpack.c.b16 %v9416, %v9408
    %v10273 = vpack.c.b16 %v9417, %v9409
    %v10274 = vpack.c.b16 %v9418, %v9410
    %v10275 = vpack.c.b16 %v9427, %v9419
    %v10276 = vpack.c.b16 %v9428, %v9420
    %v10277 = vpack.c.b16 %v9429, %v9421
    %v10278 = vpack.c.b16 %v9430, %v9422
    %v10279 = vpack.c.b16 %v9431, %v9423
    %v10280 = vpack.c.b16 %v9432, %v9424
    %v10281 = vpack.c.b16 %v9433, %v9425
    %v10282 = vpack.c.b16 %v9434, %v9426
    %v10283 = vpack.c.b16 %v9443, %v9435
    %v10284 = vpack.c.b16 %v9444, %v9436
    %v10285 = vpack.c.b16 %v9445, %v9437
    %v10286 = vpack.c.b16 %v9446, %v9438
    %v10287 = vpack.c.b16 %v9447, %v9439
    %v10288 = vpack.c.b16 %v9448, %v9440
    %v10289 = vpack.c.b16 %v9449, %v9441
    %v10290 = vpack.c.b16 %v9450, %v9442
    %v10291 = vpack.c.b16 %v9459, %v9451
    %v10292 = vpack.c.b16 %v9460, %v9452
    %v10293 = vpack.c.b16 %v9461, %v9453
    %v10294 = vpack.c.b16 %v9462, %v9454
    %v10295 = vpack.c.b16 %v9463, %v9455
    %v10296 = vpack.c.b16 %v9464, %v9456
    %v10297 = vpack.c.b16 %v9465, %v9457
    %v10298 = vpack.c.b16 %v9466, %v9458
    %v10299 = vpack.c.b16 %v9475, %v9467
    %v10300 = vpack.c.b16 %v9476, %v9468
    %v10301 = vpack.c.b16 %v9477, %v9469
    %v10302 = vpack.c.b16 %v9478, %v9470
    %v10303 = vpack.c.b16 %v9479, %v9471
    %v10304 = vpack.c.b16 %v9480, %v9472
    %v10305 = vpack.c.b16 %v9481, %v9473
    %v10306 = vpack.c.b16 %v9482, %v9474
    %v10307 = vpack.c.b16 %v9491, %v9483
    %v10308 = vpack.c.b16 %v9492, %v9484
    %v10309 = vpack.c.b16 %v9493, %v9485
    %v10310 = vpack.c.b16 %v9494, %v9486
    %v10311 = vpack.c.b16 %v9495, %v9487
    %v10312 = vpack.c.b16 %v9496, %v9488
    %v10313 = vpack.c.b16 %v9497, %v9489
    %v10314 = vpack.c.b16 %v9498, %v9490
    %v10315 = vpack.c.b16 %v9507, %v9499
    %v10316 = vpack.c.b16 %v9508, %v9500
    %v10317 = vpack.c.b16 %v9509, %v9501
    %v10318 = vpack.c.b16 %v9510, %v9502
    %v10319 = vpack.c.b16 %v9511, %v9503
    %v10320 = vpack.c.b16 %v9512, %v9504
    %v10321 = vpack.c.b16 %v9513, %v9505
    %v10322 = vpack.c.b16 %v9514, %v9506
    %v10323 = vpack.c.b16 %v9523, %v9515
    %v10324 = vpack.c.b16 %v9524, %v9516
    %v10325 = vpack.c.b16 %v9525, %v9517
    %v10326 = vpack.c.b16 %v9526, %v9518
    %v10327 = vpack.c.b16 %v9527, %v9519
    %v10328 = vpack.c.b16 %v9528, %v9520
    %v10329 = vpack.c.b16 %v9529, %v9521
    %v10330 = vpack.c.b16 %v9530, %v9522
    %v10331 = vpack.c.b16 %v9539, %v9531
    %v10332 = vpack.c.b16 %v9540, %v9532
    %v10333 = vpack.c.b16 %v9541, %v9533
    %v10334 = vpack.c.b16 %v9542, %v9534
    %v10335 = vpack.c.b16 %v9543, %v9535
    %v10336 = vpack.c.b16 %v9544, %v9536
    %v10337 = vpack.c.b16 %v9545, %v9537
    %v10338 = vpack.c.b16 %v9546, %v9538
    %v10339 = vpack.c.b16 %v9555, %v9547
    %v10340 = vpack.c.b16 %v9556, %v9548
    %v10341 = vpack.c.b16 %v9557, %v9549
    %v10342 = vpack.c.b16 %v9558, %v9550
    %v10343 = vpack.c.b16 %v9559, %v9551
    %v10344 = vpack.c.b16 %v9560, %v9552
    %v10345 = vpack.c.b16 %v9561, %v9553
    %v10346 = vpack.c.b16 %v9562, %v9554
    %v10347 = vpack.c.b16 %v9571, %v9563
    %v10348 = vpack.c.b16 %v9572, %v9564
    %v10349 = vpack.c.b16 %v9573, %v9565
    %v10350 = vpack.c.b16 %v9574, %v9566
    %v10351 = vpack.c.b16 %v9575, %v9567
    %v10352 = vpack.c.b16 %v9576, %v9568
    %v10353 = vpack.c.b16 %v9577, %v9569
    %v10354 = vpack.c.b16 %v9578, %v9570
    %v10355 = vpack.c.b16 %v9587, %v9579
    %v10356 = vpack.c.b16 %v9588, %v9580
    %v10357 = vpack.c.b16 %v9589, %v9581
    %v10358 = vpack.c.b16 %v9590, %v9582
    %v10359 = vpack.c.b16 %v9591, %v9583
    %v10360 = vpack.c.b16 %v9592, %v9584
    %v10361 = vpack.c.b16 %v9593, %v9585
    %v10362 = vpack.c.b16 %v9594, %v9586
    %v10363 = vpack.c.b16 %v9603, %v9595
    %v10364 = vpack.c.b16 %v9604, %v9596
    %v10365 = vpack.c.b16 %v9605, %v9597
    %v10366 = vpack.c.b16 %v9606, %v9598
    %v10367 = vpack.c.b16 %v9607, %v9599
    %v10368 = vpack.c.b16 %v9608, %v9600
    %v10369 = vpack.c.b16 %v9609, %v9601
    %v10370 = vpack.c.b16 %v9610, %v9602
    %v10371 = vpack.c.b16 %v9619, %v9611
    %v10372 = vpack.c.b16 %v9620, %v9612
    %v10373 = vpack.c.b16 %v9621, %v9613
    %v10374 = vpack.c.b16 %v9622, %v9614
    %v10375 = vpack.c.b16 %v9623, %v9615
    %v10376 = vpack.c.b16 %v9624, %v9616
    %v10377 = vpack.c.b16 %v9625, %v9617
    %v10378 = vpack.c.b16 %v9626, %v9618
    %v10379 = vpack.c.b16 %v9635, %v9627
    %v10380 = vpack.c.b16 %v9636, %v9628
    %v10381 = vpack.c.b16 %v9637, %v9629
    %v10382 = vpack.c.b16 %v9638, %v9630
    %v10383 = vpack.c.b16 %v9639, %v9631
    %v10384 = vpack.c.b16 %v9640, %v9632
    %v10385 = vpack.c.b16 %v9641, %v9633
    %v10386 = vpack.c.b16 %v9642, %v9634
    %v10387 = vpack.c.b16 %v9651, %v9643
    %v10388 = vpack.c.b16 %v9652, %v9644
    %v10389 = vpack.c.b16 %v9653, %v9645
    %v10390 = vpack.c.b16 %v9654, %v9646
    %v10391 = vpack.c.b16 %v9655, %v9647
    %v10392 = vpack.c.b16 %v9656, %v9648
    %v10393 = vpack.c.b16 %v9657, %v9649
    %v10394 = vpack.c.b16 %v9658, %v9650
    %v10395 = vpack.c.b16 %v9667, %v9659
    %v10396 = vpack.c.b16 %v9668, %v9660
    %v10397 = vpack.c.b16 %v9669, %v9661
    %v10398 = vpack.c.b16 %v9670, %v9662
    %v10399 = vpack.c.b16 %v9671, %v9663
    %v10400 = vpack.c.b16 %v9672, %v9664
    %v10401 = vpack.c.b16 %v9673, %v9665
    %v10402 = vpack.c.b16 %v9674, %v9666
    %v10403 = vpack.c.b16 %v9683, %v9675
    %v10404 = vpack.c.b16 %v9684, %v9676
    %v10405 = vpack.c.b16 %v9685, %v9677
    %v10406 = vpack.c.b16 %v9686, %v9678
    %v10407 = vpack.c.b16 %v9687, %v9679
    %v10408 = vpack.c.b16 %v9688, %v9680
    %v10409 = vpack.c.b16 %v9689, %v9681
    %v10410 = vpack.c.b16 %v9690, %v9682
    %v10411 = vpack.c.b16 %v9699, %v9691
    %v10412 = vpack.c.b16 %v9700, %v9692
    %v10413 = vpack.c.b16 %v9701, %v9693
    %v10414 = vpack.c.b16 %v9702, %v9694
    %v10415 = vpack.c.b16 %v9703, %v9695
    %v10416 = vpack.c.b16 %v9704, %v9696
    %v10417 = vpack.c.b16 %v9705, %v9697
    %v10418 = vpack.c.b16 %v9706, %v9698
    %v10419 = vpack.c.b16 %v9715, %v9707
    %v10420 = vpack.c.b16 %v9716, %v9708
    %v10421 = vpack.c.b16 %v9717, %v9709
    %v10422 = vpack.c.b16 %v9718, %v9710
    %v10423 = vpack.c.b16 %v9719, %v9711
    %v10424 = vpack.c.b16 %v9720, %v9712
    %v10425 = vpack.c.b16 %v9721, %v9713
    %v10426 = vpack.c.b16 %v9722, %v9714
    %v10427 = vpack.c.b16 %v9731, %v9723
    %v10428 = vpack.c.b16 %v9732, %v9724
    %v10429 = vpack.c.b16 %v9733, %v9725
    %v10430 = vpack.c.b16 %v9734, %v9726
    %v10431 = vpack.c.b16 %v9735, %v9727
    %v10432 = vpack.c.b16 %v9736, %v9728
    %v10433 = vpack.c.b16 %v9737, %v9729
    %v10434 = vpack.c.b16 %v9738, %v9730
    %v10435 = vpack.c.b16 %v9747, %v9739
    %v10436 = vpack.c.b16 %v9748, %v9740
    %v10437 = vpack.c.b16 %v9749, %v9741
    %v10438 = vpack.c.b16 %v9750, %v9742
    %v10439 = vpack.c.b16 %v9751, %v9743
    %v10440 = vpack.c.b16 %v9752, %v9744
    %v10441 = vpack.c.b16 %v9753, %v9745
    %v10442 = vpack.c.b16 %v9754, %v9746
    %v10443 = vpack.c.b16 %v9763, %v9755
    %v10444 = vpack.c.b16 %v9764, %v9756
    %v10445 = vpack.c.b16 %v9765, %v9757
    %v10446 = vpack.c.b16 %v9766, %v9758
    %v10447 = vpack.c.b16 %v9767, %v9759
    %v10448 = vpack.c.b16 %v9768, %v9760
    %v10449 = vpack.c.b16 %v9769, %v9761
    %v10450 = vpack.c.b16 %v9770, %v9762
    %v10451 = vpack.c.b16 %v9779, %v9771
    %v10452 = vpack.c.b16 %v9780, %v9772
    %v10453 = vpack.c.b16 %v9781, %v9773
    %v10454 = vpack.c.b16 %v9782, %v9774
    %v10455 = vpack.c.b16 %v9783, %v9775
    %v10456 = vpack.c.b16 %v9784, %v9776
    %v10457 = vpack.c.b16 %v9785, %v9777
    %v10458 = vpack.c.b16 %v9786, %v9778
    %v10459 = vpack.c.b16 %v9795, %v9787
    %v10460 = vpack.c.b16 %v9796, %v9788
    %v10461 = vpack.c.b16 %v9797, %v9789
    %v10462 = vpack.c.b16 %v9798, %v9790
    %v10463 = vpack.c.b16 %v9799, %v9791
    %v10464 = vpack.c.b16 %v9800, %v9792
    %v10465 = vpack.c.b16 %v9801, %v9793
    %v10466 = vpack.c.b16 %v9802, %v9794
    %v10467 = vpack.c.b16 %v9811, %v9803
    %v10468 = vpack.c.b16 %v9812, %v9804
    %v10469 = vpack.c.b16 %v9813, %v9805
    %v10470 = vpack.c.b16 %v9814, %v9806
    %v10471 = vpack.c.b16 %v9815, %v9807
    %v10472 = vpack.c.b16 %v9816, %v9808
    %v10473 = vpack.c.b16 %v9817, %v9809
    %v10474 = vpack.c.b16 %v9818, %v9810
    %v10475 = vpack.c.b16 %v9827, %v9819
    %v10476 = vpack.c.b16 %v9828, %v9820
    %v10477 = vpack.c.b16 %v9829, %v9821
    %v10478 = vpack.c.b16 %v9830, %v9822
    %v10479 = vpack.c.b16 %v9831, %v9823
    %v10480 = vpack.c.b16 %v9832, %v9824
    %v10481 = vpack.c.b16 %v9833, %v9825
    %v10482 = vpack.c.b16 %v9834, %v9826
    %v10483 = vpack.c.b16 %v9843, %v9835
    %v10484 = vpack.c.b16 %v9844, %v9836
    %v10485 = vpack.c.b16 %v9845, %v9837
    %v10486 = vpack.c.b16 %v9846, %v9838
    %v10487 = vpack.c.b16 %v9847, %v9839
    %v10488 = vpack.c.b16 %v9848, %v9840
    %v10489 = vpack.c.b16 %v9849, %v9841
    %v10490 = vpack.c.b16 %v9850, %v9842
    %v10491 = vpack.c.b16 %v9859, %v9851
    %v10492 = vpack.c.b16 %v9860, %v9852
    %v10493 = vpack.c.b16 %v9861, %v9853
    %v10494 = vpack.c.b16 %v9862, %v9854
    %v10495 = vpack.c.b16 %v9863, %v9855
    %v10496 = vpack.c.b16 %v9864, %v9856
    %v10497 = vpack.c.b16 %v9865, %v9857
    %v10498 = vpack.c.b16 %v9866, %v9858
    %v10499 = vpack.c.b16 %v9875, %v9867
    %v10500 = vpack.c.b16 %v9876, %v9868
    %v10501 = vpack.c.b16 %v9877, %v9869
    %v10502 = vpack.c.b16 %v9878, %v9870
    %v10503 = vpack.c.b16 %v9879, %v9871
    %v10504 = vpack.c.b16 %v9880, %v9872
    %v10505 = vpack.c.b16 %v9881, %v9873
    %v10506 = vpack.c.b16 %v9882, %v9874
    %v10507 = vpack.c.b16 %v9891, %v9883
    %v10508 = vpack.c.b16 %v9892, %v9884
    %v10509 = vpack.c.b16 %v9893, %v9885
    %v10510 = vpack.c.b16 %v9894, %v9886
    %v10511 = vpack.c.b16 %v9895, %v9887
    %v10512 = vpack.c.b16 %v9896, %v9888
    %v10513 = vpack.c.b16 %v9897, %v9889
    %v10514 = vpack.c.b16 %v9898, %v9890
    %v10515 = vpack.c.b16 %v9907, %v9899
    %v10516 = vpack.c.b16 %v9908, %v9900
    %v10517 = vpack.c.b16 %v9909, %v9901
    %v10518 = vpack.c.b16 %v9910, %v9902
    %v10519 = vpack.c.b16 %v9911, %v9903
    %v10520 = vpack.c.b16 %v9912, %v9904
    %v10521 = vpack.c.b16 %v9913, %v9905
    %v10522 = vpack.c.b16 %v9914, %v9906
    %v10523 = vpack.c.b16 %v9923, %v9915
    %v10524 = vpack.c.b16 %v9924, %v9916
    %v10525 = vpack.c.b16 %v9925, %v9917
    %v10526 = vpack.c.b16 %v9926, %v9918
    %v10527 = vpack.c.b16 %v9927, %v9919
    %v10528 = vpack.c.b16 %v9928, %v9920
    %v10529 = vpack.c.b16 %v9929, %v9921
    %v10530 = vpack.c.b16 %v9930, %v9922
    %v10531 = vpack.c.b16 %v9939, %v9931
    %v10532 = vpack.c.b16 %v9940, %v9932
    %v10533 = vpack.c.b16 %v9941, %v9933
    %v10534 = vpack.c.b16 %v9942, %v9934
    %v10535 = vpack.c.b16 %v9943, %v9935
    %v10536 = vpack.c.b16 %v9944, %v9936
    %v10537 = vpack.c.b16 %v9945, %v9937
    %v10538 = vpack.c.b16 %v9946, %v9938
    %v10539 = vpack.c.b16 %v9955, %v9947
    %v10540 = vpack.c.b16 %v9956, %v9948
    %v10541 = vpack.c.b16 %v9957, %v9949
    %v10542 = vpack.c.b16 %v9958, %v9950
    %v10543 = vpack.c.b16 %v9959, %v9951
    %v10544 = vpack.c.b16 %v9960, %v9952
    %v10545 = vpack.c.b16 %v9961, %v9953
    %v10546 = vpack.c.b16 %v9962, %v9954
    %v10547 = vpack.c.b16 %v9971, %v9963
    %v10548 = vpack.c.b16 %v9972, %v9964
    %v10549 = vpack.c.b16 %v9973, %v9965
    %v10550 = vpack.c.b16 %v9974, %v9966
    %v10551 = vpack.c.b16 %v9975, %v9967
    %v10552 = vpack.c.b16 %v9976, %v9968
    %v10553 = vpack.c.b16 %v9977, %v9969
    %v10554 = vpack.c.b16 %v9978, %v9970
    %v10555 = vpack.c.b16 %v9987, %v9979
    %v10556 = vpack.c.b16 %v9988, %v9980
    %v10557 = vpack.c.b16 %v9989, %v9981
    %v10558 = vpack.c.b16 %v9990, %v9982
    %v10559 = vpack.c.b16 %v9991, %v9983
    %v10560 = vpack.c.b16 %v9992, %v9984
    %v10561 = vpack.c.b16 %v9993, %v9985
    %v10562 = vpack.c.b16 %v9994, %v9986
    %v10563 = vpack.c.b16 %v10003, %v9995
    %v10564 = vpack.c.b16 %v10004, %v9996
    %v10565 = vpack.c.b16 %v10005, %v9997
    %v10566 = vpack.c.b16 %v10006, %v9998
    %v10567 = vpack.c.b16 %v10007, %v9999
    %v10568 = vpack.c.b16 %v10008, %v10000
    %v10569 = vpack.c.b16 %v10009, %v10001
    %v10570 = vpack.c.b16 %v10010, %v10002
    %v10571 = vpack.c.b16 %v10019, %v10011
    %v10572 = vpack.c.b16 %v10020, %v10012
    %v10573 = vpack.c.b16 %v10021, %v10013
    %v10574 = vpack.c.b16 %v10022, %v10014
    %v10575 = vpack.c.b16 %v10023, %v10015
    %v10576 = vpack.c.b16 %v10024, %v10016
    %v10577 = vpack.c.b16 %v10025, %v10017
    %v10578 = vpack.c.b16 %v10026, %v10018
    %v10579 = vpack.c.b16 %v10035, %v10027
    %v10580 = vpack.c.b16 %v10036, %v10028
    %v10581 = vpack.c.b16 %v10037, %v10029
    %v10582 = vpack.c.b16 %v10038, %v10030
    %v10583 = vpack.c.b16 %v10039, %v10031
    %v10584 = vpack.c.b16 %v10040, %v10032
    %v10585 = vpack.c.b16 %v10041, %v10033
    %v10586 = vpack.c.b16 %v10042, %v10034
    %v10587 = vpack.c.b16 %v10051, %v10043
    %v10588 = vpack.c.b16 %v10052, %v10044
    %v10589 = vpack.c.b16 %v10053, %v10045
    %v10590 = vpack.c.b16 %v10054, %v10046
    %v10591 = vpack.c.b16 %v10055, %v10047
    %v10592 = vpack.c.b16 %v10056, %v10048
    %v10593 = vpack.c.b16 %v10057, %v10049
    %v10594 = vpack.c.b16 %v10058, %v10050
    %v10595 = vpack.c.b16 %v10067, %v10059
    %v10596 = vpack.c.b16 %v10068, %v10060
    %v10597 = vpack.c.b16 %v10069, %v10061
    %v10598 = vpack.c.b16 %v10070, %v10062
    %v10599 = vpack.c.b16 %v10071, %v10063
    %v10600 = vpack.c.b16 %v10072, %v10064
    %v10601 = vpack.c.b16 %v10073, %v10065
    %v10602 = vpack.c.b16 %v10074, %v10066
    %v10603 = vpack.c.b16 %v10083, %v10075
    %v10604 = vpack.c.b16 %v10084, %v10076
    %v10605 = vpack.c.b16 %v10085, %v10077
    %v10606 = vpack.c.b16 %v10086, %v10078
    %v10607 = vpack.c.b16 %v10087, %v10079
    %v10608 = vpack.c.b16 %v10088, %v10080
    %v10609 = vpack.c.b16 %v10089, %v10081
    %v10610 = vpack.c.b16 %v10090, %v10082
    %v10611 = vpack.c.b16 %v10099, %v10091
    %v10612 = vpack.c.b16 %v10100, %v10092
    %v10613 = vpack.c.b16 %v10101, %v10093
    %v10614 = vpack.c.b16 %v10102, %v10094
    %v10615 = vpack.c.b16 %v10103, %v10095
    %v10616 = vpack.c.b16 %v10104, %v10096
    %v10617 = vpack.c.b16 %v10105, %v10097
    %v10618 = vpack.c.b16 %v10106, %v10098
    %11131 = vmatpush.bf16.msra.mxu0 %v10163
    %11132 = vmatpush.bf16.msra.mxu0 %v10155
    %11133 = vmatpush.bf16.msra.mxu0 %v10147
    %11134 = vmatpush.bf16.msra.mxu0 %v10139
    %11135 = vmatpush.bf16.msra.mxu0 %v10131
    %11136 = vmatpush.bf16.msra.mxu0 %v10123
    %11137 = vmatpush.bf16.msra.mxu0 %v10115
    %11138 = vmatpush.bf16.msra.mxu0 %v10107
    %11139 = vmatmul.bf16.gmra.mxu0 %v8033
    %v11140 = vpop.f32.mrf.mxu0
    %v11141 = vadd.f32 %v8555, %v11140
    %v11142 = vpop.f32.mrf.mxu0
    %11143 = vdwg.mxu0
    %11144 = vmatpush.bf16.msra.mxu0 %v10227
    %11145 = vmatpush.bf16.msra.mxu0 %v10219
    %11146 = vmatpush.bf16.msra.mxu0 %v10211
    %11147 = vmatpush.bf16.msra.mxu0 %v10203
    %11148 = vmatpush.bf16.msra.mxu0 %v10195
    %11149 = vmatpush.bf16.msra.mxu0 %v10187
    %11150 = vmatpush.bf16.msra.mxu0 %v10179
    %11151 = vmatpush.bf16.msra.mxu0 %v10171
    %11152 = vmatmul.bf16.gmra.mxu0 %v8034
    %v11153 = vpop.f32.mrf.mxu0
    %v11154 = vadd.f32 %v11141, %v11153
    %v11155 = vpop.f32.mrf.mxu0
    %11156 = vdwg.mxu0
    %11157 = vmatpush.bf16.msra.mxu0 %v10291
    %11158 = vmatpush.bf16.msra.mxu0 %v10283
    %11159 = vmatpush.bf16.msra.mxu0 %v10275
    %11160 = vmatpush.bf16.msra.mxu0 %v10267
    %11161 = vmatpush.bf16.msra.mxu0 %v10259
    %11162 = vmatpush.bf16.msra.mxu0 %v10251
    %11163 = vmatpush.bf16.msra.mxu0 %v10243
    %11164 = vmatpush.bf16.msra.mxu0 %v10235
    %11165 = vmatmul.bf16.gmra.mxu0 %v8035
    %v11166 = vpop.f32.mrf.mxu0
    %v11167 = vadd.f32 %v11154, %v11166
    %v11168 = vpop.f32.mrf.mxu0
    %11169 = vdwg.mxu0
    %11170 = vmatpush.bf16.msra.mxu0 %v10355
    %11171 = vmatpush.bf16.msra.mxu0 %v10347
    %11172 = vmatpush.bf16.msra.mxu0 %v10339
    %11173 = vmatpush.bf16.msra.mxu0 %v10331
    %11174 = vmatpush.bf16.msra.mxu0 %v10323
    %11175 = vmatpush.bf16.msra.mxu0 %v10315
    %11176 = vmatpush.bf16.msra.mxu0 %v10307
    %11177 = vmatpush.bf16.msra.mxu0 %v10299
    %11178 = vmatmul.bf16.gmra.mxu0 %v8036
    %v11179 = vpop.f32.mrf.mxu0
    %v11180 = vadd.f32 %v11167, %v11179
    %v11181 = vpop.f32.mrf.mxu0
    %11182 = vdwg.mxu0
    %11183 = vmatpush.bf16.msra.mxu0 %v10419
    %11184 = vmatpush.bf16.msra.mxu0 %v10411
    %11185 = vmatpush.bf16.msra.mxu0 %v10403
    %11186 = vmatpush.bf16.msra.mxu0 %v10395
    %11187 = vmatpush.bf16.msra.mxu0 %v10387
    %11188 = vmatpush.bf16.msra.mxu0 %v10379
    %11189 = vmatpush.bf16.msra.mxu0 %v10371
    %11190 = vmatpush.bf16.msra.mxu0 %v10363
    %11191 = vmatmul.bf16.gmra.mxu0 %v8037
    %v11192 = vpop.f32.mrf.mxu0
    %v11193 = vadd.f32 %v11180, %v11192
    %v11194 = vpop.f32.mrf.mxu0
    %11195 = vdwg.mxu0
    %11196 = vmatpush.bf16.msra.mxu0 %v10483
    %11197 = vmatpush.bf16.msra.mxu0 %v10475
    %11198 = vmatpush.bf16.msra.mxu0 %v10467
    %11199 = vmatpush.bf16.msra.mxu0 %v10459
    %11200 = vmatpush.bf16.msra.mxu0 %v10451
    %11201 = vmatpush.bf16.msra.mxu0 %v10443
    %11202 = vmatpush.bf16.msra.mxu0 %v10435
    %11203 = vmatpush.bf16.msra.mxu0 %v10427
    %11204 = vmatmul.bf16.gmra.mxu0 %v8038
    %v11205 = vpop.f32.mrf.mxu0
    %v11206 = vadd.f32 %v11193, %v11205
    %v11207 = vpop.f32.mrf.mxu0
    %11208 = vdwg.mxu0
    %11209 = vmatpush.bf16.msra.mxu0 %v10547
    %11210 = vmatpush.bf16.msra.mxu0 %v10539
    %11211 = vmatpush.bf16.msra.mxu0 %v10531
    %11212 = vmatpush.bf16.msra.mxu0 %v10523
    %11213 = vmatpush.bf16.msra.mxu0 %v10515
    %11214 = vmatpush.bf16.msra.mxu0 %v10507
    %11215 = vmatpush.bf16.msra.mxu0 %v10499
    %11216 = vmatpush.bf16.msra.mxu0 %v10491
    %11217 = vmatmul.bf16.gmra.mxu0 %v8039
    %v11218 = vpop.f32.mrf.mxu0
    %v11219 = vadd.f32 %v11206, %v11218
    %v11220 = vpop.f32.mrf.mxu0
    %11221 = vdwg.mxu0
    %11222 = vmatpush.bf16.msra.mxu0 %v10611
    %11223 = vmatpush.bf16.msra.mxu0 %v10603
    %11224 = vmatpush.bf16.msra.mxu0 %v10595
    %11225 = vmatpush.bf16.msra.mxu0 %v10587
    %11226 = vmatpush.bf16.msra.mxu0 %v10579
    %11227 = vmatpush.bf16.msra.mxu0 %v10571
    %11228 = vmatpush.bf16.msra.mxu0 %v10563
    %11229 = vmatpush.bf16.msra.mxu0 %v10555
    %11230 = vmatmul.bf16.gmra.mxu0 %v8040
    %v11231 = vpop.f32.mrf.mxu0
    %v11232 = vadd.f32 %v11219, %v11231
    %v11233 = vpop.f32.mrf.mxu0
    %11234 = vdwg.mxu0
    %11235 = vmatpush.bf16.msra.mxu0 %v10164
    %11236 = vmatpush.bf16.msra.mxu0 %v10156
    %11237 = vmatpush.bf16.msra.mxu0 %v10148
    %11238 = vmatpush.bf16.msra.mxu0 %v10140
    %11239 = vmatpush.bf16.msra.mxu0 %v10132
    %11240 = vmatpush.bf16.msra.mxu0 %v10124
    %11241 = vmatpush.bf16.msra.mxu0 %v10116
    %11242 = vmatpush.bf16.msra.mxu0 %v10108
    %11243 = vmatmul.bf16.gmra.mxu0 %v8033
    %v11244 = vpop.f32.mrf.mxu0
    %v11245 = vadd.f32 %v8556, %v11244
    %v11246 = vpop.f32.mrf.mxu0
    %11247 = vdwg.mxu0
    %11248 = vmatpush.bf16.msra.mxu0 %v10228
    %11249 = vmatpush.bf16.msra.mxu0 %v10220
    %11250 = vmatpush.bf16.msra.mxu0 %v10212
    %11251 = vmatpush.bf16.msra.mxu0 %v10204
    %11252 = vmatpush.bf16.msra.mxu0 %v10196
    %11253 = vmatpush.bf16.msra.mxu0 %v10188
    %11254 = vmatpush.bf16.msra.mxu0 %v10180
    %11255 = vmatpush.bf16.msra.mxu0 %v10172
    %11256 = vmatmul.bf16.gmra.mxu0 %v8034
    %v11257 = vpop.f32.mrf.mxu0
    %v11258 = vadd.f32 %v11245, %v11257
    %v11259 = vpop.f32.mrf.mxu0
    %11260 = vdwg.mxu0
    %11261 = vmatpush.bf16.msra.mxu0 %v10292
    %11262 = vmatpush.bf16.msra.mxu0 %v10284
    %11263 = vmatpush.bf16.msra.mxu0 %v10276
    %11264 = vmatpush.bf16.msra.mxu0 %v10268
    %11265 = vmatpush.bf16.msra.mxu0 %v10260
    %11266 = vmatpush.bf16.msra.mxu0 %v10252
    %11267 = vmatpush.bf16.msra.mxu0 %v10244
    %11268 = vmatpush.bf16.msra.mxu0 %v10236
    %11269 = vmatmul.bf16.gmra.mxu0 %v8035
    %v11270 = vpop.f32.mrf.mxu0
    %v11271 = vadd.f32 %v11258, %v11270
    %v11272 = vpop.f32.mrf.mxu0
    %11273 = vdwg.mxu0
    %11274 = vmatpush.bf16.msra.mxu0 %v10356
    %11275 = vmatpush.bf16.msra.mxu0 %v10348
    %11276 = vmatpush.bf16.msra.mxu0 %v10340
    %11277 = vmatpush.bf16.msra.mxu0 %v10332
    %11278 = vmatpush.bf16.msra.mxu0 %v10324
    %11279 = vmatpush.bf16.msra.mxu0 %v10316
    %11280 = vmatpush.bf16.msra.mxu0 %v10308
    %11281 = vmatpush.bf16.msra.mxu0 %v10300
    %11282 = vmatmul.bf16.gmra.mxu0 %v8036
    %v11283 = vpop.f32.mrf.mxu0
    %v11284 = vadd.f32 %v11271, %v11283
    %v11285 = vpop.f32.mrf.mxu0
    %11286 = vdwg.mxu0
    %11287 = vmatpush.bf16.msra.mxu0 %v10420
    %11288 = vmatpush.bf16.msra.mxu0 %v10412
    %11289 = vmatpush.bf16.msra.mxu0 %v10404
    %11290 = vmatpush.bf16.msra.mxu0 %v10396
    %11291 = vmatpush.bf16.msra.mxu0 %v10388
    %11292 = vmatpush.bf16.msra.mxu0 %v10380
    %11293 = vmatpush.bf16.msra.mxu0 %v10372
    %11294 = vmatpush.bf16.msra.mxu0 %v10364
    %11295 = vmatmul.bf16.gmra.mxu0 %v8037
    %v11296 = vpop.f32.mrf.mxu0
    %v11297 = vadd.f32 %v11284, %v11296
    %v11298 = vpop.f32.mrf.mxu0
    %11299 = vdwg.mxu0
    %11300 = vmatpush.bf16.msra.mxu0 %v10484
    %11301 = vmatpush.bf16.msra.mxu0 %v10476
    %11302 = vmatpush.bf16.msra.mxu0 %v10468
    %11303 = vmatpush.bf16.msra.mxu0 %v10460
    %11304 = vmatpush.bf16.msra.mxu0 %v10452
    %11305 = vmatpush.bf16.msra.mxu0 %v10444
    %11306 = vmatpush.bf16.msra.mxu0 %v10436
    %11307 = vmatpush.bf16.msra.mxu0 %v10428
    %11308 = vmatmul.bf16.gmra.mxu0 %v8038
    %v11309 = vpop.f32.mrf.mxu0
    %v11310 = vadd.f32 %v11297, %v11309
    %v11311 = vpop.f32.mrf.mxu0
    %11312 = vdwg.mxu0
    %11313 = vmatpush.bf16.msra.mxu0 %v10548
    %11314 = vmatpush.bf16.msra.mxu0 %v10540
    %11315 = vmatpush.bf16.msra.mxu0 %v10532
    %11316 = vmatpush.bf16.msra.mxu0 %v10524
    %11317 = vmatpush.bf16.msra.mxu0 %v10516
    %11318 = vmatpush.bf16.msra.mxu0 %v10508
    %11319 = vmatpush.bf16.msra.mxu0 %v10500
    %11320 = vmatpush.bf16.msra.mxu0 %v10492
    %11321 = vmatmul.bf16.gmra.mxu0 %v8039
    %v11322 = vpop.f32.mrf.mxu0
    %v11323 = vadd.f32 %v11310, %v11322
    %v11324 = vpop.f32.mrf.mxu0
    %11325 = vdwg.mxu0
    %11326 = vmatpush.bf16.msra.mxu0 %v10612
    %11327 = vmatpush.bf16.msra.mxu0 %v10604
    %11328 = vmatpush.bf16.msra.mxu0 %v10596
    %11329 = vmatpush.bf16.msra.mxu0 %v10588
    %11330 = vmatpush.bf16.msra.mxu0 %v10580
    %11331 = vmatpush.bf16.msra.mxu0 %v10572
    %11332 = vmatpush.bf16.msra.mxu0 %v10564
    %11333 = vmatpush.bf16.msra.mxu0 %v10556
    %11334 = vmatmul.bf16.gmra.mxu0 %v8040
    %v11335 = vpop.f32.mrf.mxu0
    %v11336 = vadd.f32 %v11323, %v11335
    %v11337 = vpop.f32.mrf.mxu0
    %11338 = vdwg.mxu0
    %11339 = vmatpush.bf16.msra.mxu0 %v10165
    %11340 = vmatpush.bf16.msra.mxu0 %v10157
    %11341 = vmatpush.bf16.msra.mxu0 %v10149
    %11342 = vmatpush.bf16.msra.mxu0 %v10141
    %11343 = vmatpush.bf16.msra.mxu0 %v10133
    %11344 = vmatpush.bf16.msra.mxu0 %v10125
    %11345 = vmatpush.bf16.msra.mxu0 %v10117
    %11346 = vmatpush.bf16.msra.mxu0 %v10109
    %11347 = vmatmul.bf16.gmra.mxu0 %v8033
    %v11348 = vpop.f32.mrf.mxu0
    %v11349 = vadd.f32 %v8557, %v11348
    %v11350 = vpop.f32.mrf.mxu0
    %11351 = vdwg.mxu0
    %11352 = vmatpush.bf16.msra.mxu0 %v10229
    %11353 = vmatpush.bf16.msra.mxu0 %v10221
    %11354 = vmatpush.bf16.msra.mxu0 %v10213
    %11355 = vmatpush.bf16.msra.mxu0 %v10205
    %11356 = vmatpush.bf16.msra.mxu0 %v10197
    %11357 = vmatpush.bf16.msra.mxu0 %v10189
    %11358 = vmatpush.bf16.msra.mxu0 %v10181
    %11359 = vmatpush.bf16.msra.mxu0 %v10173
    %11360 = vmatmul.bf16.gmra.mxu0 %v8034
    %v11361 = vpop.f32.mrf.mxu0
    %v11362 = vadd.f32 %v11349, %v11361
    %v11363 = vpop.f32.mrf.mxu0
    %11364 = vdwg.mxu0
    %11365 = vmatpush.bf16.msra.mxu0 %v10293
    %11366 = vmatpush.bf16.msra.mxu0 %v10285
    %11367 = vmatpush.bf16.msra.mxu0 %v10277
    %11368 = vmatpush.bf16.msra.mxu0 %v10269
    %11369 = vmatpush.bf16.msra.mxu0 %v10261
    %11370 = vmatpush.bf16.msra.mxu0 %v10253
    %11371 = vmatpush.bf16.msra.mxu0 %v10245
    %11372 = vmatpush.bf16.msra.mxu0 %v10237
    %11373 = vmatmul.bf16.gmra.mxu0 %v8035
    %v11374 = vpop.f32.mrf.mxu0
    %v11375 = vadd.f32 %v11362, %v11374
    %v11376 = vpop.f32.mrf.mxu0
    %11377 = vdwg.mxu0
    %11378 = vmatpush.bf16.msra.mxu0 %v10357
    %11379 = vmatpush.bf16.msra.mxu0 %v10349
    %11380 = vmatpush.bf16.msra.mxu0 %v10341
    %11381 = vmatpush.bf16.msra.mxu0 %v10333
    %11382 = vmatpush.bf16.msra.mxu0 %v10325
    %11383 = vmatpush.bf16.msra.mxu0 %v10317
    %11384 = vmatpush.bf16.msra.mxu0 %v10309
    %11385 = vmatpush.bf16.msra.mxu0 %v10301
    %11386 = vmatmul.bf16.gmra.mxu0 %v8036
    %v11387 = vpop.f32.mrf.mxu0
    %v11388 = vadd.f32 %v11375, %v11387
    %v11389 = vpop.f32.mrf.mxu0
    %11390 = vdwg.mxu0
    %11391 = vmatpush.bf16.msra.mxu0 %v10421
    %11392 = vmatpush.bf16.msra.mxu0 %v10413
    %11393 = vmatpush.bf16.msra.mxu0 %v10405
    %11394 = vmatpush.bf16.msra.mxu0 %v10397
    %11395 = vmatpush.bf16.msra.mxu0 %v10389
    %11396 = vmatpush.bf16.msra.mxu0 %v10381
    %11397 = vmatpush.bf16.msra.mxu0 %v10373
    %11398 = vmatpush.bf16.msra.mxu0 %v10365
    %11399 = vmatmul.bf16.gmra.mxu0 %v8037
    %v11400 = vpop.f32.mrf.mxu0
    %v11401 = vadd.f32 %v11388, %v11400
    %v11402 = vpop.f32.mrf.mxu0
    %11403 = vdwg.mxu0
    %11404 = vmatpush.bf16.msra.mxu0 %v10485
    %11405 = vmatpush.bf16.msra.mxu0 %v10477
    %11406 = vmatpush.bf16.msra.mxu0 %v10469
    %11407 = vmatpush.bf16.msra.mxu0 %v10461
    %11408 = vmatpush.bf16.msra.mxu0 %v10453
    %11409 = vmatpush.bf16.msra.mxu0 %v10445
    %11410 = vmatpush.bf16.msra.mxu0 %v10437
    %11411 = vmatpush.bf16.msra.mxu0 %v10429
    %11412 = vmatmul.bf16.gmra.mxu0 %v8038
    %v11413 = vpop.f32.mrf.mxu0
    %v11414 = vadd.f32 %v11401, %v11413
    %v11415 = vpop.f32.mrf.mxu0
    %11416 = vdwg.mxu0
    %11417 = vmatpush.bf16.msra.mxu0 %v10549
    %11418 = vmatpush.bf16.msra.mxu0 %v10541
    %11419 = vmatpush.bf16.msra.mxu0 %v10533
    %11420 = vmatpush.bf16.msra.mxu0 %v10525
    %11421 = vmatpush.bf16.msra.mxu0 %v10517
    %11422 = vmatpush.bf16.msra.mxu0 %v10509
    %11423 = vmatpush.bf16.msra.mxu0 %v10501
    %11424 = vmatpush.bf16.msra.mxu0 %v10493
    %11425 = vmatmul.bf16.gmra.mxu0 %v8039
    %v11426 = vpop.f32.mrf.mxu0
    %v11427 = vadd.f32 %v11414, %v11426
    %v11428 = vpop.f32.mrf.mxu0
    %11429 = vdwg.mxu0
    %11430 = vmatpush.bf16.msra.mxu0 %v10613
    %11431 = vmatpush.bf16.msra.mxu0 %v10605
    %11432 = vmatpush.bf16.msra.mxu0 %v10597
    %11433 = vmatpush.bf16.msra.mxu0 %v10589
    %11434 = vmatpush.bf16.msra.mxu0 %v10581
    %11435 = vmatpush.bf16.msra.mxu0 %v10573
    %11436 = vmatpush.bf16.msra.mxu0 %v10565
    %11437 = vmatpush.bf16.msra.mxu0 %v10557
    %11438 = vmatmul.bf16.gmra.mxu0 %v8040
    %v11439 = vpop.f32.mrf.mxu0
    %v11440 = vadd.f32 %v11427, %v11439
    %v11441 = vpop.f32.mrf.mxu0
    %11442 = vdwg.mxu0
    %11443 = vmatpush.bf16.msra.mxu0 %v10166
    %11444 = vmatpush.bf16.msra.mxu0 %v10158
    %11445 = vmatpush.bf16.msra.mxu0 %v10150
    %11446 = vmatpush.bf16.msra.mxu0 %v10142
    %11447 = vmatpush.bf16.msra.mxu0 %v10134
    %11448 = vmatpush.bf16.msra.mxu0 %v10126
    %11449 = vmatpush.bf16.msra.mxu0 %v10118
    %11450 = vmatpush.bf16.msra.mxu0 %v10110
    %11451 = vmatmul.bf16.gmra.mxu0 %v8033
    %v11452 = vpop.f32.mrf.mxu0
    %v11453 = vadd.f32 %v8558, %v11452
    %v11454 = vpop.f32.mrf.mxu0
    %11455 = vdwg.mxu0
    %11456 = vmatpush.bf16.msra.mxu0 %v10230
    %11457 = vmatpush.bf16.msra.mxu0 %v10222
    %11458 = vmatpush.bf16.msra.mxu0 %v10214
    %11459 = vmatpush.bf16.msra.mxu0 %v10206
    %11460 = vmatpush.bf16.msra.mxu0 %v10198
    %11461 = vmatpush.bf16.msra.mxu0 %v10190
    %11462 = vmatpush.bf16.msra.mxu0 %v10182
    %11463 = vmatpush.bf16.msra.mxu0 %v10174
    %11464 = vmatmul.bf16.gmra.mxu0 %v8034
    %v11465 = vpop.f32.mrf.mxu0
    %v11466 = vadd.f32 %v11453, %v11465
    %v11467 = vpop.f32.mrf.mxu0
    %11468 = vdwg.mxu0
    %11469 = vmatpush.bf16.msra.mxu0 %v10294
    %11470 = vmatpush.bf16.msra.mxu0 %v10286
    %11471 = vmatpush.bf16.msra.mxu0 %v10278
    %11472 = vmatpush.bf16.msra.mxu0 %v10270
    %11473 = vmatpush.bf16.msra.mxu0 %v10262
    %11474 = vmatpush.bf16.msra.mxu0 %v10254
    %11475 = vmatpush.bf16.msra.mxu0 %v10246
    %11476 = vmatpush.bf16.msra.mxu0 %v10238
    %11477 = vmatmul.bf16.gmra.mxu0 %v8035
    %v11478 = vpop.f32.mrf.mxu0
    %v11479 = vadd.f32 %v11466, %v11478
    %v11480 = vpop.f32.mrf.mxu0
    %11481 = vdwg.mxu0
    %11482 = vmatpush.bf16.msra.mxu0 %v10358
    %11483 = vmatpush.bf16.msra.mxu0 %v10350
    %11484 = vmatpush.bf16.msra.mxu0 %v10342
    %11485 = vmatpush.bf16.msra.mxu0 %v10334
    %11486 = vmatpush.bf16.msra.mxu0 %v10326
    %11487 = vmatpush.bf16.msra.mxu0 %v10318
    %11488 = vmatpush.bf16.msra.mxu0 %v10310
    %11489 = vmatpush.bf16.msra.mxu0 %v10302
    %11490 = vmatmul.bf16.gmra.mxu0 %v8036
    %v11491 = vpop.f32.mrf.mxu0
    %v11492 = vadd.f32 %v11479, %v11491
    %v11493 = vpop.f32.mrf.mxu0
    %11494 = vdwg.mxu0
    %11495 = vmatpush.bf16.msra.mxu0 %v10422
    %11496 = vmatpush.bf16.msra.mxu0 %v10414
    %11497 = vmatpush.bf16.msra.mxu0 %v10406
    %11498 = vmatpush.bf16.msra.mxu0 %v10398
    %11499 = vmatpush.bf16.msra.mxu0 %v10390
    %11500 = vmatpush.bf16.msra.mxu0 %v10382
    %11501 = vmatpush.bf16.msra.mxu0 %v10374
    %11502 = vmatpush.bf16.msra.mxu0 %v10366
    %11503 = vmatmul.bf16.gmra.mxu0 %v8037
    %v11504 = vpop.f32.mrf.mxu0
    %v11505 = vadd.f32 %v11492, %v11504
    %v11506 = vpop.f32.mrf.mxu0
    %11507 = vdwg.mxu0
    %11508 = vmatpush.bf16.msra.mxu0 %v10486
    %11509 = vmatpush.bf16.msra.mxu0 %v10478
    %11510 = vmatpush.bf16.msra.mxu0 %v10470
    %11511 = vmatpush.bf16.msra.mxu0 %v10462
    %11512 = vmatpush.bf16.msra.mxu0 %v10454
    %11513 = vmatpush.bf16.msra.mxu0 %v10446
    %11514 = vmatpush.bf16.msra.mxu0 %v10438
    %11515 = vmatpush.bf16.msra.mxu0 %v10430
    %11516 = vmatmul.bf16.gmra.mxu0 %v8038
    %v11517 = vpop.f32.mrf.mxu0
    %v11518 = vadd.f32 %v11505, %v11517
    %v11519 = vpop.f32.mrf.mxu0
    %11520 = vdwg.mxu0
    %11521 = vmatpush.bf16.msra.mxu0 %v10550
    %11522 = vmatpush.bf16.msra.mxu0 %v10542
    %11523 = vmatpush.bf16.msra.mxu0 %v10534
    %11524 = vmatpush.bf16.msra.mxu0 %v10526
    %11525 = vmatpush.bf16.msra.mxu0 %v10518
    %11526 = vmatpush.bf16.msra.mxu0 %v10510
    %11527 = vmatpush.bf16.msra.mxu0 %v10502
    %11528 = vmatpush.bf16.msra.mxu0 %v10494
    %11529 = vmatmul.bf16.gmra.mxu0 %v8039
    %v11530 = vpop.f32.mrf.mxu0
    %v11531 = vadd.f32 %v11518, %v11530
    %v11532 = vpop.f32.mrf.mxu0
    %11533 = vdwg.mxu0
    %11534 = vmatpush.bf16.msra.mxu0 %v10614
    %11535 = vmatpush.bf16.msra.mxu0 %v10606
    %11536 = vmatpush.bf16.msra.mxu0 %v10598
    %11537 = vmatpush.bf16.msra.mxu0 %v10590
    %11538 = vmatpush.bf16.msra.mxu0 %v10582
    %11539 = vmatpush.bf16.msra.mxu0 %v10574
    %11540 = vmatpush.bf16.msra.mxu0 %v10566
    %11541 = vmatpush.bf16.msra.mxu0 %v10558
    %11542 = vmatmul.bf16.gmra.mxu0 %v8040
    %v11543 = vpop.f32.mrf.mxu0
    %v11544 = vadd.f32 %v11531, %v11543
    %v11545 = vpop.f32.mrf.mxu0
    %11546 = vdwg.mxu0
    %11547 = vmatpush.bf16.msra.mxu0 %v10167
    %11548 = vmatpush.bf16.msra.mxu0 %v10159
    %11549 = vmatpush.bf16.msra.mxu0 %v10151
    %11550 = vmatpush.bf16.msra.mxu0 %v10143
    %11551 = vmatpush.bf16.msra.mxu0 %v10135
    %11552 = vmatpush.bf16.msra.mxu0 %v10127
    %11553 = vmatpush.bf16.msra.mxu0 %v10119
    %11554 = vmatpush.bf16.msra.mxu0 %v10111
    %11555 = vmatmul.bf16.gmra.mxu0 %v8033
    %v11556 = vpop.f32.mrf.mxu0
    %v11557 = vadd.f32 %v8559, %v11556
    %v11558 = vpop.f32.mrf.mxu0
    %11559 = vdwg.mxu0
    %11560 = vmatpush.bf16.msra.mxu0 %v10231
    %11561 = vmatpush.bf16.msra.mxu0 %v10223
    %11562 = vmatpush.bf16.msra.mxu0 %v10215
    %11563 = vmatpush.bf16.msra.mxu0 %v10207
    %11564 = vmatpush.bf16.msra.mxu0 %v10199
    %11565 = vmatpush.bf16.msra.mxu0 %v10191
    %11566 = vmatpush.bf16.msra.mxu0 %v10183
    %11567 = vmatpush.bf16.msra.mxu0 %v10175
    %11568 = vmatmul.bf16.gmra.mxu0 %v8034
    %v11569 = vpop.f32.mrf.mxu0
    %v11570 = vadd.f32 %v11557, %v11569
    %v11571 = vpop.f32.mrf.mxu0
    %11572 = vdwg.mxu0
    %11573 = vmatpush.bf16.msra.mxu0 %v10295
    %11574 = vmatpush.bf16.msra.mxu0 %v10287
    %11575 = vmatpush.bf16.msra.mxu0 %v10279
    %11576 = vmatpush.bf16.msra.mxu0 %v10271
    %11577 = vmatpush.bf16.msra.mxu0 %v10263
    %11578 = vmatpush.bf16.msra.mxu0 %v10255
    %11579 = vmatpush.bf16.msra.mxu0 %v10247
    %11580 = vmatpush.bf16.msra.mxu0 %v10239
    %11581 = vmatmul.bf16.gmra.mxu0 %v8035
    %v11582 = vpop.f32.mrf.mxu0
    %v11583 = vadd.f32 %v11570, %v11582
    %v11584 = vpop.f32.mrf.mxu0
    %11585 = vdwg.mxu0
    %11586 = vmatpush.bf16.msra.mxu0 %v10359
    %11587 = vmatpush.bf16.msra.mxu0 %v10351
    %11588 = vmatpush.bf16.msra.mxu0 %v10343
    %11589 = vmatpush.bf16.msra.mxu0 %v10335
    %11590 = vmatpush.bf16.msra.mxu0 %v10327
    %11591 = vmatpush.bf16.msra.mxu0 %v10319
    %11592 = vmatpush.bf16.msra.mxu0 %v10311
    %11593 = vmatpush.bf16.msra.mxu0 %v10303
    %11594 = vmatmul.bf16.gmra.mxu0 %v8036
    %v11595 = vpop.f32.mrf.mxu0
    %v11596 = vadd.f32 %v11583, %v11595
    %v11597 = vpop.f32.mrf.mxu0
    %11598 = vdwg.mxu0
    %11599 = vmatpush.bf16.msra.mxu0 %v10423
    %11600 = vmatpush.bf16.msra.mxu0 %v10415
    %11601 = vmatpush.bf16.msra.mxu0 %v10407
    %11602 = vmatpush.bf16.msra.mxu0 %v10399
    %11603 = vmatpush.bf16.msra.mxu0 %v10391
    %11604 = vmatpush.bf16.msra.mxu0 %v10383
    %11605 = vmatpush.bf16.msra.mxu0 %v10375
    %11606 = vmatpush.bf16.msra.mxu0 %v10367
    %11607 = vmatmul.bf16.gmra.mxu0 %v8037
    %v11608 = vpop.f32.mrf.mxu0
    %v11609 = vadd.f32 %v11596, %v11608
    %v11610 = vpop.f32.mrf.mxu0
    %11611 = vdwg.mxu0
    %11612 = vmatpush.bf16.msra.mxu0 %v10487
    %11613 = vmatpush.bf16.msra.mxu0 %v10479
    %11614 = vmatpush.bf16.msra.mxu0 %v10471
    %11615 = vmatpush.bf16.msra.mxu0 %v10463
    %11616 = vmatpush.bf16.msra.mxu0 %v10455
    %11617 = vmatpush.bf16.msra.mxu0 %v10447
    %11618 = vmatpush.bf16.msra.mxu0 %v10439
    %11619 = vmatpush.bf16.msra.mxu0 %v10431
    %11620 = vmatmul.bf16.gmra.mxu0 %v8038
    %v11621 = vpop.f32.mrf.mxu0
    %v11622 = vadd.f32 %v11609, %v11621
    %v11623 = vpop.f32.mrf.mxu0
    %11624 = vdwg.mxu0
    %11625 = vmatpush.bf16.msra.mxu0 %v10551
    %11626 = vmatpush.bf16.msra.mxu0 %v10543
    %11627 = vmatpush.bf16.msra.mxu0 %v10535
    %11628 = vmatpush.bf16.msra.mxu0 %v10527
    %11629 = vmatpush.bf16.msra.mxu0 %v10519
    %11630 = vmatpush.bf16.msra.mxu0 %v10511
    %11631 = vmatpush.bf16.msra.mxu0 %v10503
    %11632 = vmatpush.bf16.msra.mxu0 %v10495
    %11633 = vmatmul.bf16.gmra.mxu0 %v8039
    %v11634 = vpop.f32.mrf.mxu0
    %v11635 = vadd.f32 %v11622, %v11634
    %v11636 = vpop.f32.mrf.mxu0
    %11637 = vdwg.mxu0
    %11638 = vmatpush.bf16.msra.mxu0 %v10615
    %11639 = vmatpush.bf16.msra.mxu0 %v10607
    %11640 = vmatpush.bf16.msra.mxu0 %v10599
    %11641 = vmatpush.bf16.msra.mxu0 %v10591
    %11642 = vmatpush.bf16.msra.mxu0 %v10583
    %11643 = vmatpush.bf16.msra.mxu0 %v10575
    %11644 = vmatpush.bf16.msra.mxu0 %v10567
    %11645 = vmatpush.bf16.msra.mxu0 %v10559
    %11646 = vmatmul.bf16.gmra.mxu0 %v8040
    %v11647 = vpop.f32.mrf.mxu0
    %v11648 = vadd.f32 %v11635, %v11647
    %v11649 = vpop.f32.mrf.mxu0
    %11650 = vdwg.mxu0
    %11651 = vmatpush.bf16.msra.mxu0 %v10168
    %11652 = vmatpush.bf16.msra.mxu0 %v10160
    %11653 = vmatpush.bf16.msra.mxu0 %v10152
    %11654 = vmatpush.bf16.msra.mxu0 %v10144
    %11655 = vmatpush.bf16.msra.mxu0 %v10136
    %11656 = vmatpush.bf16.msra.mxu0 %v10128
    %11657 = vmatpush.bf16.msra.mxu0 %v10120
    %11658 = vmatpush.bf16.msra.mxu0 %v10112
    %11659 = vmatmul.bf16.gmra.mxu0 %v8033
    %v11660 = vpop.f32.mrf.mxu0
    %v11661 = vadd.f32 %v8560, %v11660
    %v11662 = vpop.f32.mrf.mxu0
    %11663 = vdwg.mxu0
    %11664 = vmatpush.bf16.msra.mxu0 %v10232
    %11665 = vmatpush.bf16.msra.mxu0 %v10224
    %11666 = vmatpush.bf16.msra.mxu0 %v10216
    %11667 = vmatpush.bf16.msra.mxu0 %v10208
    %11668 = vmatpush.bf16.msra.mxu0 %v10200
    %11669 = vmatpush.bf16.msra.mxu0 %v10192
    %11670 = vmatpush.bf16.msra.mxu0 %v10184
    %11671 = vmatpush.bf16.msra.mxu0 %v10176
    %11672 = vmatmul.bf16.gmra.mxu0 %v8034
    %v11673 = vpop.f32.mrf.mxu0
    %v11674 = vadd.f32 %v11661, %v11673
    %v11675 = vpop.f32.mrf.mxu0
    %11676 = vdwg.mxu0
    %11677 = vmatpush.bf16.msra.mxu0 %v10296
    %11678 = vmatpush.bf16.msra.mxu0 %v10288
    %11679 = vmatpush.bf16.msra.mxu0 %v10280
    %11680 = vmatpush.bf16.msra.mxu0 %v10272
    %11681 = vmatpush.bf16.msra.mxu0 %v10264
    %11682 = vmatpush.bf16.msra.mxu0 %v10256
    %11683 = vmatpush.bf16.msra.mxu0 %v10248
    %11684 = vmatpush.bf16.msra.mxu0 %v10240
    %11685 = vmatmul.bf16.gmra.mxu0 %v8035
    %v11686 = vpop.f32.mrf.mxu0
    %v11687 = vadd.f32 %v11674, %v11686
    %v11688 = vpop.f32.mrf.mxu0
    %11689 = vdwg.mxu0
    %11690 = vmatpush.bf16.msra.mxu0 %v10360
    %11691 = vmatpush.bf16.msra.mxu0 %v10352
    %11692 = vmatpush.bf16.msra.mxu0 %v10344
    %11693 = vmatpush.bf16.msra.mxu0 %v10336
    %11694 = vmatpush.bf16.msra.mxu0 %v10328
    %11695 = vmatpush.bf16.msra.mxu0 %v10320
    %11696 = vmatpush.bf16.msra.mxu0 %v10312
    %11697 = vmatpush.bf16.msra.mxu0 %v10304
    %11698 = vmatmul.bf16.gmra.mxu0 %v8036
    %v11699 = vpop.f32.mrf.mxu0
    %v11700 = vadd.f32 %v11687, %v11699
    %v11701 = vpop.f32.mrf.mxu0
    %11702 = vdwg.mxu0
    %11703 = vmatpush.bf16.msra.mxu0 %v10424
    %11704 = vmatpush.bf16.msra.mxu0 %v10416
    %11705 = vmatpush.bf16.msra.mxu0 %v10408
    %11706 = vmatpush.bf16.msra.mxu0 %v10400
    %11707 = vmatpush.bf16.msra.mxu0 %v10392
    %11708 = vmatpush.bf16.msra.mxu0 %v10384
    %11709 = vmatpush.bf16.msra.mxu0 %v10376
    %11710 = vmatpush.bf16.msra.mxu0 %v10368
    %11711 = vmatmul.bf16.gmra.mxu0 %v8037
    %v11712 = vpop.f32.mrf.mxu0
    %v11713 = vadd.f32 %v11700, %v11712
    %v11714 = vpop.f32.mrf.mxu0
    %11715 = vdwg.mxu0
    %11716 = vmatpush.bf16.msra.mxu0 %v10488
    %11717 = vmatpush.bf16.msra.mxu0 %v10480
    %11718 = vmatpush.bf16.msra.mxu0 %v10472
    %11719 = vmatpush.bf16.msra.mxu0 %v10464
    %11720 = vmatpush.bf16.msra.mxu0 %v10456
    %11721 = vmatpush.bf16.msra.mxu0 %v10448
    %11722 = vmatpush.bf16.msra.mxu0 %v10440
    %11723 = vmatpush.bf16.msra.mxu0 %v10432
    %11724 = vmatmul.bf16.gmra.mxu0 %v8038
    %v11725 = vpop.f32.mrf.mxu0
    %v11726 = vadd.f32 %v11713, %v11725
    %v11727 = vpop.f32.mrf.mxu0
    %11728 = vdwg.mxu0
    %11729 = vmatpush.bf16.msra.mxu0 %v10552
    %11730 = vmatpush.bf16.msra.mxu0 %v10544
    %11731 = vmatpush.bf16.msra.mxu0 %v10536
    %11732 = vmatpush.bf16.msra.mxu0 %v10528
    %11733 = vmatpush.bf16.msra.mxu0 %v10520
    %11734 = vmatpush.bf16.msra.mxu0 %v10512
    %11735 = vmatpush.bf16.msra.mxu0 %v10504
    %11736 = vmatpush.bf16.msra.mxu0 %v10496
    %11737 = vmatmul.bf16.gmra.mxu0 %v8039
    %v11738 = vpop.f32.mrf.mxu0
    %v11739 = vadd.f32 %v11726, %v11738
    %v11740 = vpop.f32.mrf.mxu0
    %11741 = vdwg.mxu0
    %11742 = vmatpush.bf16.msra.mxu0 %v10616
    %11743 = vmatpush.bf16.msra.mxu0 %v10608
    %11744 = vmatpush.bf16.msra.mxu0 %v10600
    %11745 = vmatpush.bf16.msra.mxu0 %v10592
    %11746 = vmatpush.bf16.msra.mxu0 %v10584
    %11747 = vmatpush.bf16.msra.mxu0 %v10576
    %11748 = vmatpush.bf16.msra.mxu0 %v10568
    %11749 = vmatpush.bf16.msra.mxu0 %v10560
    %11750 = vmatmul.bf16.gmra.mxu0 %v8040
    %v11751 = vpop.f32.mrf.mxu0
    %v11752 = vadd.f32 %v11739, %v11751
    %v11753 = vpop.f32.mrf.mxu0
    %11754 = vdwg.mxu0
    %11755 = vmatpush.bf16.msra.mxu0 %v10169
    %11756 = vmatpush.bf16.msra.mxu0 %v10161
    %11757 = vmatpush.bf16.msra.mxu0 %v10153
    %11758 = vmatpush.bf16.msra.mxu0 %v10145
    %11759 = vmatpush.bf16.msra.mxu0 %v10137
    %11760 = vmatpush.bf16.msra.mxu0 %v10129
    %11761 = vmatpush.bf16.msra.mxu0 %v10121
    %11762 = vmatpush.bf16.msra.mxu0 %v10113
    %11763 = vmatmul.bf16.gmra.mxu0 %v8033
    %v11764 = vpop.f32.mrf.mxu0
    %v11765 = vadd.f32 %v8561, %v11764
    %v11766 = vpop.f32.mrf.mxu0
    %11767 = vdwg.mxu0
    %11768 = vmatpush.bf16.msra.mxu0 %v10233
    %11769 = vmatpush.bf16.msra.mxu0 %v10225
    %11770 = vmatpush.bf16.msra.mxu0 %v10217
    %11771 = vmatpush.bf16.msra.mxu0 %v10209
    %11772 = vmatpush.bf16.msra.mxu0 %v10201
    %11773 = vmatpush.bf16.msra.mxu0 %v10193
    %11774 = vmatpush.bf16.msra.mxu0 %v10185
    %11775 = vmatpush.bf16.msra.mxu0 %v10177
    %11776 = vmatmul.bf16.gmra.mxu0 %v8034
    %v11777 = vpop.f32.mrf.mxu0
    %v11778 = vadd.f32 %v11765, %v11777
    %v11779 = vpop.f32.mrf.mxu0
    %11780 = vdwg.mxu0
    %11781 = vmatpush.bf16.msra.mxu0 %v10297
    %11782 = vmatpush.bf16.msra.mxu0 %v10289
    %11783 = vmatpush.bf16.msra.mxu0 %v10281
    %11784 = vmatpush.bf16.msra.mxu0 %v10273
    %11785 = vmatpush.bf16.msra.mxu0 %v10265
    %11786 = vmatpush.bf16.msra.mxu0 %v10257
    %11787 = vmatpush.bf16.msra.mxu0 %v10249
    %11788 = vmatpush.bf16.msra.mxu0 %v10241
    %11789 = vmatmul.bf16.gmra.mxu0 %v8035
    %v11790 = vpop.f32.mrf.mxu0
    %v11791 = vadd.f32 %v11778, %v11790
    %v11792 = vpop.f32.mrf.mxu0
    %11793 = vdwg.mxu0
    %11794 = vmatpush.bf16.msra.mxu0 %v10361
    %11795 = vmatpush.bf16.msra.mxu0 %v10353
    %11796 = vmatpush.bf16.msra.mxu0 %v10345
    %11797 = vmatpush.bf16.msra.mxu0 %v10337
    %11798 = vmatpush.bf16.msra.mxu0 %v10329
    %11799 = vmatpush.bf16.msra.mxu0 %v10321
    %11800 = vmatpush.bf16.msra.mxu0 %v10313
    %11801 = vmatpush.bf16.msra.mxu0 %v10305
    %11802 = vmatmul.bf16.gmra.mxu0 %v8036
    %v11803 = vpop.f32.mrf.mxu0
    %v11804 = vadd.f32 %v11791, %v11803
    %v11805 = vpop.f32.mrf.mxu0
    %11806 = vdwg.mxu0
    %11807 = vmatpush.bf16.msra.mxu0 %v10425
    %11808 = vmatpush.bf16.msra.mxu0 %v10417
    %11809 = vmatpush.bf16.msra.mxu0 %v10409
    %11810 = vmatpush.bf16.msra.mxu0 %v10401
    %11811 = vmatpush.bf16.msra.mxu0 %v10393
    %11812 = vmatpush.bf16.msra.mxu0 %v10385
    %11813 = vmatpush.bf16.msra.mxu0 %v10377
    %11814 = vmatpush.bf16.msra.mxu0 %v10369
    %11815 = vmatmul.bf16.gmra.mxu0 %v8037
    %v11816 = vpop.f32.mrf.mxu0
    %v11817 = vadd.f32 %v11804, %v11816
    %v11818 = vpop.f32.mrf.mxu0
    %11819 = vdwg.mxu0
    %11820 = vmatpush.bf16.msra.mxu0 %v10489
    %11821 = vmatpush.bf16.msra.mxu0 %v10481
    %11822 = vmatpush.bf16.msra.mxu0 %v10473
    %11823 = vmatpush.bf16.msra.mxu0 %v10465
    %11824 = vmatpush.bf16.msra.mxu0 %v10457
    %11825 = vmatpush.bf16.msra.mxu0 %v10449
    %11826 = vmatpush.bf16.msra.mxu0 %v10441
    %11827 = vmatpush.bf16.msra.mxu0 %v10433
    %11828 = vmatmul.bf16.gmra.mxu0 %v8038
    %v11829 = vpop.f32.mrf.mxu0
    %v11830 = vadd.f32 %v11817, %v11829
    %v11831 = vpop.f32.mrf.mxu0
    %11832 = vdwg.mxu0
    %11833 = vmatpush.bf16.msra.mxu0 %v10553
    %11834 = vmatpush.bf16.msra.mxu0 %v10545
    %11835 = vmatpush.bf16.msra.mxu0 %v10537
    %11836 = vmatpush.bf16.msra.mxu0 %v10529
    %11837 = vmatpush.bf16.msra.mxu0 %v10521
    %11838 = vmatpush.bf16.msra.mxu0 %v10513
    %11839 = vmatpush.bf16.msra.mxu0 %v10505
    %11840 = vmatpush.bf16.msra.mxu0 %v10497
    %11841 = vmatmul.bf16.gmra.mxu0 %v8039
    %v11842 = vpop.f32.mrf.mxu0
    %v11843 = vadd.f32 %v11830, %v11842
    %v11844 = vpop.f32.mrf.mxu0
    %11845 = vdwg.mxu0
    %11846 = vmatpush.bf16.msra.mxu0 %v10617
    %11847 = vmatpush.bf16.msra.mxu0 %v10609
    %11848 = vmatpush.bf16.msra.mxu0 %v10601
    %11849 = vmatpush.bf16.msra.mxu0 %v10593
    %11850 = vmatpush.bf16.msra.mxu0 %v10585
    %11851 = vmatpush.bf16.msra.mxu0 %v10577
    %11852 = vmatpush.bf16.msra.mxu0 %v10569
    %11853 = vmatpush.bf16.msra.mxu0 %v10561
    %11854 = vmatmul.bf16.gmra.mxu0 %v8040
    %v11855 = vpop.f32.mrf.mxu0
    %v11856 = vadd.f32 %v11843, %v11855
    %v11857 = vpop.f32.mrf.mxu0
    %11858 = vdwg.mxu0
    %11859 = vmatpush.bf16.msra.mxu0 %v10170
    %11860 = vmatpush.bf16.msra.mxu0 %v10162
    %11861 = vmatpush.bf16.msra.mxu0 %v10154
    %11862 = vmatpush.bf16.msra.mxu0 %v10146
    %11863 = vmatpush.bf16.msra.mxu0 %v10138
    %11864 = vmatpush.bf16.msra.mxu0 %v10130
    %11865 = vmatpush.bf16.msra.mxu0 %v10122
    %11866 = vmatpush.bf16.msra.mxu0 %v10114
    %11867 = vmatmul.bf16.gmra.mxu0 %v8033
    %v11868 = vpop.f32.mrf.mxu0
    %v11869 = vadd.f32 %v8562, %v11868
    %v11870 = vpop.f32.mrf.mxu0
    %11871 = vdwg.mxu0
    %11872 = vmatpush.bf16.msra.mxu0 %v10234
    %11873 = vmatpush.bf16.msra.mxu0 %v10226
    %11874 = vmatpush.bf16.msra.mxu0 %v10218
    %11875 = vmatpush.bf16.msra.mxu0 %v10210
    %11876 = vmatpush.bf16.msra.mxu0 %v10202
    %11877 = vmatpush.bf16.msra.mxu0 %v10194
    %11878 = vmatpush.bf16.msra.mxu0 %v10186
    %11879 = vmatpush.bf16.msra.mxu0 %v10178
    %11880 = vmatmul.bf16.gmra.mxu0 %v8034
    %v11881 = vpop.f32.mrf.mxu0
    %v11882 = vadd.f32 %v11869, %v11881
    %v11883 = vpop.f32.mrf.mxu0
    %11884 = vdwg.mxu0
    %11885 = vmatpush.bf16.msra.mxu0 %v10298
    %11886 = vmatpush.bf16.msra.mxu0 %v10290
    %11887 = vmatpush.bf16.msra.mxu0 %v10282
    %11888 = vmatpush.bf16.msra.mxu0 %v10274
    %11889 = vmatpush.bf16.msra.mxu0 %v10266
    %11890 = vmatpush.bf16.msra.mxu0 %v10258
    %11891 = vmatpush.bf16.msra.mxu0 %v10250
    %11892 = vmatpush.bf16.msra.mxu0 %v10242
    %11893 = vmatmul.bf16.gmra.mxu0 %v8035
    %v11894 = vpop.f32.mrf.mxu0
    %v11895 = vadd.f32 %v11882, %v11894
    %v11896 = vpop.f32.mrf.mxu0
    %11897 = vdwg.mxu0
    %11898 = vmatpush.bf16.msra.mxu0 %v10362
    %11899 = vmatpush.bf16.msra.mxu0 %v10354
    %11900 = vmatpush.bf16.msra.mxu0 %v10346
    %11901 = vmatpush.bf16.msra.mxu0 %v10338
    %11902 = vmatpush.bf16.msra.mxu0 %v10330
    %11903 = vmatpush.bf16.msra.mxu0 %v10322
    %11904 = vmatpush.bf16.msra.mxu0 %v10314
    %11905 = vmatpush.bf16.msra.mxu0 %v10306
    %11906 = vmatmul.bf16.gmra.mxu0 %v8036
    %v11907 = vpop.f32.mrf.mxu0
    %v11908 = vadd.f32 %v11895, %v11907
    %v11909 = vpop.f32.mrf.mxu0
    %11910 = vdwg.mxu0
    %11911 = vmatpush.bf16.msra.mxu0 %v10426
    %11912 = vmatpush.bf16.msra.mxu0 %v10418
    %11913 = vmatpush.bf16.msra.mxu0 %v10410
    %11914 = vmatpush.bf16.msra.mxu0 %v10402
    %11915 = vmatpush.bf16.msra.mxu0 %v10394
    %11916 = vmatpush.bf16.msra.mxu0 %v10386
    %11917 = vmatpush.bf16.msra.mxu0 %v10378
    %11918 = vmatpush.bf16.msra.mxu0 %v10370
    %11919 = vmatmul.bf16.gmra.mxu0 %v8037
    %v11920 = vpop.f32.mrf.mxu0
    %v11921 = vadd.f32 %v11908, %v11920
    %v11922 = vpop.f32.mrf.mxu0
    %11923 = vdwg.mxu0
    %11924 = vmatpush.bf16.msra.mxu0 %v10490
    %11925 = vmatpush.bf16.msra.mxu0 %v10482
    %11926 = vmatpush.bf16.msra.mxu0 %v10474
    %11927 = vmatpush.bf16.msra.mxu0 %v10466
    %11928 = vmatpush.bf16.msra.mxu0 %v10458
    %11929 = vmatpush.bf16.msra.mxu0 %v10450
    %11930 = vmatpush.bf16.msra.mxu0 %v10442
    %11931 = vmatpush.bf16.msra.mxu0 %v10434
    %11932 = vmatmul.bf16.gmra.mxu0 %v8038
    %v11933 = vpop.f32.mrf.mxu0
    %v11934 = vadd.f32 %v11921, %v11933
    %v11935 = vpop.f32.mrf.mxu0
    %11936 = vdwg.mxu0
    %11937 = vmatpush.bf16.msra.mxu0 %v10554
    %11938 = vmatpush.bf16.msra.mxu0 %v10546
    %11939 = vmatpush.bf16.msra.mxu0 %v10538
    %11940 = vmatpush.bf16.msra.mxu0 %v10530
    %11941 = vmatpush.bf16.msra.mxu0 %v10522
    %11942 = vmatpush.bf16.msra.mxu0 %v10514
    %11943 = vmatpush.bf16.msra.mxu0 %v10506
    %11944 = vmatpush.bf16.msra.mxu0 %v10498
    %11945 = vmatmul.bf16.gmra.mxu0 %v8039
    %v11946 = vpop.f32.mrf.mxu0
    %v11947 = vadd.f32 %v11934, %v11946
    %v11948 = vpop.f32.mrf.mxu0
    %11949 = vdwg.mxu0
    %11950 = vmatpush.bf16.msra.mxu0 %v10618
    %11951 = vmatpush.bf16.msra.mxu0 %v10610
    %11952 = vmatpush.bf16.msra.mxu0 %v10602
    %11953 = vmatpush.bf16.msra.mxu0 %v10594
    %11954 = vmatpush.bf16.msra.mxu0 %v10586
    %11955 = vmatpush.bf16.msra.mxu0 %v10578
    %11956 = vmatpush.bf16.msra.mxu0 %v10570
    %11957 = vmatpush.bf16.msra.mxu0 %v10562
    %11958 = vmatmul.bf16.gmra.mxu0 %v8040
    %v11959 = vpop.f32.mrf.mxu0
    %v11960 = vadd.f32 %v11947, %v11959
    %v11961 = vpop.f32.mrf.mxu0
    %11962 = vdwg.mxu0
    %v11963 = vmax.f32 %v11232, 0.0
    %v11964 = vmax.f32 %v11336, 0.0
    %v11965 = vmax.f32 %v11440, 0.0
    %v11966 = vmax.f32 %v11544, 0.0
    %v11967 = vmax.f32 %v11648, 0.0
    %v11968 = vmax.f32 %v11752, 0.0
    %v11969 = vmax.f32 %v11856, 0.0
    %v11970 = vmax.f32 %v11960, 0.0
    %v11971 = vpack.c.bf16 %v11963, %v11963
    %v11972 = vpack.c.bf16 %v11964, %v11964
    %v11973 = vpack.c.bf16 %v11965, %v11965
    %v11974 = vpack.c.bf16 %v11966, %v11966
    %v11975 = vpack.c.bf16 %v11967, %v11967
    %v11976 = vpack.c.bf16 %v11968, %v11968
    %v11977 = vpack.c.bf16 %v11969, %v11969
    %v11978 = vpack.c.bf16 %v11970, %v11970
    %v11979 = vld [vmem:[#allocation12] sm:$0xf]
    %v11980 = vld [vmem:[#allocation12 + $0x4] sm:$0xf]
    %v11981 = vld [vmem:[#allocation12 + $0x8] sm:$0xf]
    %v11982 = vld [vmem:[#allocation12 + $0xc] sm:$0xf]
    %v11983 = vld [vmem:[#allocation12 + $0x10] sm:$0xf]
    %v11984 = vld [vmem:[#allocation12 + $0x14] sm:$0xf]
    %v11985 = vld [vmem:[#allocation12 + $0x18] sm:$0xf]
    %v11986 = vld [vmem:[#allocation12 + $0x1c] sm:$0xf]
    %v11987 = vld [vmem:[#allocation12 + $0x20] sm:$0xf]
    %v11988 = vld [vmem:[#allocation12 + $0x24] sm:$0xf]
    %v11989 = vld [vmem:[#allocation12 + $0x28] sm:$0xf]
    %v11990 = vld [vmem:[#allocation12 + $0x2c] sm:$0xf]
    %v11991 = vld [vmem:[#allocation12 + $0x30] sm:$0xf]
    %v11992 = vld [vmem:[#allocation12 + $0x34] sm:$0xf]
    %v11993 = vld [vmem:[#allocation12 + $0x38] sm:$0xf]
    %v11994 = vld [vmem:[#allocation12 + $0x3c] sm:$0xf]
    %v11995 = vld [vmem:[#allocation12 + $0x40] sm:$0xf]
    %v11996 = vld [vmem:[#allocation12 + $0x44] sm:$0xf]
    %v11997 = vld [vmem:[#allocation12 + $0x48] sm:$0xf]
    %v11998 = vld [vmem:[#allocation12 + $0x4c] sm:$0xf]
    %v11999 = vld [vmem:[#allocation12 + $0x50] sm:$0xf]
    %v12000 = vld [vmem:[#allocation12 + $0x54] sm:$0xf]
    %v12001 = vld [vmem:[#allocation12 + $0x58] sm:$0xf]
    %v12002 = vld [vmem:[#allocation12 + $0x5c] sm:$0xf]
    %v12003 = vld [vmem:[#allocation12 + $0x60] sm:$0xf]
    %v12004 = vld [vmem:[#allocation12 + $0x64] sm:$0xf]
    %v12005 = vld [vmem:[#allocation12 + $0x68] sm:$0xf]
    %v12006 = vld [vmem:[#allocation12 + $0x6c] sm:$0xf]
    %v12007 = vld [vmem:[#allocation12 + $0x70] sm:$0xf]
    %v12008 = vld [vmem:[#allocation12 + $0x74] sm:$0xf]
    %v12009 = vld [vmem:[#allocation12 + $0x78] sm:$0xf]
    %v12010 = vld [vmem:[#allocation12 + $0x7c] sm:$0xf]
    %v12011 = vld [vmem:[#allocation12 + $0x80] sm:$0xf]
    %v12012 = vld [vmem:[#allocation12 + $0x84] sm:$0xf]
    %v12013 = vld [vmem:[#allocation12 + $0x88] sm:$0xf]
    %v12014 = vld [vmem:[#allocation12 + $0x8c] sm:$0xf]
    %v12015 = vld [vmem:[#allocation12 + $0x90] sm:$0xf]
    %v12016 = vld [vmem:[#allocation12 + $0x94] sm:$0xf]
    %v12017 = vld [vmem:[#allocation12 + $0x98] sm:$0xf]
    %v12018 = vld [vmem:[#allocation12 + $0x9c] sm:$0xf]
    %v12019 = vld [vmem:[#allocation12 + $0xa0] sm:$0xf]
    %v12020 = vld [vmem:[#allocation12 + $0xa4] sm:$0xf]
    %v12021 = vld [vmem:[#allocation12 + $0xa8] sm:$0xf]
    %v12022 = vld [vmem:[#allocation12 + $0xac] sm:$0xf]
    %v12023 = vld [vmem:[#allocation12 + $0xb0] sm:$0xf]
    %v12024 = vld [vmem:[#allocation12 + $0xb4] sm:$0xf]
    %v12025 = vld [vmem:[#allocation12 + $0xb8] sm:$0xf]
    %v12026 = vld [vmem:[#allocation12 + $0xbc] sm:$0xf]
    %v12027 = vld [vmem:[#allocation12 + $0xc0] sm:$0xf]
    %v12028 = vld [vmem:[#allocation12 + $0xc4] sm:$0xf]
    %v12029 = vld [vmem:[#allocation12 + $0xc8] sm:$0xf]
    %v12030 = vld [vmem:[#allocation12 + $0xcc] sm:$0xf]
    %v12031 = vld [vmem:[#allocation12 + $0xd0] sm:$0xf]
    %v12032 = vld [vmem:[#allocation12 + $0xd4] sm:$0xf]
    %v12033 = vld [vmem:[#allocation12 + $0xd8] sm:$0xf]
    %v12034 = vld [vmem:[#allocation12 + $0xdc] sm:$0xf]
    %v12035 = vld [vmem:[#allocation12 + $0xe0] sm:$0xf]
    %v12036 = vld [vmem:[#allocation12 + $0xe4] sm:$0xf]
    %v12037 = vld [vmem:[#allocation12 + $0xe8] sm:$0xf]
    %v12038 = vld [vmem:[#allocation12 + $0xec] sm:$0xf]
    %v12039 = vld [vmem:[#allocation12 + $0xf0] sm:$0xf]
    %v12040 = vld [vmem:[#allocation12 + $0xf4] sm:$0xf]
    %v12041 = vld [vmem:[#allocation12 + $0xf8] sm:$0xf]
    %v12042 = vld [vmem:[#allocation12 + $0xfc] sm:$0xf]
    %v12043 = vld [vmem:[#allocation12 + $0x100] sm:$0xf]
    %v12044 = vld [vmem:[#allocation12 + $0x104] sm:$0xf]
    %v12045 = vld [vmem:[#allocation12 + $0x108] sm:$0xf]
    %v12046 = vld [vmem:[#allocation12 + $0x10c] sm:$0xf]
    %v12047 = vld [vmem:[#allocation12 + $0x110] sm:$0xf]
    %v12048 = vld [vmem:[#allocation12 + $0x114] sm:$0xf]
    %v12049 = vld [vmem:[#allocation12 + $0x118] sm:$0xf]
    %v12050 = vld [vmem:[#allocation12 + $0x11c] sm:$0xf]
    %v12051 = vld [vmem:[#allocation12 + $0x120] sm:$0xf]
    %v12052 = vld [vmem:[#allocation12 + $0x124] sm:$0xf]
    %v12053 = vld [vmem:[#allocation12 + $0x128] sm:$0xf]
    %v12054 = vld [vmem:[#allocation12 + $0x12c] sm:$0xf]
    %v12055 = vld [vmem:[#allocation12 + $0x130] sm:$0xf]
    %v12056 = vld [vmem:[#allocation12 + $0x134] sm:$0xf]
    %v12057 = vld [vmem:[#allocation12 + $0x138] sm:$0xf]
    %v12058 = vld [vmem:[#allocation12 + $0x13c] sm:$0xf]
    %v12059 = vld [vmem:[#allocation12 + $0x140] sm:$0xf]
    %v12060 = vld [vmem:[#allocation12 + $0x144] sm:$0xf]
    %v12061 = vld [vmem:[#allocation12 + $0x148] sm:$0xf]
    %v12062 = vld [vmem:[#allocation12 + $0x14c] sm:$0xf]
    %v12063 = vld [vmem:[#allocation12 + $0x150] sm:$0xf]
    %v12064 = vld [vmem:[#allocation12 + $0x154] sm:$0xf]
    %v12065 = vld [vmem:[#allocation12 + $0x158] sm:$0xf]
    %v12066 = vld [vmem:[#allocation12 + $0x15c] sm:$0xf]
    %v12067 = vld [vmem:[#allocation12 + $0x160] sm:$0xf]
    %v12068 = vld [vmem:[#allocation12 + $0x164] sm:$0xf]
    %v12069 = vld [vmem:[#allocation12 + $0x168] sm:$0xf]
    %v12070 = vld [vmem:[#allocation12 + $0x16c] sm:$0xf]
    %v12071 = vld [vmem:[#allocation12 + $0x170] sm:$0xf]
    %v12072 = vld [vmem:[#allocation12 + $0x174] sm:$0xf]
    %v12073 = vld [vmem:[#allocation12 + $0x178] sm:$0xf]
    %v12074 = vld [vmem:[#allocation12 + $0x17c] sm:$0xf]
    %v12075 = vld [vmem:[#allocation12 + $0x180] sm:$0xf]
    %v12076 = vld [vmem:[#allocation12 + $0x184] sm:$0xf]
    %v12077 = vld [vmem:[#allocation12 + $0x188] sm:$0xf]
    %v12078 = vld [vmem:[#allocation12 + $0x18c] sm:$0xf]
    %v12079 = vld [vmem:[#allocation12 + $0x190] sm:$0xf]
    %v12080 = vld [vmem:[#allocation12 + $0x194] sm:$0xf]
    %v12081 = vld [vmem:[#allocation12 + $0x198] sm:$0xf]
    %v12082 = vld [vmem:[#allocation12 + $0x19c] sm:$0xf]
    %v12083 = vld [vmem:[#allocation12 + $0x1a0] sm:$0xf]
    %v12084 = vld [vmem:[#allocation12 + $0x1a4] sm:$0xf]
    %v12085 = vld [vmem:[#allocation12 + $0x1a8] sm:$0xf]
    %v12086 = vld [vmem:[#allocation12 + $0x1ac] sm:$0xf]
    %v12087 = vld [vmem:[#allocation12 + $0x1b0] sm:$0xf]
    %v12088 = vld [vmem:[#allocation12 + $0x1b4] sm:$0xf]
    %v12089 = vld [vmem:[#allocation12 + $0x1b8] sm:$0xf]
    %v12090 = vld [vmem:[#allocation12 + $0x1bc] sm:$0xf]
    %v12091 = vld [vmem:[#allocation12 + $0x1c0] sm:$0xf]
    %v12092 = vld [vmem:[#allocation12 + $0x1c4] sm:$0xf]
    %v12093 = vld [vmem:[#allocation12 + $0x1c8] sm:$0xf]
    %v12094 = vld [vmem:[#allocation12 + $0x1cc] sm:$0xf]
    %v12095 = vld [vmem:[#allocation12 + $0x1d0] sm:$0xf]
    %v12096 = vld [vmem:[#allocation12 + $0x1d4] sm:$0xf]
    %v12097 = vld [vmem:[#allocation12 + $0x1d8] sm:$0xf]
    %v12098 = vld [vmem:[#allocation12 + $0x1dc] sm:$0xf]
    %v12099 = vld [vmem:[#allocation12 + $0x1e0] sm:$0xf]
    %v12100 = vld [vmem:[#allocation12 + $0x1e4] sm:$0xf]
    %v12101 = vld [vmem:[#allocation12 + $0x1e8] sm:$0xf]
    %v12102 = vld [vmem:[#allocation12 + $0x1ec] sm:$0xf]
    %v12103 = vld [vmem:[#allocation12 + $0x1f0] sm:$0xf]
    %v12104 = vld [vmem:[#allocation12 + $0x1f4] sm:$0xf]
    %v12105 = vld [vmem:[#allocation12 + $0x1f8] sm:$0xf]
    %v12106 = vld [vmem:[#allocation12 + $0x1fc] sm:$0xf]
    %v12107 = vld [vmem:[#allocation13] sm:$0x1]
    %v12109 = vperm.slane %v12107, 0
    %v12239 = vunpack.c.l.b16 %v11979
    %v12240 = vunpack.c.l.b16 %v11980
    %v12241 = vunpack.c.l.b16 %v11981
    %v12242 = vunpack.c.l.b16 %v11982
    %v12243 = vunpack.c.l.b16 %v11983
    %v12244 = vunpack.c.l.b16 %v11984
    %v12245 = vunpack.c.l.b16 %v11985
    %v12246 = vunpack.c.l.b16 %v11986
    %v12247 = vunpack.c.l.b16 %v11987
    %v12248 = vunpack.c.l.b16 %v11988
    %v12249 = vunpack.c.l.b16 %v11989
    %v12250 = vunpack.c.l.b16 %v11990
    %v12251 = vunpack.c.l.b16 %v11991
    %v12252 = vunpack.c.l.b16 %v11992
    %v12253 = vunpack.c.l.b16 %v11993
    %v12254 = vunpack.c.l.b16 %v11994
    %v12255 = vunpack.c.l.b16 %v11995
    %v12256 = vunpack.c.l.b16 %v11996
    %v12257 = vunpack.c.l.b16 %v11997
    %v12258 = vunpack.c.l.b16 %v11998
    %v12259 = vunpack.c.l.b16 %v11999
    %v12260 = vunpack.c.l.b16 %v12000
    %v12261 = vunpack.c.l.b16 %v12001
    %v12262 = vunpack.c.l.b16 %v12002
    %v12263 = vunpack.c.l.b16 %v12003
    %v12264 = vunpack.c.l.b16 %v12004
    %v12265 = vunpack.c.l.b16 %v12005
    %v12266 = vunpack.c.l.b16 %v12006
    %v12267 = vunpack.c.l.b16 %v12007
    %v12268 = vunpack.c.l.b16 %v12008
    %v12269 = vunpack.c.l.b16 %v12009
    %v12270 = vunpack.c.l.b16 %v12010
    %v12271 = vunpack.c.l.b16 %v12011
    %v12272 = vunpack.c.l.b16 %v12012
    %v12273 = vunpack.c.l.b16 %v12013
    %v12274 = vunpack.c.l.b16 %v12014
    %v12275 = vunpack.c.l.b16 %v12015
    %v12276 = vunpack.c.l.b16 %v12016
    %v12277 = vunpack.c.l.b16 %v12017
    %v12278 = vunpack.c.l.b16 %v12018
    %v12279 = vunpack.c.l.b16 %v12019
    %v12280 = vunpack.c.l.b16 %v12020
    %v12281 = vunpack.c.l.b16 %v12021
    %v12282 = vunpack.c.l.b16 %v12022
    %v12283 = vunpack.c.l.b16 %v12023
    %v12284 = vunpack.c.l.b16 %v12024
    %v12285 = vunpack.c.l.b16 %v12025
    %v12286 = vunpack.c.l.b16 %v12026
    %v12287 = vunpack.c.l.b16 %v12027
    %v12288 = vunpack.c.l.b16 %v12028
    %v12289 = vunpack.c.l.b16 %v12029
    %v12290 = vunpack.c.l.b16 %v12030
    %v12291 = vunpack.c.l.b16 %v12031
    %v12292 = vunpack.c.l.b16 %v12032
    %v12293 = vunpack.c.l.b16 %v12033
    %v12294 = vunpack.c.l.b16 %v12034
    %v12295 = vunpack.c.l.b16 %v12035
    %v12296 = vunpack.c.l.b16 %v12036
    %v12297 = vunpack.c.l.b16 %v12037
    %v12298 = vunpack.c.l.b16 %v12038
    %v12299 = vunpack.c.l.b16 %v12039
    %v12300 = vunpack.c.l.b16 %v12040
    %v12301 = vunpack.c.l.b16 %v12041
    %v12302 = vunpack.c.l.b16 %v12042
    %v12303 = vunpack.c.l.b16 %v12043
    %v12304 = vunpack.c.l.b16 %v12044
    %v12305 = vunpack.c.l.b16 %v12045
    %v12306 = vunpack.c.l.b16 %v12046
    %v12307 = vunpack.c.l.b16 %v12047
    %v12308 = vunpack.c.l.b16 %v12048
    %v12309 = vunpack.c.l.b16 %v12049
    %v12310 = vunpack.c.l.b16 %v12050
    %v12311 = vunpack.c.l.b16 %v12051
    %v12312 = vunpack.c.l.b16 %v12052
    %v12313 = vunpack.c.l.b16 %v12053
    %v12314 = vunpack.c.l.b16 %v12054
    %v12315 = vunpack.c.l.b16 %v12055
    %v12316 = vunpack.c.l.b16 %v12056
    %v12317 = vunpack.c.l.b16 %v12057
    %v12318 = vunpack.c.l.b16 %v12058
    %v12319 = vunpack.c.l.b16 %v12059
    %v12320 = vunpack.c.l.b16 %v12060
    %v12321 = vunpack.c.l.b16 %v12061
    %v12322 = vunpack.c.l.b16 %v12062
    %v12323 = vunpack.c.l.b16 %v12063
    %v12324 = vunpack.c.l.b16 %v12064
    %v12325 = vunpack.c.l.b16 %v12065
    %v12326 = vunpack.c.l.b16 %v12066
    %v12327 = vunpack.c.l.b16 %v12067
    %v12328 = vunpack.c.l.b16 %v12068
    %v12329 = vunpack.c.l.b16 %v12069
    %v12330 = vunpack.c.l.b16 %v12070
    %v12331 = vunpack.c.l.b16 %v12071
    %v12332 = vunpack.c.l.b16 %v12072
    %v12333 = vunpack.c.l.b16 %v12073
    %v12334 = vunpack.c.l.b16 %v12074
    %v12335 = vunpack.c.l.b16 %v12075
    %v12336 = vunpack.c.l.b16 %v12076
    %v12337 = vunpack.c.l.b16 %v12077
    %v12338 = vunpack.c.l.b16 %v12078
    %v12339 = vunpack.c.l.b16 %v12079
    %v12340 = vunpack.c.l.b16 %v12080
    %v12341 = vunpack.c.l.b16 %v12081
    %v12342 = vunpack.c.l.b16 %v12082
    %v12343 = vunpack.c.l.b16 %v12083
    %v12344 = vunpack.c.l.b16 %v12084
    %v12345 = vunpack.c.l.b16 %v12085
    %v12346 = vunpack.c.l.b16 %v12086
    %v12347 = vunpack.c.l.b16 %v12087
    %v12348 = vunpack.c.l.b16 %v12088
    %v12349 = vunpack.c.l.b16 %v12089
    %v12350 = vunpack.c.l.b16 %v12090
    %v12351 = vunpack.c.l.b16 %v12091
    %v12352 = vunpack.c.l.b16 %v12092
    %v12353 = vunpack.c.l.b16 %v12093
    %v12354 = vunpack.c.l.b16 %v12094
    %v12355 = vunpack.c.l.b16 %v12095
    %v12356 = vunpack.c.l.b16 %v12096
    %v12357 = vunpack.c.l.b16 %v12097
    %v12358 = vunpack.c.l.b16 %v12098
    %v12359 = vunpack.c.l.b16 %v12099
    %v12360 = vunpack.c.l.b16 %v12100
    %v12361 = vunpack.c.l.b16 %v12101
    %v12362 = vunpack.c.l.b16 %v12102
    %v12363 = vunpack.c.l.b16 %v12103
    %v12364 = vunpack.c.l.b16 %v12104
    %v12365 = vunpack.c.l.b16 %v12105
    %v12366 = vunpack.c.l.b16 %v12106
    %v12367 = vpack.c.b16 %v12240, %v12239
    %v12368 = vpack.c.b16 %v12242, %v12241
    %v12369 = vpack.c.b16 %v12244, %v12243
    %v12370 = vpack.c.b16 %v12246, %v12245
    %v12371 = vpack.c.b16 %v12248, %v12247
    %v12372 = vpack.c.b16 %v12250, %v12249
    %v12373 = vpack.c.b16 %v12252, %v12251
    %v12374 = vpack.c.b16 %v12254, %v12253
    %v12375 = vpack.c.b16 %v12256, %v12255
    %v12376 = vpack.c.b16 %v12258, %v12257
    %v12377 = vpack.c.b16 %v12260, %v12259
    %v12378 = vpack.c.b16 %v12262, %v12261
    %v12379 = vpack.c.b16 %v12264, %v12263
    %v12380 = vpack.c.b16 %v12266, %v12265
    %v12381 = vpack.c.b16 %v12268, %v12267
    %v12382 = vpack.c.b16 %v12270, %v12269
    %v12383 = vpack.c.b16 %v12272, %v12271
    %v12384 = vpack.c.b16 %v12274, %v12273
    %v12385 = vpack.c.b16 %v12276, %v12275
    %v12386 = vpack.c.b16 %v12278, %v12277
    %v12387 = vpack.c.b16 %v12280, %v12279
    %v12388 = vpack.c.b16 %v12282, %v12281
    %v12389 = vpack.c.b16 %v12284, %v12283
    %v12390 = vpack.c.b16 %v12286, %v12285
    %v12391 = vpack.c.b16 %v12288, %v12287
    %v12392 = vpack.c.b16 %v12290, %v12289
    %v12393 = vpack.c.b16 %v12292, %v12291
    %v12394 = vpack.c.b16 %v12294, %v12293
    %v12395 = vpack.c.b16 %v12296, %v12295
    %v12396 = vpack.c.b16 %v12298, %v12297
    %v12397 = vpack.c.b16 %v12300, %v12299
    %v12398 = vpack.c.b16 %v12302, %v12301
    %v12399 = vpack.c.b16 %v12304, %v12303
    %v12400 = vpack.c.b16 %v12306, %v12305
    %v12401 = vpack.c.b16 %v12308, %v12307
    %v12402 = vpack.c.b16 %v12310, %v12309
    %v12403 = vpack.c.b16 %v12312, %v12311
    %v12404 = vpack.c.b16 %v12314, %v12313
    %v12405 = vpack.c.b16 %v12316, %v12315
    %v12406 = vpack.c.b16 %v12318, %v12317
    %v12407 = vpack.c.b16 %v12320, %v12319
    %v12408 = vpack.c.b16 %v12322, %v12321
    %v12409 = vpack.c.b16 %v12324, %v12323
    %v12410 = vpack.c.b16 %v12326, %v12325
    %v12411 = vpack.c.b16 %v12328, %v12327
    %v12412 = vpack.c.b16 %v12330, %v12329
    %v12413 = vpack.c.b16 %v12332, %v12331
    %v12414 = vpack.c.b16 %v12334, %v12333
    %v12415 = vpack.c.b16 %v12336, %v12335
    %v12416 = vpack.c.b16 %v12338, %v12337
    %v12417 = vpack.c.b16 %v12340, %v12339
    %v12418 = vpack.c.b16 %v12342, %v12341
    %v12419 = vpack.c.b16 %v12344, %v12343
    %v12420 = vpack.c.b16 %v12346, %v12345
    %v12421 = vpack.c.b16 %v12348, %v12347
    %v12422 = vpack.c.b16 %v12350, %v12349
    %v12423 = vpack.c.b16 %v12352, %v12351
    %v12424 = vpack.c.b16 %v12354, %v12353
    %v12425 = vpack.c.b16 %v12356, %v12355
    %v12426 = vpack.c.b16 %v12358, %v12357
    %v12427 = vpack.c.b16 %v12360, %v12359
    %v12428 = vpack.c.b16 %v12362, %v12361
    %v12429 = vpack.c.b16 %v12364, %v12363
    %v12430 = vpack.c.b16 %v12366, %v12365
    %12495 = vmatpush.bf16.msra.mxu0 %v12374
    %12496 = vmatpush.bf16.msra.mxu0 %v12373
    %12497 = vmatpush.bf16.msra.mxu0 %v12372
    %12498 = vmatpush.bf16.msra.mxu0 %v12371
    %12499 = vmatpush.bf16.msra.mxu0 %v12370
    %12500 = vmatpush.bf16.msra.mxu0 %v12369
    %12501 = vmatpush.bf16.msra.mxu0 %v12368
    %12502 = vmatpush.bf16.msra.mxu0 %v12367
    %12503 = vmatmul.bf16.gmra.mxu0 %v11971
    %v12504 = vpop.f32.mrf.mxu0
    %v12505 = vadd.f32 %v12109, %v12504
    %v12506 = vpop.f32.mrf.mxu0
    %12507 = vdwg.mxu0
    %12508 = vmatpush.bf16.msra.mxu0 %v12382
    %12509 = vmatpush.bf16.msra.mxu0 %v12381
    %12510 = vmatpush.bf16.msra.mxu0 %v12380
    %12511 = vmatpush.bf16.msra.mxu0 %v12379
    %12512 = vmatpush.bf16.msra.mxu0 %v12378
    %12513 = vmatpush.bf16.msra.mxu0 %v12377
    %12514 = vmatpush.bf16.msra.mxu0 %v12376
    %12515 = vmatpush.bf16.msra.mxu0 %v12375
    %12516 = vmatmul.bf16.gmra.mxu0 %v11972
    %v12517 = vpop.f32.mrf.mxu0
    %v12518 = vadd.f32 %v12505, %v12517
    %v12519 = vpop.f32.mrf.mxu0
    %12520 = vdwg.mxu0
    %12521 = vmatpush.bf16.msra.mxu0 %v12390
    %12522 = vmatpush.bf16.msra.mxu0 %v12389
    %12523 = vmatpush.bf16.msra.mxu0 %v12388
    %12524 = vmatpush.bf16.msra.mxu0 %v12387
    %12525 = vmatpush.bf16.msra.mxu0 %v12386
    %12526 = vmatpush.bf16.msra.mxu0 %v12385
    %12527 = vmatpush.bf16.msra.mxu0 %v12384
    %12528 = vmatpush.bf16.msra.mxu0 %v12383
    %12529 = vmatmul.bf16.gmra.mxu0 %v11973
    %v12530 = vpop.f32.mrf.mxu0
    %v12531 = vadd.f32 %v12518, %v12530
    %v12532 = vpop.f32.mrf.mxu0
    %12533 = vdwg.mxu0
    %12534 = vmatpush.bf16.msra.mxu0 %v12398
    %12535 = vmatpush.bf16.msra.mxu0 %v12397
    %12536 = vmatpush.bf16.msra.mxu0 %v12396
    %12537 = vmatpush.bf16.msra.mxu0 %v12395
    %12538 = vmatpush.bf16.msra.mxu0 %v12394
    %12539 = vmatpush.bf16.msra.mxu0 %v12393
    %12540 = vmatpush.bf16.msra.mxu0 %v12392
    %12541 = vmatpush.bf16.msra.mxu0 %v12391
    %12542 = vmatmul.bf16.gmra.mxu0 %v11974
    %v12543 = vpop.f32.mrf.mxu0
    %v12544 = vadd.f32 %v12531, %v12543
    %v12545 = vpop.f32.mrf.mxu0
    %12546 = vdwg.mxu0
    %12547 = vmatpush.bf16.msra.mxu0 %v12406
    %12548 = vmatpush.bf16.msra.mxu0 %v12405
    %12549 = vmatpush.bf16.msra.mxu0 %v12404
    %12550 = vmatpush.bf16.msra.mxu0 %v12403
    %12551 = vmatpush.bf16.msra.mxu0 %v12402
    %12552 = vmatpush.bf16.msra.mxu0 %v12401
    %12553 = vmatpush.bf16.msra.mxu0 %v12400
    %12554 = vmatpush.bf16.msra.mxu0 %v12399
    %12555 = vmatmul.bf16.gmra.mxu0 %v11975
    %v12556 = vpop.f32.mrf.mxu0
    %v12557 = vadd.f32 %v12544, %v12556
    %v12558 = vpop.f32.mrf.mxu0
    %12559 = vdwg.mxu0
    %12560 = vmatpush.bf16.msra.mxu0 %v12414
    %12561 = vmatpush.bf16.msra.mxu0 %v12413
    %12562 = vmatpush.bf16.msra.mxu0 %v12412
    %12563 = vmatpush.bf16.msra.mxu0 %v12411
    %12564 = vmatpush.bf16.msra.mxu0 %v12410
    %12565 = vmatpush.bf16.msra.mxu0 %v12409
    %12566 = vmatpush.bf16.msra.mxu0 %v12408
    %12567 = vmatpush.bf16.msra.mxu0 %v12407
    %12568 = vmatmul.bf16.gmra.mxu0 %v11976
    %v12569 = vpop.f32.mrf.mxu0
    %v12570 = vadd.f32 %v12557, %v12569
    %v12571 = vpop.f32.mrf.mxu0
    %12572 = vdwg.mxu0
    %12573 = vmatpush.bf16.msra.mxu0 %v12422
    %12574 = vmatpush.bf16.msra.mxu0 %v12421
    %12575 = vmatpush.bf16.msra.mxu0 %v12420
    %12576 = vmatpush.bf16.msra.mxu0 %v12419
    %12577 = vmatpush.bf16.msra.mxu0 %v12418
    %12578 = vmatpush.bf16.msra.mxu0 %v12417
    %12579 = vmatpush.bf16.msra.mxu0 %v12416
    %12580 = vmatpush.bf16.msra.mxu0 %v12415
    %12581 = vmatmul.bf16.gmra.mxu0 %v11977
    %v12582 = vpop.f32.mrf.mxu0
    %v12583 = vadd.f32 %v12570, %v12582
    %v12584 = vpop.f32.mrf.mxu0
    %12585 = vdwg.mxu0
    %12586 = vmatpush.bf16.msra.mxu0 %v12430
    %12587 = vmatpush.bf16.msra.mxu0 %v12429
    %12588 = vmatpush.bf16.msra.mxu0 %v12428
    %12589 = vmatpush.bf16.msra.mxu0 %v12427
    %12590 = vmatpush.bf16.msra.mxu0 %v12426
    %12591 = vmatpush.bf16.msra.mxu0 %v12425
    %12592 = vmatpush.bf16.msra.mxu0 %v12424
    %12593 = vmatpush.bf16.msra.mxu0 %v12423
    %12594 = vmatmul.bf16.gmra.mxu0 %v11978
    %v12595 = vpop.f32.mrf.mxu0
    %v12596 = vadd.f32 %v12583, %v12595
    %v12597 = vpop.f32.mrf.mxu0
    %12598 = vdwg.mxu0
    %12599 = vst [vmem:[%s9] sm:$0xff] %v12596
    // Predicated region
    $region70: #{_mlp_forward.1} parent=1 // pred_check
      _
    $region71: #{_mlp_forward.1} parent=1 // pred_check_branch
      %12601 = sbr.rel (0) target = $region73
    $region72: #{_mlp_forward.1} parent=1 // pred_region
      _
    $region73: #{_mlp_forward.1} parent=1 // pred_fallthru
      _
    // Predicated region
    $region74: #{_mlp_forward.1} parent=1 // pred_check
      _
    $region75: #{_mlp_forward.1} parent=1 // pred_check_branch
      %12603 = sbr.rel (0) target = $region77
    $region76: #{_mlp_forward.1} parent=1 // pred_region
      _
    $region77: #{_mlp_forward.1} parent=1 // pred_fallthru
      _
    %12604 = vsyncpa [#allocation3], 1
    %12605 = vsyncpa [#allocation5], 1
    %12606 = vsyncpa [#allocation8], 1
    %12607 = vsyncpa [#allocation11], 1
    %12608 = vsyncpa [#allocation14], 1

</llo_original>
